<compile_context>
chip_gen: v5e
topology: v5e:2x2
jax: 0.10.0
libtpu: 0.0.40
codegen_flags: <defaults>
</compile_context>

<pallas_src>
import math
import functools

import jax
import jax.numpy as jnp
from jax.experimental import pallas as pl
from jax.experimental.pallas import tpu as pltpu


# ----------------- fused 4 x (Conv(5x1) + BN) per-branch kernel -----------------
def conv_branch_kernel(x_ref, w1_ref, w2_ref, w3_ref, w4_ref,
                       b1_ref, b2_ref, b3_ref, b4_ref, o_ref):
    # x_ref: (T, 1) one (batch, feature) column; w1_ref: (5, 1, 64);
    # w2..w4_ref: (5, 64, 64); b*_ref: (1, 64) (BN already folded);
    # o_ref: (T-16, 64).
    t_in = x_ref.shape[0]
    x = x_ref[...]                                       # (T, 1)

    # Layer 1 (Cin=1): 5-tap broadcast multiply-accumulate on the VPU.
    t_cur = t_in - 4
    acc = jnp.zeros((t_cur, 64), jnp.float32)
    for k in range(5):                                   # static unroll over taps
        acc = acc + x[k:k + t_cur, :] * w1_ref[k]        # (t,1) * (1,64) -> (t,64)
    h = acc + b1_ref[...]                                # bias/BN shift hoisted once

    # Layers 2-4 (Cin=64): per-tap (t,64)x(64,64) MXU matmuls, accumulate in f32.
    for w_ref, b_ref in ((w2_ref, b2_ref), (w3_ref, b3_ref), (w4_ref, b4_ref)):
        t_nxt = t_cur - 4
        acc = jnp.zeros((t_nxt, 64), jnp.float32)
        for k in range(5):
            acc = acc + jnp.dot(h[k:k + t_nxt, :], w_ref[k],
                                preferred_element_type=jnp.float32)
        h = acc + b_ref[...]
        t_cur = t_nxt

    o_ref[...] = h


def conv_branches(x_cols, w1, w2, w3, w4, b1, b2, b3, b4):
    # x_cols: (G, N, T, 1) with G = number of branches run together, N = B*F.
    g, n, t_in, _ = x_cols.shape
    t_out = t_in - 16
    wspec1 = pl.BlockSpec((None, 5, 1, 64), lambda i, j: (i, 0, 0, 0))
    wspec = pl.BlockSpec((None, 5, 64, 64), lambda i, j: (i, 0, 0, 0))
    bspec = pl.BlockSpec((None, 1, 64), lambda i, j: (i, 0, 0))
    return pl.pallas_call(
        conv_branch_kernel,
        out_shape=jax.ShapeDtypeStruct((g, n, t_out, 64), jnp.float32),
        grid=(g, n),
        in_specs=[
            pl.BlockSpec((None, None, t_in, 1), lambda i, j: (i, j, 0, 0)),
            wspec1, wspec, wspec, wspec,
            bspec, bspec, bspec, bspec,
        ],
        out_specs=pl.BlockSpec((None, None, t_out, 64), lambda i, j: (i, j, 0, 0)),
        compiler_params=pltpu.CompilerParams(
            dimension_semantics=("parallel", "parallel")),
    )(x_cols, w1, w2, w3, w4, b1, b2, b3, b4)


# ------------------- fused 2-layer LSTM kernel (per branch) ---------------------
def make_lstm2_kernel(t_len, bsz):
    def kernel(x_ref, wih1_ref, whh1_ref, b1_ref, wih2_ref, whh2_ref, b2_ref,
               o_ref, g_sc, seq_sc):
        # x_ref: (T*B, Din) time-major rows (row t*B+b = timestep t, batch b);
        # wih*: (Din|H, 4H), whh*: (H, 4H), b*: (1, 4H);
        # o_ref: (T*B, H); g_sc: (T*B, 4H) VMEM; seq_sc: (T*B, H) VMEM.
        h_dim = o_ref.shape[1]

        def run_layer(whh_ref, out_ref):
            h = jnp.zeros((bsz, h_dim), jnp.float32)
            c = jnp.zeros((bsz, h_dim), jnp.float32)
            for t in range(t_len):                       # static unroll (T is small)
                row = t * bsz
                gates = (g_sc[row:row + bsz, :]
                         + jnp.dot(h, whh_ref[...],
                                   preferred_element_type=jnp.float32))
                i = jax.nn.sigmoid(gates[:, 0:h_dim])
                f = jax.nn.sigmoid(gates[:, h_dim:2 * h_dim])
                g = jnp.tanh(gates[:, 2 * h_dim:3 * h_dim])
                o = jax.nn.sigmoid(gates[:, 3 * h_dim:4 * h_dim])
                c = f * c + i * g
                h = o * jnp.tanh(c)
                out_ref[row:row + bsz, :] = h
            # TODO(synk): switch to lax.fori_loop for long sequences (compile size).

        # Layer 1: hoisted input projection (single big matmul), then recurrence.
        g_sc[...] = (jnp.dot(x_ref[...], wih1_ref[...],
                             preferred_element_type=jnp.float32) + b1_ref[...])
        run_layer(whh1_ref, seq_sc)
        # Layer 2: input projection from layer-1 hidden sequence, then recurrence.
        g_sc[...] = (jnp.dot(seq_sc[...], wih2_ref[...],
                             preferred_element_type=jnp.float32) + b2_ref[...])
        run_layer(whh2_ref, o_ref)

    return kernel


def lstm_two_layers(x2d, bsz, wih1, whh1, b1, wih2, whh2, b2):
    # x2d: (G, T*B, Din) time-major; returns (G, T*B, H).
    g, tb, d_in = x2d.shape
    t_len = tb // bsz
    h_dim = whh1.shape[1]
    h4 = 4 * h_dim
    return pl.pallas_call(
        make_lstm2_kernel(t_len, bsz),
        out_shape=jax.ShapeDtypeStruct((g, tb, h_dim), jnp.float32),
        grid=(g,),
        in_specs=[
            pl.BlockSpec((None, tb, d_in), lambda i: (i, 0, 0)),
            pl.BlockSpec((None, d_in, h4), lambda i: (i, 0, 0)),
            pl.BlockSpec((None, h_dim, h4), lambda i: (i, 0, 0)),
            pl.BlockSpec((None, 1, h4), lambda i: (i, 0, 0)),
            pl.BlockSpec((None, h_dim, h4), lambda i: (i, 0, 0)),
            pl.BlockSpec((None, h_dim, h4), lambda i: (i, 0, 0)),
            pl.BlockSpec((None, 1, h4), lambda i: (i, 0, 0)),
        ],
        out_specs=pl.BlockSpec((None, tb, h_dim), lambda i: (i, 0, 0)),
        scratch_shapes=[pltpu.VMEM((tb, h4), jnp.float32),
                        pltpu.VMEM((tb, h_dim), jnp.float32)],
        compiler_params=pltpu.CompilerParams(dimension_semantics=("parallel",)),
    )(x2d, wih1, whh1, b1, wih2, whh2, b2)


# ------------------------------ final linear kernel -----------------------------
def linear_kernel(x_ref, w_ref, b_ref, o_ref):
    o_ref[...] = (jnp.dot(x_ref[...], w_ref[...],
                          preferred_element_type=jnp.float32) + b_ref[...])


def linear(x, w_t, b):
    # w_t/b already padded to a lane-dense (multiple of 128) output width.
    # TODO(synk): for the original 125696-wide input, K-tile with a VMEM accumulator.
    bsz = x.shape[0]
    n_out = w_t.shape[1]
    return pl.pallas_call(
        linear_kernel,
        out_shape=jax.ShapeDtypeStruct((bsz, n_out), jnp.float32),
    )(x, w_t, b)


# -------------------------------- parameter init --------------------------------
def xavier_uniform(key, shape, fan_in, fan_out):
    bound = math.sqrt(6.0 / (fan_in + fan_out))
    return jax.random.uniform(key, shape, jnp.float32, -bound, bound)


def orthogonal(key, rows, cols):
    return jax.nn.initializers.orthogonal()(key, (rows, cols), jnp.float32)


def make_branch_params(key, feat):
    keys = jax.random.split(key, 8)
    eps = 1e-5
    conv_w, conv_b = [], []
    c_in = 1
    for li in range(4):
        c_out = 64
        # PyTorch Conv2d weight (Cout, Cin, 5, 1), xavier_uniform_, bias = 0.
        w = xavier_uniform(keys[li], (c_out, c_in, 5, 1),
                           fan_in=c_in * 5, fan_out=c_out * 5)
        w_k = jnp.transpose(w[:, :, :, 0], (2, 1, 0))            # (5, Cin, Cout)
        # BN eval mode (mean=0, var=1, gamma=1, beta=0) folded into weight/bias.
        scale = 1.0 / math.sqrt(1.0 + eps)
        conv_w.append(w_k * scale)
        conv_b.append(jnp.zeros((1, c_out), jnp.float32))
        c_in = 64
    h = 128
    d1 = 64 * feat
    # NOTE: when loading real PyTorch weights, the bias must be b_ih + b_hh.
    lstm1 = (orthogonal(keys[4], 4 * h, d1).T,                   # (Din, 4H)
             orthogonal(keys[5], 4 * h, h).T,                    # (H, 4H)
             jnp.zeros((1, 4 * h), jnp.float32))
    lstm2 = (orthogonal(keys[6], 4 * h, h).T,
             orthogonal(keys[7], 4 * h, h).T,
             jnp.zeros((1, 4 * h), jnp.float32))
    return {"conv_w": conv_w, "conv_b": conv_b, "lstm1": lstm1, "lstm2": lstm2}


def init_params(key, acc_features, gyr_features, classes_num, seq_len):
    k_acc, k_gyr, k_fc = jax.random.split(key, 3)
    acc = make_branch_params(k_acc, acc_features)
    gyr = make_branch_params(k_gyr, gyr_features)
    t_out = seq_len - 16
    in_feats = 2 * 128 * t_out   # original module hard-codes 125696 for its data shape
    w_fc = xavier_uniform(k_fc, (classes_num, in_feats),
                          fan_in=in_feats, fan_out=classes_num).T  # (in, classes)
    b_fc = jnp.zeros((1, classes_num), jnp.float32)
    classes_pad = ((classes_num + 127) // 128) * 128
    w_fc = jnp.pad(w_fc, ((0, 0), (0, classes_pad - classes_num)))
    b_fc = jnp.pad(b_fc, ((0, 0), (0, classes_pad - classes_num)))
    return {"acc": acc, "gyr": gyr, "fc": (w_fc, b_fc, classes_num)}


# ------------------------------------ forward ------------------------------------
def _nchw_to_cols(x_nchw):
    b, c, t, f = x_nchw.shape
    # NCHW -> (B*F, T, C) one column per (batch, feature); C == 1 here.
    return jnp.transpose(x_nchw, (0, 3, 2, 1)).reshape(b * f, t, c)


def _conv_out_to_lstm_in(y, b, f):
    # y: (B*F, T4, 64). Reproduce torch's raw .reshape((B, T4, -1)) on NCHW output.
    t4 = y.shape[1]
    y = jnp.transpose(y.reshape(b, f, t4, 64), (0, 3, 2, 1))   # (B, 64, T4, F) NCHW
    y = y.reshape(b, t4, 64 * f)                               # raw row-major reshape
    return jnp.transpose(y, (1, 0, 2))                         # (T4, B, 64F) time-major


def run_branches(inputs, branch_params):
    # Runs len(inputs) branches in a single conv call + single LSTM call
    # (leading "parallel" branch grid axis -> both TensorCores on v7x).
    g = len(inputs)
    b, _, t, f = inputs[0].shape
    t4 = t - 16

    def stack(fn):
        return jnp.stack([fn(p) for p in branch_params], axis=0)

    x_cols = jnp.stack([_nchw_to_cols(x) for x in inputs], axis=0)   # (G, B*F, T, 1)
    conv_out = conv_branches(
        x_cols,
        stack(lambda p: p["conv_w"][0]), stack(lambda p: p["conv_w"][1]),
        stack(lambda p: p["conv_w"][2]), stack(lambda p: p["conv_w"][3]),
        stack(lambda p: p["conv_b"][0]), stack(lambda p: p["conv_b"][1]),
        stack(lambda p: p["conv_b"][2]), stack(lambda p: p["conv_b"][3]),
    )                                                                # (G, B*F, T4, 64)

    lstm_in = jnp.stack([_conv_out_to_lstm_in(conv_out[i], b, f) for i in range(g)],
                        axis=0)                                      # (G, T4, B, 64F)
    lstm_in = lstm_in.reshape(g, t4 * b, 64 * f)

    out = lstm_two_layers(
        lstm_in, b,
        stack(lambda p: p["lstm1"][0]), stack(lambda p: p["lstm1"][1]),
        stack(lambda p: p["lstm1"][2]),
        stack(lambda p: p["lstm2"][0]), stack(lambda p: p["lstm2"][1]),
        stack(lambda p: p["lstm2"][2]),
    )                                                                # (G, T4*B, 128)

    embeds = []
    for i in range(g):
        o = out[i].reshape(t4, b, 128)
        # torch: permute(0,2,1) then flatten -> (B, 128*T4)
        embeds.append(jnp.transpose(o, (1, 2, 0)).reshape(b, 128 * t4))
    return embeds


def forward(params, input_acc, input_gyr):
    if input_acc.shape == input_gyr.shape:
        embeds = run_branches([input_acc, input_gyr],
                              [params["acc"], params["gyr"]])
    else:
        # Different feature counts -> different LSTM1 input widths; run separately.
        embeds = (run_branches([input_acc], [params["acc"]])
                  + run_branches([input_gyr], [params["gyr"]]))
    x3 = jnp.concatenate(embeds, axis=1)
    w_fc, b_fc, n_classes = params["fc"]
    logits = linear(x3, w_fc, b_fc)[:, :n_classes]
    return {"clipwise_output": logits, "logits": logits, "embedding": x3}


# -------------------------------------- main --------------------------------------
if __name__ == "__main__":
    B, T, F_ACC, F_GYR, CLASSES = 2, 24, 4, 4, 10    # T - 16 = 8 LSTM steps
    key = jax.random.PRNGKey(0)
    k_a, k_g, k_p = jax.random.split(key, 3)
    input_acc = jax.random.normal(k_a, (B, 1, T, F_ACC), jnp.float32)
    input_gyr = jax.random.normal(k_g, (B, 1, T, F_GYR), jnp.float32)
    params = init_params(k_p, F_ACC, F_GYR, CLASSES, T)

    fwd = jax.jit(functools.partial(forward, params))
    out = fwd(input_acc, input_gyr)
    jax.block_until_ready(out)
    assert out["logits"].shape == (B, CLASSES)
    assert out["embedding"].shape == (B, 2 * 128 * (T - 16))
    print("KERNEL_OK")
</pallas_src>

<mosaic_0001>
module attributes {stable_mosaic.version = 11 : i64} {
  func.func @conv_branch_kernel(%arg0: i32, %arg1: i32, %arg2: memref<1x1x24x1xf32, #tpu.memory_space<vmem>>, %arg3: memref<1x5x1x64xf32, #tpu.memory_space<vmem>>, %arg4: memref<1x5x64x64xf32, #tpu.memory_space<vmem>>, %arg5: memref<1x5x64x64xf32, #tpu.memory_space<vmem>>, %arg6: memref<1x5x64x64xf32, #tpu.memory_space<vmem>>, %arg7: memref<1x1x64xf32, #tpu.memory_space<vmem>>, %arg8: memref<1x1x64xf32, #tpu.memory_space<vmem>>, %arg9: memref<1x1x64xf32, #tpu.memory_space<vmem>>, %arg10: memref<1x1x64xf32, #tpu.memory_space<vmem>>, %arg11: memref<1x1x8x64xf32, #tpu.memory_space<vmem>>) attributes {dimension_semantics = [#tpu.dimension_semantics<parallel>, #tpu.dimension_semantics<parallel>], iteration_bounds = array<i64: 2, 8>, scalar_prefetch = 0 : i64, scratch_operands = 0 : i64, tpu.core_type = #tpu.core_type<tc>, window_params = [{transform_indices = @transform_0, window_bounds = array<i64: 1, 1, 24, 1>}, {transform_indices = @transform_1, window_bounds = array<i64: 1, 5, 1, 64>}, {transform_indices = @transform_2, window_bounds = array<i64: 1, 5, 64, 64>}, {transform_indices = @transform_3, window_bounds = array<i64: 1, 5, 64, 64>}, {transform_indices = @transform_4, window_bounds = array<i64: 1, 5, 64, 64>}, {transform_indices = @transform_5, window_bounds = array<i64: 1, 1, 64>}, {transform_indices = @transform_6, window_bounds = array<i64: 1, 1, 64>}, {transform_indices = @transform_7, window_bounds = array<i64: 1, 1, 64>}, {transform_indices = @transform_8, window_bounds = array<i64: 1, 1, 64>}, {transform_indices = @transform_9, window_bounds = array<i64: 1, 1, 8, 64>}]} {
    %c0 = arith.constant 0 : index
    %c0_0 = arith.constant 0 : index
    %c0_1 = arith.constant 0 : index
    %c0_2 = arith.constant 0 : index
    %0 = vector.load %arg2[%c0, %c0_0, %c0_1, %c0_2] : memref<1x1x24x1xf32, #tpu.memory_space<vmem>>, vector<1x1x24x1xf32>
    %1 = vector.shape_cast %0 : vector<1x1x24x1xf32> to vector<24x1xf32>
    %cst = arith.constant 0.000000e+00 : f32
    %2 = vector.broadcast %cst : f32 to vector<20x64xf32>
    %3 = vector.extract_strided_slice %1 {offsets = [0, 0], sizes = [20, 1], strides = [1, 1]} : vector<24x1xf32> to vector<20x1xf32>
    %c0_3 = arith.constant 0 : index
    %c0_4 = arith.constant 0 : index
    %c0_5 = arith.constant 0 : index
    %c0_6 = arith.constant 0 : index
    %4 = vector.load %arg3[%c0_3, %c0_4, %c0_5, %c0_6] : memref<1x5x1x64xf32, #tpu.memory_space<vmem>>, vector<1x1x1x64xf32>
    %5 = vector.shape_cast %4 : vector<1x1x1x64xf32> to vector<1x64xf32>
    %6 = vector.broadcast %3 : vector<20x1xf32> to vector<20x64xf32>
    %7 = vector.broadcast %5 : vector<1x64xf32> to vector<20x64xf32>
    %8 = arith.mulf %6, %7 : vector<20x64xf32>
    %9 = arith.addf %2, %8 : vector<20x64xf32>
    %10 = vector.extract_strided_slice %1 {offsets = [1, 0], sizes = [20, 1], strides = [1, 1]} : vector<24x1xf32> to vector<20x1xf32>
    %c0_7 = arith.constant 0 : index
    %c1 = arith.constant 1 : index
    %c0_8 = arith.constant 0 : index
    %c0_9 = arith.constant 0 : index
    %11 = vector.load %arg3[%c0_7, %c1, %c0_8, %c0_9] : memref<1x5x1x64xf32, #tpu.memory_space<vmem>>, vector<1x1x1x64xf32>
    %12 = vector.shape_cast %11 : vector<1x1x1x64xf32> to vector<1x64xf32>
    %13 = vector.broadcast %10 : vector<20x1xf32> to vector<20x64xf32>
    %14 = vector.broadcast %12 : vector<1x64xf32> to vector<20x64xf32>
    %15 = arith.mulf %13, %14 : vector<20x64xf32>
    %16 = arith.addf %9, %15 : vector<20x64xf32>
    %17 = vector.extract_strided_slice %1 {offsets = [2, 0], sizes = [20, 1], strides = [1, 1]} : vector<24x1xf32> to vector<20x1xf32>
    %c0_10 = arith.constant 0 : index
    %c2 = arith.constant 2 : index
    %c0_11 = arith.constant 0 : index
    %c0_12 = arith.constant 0 : index
    %18 = vector.load %arg3[%c0_10, %c2, %c0_11, %c0_12] : memref<1x5x1x64xf32, #tpu.memory_space<vmem>>, vector<1x1x1x64xf32>
    %19 = vector.shape_cast %18 : vector<1x1x1x64xf32> to vector<1x64xf32>
    %20 = vector.broadcast %17 : vector<20x1xf32> to vector<20x64xf32>
    %21 = vector.broadcast %19 : vector<1x64xf32> to vector<20x64xf32>
    %22 = arith.mulf %20, %21 : vector<20x64xf32>
    %23 = arith.addf %16, %22 : vector<20x64xf32>
    %24 = vector.extract_strided_slice %1 {offsets = [3, 0], sizes = [20, 1], strides = [1, 1]} : vector<24x1xf32> to vector<20x1xf32>
    %c0_13 = arith.constant 0 : index
    %c3 = arith.constant 3 : index
    %c0_14 = arith.constant 0 : index
    %c0_15 = arith.constant 0 : index
    %25 = vector.load %arg3[%c0_13, %c3, %c0_14, %c0_15] : memref<1x5x1x64xf32, #tpu.memory_space<vmem>>, vector<1x1x1x64xf32>
    %26 = vector.shape_cast %25 : vector<1x1x1x64xf32> to vector<1x64xf32>
    %27 = vector.broadcast %24 : vector<20x1xf32> to vector<20x64xf32>
    %28 = vector.broadcast %26 : vector<1x64xf32> to vector<20x64xf32>
    %29 = arith.mulf %27, %28 : vector<20x64xf32>
    %30 = arith.addf %23, %29 : vector<20x64xf32>
    %31 = vector.extract_strided_slice %1 {offsets = [4, 0], sizes = [20, 1], strides = [1, 1]} : vector<24x1xf32> to vector<20x1xf32>
    %c0_16 = arith.constant 0 : index
    %c4 = arith.constant 4 : index
    %c0_17 = arith.constant 0 : index
    %c0_18 = arith.constant 0 : index
    %32 = vector.load %arg3[%c0_16, %c4, %c0_17, %c0_18] : memref<1x5x1x64xf32, #tpu.memory_space<vmem>>, vector<1x1x1x64xf32>
    %33 = vector.shape_cast %32 : vector<1x1x1x64xf32> to vector<1x64xf32>
    %34 = vector.broadcast %31 : vector<20x1xf32> to vector<20x64xf32>
    %35 = vector.broadcast %33 : vector<1x64xf32> to vector<20x64xf32>
    %36 = arith.mulf %34, %35 : vector<20x64xf32>
    %37 = arith.addf %30, %36 : vector<20x64xf32>
    %c0_19 = arith.constant 0 : index
    %c0_20 = arith.constant 0 : index
    %c0_21 = arith.constant 0 : index
    %38 = vector.load %arg7[%c0_19, %c0_20, %c0_21] : memref<1x1x64xf32, #tpu.memory_space<vmem>>, vector<1x1x64xf32>
    %39 = vector.shape_cast %38 : vector<1x1x64xf32> to vector<1x64xf32>
    %40 = vector.broadcast %39 : vector<1x64xf32> to vector<20x64xf32>
    %41 = arith.addf %37, %40 : vector<20x64xf32>
    %cst_22 = arith.constant 0.000000e+00 : f32
    %42 = vector.broadcast %cst_22 : f32 to vector<16x64xf32>
    %43 = vector.extract_strided_slice %41 {offsets = [0, 0], sizes = [16, 64], strides = [1, 1]} : vector<20x64xf32> to vector<16x64xf32>
    %c0_23 = arith.constant 0 : index
    %c0_24 = arith.constant 0 : index
    %c0_25 = arith.constant 0 : index
    %c0_26 = arith.constant 0 : index
    %44 = vector.load %arg4[%c0_23, %c0_24, %c0_25, %c0_26] : memref<1x5x64x64xf32, #tpu.memory_space<vmem>>, vector<1x1x64x64xf32>
    %45 = vector.shape_cast %44 : vector<1x1x64x64xf32> to vector<64x64xf32>
    %cst_27 = arith.constant dense<0.000000e+00> : vector<16x64xf32>
    %46 = tpu.matmul %43, %45, %cst_27 {dimension_numbers = #tpu.dot_dimension_numbers<[1], [0], [0], [1], [0, 0, 1, 1], [], []>} : vector<16x64xf32>, vector<64x64xf32>, vector<16x64xf32> -> vector<16x64xf32>
    %47 = arith.addf %42, %46 : vector<16x64xf32>
    %48 = vector.extract_strided_slice %41 {offsets = [1, 0], sizes = [16, 64], strides = [1, 1]} : vector<20x64xf32> to vector<16x64xf32>
    %c0_28 = arith.constant 0 : index
    %c1_29 = arith.constant 1 : index
    %c0_30 = arith.constant 0 : index
    %c0_31 = arith.constant 0 : index
    %49 = vector.load %arg4[%c0_28, %c1_29, %c0_30, %c0_31] : memref<1x5x64x64xf32, #tpu.memory_space<vmem>>, vector<1x1x64x64xf32>
    %50 = vector.shape_cast %49 : vector<1x1x64x64xf32> to vector<64x64xf32>
    %cst_32 = arith.constant dense<0.000000e+00> : vector<16x64xf32>
    %51 = tpu.matmul %48, %50, %cst_32 {dimension_numbers = #tpu.dot_dimension_numbers<[1], [0], [0], [1], [0, 0, 1, 1], [], []>} : vector<16x64xf32>, vector<64x64xf32>, vector<16x64xf32> -> vector<16x64xf32>
    %52 = arith.addf %47, %51 : vector<16x64xf32>
    %53 = vector.extract_strided_slice %41 {offsets = [2, 0], sizes = [16, 64], strides = [1, 1]} : vector<20x64xf32> to vector<16x64xf32>
    %c0_33 = arith.constant 0 : index
    %c2_34 = arith.constant 2 : index
    %c0_35 = arith.constant 0 : index
    %c0_36 = arith.constant 0 : index
    %54 = vector.load %arg4[%c0_33, %c2_34, %c0_35, %c0_36] : memref<1x5x64x64xf32, #tpu.memory_space<vmem>>, vector<1x1x64x64xf32>
    %55 = vector.shape_cast %54 : vector<1x1x64x64xf32> to vector<64x64xf32>
    %cst_37 = arith.constant dense<0.000000e+00> : vector<16x64xf32>
    %56 = tpu.matmul %53, %55, %cst_37 {dimension_numbers = #tpu.dot_dimension_numbers<[1], [0], [0], [1], [0, 0, 1, 1], [], []>} : vector<16x64xf32>, vector<64x64xf32>, vector<16x64xf32> -> vector<16x64xf32>
    %57 = arith.addf %52, %56 : vector<16x64xf32>
    %58 = vector.extract_strided_slice %41 {offsets = [3, 0], sizes = [16, 64], strides = [1, 1]} : vector<20x64xf32> to vector<16x64xf32>
    %c0_38 = arith.constant 0 : index
    %c3_39 = arith.constant 3 : index
    %c0_40 = arith.constant 0 : index
    %c0_41 = arith.constant 0 : index
    %59 = vector.load %arg4[%c0_38, %c3_39, %c0_40, %c0_41] : memref<1x5x64x64xf32, #tpu.memory_space<vmem>>, vector<1x1x64x64xf32>
    %60 = vector.shape_cast %59 : vector<1x1x64x64xf32> to vector<64x64xf32>
    %cst_42 = arith.constant dense<0.000000e+00> : vector<16x64xf32>
    %61 = tpu.matmul %58, %60, %cst_42 {dimension_numbers = #tpu.dot_dimension_numbers<[1], [0], [0], [1], [0, 0, 1, 1], [], []>} : vector<16x64xf32>, vector<64x64xf32>, vector<16x64xf32> -> vector<16x64xf32>
    %62 = arith.addf %57, %61 : vector<16x64xf32>
    %63 = vector.extract_strided_slice %41 {offsets = [4, 0], sizes = [16, 64], strides = [1, 1]} : vector<20x64xf32> to vector<16x64xf32>
    %c0_43 = arith.constant 0 : index
    %c4_44 = arith.constant 4 : index
    %c0_45 = arith.constant 0 : index
    %c0_46 = arith.constant 0 : index
    %64 = vector.load %arg4[%c0_43, %c4_44, %c0_45, %c0_46] : memref<1x5x64x64xf32, #tpu.memory_space<vmem>>, vector<1x1x64x64xf32>
    %65 = vector.shape_cast %64 : vector<1x1x64x64xf32> to vector<64x64xf32>
    %cst_47 = arith.constant dense<0.000000e+00> : vector<16x64xf32>
    %66 = tpu.matmul %63, %65, %cst_47 {dimension_numbers = #tpu.dot_dimension_numbers<[1], [0], [0], [1], [0, 0, 1, 1], [], []>} : vector<16x64xf32>, vector<64x64xf32>, vector<16x64xf32> -> vector<16x64xf32>
    %67 = arith.addf %62, %66 : vector<16x64xf32>
    %c0_48 = arith.constant 0 : index
    %c0_49 = arith.constant 0 : index
    %c0_50 = arith.constant 0 : index
    %68 = vector.load %arg8[%c0_48, %c0_49, %c0_50] : memref<1x1x64xf32, #tpu.memory_space<vmem>>, vector<1x1x64xf32>
    %69 = vector.shape_cast %68 : vector<1x1x64xf32> to vector<1x64xf32>
    %70 = vector.broadcast %69 : vector<1x64xf32> to vector<16x64xf32>
    %71 = arith.addf %67, %70 : vector<16x64xf32>
    %cst_51 = arith.constant 0.000000e+00 : f32
    %72 = vector.broadcast %cst_51 : f32 to vector<12x64xf32>
    %73 = vector.extract_strided_slice %71 {offsets = [0, 0], sizes = [12, 64], strides = [1, 1]} : vector<16x64xf32> to vector<12x64xf32>
    %c0_52 = arith.constant 0 : index
    %c0_53 = arith.constant 0 : index
    %c0_54 = arith.constant 0 : index
    %c0_55 = arith.constant 0 : index
    %74 = vector.load %arg5[%c0_52, %c0_53, %c0_54, %c0_55] : memref<1x5x64x64xf32, #tpu.memory_space<vmem>>, vector<1x1x64x64xf32>
    %75 = vector.shape_cast %74 : vector<1x1x64x64xf32> to vector<64x64xf32>
    %cst_56 = arith.constant dense<0.000000e+00> : vector<12x64xf32>
    %76 = tpu.matmul %73, %75, %cst_56 {dimension_numbers = #tpu.dot_dimension_numbers<[1], [0], [0], [1], [0, 0, 1, 1], [], []>} : vector<12x64xf32>, vector<64x64xf32>, vector<12x64xf32> -> vector<12x64xf32>
    %77 = arith.addf %72, %76 : vector<12x64xf32>
    %78 = vector.extract_strided_slice %71 {offsets = [1, 0], sizes = [12, 64], strides = [1, 1]} : vector<16x64xf32> to vector<12x64xf32>
    %c0_57 = arith.constant 0 : index
    %c1_58 = arith.constant 1 : index
    %c0_59 = arith.constant 0 : index
    %c0_60 = arith.constant 0 : index
    %79 = vector.load %arg5[%c0_57, %c1_58, %c0_59, %c0_60] : memref<1x5x64x64xf32, #tpu.memory_space<vmem>>, vector<1x1x64x64xf32>
    %80 = vector.shape_cast %79 : vector<1x1x64x64xf32> to vector<64x64xf32>
    %cst_61 = arith.constant dense<0.000000e+00> : vector<12x64xf32>
    %81 = tpu.matmul %78, %80, %cst_61 {dimension_numbers = #tpu.dot_dimension_numbers<[1], [0], [0], [1], [0, 0, 1, 1], [], []>} : vector<12x64xf32>, vector<64x64xf32>, vector<12x64xf32> -> vector<12x64xf32>
    %82 = arith.addf %77, %81 : vector<12x64xf32>
    %83 = vector.extract_strided_slice %71 {offsets = [2, 0], sizes = [12, 64], strides = [1, 1]} : vector<16x64xf32> to vector<12x64xf32>
    %c0_62 = arith.constant 0 : index
    %c2_63 = arith.constant 2 : index
    %c0_64 = arith.constant 0 : index
    %c0_65 = arith.constant 0 : index
    %84 = vector.load %arg5[%c0_62, %c2_63, %c0_64, %c0_65] : memref<1x5x64x64xf32, #tpu.memory_space<vmem>>, vector<1x1x64x64xf32>
    %85 = vector.shape_cast %84 : vector<1x1x64x64xf32> to vector<64x64xf32>
    %cst_66 = arith.constant dense<0.000000e+00> : vector<12x64xf32>
    %86 = tpu.matmul %83, %85, %cst_66 {dimension_numbers = #tpu.dot_dimension_numbers<[1], [0], [0], [1], [0, 0, 1, 1], [], []>} : vector<12x64xf32>, vector<64x64xf32>, vector<12x64xf32> -> vector<12x64xf32>
    %87 = arith.addf %82, %86 : vector<12x64xf32>
    %88 = vector.extract_strided_slice %71 {offsets = [3, 0], sizes = [12, 64], strides = [1, 1]} : vector<16x64xf32> to vector<12x64xf32>
    %c0_67 = arith.constant 0 : index
    %c3_68 = arith.constant 3 : index
    %c0_69 = arith.constant 0 : index
    %c0_70 = arith.constant 0 : index
    %89 = vector.load %arg5[%c0_67, %c3_68, %c0_69, %c0_70] : memref<1x5x64x64xf32, #tpu.memory_space<vmem>>, vector<1x1x64x64xf32>
    %90 = vector.shape_cast %89 : vector<1x1x64x64xf32> to vector<64x64xf32>
    %cst_71 = arith.constant dense<0.000000e+00> : vector<12x64xf32>
    %91 = tpu.matmul %88, %90, %cst_71 {dimension_numbers = #tpu.dot_dimension_numbers<[1], [0], [0], [1], [0, 0, 1, 1], [], []>} : vector<12x64xf32>, vector<64x64xf32>, vector<12x64xf32> -> vector<12x64xf32>
    %92 = arith.addf %87, %91 : vector<12x64xf32>
    %93 = vector.extract_strided_slice %71 {offsets = [4, 0], sizes = [12, 64], strides = [1, 1]} : vector<16x64xf32> to vector<12x64xf32>
    %c0_72 = arith.constant 0 : index
    %c4_73 = arith.constant 4 : index
    %c0_74 = arith.constant 0 : index
    %c0_75 = arith.constant 0 : index
    %94 = vector.load %arg5[%c0_72, %c4_73, %c0_74, %c0_75] : memref<1x5x64x64xf32, #tpu.memory_space<vmem>>, vector<1x1x64x64xf32>
    %95 = vector.shape_cast %94 : vector<1x1x64x64xf32> to vector<64x64xf32>
    %cst_76 = arith.constant dense<0.000000e+00> : vector<12x64xf32>
    %96 = tpu.matmul %93, %95, %cst_76 {dimension_numbers = #tpu.dot_dimension_numbers<[1], [0], [0], [1], [0, 0, 1, 1], [], []>} : vector<12x64xf32>, vector<64x64xf32>, vector<12x64xf32> -> vector<12x64xf32>
    %97 = arith.addf %92, %96 : vector<12x64xf32>
    %c0_77 = arith.constant 0 : index
    %c0_78 = arith.constant 0 : index
    %c0_79 = arith.constant 0 : index
    %98 = vector.load %arg9[%c0_77, %c0_78, %c0_79] : memref<1x1x64xf32, #tpu.memory_space<vmem>>, vector<1x1x64xf32>
    %99 = vector.shape_cast %98 : vector<1x1x64xf32> to vector<1x64xf32>
    %100 = vector.broadcast %99 : vector<1x64xf32> to vector<12x64xf32>
    %101 = arith.addf %97, %100 : vector<12x64xf32>
    %cst_80 = arith.constant 0.000000e+00 : f32
    %102 = vector.broadcast %cst_80 : f32 to vector<8x64xf32>
    %103 = vector.extract_strided_slice %101 {offsets = [0, 0], sizes = [8, 64], strides = [1, 1]} : vector<12x64xf32> to vector<8x64xf32>
    %c0_81 = arith.constant 0 : index
    %c0_82 = arith.constant 0 : index
    %c0_83 = arith.constant 0 : index
    %c0_84 = arith.constant 0 : index
    %104 = vector.load %arg6[%c0_81, %c0_82, %c0_83, %c0_84] : memref<1x5x64x64xf32, #tpu.memory_space<vmem>>, vector<1x1x64x64xf32>
    %105 = vector.shape_cast %104 : vector<1x1x64x64xf32> to vector<64x64xf32>
    %cst_85 = arith.constant dense<0.000000e+00> : vector<8x64xf32>
    %106 = tpu.matmul %103, %105, %cst_85 {dimension_numbers = #tpu.dot_dimension_numbers<[1], [0], [0], [1], [0, 0, 1, 1], [], []>} : vector<8x64xf32>, vector<64x64xf32>, vector<8x64xf32> -> vector<8x64xf32>
    %107 = arith.addf %102, %106 : vector<8x64xf32>
    %108 = vector.extract_strided_slice %101 {offsets = [1, 0], sizes = [8, 64], strides = [1, 1]} : vector<12x64xf32> to vector<8x64xf32>
    %c0_86 = arith.constant 0 : index
    %c1_87 = arith.constant 1 : index
    %c0_88 = arith.constant 0 : index
    %c0_89 = arith.constant 0 : index
    %109 = vector.load %arg6[%c0_86, %c1_87, %c0_88, %c0_89] : memref<1x5x64x64xf32, #tpu.memory_space<vmem>>, vector<1x1x64x64xf32>
    %110 = vector.shape_cast %109 : vector<1x1x64x64xf32> to vector<64x64xf32>
    %cst_90 = arith.constant dense<0.000000e+00> : vector<8x64xf32>
    %111 = tpu.matmul %108, %110, %cst_90 {dimension_numbers = #tpu.dot_dimension_numbers<[1], [0], [0], [1], [0, 0, 1, 1], [], []>} : vector<8x64xf32>, vector<64x64xf32>, vector<8x64xf32> -> vector<8x64xf32>
    %112 = arith.addf %107, %111 : vector<8x64xf32>
    %113 = vector.extract_strided_slice %101 {offsets = [2, 0], sizes = [8, 64], strides = [1, 1]} : vector<12x64xf32> to vector<8x64xf32>
    %c0_91 = arith.constant 0 : index
    %c2_92 = arith.constant 2 : index
    %c0_93 = arith.constant 0 : index
    %c0_94 = arith.constant 0 : index
    %114 = vector.load %arg6[%c0_91, %c2_92, %c0_93, %c0_94] : memref<1x5x64x64xf32, #tpu.memory_space<vmem>>, vector<1x1x64x64xf32>
    %115 = vector.shape_cast %114 : vector<1x1x64x64xf32> to vector<64x64xf32>
    %cst_95 = arith.constant dense<0.000000e+00> : vector<8x64xf32>
    %116 = tpu.matmul %113, %115, %cst_95 {dimension_numbers = #tpu.dot_dimension_numbers<[1], [0], [0], [1], [0, 0, 1, 1], [], []>} : vector<8x64xf32>, vector<64x64xf32>, vector<8x64xf32> -> vector<8x64xf32>
    %117 = arith.addf %112, %116 : vector<8x64xf32>
    %118 = vector.extract_strided_slice %101 {offsets = [3, 0], sizes = [8, 64], strides = [1, 1]} : vector<12x64xf32> to vector<8x64xf32>
    %c0_96 = arith.constant 0 : index
    %c3_97 = arith.constant 3 : index
    %c0_98 = arith.constant 0 : index
    %c0_99 = arith.constant 0 : index
    %119 = vector.load %arg6[%c0_96, %c3_97, %c0_98, %c0_99] : memref<1x5x64x64xf32, #tpu.memory_space<vmem>>, vector<1x1x64x64xf32>
    %120 = vector.shape_cast %119 : vector<1x1x64x64xf32> to vector<64x64xf32>
    %cst_100 = arith.constant dense<0.000000e+00> : vector<8x64xf32>
    %121 = tpu.matmul %118, %120, %cst_100 {dimension_numbers = #tpu.dot_dimension_numbers<[1], [0], [0], [1], [0, 0, 1, 1], [], []>} : vector<8x64xf32>, vector<64x64xf32>, vector<8x64xf32> -> vector<8x64xf32>
    %122 = arith.addf %117, %121 : vector<8x64xf32>
    %123 = vector.extract_strided_slice %101 {offsets = [4, 0], sizes = [8, 64], strides = [1, 1]} : vector<12x64xf32> to vector<8x64xf32>
    %c0_101 = arith.constant 0 : index
    %c4_102 = arith.constant 4 : index
    %c0_103 = arith.constant 0 : index
    %c0_104 = arith.constant 0 : index
    %124 = vector.load %arg6[%c0_101, %c4_102, %c0_103, %c0_104] : memref<1x5x64x64xf32, #tpu.memory_space<vmem>>, vector<1x1x64x64xf32>
    %125 = vector.shape_cast %124 : vector<1x1x64x64xf32> to vector<64x64xf32>
    %cst_105 = arith.constant dense<0.000000e+00> : vector<8x64xf32>
    %126 = tpu.matmul %123, %125, %cst_105 {dimension_numbers = #tpu.dot_dimension_numbers<[1], [0], [0], [1], [0, 0, 1, 1], [], []>} : vector<8x64xf32>, vector<64x64xf32>, vector<8x64xf32> -> vector<8x64xf32>
    %127 = arith.addf %122, %126 : vector<8x64xf32>
    %c0_106 = arith.constant 0 : index
    %c0_107 = arith.constant 0 : index
    %c0_108 = arith.constant 0 : index
    %128 = vector.load %arg10[%c0_106, %c0_107, %c0_108] : memref<1x1x64xf32, #tpu.memory_space<vmem>>, vector<1x1x64xf32>
    %129 = vector.shape_cast %128 : vector<1x1x64xf32> to vector<1x64xf32>
    %130 = vector.broadcast %129 : vector<1x64xf32> to vector<8x64xf32>
    %131 = arith.addf %127, %130 : vector<8x64xf32>
    %c0_109 = arith.constant 0 : index
    %c0_110 = arith.constant 0 : index
    %c0_111 = arith.constant 0 : index
    %c0_112 = arith.constant 0 : index
    %132 = vector.load %arg11[%c0_109, %c0_110, %c0_111, %c0_112] : memref<1x1x8x64xf32, #tpu.memory_space<vmem>>, vector<1x1x8x64xf32>
    %133 = vector.shape_cast %132 : vector<1x1x8x64xf32> to vector<8x64xf32>
    %134 = vector.shape_cast %131 : vector<8x64xf32> to vector<1x1x8x64xf32>
    tpu.vector_store %arg11[%c0_109, %c0_110, %c0_111, %c0_112], %134 {strides = array<i32>} : memref<1x1x8x64xf32, #tpu.memory_space<vmem>>, vector<1x1x8x64xf32>,
    return
  }
  func.func @transform_0(%arg0: i32, %arg1: i32) -> (i32, i32, i32, i32) {
    %c0_i32 = arith.constant 0 : i32
    %c0_i32_0 = arith.constant 0 : i32
    %c0_i32_1 = arith.constant 0 : i32
    return %arg0, %arg1, %c0_i32, %c0_i32_0 : i32, i32, i32, i32
  }
  func.func @transform_1(%arg0: i32, %arg1: i32) -> (i32, i32, i32, i32) {
    %c0_i32 = arith.constant 0 : i32
    %c0_i32_0 = arith.constant 0 : i32
    %c0_i32_1 = arith.constant 0 : i32
    %c0_i32_2 = arith.constant 0 : i32
    return %arg0, %c0_i32, %c0_i32_0, %c0_i32_1 : i32, i32, i32, i32
  }
  func.func @transform_2(%arg0: i32, %arg1: i32) -> (i32, i32, i32, i32) {
    %c0_i32 = arith.constant 0 : i32
    %c0_i32_0 = arith.constant 0 : i32
    %c0_i32_1 = arith.constant 0 : i32
    %c0_i32_2 = arith.constant 0 : i32
    return %arg0, %c0_i32, %c0_i32_0, %c0_i32_1 : i32, i32, i32, i32
  }
  func.func @transform_3(%arg0: i32, %arg1: i32) -> (i32, i32, i32, i32) {
    %c0_i32 = arith.constant 0 : i32
    %c0_i32_0 = arith.constant 0 : i32
    %c0_i32_1 = arith.constant 0 : i32
    %c0_i32_2 = arith.constant 0 : i32
    return %arg0, %c0_i32, %c0_i32_0, %c0_i32_1 : i32, i32, i32, i32
  }
  func.func @transform_4(%arg0: i32, %arg1: i32) -> (i32, i32, i32, i32) {
    %c0_i32 = arith.constant 0 : i32
    %c0_i32_0 = arith.constant 0 : i32
    %c0_i32_1 = arith.constant 0 : i32
    %c0_i32_2 = arith.constant 0 : i32
    return %arg0, %c0_i32, %c0_i32_0, %c0_i32_1 : i32, i32, i32, i32
  }
  func.func @transform_5(%arg0: i32, %arg1: i32) -> (i32, i32, i32) {
    %c0_i32 = arith.constant 0 : i32
    %c0_i32_0 = arith.constant 0 : i32
    %c0_i32_1 = arith.constant 0 : i32
    return %arg0, %c0_i32, %c0_i32_0 : i32, i32, i32
  }
  func.func @transform_6(%arg0: i32, %arg1: i32) -> (i32, i32, i32) {
    %c0_i32 = arith.constant 0 : i32
    %c0_i32_0 = arith.constant 0 : i32
    %c0_i32_1 = arith.constant 0 : i32
    return %arg0, %c0_i32, %c0_i32_0 : i32, i32, i32
  }
  func.func @transform_7(%arg0: i32, %arg1: i32) -> (i32, i32, i32) {
    %c0_i32 = arith.constant 0 : i32
    %c0_i32_0 = arith.constant 0 : i32
    %c0_i32_1 = arith.constant 0 : i32
    return %arg0, %c0_i32, %c0_i32_0 : i32, i32, i32
  }
  func.func @transform_8(%arg0: i32, %arg1: i32) -> (i32, i32, i32) {
    %c0_i32 = arith.constant 0 : i32
    %c0_i32_0 = arith.constant 0 : i32
    %c0_i32_1 = arith.constant 0 : i32
    return %arg0, %c0_i32, %c0_i32_0 : i32, i32, i32
  }
  func.func @transform_9(%arg0: i32, %arg1: i32) -> (i32, i32, i32, i32) {
    %c0_i32 = arith.constant 0 : i32
    %c0_i32_0 = arith.constant 0 : i32
    %c0_i32_1 = arith.constant 0 : i32
    return %arg0, %arg1, %c0_i32, %c0_i32_0 : i32, i32, i32, i32
  }
}

module attributes {stable_mosaic.version = 11 : i64} {
  func.func @kernel(%arg0: i32, %arg1: memref<1x16x256xf32, #tpu.memory_space<vmem>>, %arg2: memref<1x256x512xf32, #tpu.memory_space<vmem>>, %arg3: memref<1x128x512xf32, #tpu.memory_space<vmem>>, %arg4: memref<1x1x512xf32, #tpu.memory_space<vmem>>, %arg5: memref<1x128x512xf32, #tpu.memory_space<vmem>>, %arg6: memref<1x128x512xf32, #tpu.memory_space<vmem>>, %arg7: memref<1x1x512xf32, #tpu.memory_space<vmem>>, %arg8: memref<1x16x128xf32, #tpu.memory_space<vmem>>, %arg9: memref<16x512xf32, #tpu.memory_space<vmem>>, %arg10: memref<16x128xf32, #tpu.memory_space<vmem>>) attributes {dimension_semantics = [#tpu.dimension_semantics<parallel>], iteration_bounds = array<i64: 2>, scalar_prefetch = 0 : i64, scratch_operands = 2 : i64, tpu.core_type = #tpu.core_type<tc>, window_params = [{transform_indices = @transform_0, window_bounds = array<i64: 1, 16, 256>}, {transform_indices = @transform_1, window_bounds = array<i64: 1, 256, 512>}, {transform_indices = @transform_2, window_bounds = array<i64: 1, 128, 512>}, {transform_indices = @transform_3, window_bounds = array<i64: 1, 1, 512>}, {transform_indices = @transform_4, window_bounds = array<i64: 1, 128, 512>}, {transform_indices = @transform_5, window_bounds = array<i64: 1, 128, 512>}, {transform_indices = @transform_6, window_bounds = array<i64: 1, 1, 512>}, {transform_indices = @transform_7, window_bounds = array<i64: 1, 16, 128>}]} {
    %c0 = arith.constant 0 : index
    %c0_0 = arith.constant 0 : index
    %c0_1 = arith.constant 0 : index
    %0 = vector.load %arg1[%c0, %c0_0, %c0_1] : memref<1x16x256xf32, #tpu.memory_space<vmem>>, vector<1x16x256xf32>
    %1 = vector.shape_cast %0 : vector<1x16x256xf32> to vector<16x256xf32>
    %c0_2 = arith.constant 0 : index
    %c0_3 = arith.constant 0 : index
    %c0_4 = arith.constant 0 : index
    %2 = vector.load %arg2[%c0_2, %c0_3, %c0_4] : memref<1x256x512xf32, #tpu.memory_space<vmem>>, vector<1x256x512xf32>
    %3 = vector.shape_cast %2 : vector<1x256x512xf32> to vector<256x512xf32>
    %cst = arith.constant dense<0.000000e+00> : vector<16x512xf32>
    %4 = tpu.matmul %1, %3, %cst {dimension_numbers = #tpu.dot_dimension_numbers<[1], [0], [0], [1], [0, 0, 1, 1], [], []>} : vector<16x256xf32>, vector<256x512xf32>, vector<16x512xf32> -> vector<16x512xf32>
    %c0_5 = arith.constant 0 : index
    %c0_6 = arith.constant 0 : index
    %c0_7 = arith.constant 0 : index
    %5 = vector.load %arg4[%c0_5, %c0_6, %c0_7] : memref<1x1x512xf32, #tpu.memory_space<vmem>>, vector<1x1x512xf32>
    %6 = vector.shape_cast %5 : vector<1x1x512xf32> to vector<1x512xf32>
    %7 = vector.broadcast %6 : vector<1x512xf32> to vector<16x512xf32>
    %8 = arith.addf %4, %7 : vector<16x512xf32>
    %c0_8 = arith.constant 0 : index
    %c0_9 = arith.constant 0 : index
    %9 = vector.load %arg9[%c0_8, %c0_9] : memref<16x512xf32, #tpu.memory_space<vmem>>, vector<16x512xf32>
    tpu.vector_store %arg9[%c0_8, %c0_9], %8 {strides = array<i32>} : memref<16x512xf32, #tpu.memory_space<vmem>>, vector<16x512xf32>,
    %cst_10 = arith.constant 0.000000e+00 : f32
    %10 = vector.broadcast %cst_10 : f32 to vector<2x128xf32>
    %cst_11 = arith.constant 0.000000e+00 : f32
    %11 = vector.broadcast %cst_11 : f32 to vector<2x128xf32>
    %c0_12 = arith.constant 0 : index
    %c0_13 = arith.constant 0 : index
    %12 = vector.load %arg9[%c0_12, %c0_13] : memref<16x512xf32, #tpu.memory_space<vmem>>, vector<2x512xf32>
    %c0_14 = arith.constant 0 : index
    %c0_15 = arith.constant 0 : index
    %c0_16 = arith.constant 0 : index
    %13 = vector.load %arg3[%c0_14, %c0_15, %c0_16] : memref<1x128x512xf32, #tpu.memory_space<vmem>>, vector<1x128x512xf32>
    %14 = vector.shape_cast %13 : vector<1x128x512xf32> to vector<128x512xf32>
    %cst_17 = arith.constant dense<0.000000e+00> : vector<2x512xf32>
    %15 = tpu.matmul %10, %14, %cst_17 {dimension_numbers = #tpu.dot_dimension_numbers<[1], [0], [0], [1], [0, 0, 1, 1], [], []>} : vector<2x128xf32>, vector<128x512xf32>, vector<2x512xf32> -> vector<2x512xf32>
    %16 = arith.addf %12, %15 : vector<2x512xf32>
    %17 = vector.extract_strided_slice %16 {offsets = [0, 0], sizes = [2, 128], strides = [1, 1]} : vector<2x512xf32> to vector<2x128xf32>
    %18 = arith.negf %17 : vector<2x128xf32>
    %19 = math.exp %18 : vector<2x128xf32>
    %cst_18 = arith.constant 1.000000e+00 : f32
    %20 = vector.broadcast %cst_18 : f32 to vector<2x128xf32>
    %21 = arith.addf %20, %19 : vector<2x128xf32>
    %22 = arith.divf %20, %21 : vector<2x128xf32>
    %23 = vector.extract_strided_slice %16 {offsets = [0, 128], sizes = [2, 128], strides = [1, 1]} : vector<2x512xf32> to vector<2x128xf32>
    %24 = arith.negf %23 : vector<2x128xf32>
    %25 = math.exp %24 : vector<2x128xf32>
    %cst_19 = arith.constant 1.000000e+00 : f32
    %26 = vector.broadcast %cst_19 : f32 to vector<2x128xf32>
    %27 = arith.addf %26, %25 : vector<2x128xf32>
    %28 = arith.divf %26, %27 : vector<2x128xf32>
    %29 = vector.extract_strided_slice %16 {offsets = [0, 256], sizes = [2, 128], strides = [1, 1]} : vector<2x512xf32> to vector<2x128xf32>
    %30 = math.tanh %29 : vector<2x128xf32>
    %31 = vector.extract_strided_slice %16 {offsets = [0, 384], sizes = [2, 128], strides = [1, 1]} : vector<2x512xf32> to vector<2x128xf32>
    %32 = arith.negf %31 : vector<2x128xf32>
    %33 = math.exp %32 : vector<2x128xf32>
    %cst_20 = arith.constant 1.000000e+00 : f32
    %34 = vector.broadcast %cst_20 : f32 to vector<2x128xf32>
    %35 = arith.addf %34, %33 : vector<2x128xf32>
    %36 = arith.divf %34, %35 : vector<2x128xf32>
    %37 = arith.mulf %28, %11 : vector<2x128xf32>
    %38 = arith.mulf %22, %30 : vector<2x128xf32>
    %39 = arith.addf %37, %38 : vector<2x128xf32>
    %40 = math.tanh %39 : vector<2x128xf32>
    %41 = arith.mulf %36, %40 : vector<2x128xf32>
    %c0_21 = arith.constant 0 : index
    %c0_22 = arith.constant 0 : index
    %42 = vector.load %arg10[%c0_21, %c0_22] : memref<16x128xf32, #tpu.memory_space<vmem>>, vector<2x128xf32>
    tpu.vector_store %arg10[%c0_21, %c0_22], %41 {strides = array<i32>} : memref<16x128xf32, #tpu.memory_space<vmem>>, vector<2x128xf32>,
    %c2 = arith.constant 2 : index
    %c0_23 = arith.constant 0 : index
    %43 = vector.load %arg9[%c2, %c0_23] : memref<16x512xf32, #tpu.memory_space<vmem>>, vector<2x512xf32>
    %c0_24 = arith.constant 0 : index
    %c0_25 = arith.constant 0 : index
    %c0_26 = arith.constant 0 : index
    %44 = vector.load %arg3[%c0_24, %c0_25, %c0_26] : memref<1x128x512xf32, #tpu.memory_space<vmem>>, vector<1x128x512xf32>
    %45 = vector.shape_cast %44 : vector<1x128x512xf32> to vector<128x512xf32>
    %cst_27 = arith.constant dense<0.000000e+00> : vector<2x512xf32>
    %46 = tpu.matmul %41, %45, %cst_27 {dimension_numbers = #tpu.dot_dimension_numbers<[1], [0], [0], [1], [0, 0, 1, 1], [], []>} : vector<2x128xf32>, vector<128x512xf32>, vector<2x512xf32> -> vector<2x512xf32>
    %47 = arith.addf %43, %46 : vector<2x512xf32>
    %48 = vector.extract_strided_slice %47 {offsets = [0, 0], sizes = [2, 128], strides = [1, 1]} : vector<2x512xf32> to vector<2x128xf32>
    %49 = arith.negf %48 : vector<2x128xf32>
    %50 = math.exp %49 : vector<2x128xf32>
    %cst_28 = arith.constant 1.000000e+00 : f32
    %51 = vector.broadcast %cst_28 : f32 to vector<2x128xf32>
    %52 = arith.addf %51, %50 : vector<2x128xf32>
    %53 = arith.divf %51, %52 : vector<2x128xf32>
    %54 = vector.extract_strided_slice %47 {offsets = [0, 128], sizes = [2, 128], strides = [1, 1]} : vector<2x512xf32> to vector<2x128xf32>
    %55 = arith.negf %54 : vector<2x128xf32>
    %56 = math.exp %55 : vector<2x128xf32>
    %cst_29 = arith.constant 1.000000e+00 : f32
    %57 = vector.broadcast %cst_29 : f32 to vector<2x128xf32>
    %58 = arith.addf %57, %56 : vector<2x128xf32>
    %59 = arith.divf %57, %58 : vector<2x128xf32>
    %60 = vector.extract_strided_slice %47 {offsets = [0, 256], sizes = [2, 128], strides = [1, 1]} : vector<2x512xf32> to vector<2x128xf32>
    %61 = math.tanh %60 : vector<2x128xf32>
    %62 = vector.extract_strided_slice %47 {offsets = [0, 384], sizes = [2, 128], strides = [1, 1]} : vector<2x512xf32> to vector<2x128xf32>
    %63 = arith.negf %62 : vector<2x128xf32>
    %64 = math.exp %63 : vector<2x128xf32>
    %cst_30 = arith.constant 1.000000e+00 : f32
    %65 = vector.broadcast %cst_30 : f32 to vector<2x128xf32>
    %66 = arith.addf %65, %64 : vector<2x128xf32>
    %67 = arith.divf %65, %66 : vector<2x128xf32>
    %68 = arith.mulf %59, %39 : vector<2x128xf32>
    %69 = arith.mulf %53, %61 : vector<2x128xf32>
    %70 = arith.addf %68, %69 : vector<2x128xf32>
    %71 = math.tanh %70 : vector<2x128xf32>
    %72 = arith.mulf %67, %71 : vector<2x128xf32>
    %c2_31 = arith.constant 2 : index
    %c0_32 = arith.constant 0 : index
    %73 = vector.load %arg10[%c2_31, %c0_32] : memref<16x128xf32, #tpu.memory_space<vmem>>, vector<2x128xf32>
    tpu.vector_store %arg10[%c2_31, %c0_32], %72 {strides = array<i32>} : memref<16x128xf32, #tpu.memory_space<vmem>>, vector<2x128xf32>,
    %c4 = arith.constant 4 : index
    %c0_33 = arith.constant 0 : index
    %74 = vector.load %arg9[%c4, %c0_33] : memref<16x512xf32, #tpu.memory_space<vmem>>, vector<2x512xf32>
    %c0_34 = arith.constant 0 : index
    %c0_35 = arith.constant 0 : index
    %c0_36 = arith.constant 0 : index
    %75 = vector.load %arg3[%c0_34, %c0_35, %c0_36] : memref<1x128x512xf32, #tpu.memory_space<vmem>>, vector<1x128x512xf32>
    %76 = vector.shape_cast %75 : vector<1x128x512xf32> to vector<128x512xf32>
    %cst_37 = arith.constant dense<0.000000e+00> : vector<2x512xf32>
    %77 = tpu.matmul %72, %76, %cst_37 {dimension_numbers = #tpu.dot_dimension_numbers<[1], [0], [0], [1], [0, 0, 1, 1], [], []>} : vector<2x128xf32>, vector<128x512xf32>, vector<2x512xf32> -> vector<2x512xf32>
    %78 = arith.addf %74, %77 : vector<2x512xf32>
    %79 = vector.extract_strided_slice %78 {offsets = [0, 0], sizes = [2, 128], strides = [1, 1]} : vector<2x512xf32> to vector<2x128xf32>
    %80 = arith.negf %79 : vector<2x128xf32>
    %81 = math.exp %80 : vector<2x128xf32>
    %cst_38 = arith.constant 1.000000e+00 : f32
    %82 = vector.broadcast %cst_38 : f32 to vector<2x128xf32>
    %83 = arith.addf %82, %81 : vector<2x128xf32>
    %84 = arith.divf %82, %83 : vector<2x128xf32>
    %85 = vector.extract_strided_slice %78 {offsets = [0, 128], sizes = [2, 128], strides = [1, 1]} : vector<2x512xf32> to vector<2x128xf32>
    %86 = arith.negf %85 : vector<2x128xf32>
    %87 = math.exp %86 : vector<2x128xf32>
    %cst_39 = arith.constant 1.000000e+00 : f32
    %88 = vector.broadcast %cst_39 : f32 to vector<2x128xf32>
    %89 = arith.addf %88, %87 : vector<2x128xf32>
    %90 = arith.divf %88, %89 : vector<2x128xf32>
    %91 = vector.extract_strided_slice %78 {offsets = [0, 256], sizes = [2, 128], strides = [1, 1]} : vector<2x512xf32> to vector<2x128xf32>
    %92 = math.tanh %91 : vector<2x128xf32>
    %93 = vector.extract_strided_slice %78 {offsets = [0, 384], sizes = [2, 128], strides = [1, 1]} : vector<2x512xf32> to vector<2x128xf32>
    %94 = arith.negf %93 : vector<2x128xf32>
    %95 = math.exp %94 : vector<2x128xf32>
    %cst_40 = arith.constant 1.000000e+00 : f32
    %96 = vector.broadcast %cst_40 : f32 to vector<2x128xf32>
    %97 = arith.addf %96, %95 : vector<2x128xf32>
    %98 = arith.divf %96, %97 : vector<2x128xf32>
    %99 = arith.mulf %90, %70 : vector<2x128xf32>
    %100 = arith.mulf %84, %92 : vector<2x128xf32>
    %101 = arith.addf %99, %100 : vector<2x128xf32>
    %102 = math.tanh %101 : vector<2x128xf32>
    %103 = arith.mulf %98, %102 : vector<2x128xf32>
    %c4_41 = arith.constant 4 : index
    %c0_42 = arith.constant 0 : index
    %104 = vector.load %arg10[%c4_41, %c0_42] : memref<16x128xf32, #tpu.memory_space<vmem>>, vector<2x128xf32>
    tpu.vector_store %arg10[%c4_41, %c0_42], %103 {strides = array<i32>} : memref<16x128xf32, #tpu.memory_space<vmem>>, vector<2x128xf32>,
    %c6 = arith.constant 6 : index
    %c0_43 = arith.constant 0 : index
    %105 = vector.load %arg9[%c6, %c0_43] : memref<16x512xf32, #tpu.memory_space<vmem>>, vector<2x512xf32>
    %c0_44 = arith.constant 0 : index
    %c0_45 = arith.constant 0 : index
    %c0_46 = arith.constant 0 : index
    %106 = vector.load %arg3[%c0_44, %c0_45, %c0_46] : memref<1x128x512xf32, #tpu.memory_space<vmem>>, vector<1x128x512xf32>
    %107 = vector.shape_cast %106 : vector<1x128x512xf32> to vector<128x512xf32>
    %cst_47 = arith.constant dense<0.000000e+00> : vector<2x512xf32>
    %108 = tpu.matmul %103, %107, %cst_47 {dimension_numbers = #tpu.dot_dimension_numbers<[1], [0], [0], [1], [0, 0, 1, 1], [], []>} : vector<2x128xf32>, vector<128x512xf32>, vector<2x512xf32> -> vector<2x512xf32>
    %109 = arith.addf %105, %108 : vector<2x512xf32>
    %110 = vector.extract_strided_slice %109 {offsets = [0, 0], sizes = [2, 128], strides = [1, 1]} : vector<2x512xf32> to vector<2x128xf32>
    %111 = arith.negf %110 : vector<2x128xf32>
    %112 = math.exp %111 : vector<2x128xf32>
    %cst_48 = arith.constant 1.000000e+00 : f32
    %113 = vector.broadcast %cst_48 : f32 to vector<2x128xf32>
    %114 = arith.addf %113, %112 : vector<2x128xf32>
    %115 = arith.divf %113, %114 : vector<2x128xf32>
    %116 = vector.extract_strided_slice %109 {offsets = [0, 128], sizes = [2, 128], strides = [1, 1]} : vector<2x512xf32> to vector<2x128xf32>
    %117 = arith.negf %116 : vector<2x128xf32>
    %118 = math.exp %117 : vector<2x128xf32>
    %cst_49 = arith.constant 1.000000e+00 : f32
    %119 = vector.broadcast %cst_49 : f32 to vector<2x128xf32>
    %120 = arith.addf %119, %118 : vector<2x128xf32>
    %121 = arith.divf %119, %120 : vector<2x128xf32>
    %122 = vector.extract_strided_slice %109 {offsets = [0, 256], sizes = [2, 128], strides = [1, 1]} : vector<2x512xf32> to vector<2x128xf32>
    %123 = math.tanh %122 : vector<2x128xf32>
    %124 = vector.extract_strided_slice %109 {offsets = [0, 384], sizes = [2, 128], strides = [1, 1]} : vector<2x512xf32> to vector<2x128xf32>
    %125 = arith.negf %124 : vector<2x128xf32>
    %126 = math.exp %125 : vector<2x128xf32>
    %cst_50 = arith.constant 1.000000e+00 : f32
    %127 = vector.broadcast %cst_50 : f32 to vector<2x128xf32>
    %128 = arith.addf %127, %126 : vector<2x128xf32>
    %129 = arith.divf %127, %128 : vector<2x128xf32>
    %130 = arith.mulf %121, %101 : vector<2x128xf32>
    %131 = arith.mulf %115, %123 : vector<2x128xf32>
    %132 = arith.addf %130, %131 : vector<2x128xf32>
    %133 = math.tanh %132 : vector<2x128xf32>
    %134 = arith.mulf %129, %133 : vector<2x128xf32>
    %c6_51 = arith.constant 6 : index
    %c0_52 = arith.constant 0 : index
    %135 = vector.load %arg10[%c6_51, %c0_52] : memref<16x128xf32, #tpu.memory_space<vmem>>, vector<2x128xf32>
    tpu.vector_store %arg10[%c6_51, %c0_52], %134 {strides = array<i32>} : memref<16x128xf32, #tpu.memory_space<vmem>>, vector<2x128xf32>,
    %c8 = arith.constant 8 : index
    %c0_53 = arith.constant 0 : index
    %136 = vector.load %arg9[%c8, %c0_53] : memref<16x512xf32, #tpu.memory_space<vmem>>, vector<2x512xf32>
    %c0_54 = arith.constant 0 : index
    %c0_55 = arith.constant 0 : index
    %c0_56 = arith.constant 0 : index
    %137 = vector.load %arg3[%c0_54, %c0_55, %c0_56] : memref<1x128x512xf32, #tpu.memory_space<vmem>>, vector<1x128x512xf32>
    %138 = vector.shape_cast %137 : vector<1x128x512xf32> to vector<128x512xf32>
    %cst_57 = arith.constant dense<0.000000e+00> : vector<2x512xf32>
    %139 = tpu.matmul %134, %138, %cst_57 {dimension_numbers = #tpu.dot_dimension_numbers<[1], [0], [0], [1], [0, 0, 1, 1], [], []>} : vector<2x128xf32>, vector<128x512xf32>, vector<2x512xf32> -> vector<2x512xf32>
    %140 = arith.addf %136, %139 : vector<2x512xf32>
    %141 = vector.extract_strided_slice %140 {offsets = [0, 0], sizes = [2, 128], strides = [1, 1]} : vector<2x512xf32> to vector<2x128xf32>
    %142 = arith.negf %141 : vector<2x128xf32>
    %143 = math.exp %142 : vector<2x128xf32>
    %cst_58 = arith.constant 1.000000e+00 : f32
    %144 = vector.broadcast %cst_58 : f32 to vector<2x128xf32>
    %145 = arith.addf %144, %143 : vector<2x128xf32>
    %146 = arith.divf %144, %145 : vector<2x128xf32>
    %147 = vector.extract_strided_slice %140 {offsets = [0, 128], sizes = [2, 128], strides = [1, 1]} : vector<2x512xf32> to vector<2x128xf32>
    %148 = arith.negf %147 : vector<2x128xf32>
    %149 = math.exp %148 : vector<2x128xf32>
    %cst_59 = arith.constant 1.000000e+00 : f32
    %150 = vector.broadcast %cst_59 : f32 to vector<2x128xf32>
    %151 = arith.addf %150, %149 : vector<2x128xf32>
    %152 = arith.divf %150, %151 : vector<2x128xf32>
    %153 = vector.extract_strided_slice %140 {offsets = [0, 256], sizes = [2, 128], strides = [1, 1]} : vector<2x512xf32> to vector<2x128xf32>
    %154 = math.tanh %153 : vector<2x128xf32>
    %155 = vector.extract_strided_slice %140 {offsets = [0, 384], sizes = [2, 128], strides = [1, 1]} : vector<2x512xf32> to vector<2x128xf32>
    %156 = arith.negf %155 : vector<2x128xf32>
    %157 = math.exp %156 : vector<2x128xf32>
    %cst_60 = arith.constant 1.000000e+00 : f32
    %158 = vector.broadcast %cst_60 : f32 to vector<2x128xf32>
    %159 = arith.addf %158, %157 : vector<2x128xf32>
    %160 = arith.divf %158, %159 : vector<2x128xf32>
    %161 = arith.mulf %152, %132 : vector<2x128xf32>
    %162 = arith.mulf %146, %154 : vector<2x128xf32>
    %163 = arith.addf %161, %162 : vector<2x128xf32>
    %164 = math.tanh %163 : vector<2x128xf32>
    %165 = arith.mulf %160, %164 : vector<2x128xf32>
    %c8_61 = arith.constant 8 : index
    %c0_62 = arith.constant 0 : index
    %166 = vector.load %arg10[%c8_61, %c0_62] : memref<16x128xf32, #tpu.memory_space<vmem>>, vector<2x128xf32>
    tpu.vector_store %arg10[%c8_61, %c0_62], %165 {strides = array<i32>} : memref<16x128xf32, #tpu.memory_space<vmem>>, vector<2x128xf32>,
    %c10 = arith.constant 10 : index
    %c0_63 = arith.constant 0 : index
    %167 = vector.load %arg9[%c10, %c0_63] : memref<16x512xf32, #tpu.memory_space<vmem>>, vector<2x512xf32>
    %c0_64 = arith.constant 0 : index
    %c0_65 = arith.constant 0 : index
    %c0_66 = arith.constant 0 : index
    %168 = vector.load %arg3[%c0_64, %c0_65, %c0_66] : memref<1x128x512xf32, #tpu.memory_space<vmem>>, vector<1x128x512xf32>
    %169 = vector.shape_cast %168 : vector<1x128x512xf32> to vector<128x512xf32>
    %cst_67 = arith.constant dense<0.000000e+00> : vector<2x512xf32>
    %170 = tpu.matmul %165, %169, %cst_67 {dimension_numbers = #tpu.dot_dimension_numbers<[1], [0], [0], [1], [0, 0, 1, 1], [], []>} : vector<2x128xf32>, vector<128x512xf32>, vector<2x512xf32> -> vector<2x512xf32>
    %171 = arith.addf %167, %170 : vector<2x512xf32>
    %172 = vector.extract_strided_slice %171 {offsets = [0, 0], sizes = [2, 128], strides = [1, 1]} : vector<2x512xf32> to vector<2x128xf32>
    %173 = arith.negf %172 : vector<2x128xf32>
    %174 = math.exp %173 : vector<2x128xf32>
    %cst_68 = arith.constant 1.000000e+00 : f32
    %175 = vector.broadcast %cst_68 : f32 to vector<2x128xf32>
    %176 = arith.addf %175, %174 : vector<2x128xf32>
    %177 = arith.divf %175, %176 : vector<2x128xf32>
    %178 = vector.extract_strided_slice %171 {offsets = [0, 128], sizes = [2, 128], strides = [1, 1]} : vector<2x512xf32> to vector<2x128xf32>
    %179 = arith.negf %178 : vector<2x128xf32>
    %180 = math.exp %179 : vector<2x128xf32>
    %cst_69 = arith.constant 1.000000e+00 : f32
    %181 = vector.broadcast %cst_69 : f32 to vector<2x128xf32>
    %182 = arith.addf %181, %180 : vector<2x128xf32>
    %183 = arith.divf %181, %182 : vector<2x128xf32>
    %184 = vector.extract_strided_slice %171 {offsets = [0, 256], sizes = [2, 128], strides = [1, 1]} : vector<2x512xf32> to vector<2x128xf32>
    %185 = math.tanh %184 : vector<2x128xf32>
    %186 = vector.extract_strided_slice %171 {offsets = [0, 384], sizes = [2, 128], strides = [1, 1]} : vector<2x512xf32> to vector<2x128xf32>
    %187 = arith.negf %186 : vector<2x128xf32>
    %188 = math.exp %187 : vector<2x128xf32>
    %cst_70 = arith.constant 1.000000e+00 : f32
    %189 = vector.broadcast %cst_70 : f32 to vector<2x128xf32>
    %190 = arith.addf %189, %188 : vector<2x128xf32>
    %191 = arith.divf %189, %190 : vector<2x128xf32>
    %192 = arith.mulf %183, %163 : vector<2x128xf32>
    %193 = arith.mulf %177, %185 : vector<2x128xf32>
    %194 = arith.addf %192, %193 : vector<2x128xf32>
    %195 = math.tanh %194 : vector<2x128xf32>
    %196 = arith.mulf %191, %195 : vector<2x128xf32>
    %c10_71 = arith.constant 10 : index
    %c0_72 = arith.constant 0 : index
    %197 = vector.load %arg10[%c10_71, %c0_72] : memref<16x128xf32, #tpu.memory_space<vmem>>, vector<2x128xf32>
    tpu.vector_store %arg10[%c10_71, %c0_72], %196 {strides = array<i32>} : memref<16x128xf32, #tpu.memory_space<vmem>>, vector<2x128xf32>,
    %c12 = arith.constant 12 : index
    %c0_73 = arith.constant 0 : index
    %198 = vector.load %arg9[%c12, %c0_73] : memref<16x512xf32, #tpu.memory_space<vmem>>, vector<2x512xf32>
    %c0_74 = arith.constant 0 : index
    %c0_75 = arith.constant 0 : index
    %c0_76 = arith.constant 0 : index
    %199 = vector.load %arg3[%c0_74, %c0_75, %c0_76] : memref<1x128x512xf32, #tpu.memory_space<vmem>>, vector<1x128x512xf32>
    %200 = vector.shape_cast %199 : vector<1x128x512xf32> to vector<128x512xf32>
    %cst_77 = arith.constant dense<0.000000e+00> : vector<2x512xf32>
    %201 = tpu.matmul %196, %200, %cst_77 {dimension_numbers = #tpu.dot_dimension_numbers<[1], [0], [0], [1], [0, 0, 1, 1], [], []>} : vector<2x128xf32>, vector<128x512xf32>, vector<2x512xf32> -> vector<2x512xf32>
    %202 = arith.addf %198, %201 : vector<2x512xf32>
    %203 = vector.extract_strided_slice %202 {offsets = [0, 0], sizes = [2, 128], strides = [1, 1]} : vector<2x512xf32> to vector<2x128xf32>
    %204 = arith.negf %203 : vector<2x128xf32>
    %205 = math.exp %204 : vector<2x128xf32>
    %cst_78 = arith.constant 1.000000e+00 : f32
    %206 = vector.broadcast %cst_78 : f32 to vector<2x128xf32>
    %207 = arith.addf %206, %205 : vector<2x128xf32>
    %208 = arith.divf %206, %207 : vector<2x128xf32>
    %209 = vector.extract_strided_slice %202 {offsets = [0, 128], sizes = [2, 128], strides = [1, 1]} : vector<2x512xf32> to vector<2x128xf32>
    %210 = arith.negf %209 : vector<2x128xf32>
    %211 = math.exp %210 : vector<2x128xf32>
    %cst_79 = arith.constant 1.000000e+00 : f32
    %212 = vector.broadcast %cst_79 : f32 to vector<2x128xf32>
    %213 = arith.addf %212, %211 : vector<2x128xf32>
    %214 = arith.divf %212, %213 : vector<2x128xf32>
    %215 = vector.extract_strided_slice %202 {offsets = [0, 256], sizes = [2, 128], strides = [1, 1]} : vector<2x512xf32> to vector<2x128xf32>
    %216 = math.tanh %215 : vector<2x128xf32>
    %217 = vector.extract_strided_slice %202 {offsets = [0, 384], sizes = [2, 128], strides = [1, 1]} : vector<2x512xf32> to vector<2x128xf32>
    %218 = arith.negf %217 : vector<2x128xf32>
    %219 = math.exp %218 : vector<2x128xf32>
    %cst_80 = arith.constant 1.000000e+00 : f32
    %220 = vector.broadcast %cst_80 : f32 to vector<2x128xf32>
    %221 = arith.addf %220, %219 : vector<2x128xf32>
    %222 = arith.divf %220, %221 : vector<2x128xf32>
    %223 = arith.mulf %214, %194 : vector<2x128xf32>
    %224 = arith.mulf %208, %216 : vector<2x128xf32>
    %225 = arith.addf %223, %224 : vector<2x128xf32>
    %226 = math.tanh %225 : vector<2x128xf32>
    %227 = arith.mulf %222, %226 : vector<2x128xf32>
    %c12_81 = arith.constant 12 : index
    %c0_82 = arith.constant 0 : index
    %228 = vector.load %arg10[%c12_81, %c0_82] : memref<16x128xf32, #tpu.memory_space<vmem>>, vector<2x128xf32>
    tpu.vector_store %arg10[%c12_81, %c0_82], %227 {strides = array<i32>} : memref<16x128xf32, #tpu.memory_space<vmem>>, vector<2x128xf32>,
    %c14 = arith.constant 14 : index
    %c0_83 = arith.constant 0 : index
    %229 = vector.load %arg9[%c14, %c0_83] : memref<16x512xf32, #tpu.memory_space<vmem>>, vector<2x512xf32>
    %c0_84 = arith.constant 0 : index
    %c0_85 = arith.constant 0 : index
    %c0_86 = arith.constant 0 : index
    %230 = vector.load %arg3[%c0_84, %c0_85, %c0_86] : memref<1x128x512xf32, #tpu.memory_space<vmem>>, vector<1x128x512xf32>
    %231 = vector.shape_cast %230 : vector<1x128x512xf32> to vector<128x512xf32>
    %cst_87 = arith.constant dense<0.000000e+00> : vector<2x512xf32>
    %232 = tpu.matmul %227, %231, %cst_87 {dimension_numbers = #tpu.dot_dimension_numbers<[1], [0], [0], [1], [0, 0, 1, 1], [], []>} : vector<2x128xf32>, vector<128x512xf32>, vector<2x512xf32> -> vector<2x512xf32>
    %233 = arith.addf %229, %232 : vector<2x512xf32>
    %234 = vector.extract_strided_slice %233 {offsets = [0, 0], sizes = [2, 128], strides = [1, 1]} : vector<2x512xf32> to vector<2x128xf32>
    %235 = arith.negf %234 : vector<2x128xf32>
    %236 = math.exp %235 : vector<2x128xf32>
    %cst_88 = arith.constant 1.000000e+00 : f32
    %237 = vector.broadcast %cst_88 : f32 to vector<2x128xf32>
    %238 = arith.addf %237, %236 : vector<2x128xf32>
    %239 = arith.divf %237, %238 : vector<2x128xf32>
    %240 = vector.extract_strided_slice %233 {offsets = [0, 128], sizes = [2, 128], strides = [1, 1]} : vector<2x512xf32> to vector<2x128xf32>
    %241 = arith.negf %240 : vector<2x128xf32>
    %242 = math.exp %241 : vector<2x128xf32>
    %cst_89 = arith.constant 1.000000e+00 : f32
    %243 = vector.broadcast %cst_89 : f32 to vector<2x128xf32>
    %244 = arith.addf %243, %242 : vector<2x128xf32>
    %245 = arith.divf %243, %244 : vector<2x128xf32>
    %246 = vector.extract_strided_slice %233 {offsets = [0, 256], sizes = [2, 128], strides = [1, 1]} : vector<2x512xf32> to vector<2x128xf32>
    %247 = math.tanh %246 : vector<2x128xf32>
    %248 = vector.extract_strided_slice %233 {offsets = [0, 384], sizes = [2, 128], strides = [1, 1]} : vector<2x512xf32> to vector<2x128xf32>
    %249 = arith.negf %248 : vector<2x128xf32>
    %250 = math.exp %249 : vector<2x128xf32>
    %cst_90 = arith.constant 1.000000e+00 : f32
    %251 = vector.broadcast %cst_90 : f32 to vector<2x128xf32>
    %252 = arith.addf %251, %250 : vector<2x128xf32>
    %253 = arith.divf %251, %252 : vector<2x128xf32>
    %254 = arith.mulf %245, %225 : vector<2x128xf32>
    %255 = arith.mulf %239, %247 : vector<2x128xf32>
    %256 = arith.addf %254, %255 : vector<2x128xf32>
    %257 = math.tanh %256 : vector<2x128xf32>
    %258 = arith.mulf %253, %257 : vector<2x128xf32>
    %c14_91 = arith.constant 14 : index
    %c0_92 = arith.constant 0 : index
    %259 = vector.load %arg10[%c14_91, %c0_92] : memref<16x128xf32, #tpu.memory_space<vmem>>, vector<2x128xf32>
    tpu.vector_store %arg10[%c14_91, %c0_92], %258 {strides = array<i32>} : memref<16x128xf32, #tpu.memory_space<vmem>>, vector<2x128xf32>,
    %c0_93 = arith.constant 0 : index
    %c0_94 = arith.constant 0 : index
    %260 = vector.load %arg10[%c0_93, %c0_94] : memref<16x128xf32, #tpu.memory_space<vmem>>, vector<16x128xf32>
    %c0_95 = arith.constant 0 : index
    %c0_96 = arith.constant 0 : index
    %c0_97 = arith.constant 0 : index
    %261 = vector.load %arg5[%c0_95, %c0_96, %c0_97] : memref<1x128x512xf32, #tpu.memory_space<vmem>>, vector<1x128x512xf32>
    %262 = vector.shape_cast %261 : vector<1x128x512xf32> to vector<128x512xf32>
    %cst_98 = arith.constant dense<0.000000e+00> : vector<16x512xf32>
    %263 = tpu.matmul %260, %262, %cst_98 {dimension_numbers = #tpu.dot_dimension_numbers<[1], [0], [0], [1], [0, 0, 1, 1], [], []>} : vector<16x128xf32>, vector<128x512xf32>, vector<16x512xf32> -> vector<16x512xf32>
    %c0_99 = arith.constant 0 : index
    %c0_100 = arith.constant 0 : index
    %c0_101 = arith.constant 0 : index
    %264 = vector.load %arg7[%c0_99, %c0_100, %c0_101] : memref<1x1x512xf32, #tpu.memory_space<vmem>>, vector<1x1x512xf32>
    %265 = vector.shape_cast %264 : vector<1x1x512xf32> to vector<1x512xf32>
    %266 = vector.broadcast %265 : vector<1x512xf32> to vector<16x512xf32>
    %267 = arith.addf %263, %266 : vector<16x512xf32>
    %c0_102 = arith.constant 0 : index
    %c0_103 = arith.constant 0 : index
    %268 = vector.load %arg9[%c0_102, %c0_103] : memref<16x512xf32, #tpu.memory_space<vmem>>, vector<16x512xf32>
    tpu.vector_store %arg9[%c0_102, %c0_103], %267 {strides = array<i32>} : memref<16x512xf32, #tpu.memory_space<vmem>>, vector<16x512xf32>,
    %cst_104 = arith.constant 0.000000e+00 : f32
    %269 = vector.broadcast %cst_104 : f32 to vector<2x128xf32>
    %cst_105 = arith.constant 0.000000e+00 : f32
    %270 = vector.broadcast %cst_105 : f32 to vector<2x128xf32>
    %c0_106 = arith.constant 0 : index
    %c0_107 = arith.constant 0 : index
    %271 = vector.load %arg9[%c0_106, %c0_107] : memref<16x512xf32, #tpu.memory_space<vmem>>, vector<2x512xf32>
    %c0_108 = arith.constant 0 : index
    %c0_109 = arith.constant 0 : index
    %c0_110 = arith.constant 0 : index
    %272 = vector.load %arg6[%c0_108, %c0_109, %c0_110] : memref<1x128x512xf32, #tpu.memory_space<vmem>>, vector<1x128x512xf32>
    %273 = vector.shape_cast %272 : vector<1x128x512xf32> to vector<128x512xf32>
    %cst_111 = arith.constant dense<0.000000e+00> : vector<2x512xf32>
    %274 = tpu.matmul %269, %273, %cst_111 {dimension_numbers = #tpu.dot_dimension_numbers<[1], [0], [0], [1], [0, 0, 1, 1], [], []>} : vector<2x128xf32>, vector<128x512xf32>, vector<2x512xf32> -> vector<2x512xf32>
    %275 = arith.addf %271, %274 : vector<2x512xf32>
    %276 = vector.extract_strided_slice %275 {offsets = [0, 0], sizes = [2, 128], strides = [1, 1]} : vector<2x512xf32> to vector<2x128xf32>
    %277 = arith.negf %276 : vector<2x128xf32>
    %278 = math.exp %277 : vector<2x128xf32>
    %cst_112 = arith.constant 1.000000e+00 : f32
    %279 = vector.broadcast %cst_112 : f32 to vector<2x128xf32>
    %280 = arith.addf %279, %278 : vector<2x128xf32>
    %281 = arith.divf %279, %280 : vector<2x128xf32>
    %282 = vector.extract_strided_slice %275 {offsets = [0, 128], sizes = [2, 128], strides = [1, 1]} : vector<2x512xf32> to vector<2x128xf32>
    %283 = arith.negf %282 : vector<2x128xf32>
    %284 = math.exp %283 : vector<2x128xf32>
    %cst_113 = arith.constant 1.000000e+00 : f32
    %285 = vector.broadcast %cst_113 : f32 to vector<2x128xf32>
    %286 = arith.addf %285, %284 : vector<2x128xf32>
    %287 = arith.divf %285, %286 : vector<2x128xf32>
    %288 = vector.extract_strided_slice %275 {offsets = [0, 256], sizes = [2, 128], strides = [1, 1]} : vector<2x512xf32> to vector<2x128xf32>
    %289 = math.tanh %288 : vector<2x128xf32>
    %290 = vector.extract_strided_slice %275 {offsets = [0, 384], sizes = [2, 128], strides = [1, 1]} : vector<2x512xf32> to vector<2x128xf32>
    %291 = arith.negf %290 : vector<2x128xf32>
    %292 = math.exp %291 : vector<2x128xf32>
    %cst_114 = arith.constant 1.000000e+00 : f32
    %293 = vector.broadcast %cst_114 : f32 to vector<2x128xf32>
    %294 = arith.addf %293, %292 : vector<2x128xf32>
    %295 = arith.divf %293, %294 : vector<2x128xf32>
    %296 = arith.mulf %287, %270 : vector<2x128xf32>
    %297 = arith.mulf %281, %289 : vector<2x128xf32>
    %298 = arith.addf %296, %297 : vector<2x128xf32>
    %299 = math.tanh %298 : vector<2x128xf32>
    %300 = arith.mulf %295, %299 : vector<2x128xf32>
    %c0_115 = arith.constant 0 : index
    %c0_116 = arith.constant 0 : index
    %c0_117 = arith.constant 0 : index
    %301 = vector.load %arg8[%c0_115, %c0_116, %c0_117] : memref<1x16x128xf32, #tpu.memory_space<vmem>>, vector<1x2x128xf32>
    %302 = vector.shape_cast %301 : vector<1x2x128xf32> to vector<2x128xf32>
    %303 = vector.shape_cast %300 : vector<2x128xf32> to vector<1x2x128xf32>
    tpu.vector_store %arg8[%c0_115, %c0_116, %c0_117], %303 {strides = array<i32>} : memref<1x16x128xf32, #tpu.memory_space<vmem>>, vector<1x2x128xf32>,
    %c2_118 = arith.constant 2 : index
    %c0_119 = arith.constant 0 : index
    %304 = vector.load %arg9[%c2_118, %c0_119] : memref<16x512xf32, #tpu.memory_space<vmem>>, vector<2x512xf32>
    %c0_120 = arith.constant 0 : index
    %c0_121 = arith.constant 0 : index
    %c0_122 = arith.constant 0 : index
    %305 = vector.load %arg6[%c0_120, %c0_121, %c0_122] : memref<1x128x512xf32, #tpu.memory_space<vmem>>, vector<1x128x512xf32>
    %306 = vector.shape_cast %305 : vector<1x128x512xf32> to vector<128x512xf32>
    %cst_123 = arith.constant dense<0.000000e+00> : vector<2x512xf32>
    %307 = tpu.matmul %300, %306, %cst_123 {dimension_numbers = #tpu.dot_dimension_numbers<[1], [0], [0], [1], [0, 0, 1, 1], [], []>} : vector<2x128xf32>, vector<128x512xf32>, vector<2x512xf32> -> vector<2x512xf32>
    %308 = arith.addf %304, %307 : vector<2x512xf32>
    %309 = vector.extract_strided_slice %308 {offsets = [0, 0], sizes = [2, 128], strides = [1, 1]} : vector<2x512xf32> to vector<2x128xf32>
    %310 = arith.negf %309 : vector<2x128xf32>
    %311 = math.exp %310 : vector<2x128xf32>
    %cst_124 = arith.constant 1.000000e+00 : f32
    %312 = vector.broadcast %cst_124 : f32 to vector<2x128xf32>
    %313 = arith.addf %312, %311 : vector<2x128xf32>
    %314 = arith.divf %312, %313 : vector<2x128xf32>
    %315 = vector.extract_strided_slice %308 {offsets = [0, 128], sizes = [2, 128], strides = [1, 1]} : vector<2x512xf32> to vector<2x128xf32>
    %316 = arith.negf %315 : vector<2x128xf32>
    %317 = math.exp %316 : vector<2x128xf32>
    %cst_125 = arith.constant 1.000000e+00 : f32
    %318 = vector.broadcast %cst_125 : f32 to vector<2x128xf32>
    %319 = arith.addf %318, %317 : vector<2x128xf32>
    %320 = arith.divf %318, %319 : vector<2x128xf32>
    %321 = vector.extract_strided_slice %308 {offsets = [0, 256], sizes = [2, 128], strides = [1, 1]} : vector<2x512xf32> to vector<2x128xf32>
    %322 = math.tanh %321 : vector<2x128xf32>
    %323 = vector.extract_strided_slice %308 {offsets = [0, 384], sizes = [2, 128], strides = [1, 1]} : vector<2x512xf32> to vector<2x128xf32>
    %324 = arith.negf %323 : vector<2x128xf32>
    %325 = math.exp %324 : vector<2x128xf32>
    %cst_126 = arith.constant 1.000000e+00 : f32
    %326 = vector.broadcast %cst_126 : f32 to vector<2x128xf32>
    %327 = arith.addf %326, %325 : vector<2x128xf32>
    %328 = arith.divf %326, %327 : vector<2x128xf32>
    %329 = arith.mulf %320, %298 : vector<2x128xf32>
    %330 = arith.mulf %314, %322 : vector<2x128xf32>
    %331 = arith.addf %329, %330 : vector<2x128xf32>
    %332 = math.tanh %331 : vector<2x128xf32>
    %333 = arith.mulf %328, %332 : vector<2x128xf32>
    %c0_127 = arith.constant 0 : index
    %c2_128 = arith.constant 2 : index
    %c0_129 = arith.constant 0 : index
    %334 = vector.load %arg8[%c0_127, %c2_128, %c0_129] : memref<1x16x128xf32, #tpu.memory_space<vmem>>, vector<1x2x128xf32>
    %335 = vector.shape_cast %334 : vector<1x2x128xf32> to vector<2x128xf32>
    %336 = vector.shape_cast %333 : vector<2x128xf32> to vector<1x2x128xf32>
    tpu.vector_store %arg8[%c0_127, %c2_128, %c0_129], %336 {strides = array<i32>} : memref<1x16x128xf32, #tpu.memory_space<vmem>>, vector<1x2x128xf32>,
    %c4_130 = arith.constant 4 : index
    %c0_131 = arith.constant 0 : index
    %337 = vector.load %arg9[%c4_130, %c0_131] : memref<16x512xf32, #tpu.memory_space<vmem>>, vector<2x512xf32>
    %c0_132 = arith.constant 0 : index
    %c0_133 = arith.constant 0 : index
    %c0_134 = arith.constant 0 : index
    %338 = vector.load %arg6[%c0_132, %c0_133, %c0_134] : memref<1x128x512xf32, #tpu.memory_space<vmem>>, vector<1x128x512xf32>
    %339 = vector.shape_cast %338 : vector<1x128x512xf32> to vector<128x512xf32>
    %cst_135 = arith.constant dense<0.000000e+00> : vector<2x512xf32>
    %340 = tpu.matmul %333, %339, %cst_135 {dimension_numbers = #tpu.dot_dimension_numbers<[1], [0], [0], [1], [0, 0, 1, 1], [], []>} : vector<2x128xf32>, vector<128x512xf32>, vector<2x512xf32> -> vector<2x512xf32>
    %341 = arith.addf %337, %340 : vector<2x512xf32>
    %342 = vector.extract_strided_slice %341 {offsets = [0, 0], sizes = [2, 128], strides = [1, 1]} : vector<2x512xf32> to vector<2x128xf32>
    %343 = arith.negf %342 : vector<2x128xf32>
    %344 = math.exp %343 : vector<2x128xf32>
    %cst_136 = arith.constant 1.000000e+00 : f32
    %345 = vector.broadcast %cst_136 : f32 to vector<2x128xf32>
    %346 = arith.addf %345, %344 : vector<2x128xf32>
    %347 = arith.divf %345, %346 : vector<2x128xf32>
    %348 = vector.extract_strided_slice %341 {offsets = [0, 128], sizes = [2, 128], strides = [1, 1]} : vector<2x512xf32> to vector<2x128xf32>
    %349 = arith.negf %348 : vector<2x128xf32>
    %350 = math.exp %349 : vector<2x128xf32>
    %cst_137 = arith.constant 1.000000e+00 : f32
    %351 = vector.broadcast %cst_137 : f32 to vector<2x128xf32>
    %352 = arith.addf %351, %350 : vector<2x128xf32>
    %353 = arith.divf %351, %352 : vector<2x128xf32>
    %354 = vector.extract_strided_slice %341 {offsets = [0, 256], sizes = [2, 128], strides = [1, 1]} : vector<2x512xf32> to vector<2x128xf32>
    %355 = math.tanh %354 : vector<2x128xf32>
    %356 = vector.extract_strided_slice %341 {offsets = [0, 384], sizes = [2, 128], strides = [1, 1]} : vector<2x512xf32> to vector<2x128xf32>
    %357 = arith.negf %356 : vector<2x128xf32>
    %358 = math.exp %357 : vector<2x128xf32>
    %cst_138 = arith.constant 1.000000e+00 : f32
    %359 = vector.broadcast %cst_138 : f32 to vector<2x128xf32>
    %360 = arith.addf %359, %358 : vector<2x128xf32>
    %361 = arith.divf %359, %360 : vector<2x128xf32>
    %362 = arith.mulf %353, %331 : vector<2x128xf32>
    %363 = arith.mulf %347, %355 : vector<2x128xf32>
    %364 = arith.addf %362, %363 : vector<2x128xf32>
    %365 = math.tanh %364 : vector<2x128xf32>
    %366 = arith.mulf %361, %365 : vector<2x128xf32>
    %c0_139 = arith.constant 0 : index
    %c4_140 = arith.constant 4 : index
    %c0_141 = arith.constant 0 : index
    %367 = vector.load %arg8[%c0_139, %c4_140, %c0_141] : memref<1x16x128xf32, #tpu.memory_space<vmem>>, vector<1x2x128xf32>
    %368 = vector.shape_cast %367 : vector<1x2x128xf32> to vector<2x128xf32>
    %369 = vector.shape_cast %366 : vector<2x128xf32> to vector<1x2x128xf32>
    tpu.vector_store %arg8[%c0_139, %c4_140, %c0_141], %369 {strides = array<i32>} : memref<1x16x128xf32, #tpu.memory_space<vmem>>, vector<1x2x128xf32>,
    %c6_142 = arith.constant 6 : index
    %c0_143 = arith.constant 0 : index
    %370 = vector.load %arg9[%c6_142, %c0_143] : memref<16x512xf32, #tpu.memory_space<vmem>>, vector<2x512xf32>
    %c0_144 = arith.constant 0 : index
    %c0_145 = arith.constant 0 : index
    %c0_146 = arith.constant 0 : index
    %371 = vector.load %arg6[%c0_144, %c0_145, %c0_146] : memref<1x128x512xf32, #tpu.memory_space<vmem>>, vector<1x128x512xf32>
    %372 = vector.shape_cast %371 : vector<1x128x512xf32> to vector<128x512xf32>
    %cst_147 = arith.constant dense<0.000000e+00> : vector<2x512xf32>
    %373 = tpu.matmul %366, %372, %cst_147 {dimension_numbers = #tpu.dot_dimension_numbers<[1], [0], [0], [1], [0, 0, 1, 1], [], []>} : vector<2x128xf32>, vector<128x512xf32>, vector<2x512xf32> -> vector<2x512xf32>
    %374 = arith.addf %370, %373 : vector<2x512xf32>
    %375 = vector.extract_strided_slice %374 {offsets = [0, 0], sizes = [2, 128], strides = [1, 1]} : vector<2x512xf32> to vector<2x128xf32>
    %376 = arith.negf %375 : vector<2x128xf32>
    %377 = math.exp %376 : vector<2x128xf32>
    %cst_148 = arith.constant 1.000000e+00 : f32
    %378 = vector.broadcast %cst_148 : f32 to vector<2x128xf32>
    %379 = arith.addf %378, %377 : vector<2x128xf32>
    %380 = arith.divf %378, %379 : vector<2x128xf32>
    %381 = vector.extract_strided_slice %374 {offsets = [0, 128], sizes = [2, 128], strides = [1, 1]} : vector<2x512xf32> to vector<2x128xf32>
    %382 = arith.negf %381 : vector<2x128xf32>
    %383 = math.exp %382 : vector<2x128xf32>
    %cst_149 = arith.constant 1.000000e+00 : f32
    %384 = vector.broadcast %cst_149 : f32 to vector<2x128xf32>
    %385 = arith.addf %384, %383 : vector<2x128xf32>
    %386 = arith.divf %384, %385 : vector<2x128xf32>
    %387 = vector.extract_strided_slice %374 {offsets = [0, 256], sizes = [2, 128], strides = [1, 1]} : vector<2x512xf32> to vector<2x128xf32>
    %388 = math.tanh %387 : vector<2x128xf32>
    %389 = vector.extract_strided_slice %374 {offsets = [0, 384], sizes = [2, 128], strides = [1, 1]} : vector<2x512xf32> to vector<2x128xf32>
    %390 = arith.negf %389 : vector<2x128xf32>
    %391 = math.exp %390 : vector<2x128xf32>
    %cst_150 = arith.constant 1.000000e+00 : f32
    %392 = vector.broadcast %cst_150 : f32 to vector<2x128xf32>
    %393 = arith.addf %392, %391 : vector<2x128xf32>
    %394 = arith.divf %392, %393 : vector<2x128xf32>
    %395 = arith.mulf %386, %364 : vector<2x128xf32>
    %396 = arith.mulf %380, %388 : vector<2x128xf32>
    %397 = arith.addf %395, %396 : vector<2x128xf32>
    %398 = math.tanh %397 : vector<2x128xf32>
    %399 = arith.mulf %394, %398 : vector<2x128xf32>
    %c0_151 = arith.constant 0 : index
    %c6_152 = arith.constant 6 : index
    %c0_153 = arith.constant 0 : index
    %400 = vector.load %arg8[%c0_151, %c6_152, %c0_153] : memref<1x16x128xf32, #tpu.memory_space<vmem>>, vector<1x2x128xf32>
    %401 = vector.shape_cast %400 : vector<1x2x128xf32> to vector<2x128xf32>
    %402 = vector.shape_cast %399 : vector<2x128xf32> to vector<1x2x128xf32>
    tpu.vector_store %arg8[%c0_151, %c6_152, %c0_153], %402 {strides = array<i32>} : memref<1x16x128xf32, #tpu.memory_space<vmem>>, vector<1x2x128xf32>,
    %c8_154 = arith.constant 8 : index
    %c0_155 = arith.constant 0 : index
    %403 = vector.load %arg9[%c8_154, %c0_155] : memref<16x512xf32, #tpu.memory_space<vmem>>, vector<2x512xf32>
    %c0_156 = arith.constant 0 : index
    %c0_157 = arith.constant 0 : index
    %c0_158 = arith.constant 0 : index
    %404 = vector.load %arg6[%c0_156, %c0_157, %c0_158] : memref<1x128x512xf32, #tpu.memory_space<vmem>>, vector<1x128x512xf32>
    %405 = vector.shape_cast %404 : vector<1x128x512xf32> to vector<128x512xf32>
    %cst_159 = arith.constant dense<0.000000e+00> : vector<2x512xf32>
    %406 = tpu.matmul %399, %405, %cst_159 {dimension_numbers = #tpu.dot_dimension_numbers<[1], [0], [0], [1], [0, 0, 1, 1], [], []>} : vector<2x128xf32>, vector<128x512xf32>, vector<2x512xf32> -> vector<2x512xf32>
    %407 = arith.addf %403, %406 : vector<2x512xf32>
    %408 = vector.extract_strided_slice %407 {offsets = [0, 0], sizes = [2, 128], strides = [1, 1]} : vector<2x512xf32> to vector<2x128xf32>
    %409 = arith.negf %408 : vector<2x128xf32>
    %410 = math.exp %409 : vector<2x128xf32>
    %cst_160 = arith.constant 1.000000e+00 : f32
    %411 = vector.broadcast %cst_160 : f32 to vector<2x128xf32>
    %412 = arith.addf %411, %410 : vector<2x128xf32>
    %413 = arith.divf %411, %412 : vector<2x128xf32>
    %414 = vector.extract_strided_slice %407 {offsets = [0, 128], sizes = [2, 128], strides = [1, 1]} : vector<2x512xf32> to vector<2x128xf32>
    %415 = arith.negf %414 : vector<2x128xf32>
    %416 = math.exp %415 : vector<2x128xf32>
    %cst_161 = arith.constant 1.000000e+00 : f32
    %417 = vector.broadcast %cst_161 : f32 to vector<2x128xf32>
    %418 = arith.addf %417, %416 : vector<2x128xf32>
    %419 = arith.divf %417, %418 : vector<2x128xf32>
    %420 = vector.extract_strided_slice %407 {offsets = [0, 256], sizes = [2, 128], strides = [1, 1]} : vector<2x512xf32> to vector<2x128xf32>
    %421 = math.tanh %420 : vector<2x128xf32>
    %422 = vector.extract_strided_slice %407 {offsets = [0, 384], sizes = [2, 128], strides = [1, 1]} : vector<2x512xf32> to vector<2x128xf32>
    %423 = arith.negf %422 : vector<2x128xf32>
    %424 = math.exp %423 : vector<2x128xf32>
    %cst_162 = arith.constant 1.000000e+00 : f32
    %425 = vector.broadcast %cst_162 : f32 to vector<2x128xf32>
    %426 = arith.addf %425, %424 : vector<2x128xf32>
    %427 = arith.divf %425, %426 : vector<2x128xf32>
    %428 = arith.mulf %419, %397 : vector<2x128xf32>
    %429 = arith.mulf %413, %421 : vector<2x128xf32>
    %430 = arith.addf %428, %429 : vector<2x128xf32>
    %431 = math.tanh %430 : vector<2x128xf32>
    %432 = arith.mulf %427, %431 : vector<2x128xf32>
    %c0_163 = arith.constant 0 : index
    %c8_164 = arith.constant 8 : index
    %c0_165 = arith.constant 0 : index
    %433 = vector.load %arg8[%c0_163, %c8_164, %c0_165] : memref<1x16x128xf32, #tpu.memory_space<vmem>>, vector<1x2x128xf32>
    %434 = vector.shape_cast %433 : vector<1x2x128xf32> to vector<2x128xf32>
    %435 = vector.shape_cast %432 : vector<2x128xf32> to vector<1x2x128xf32>
    tpu.vector_store %arg8[%c0_163, %c8_164, %c0_165], %435 {strides = array<i32>} : memref<1x16x128xf32, #tpu.memory_space<vmem>>, vector<1x2x128xf32>,
    %c10_166 = arith.constant 10 : index
    %c0_167 = arith.constant 0 : index
    %436 = vector.load %arg9[%c10_166, %c0_167] : memref<16x512xf32, #tpu.memory_space<vmem>>, vector<2x512xf32>
    %c0_168 = arith.constant 0 : index
    %c0_169 = arith.constant 0 : index
    %c0_170 = arith.constant 0 : index
    %437 = vector.load %arg6[%c0_168, %c0_169, %c0_170] : memref<1x128x512xf32, #tpu.memory_space<vmem>>, vector<1x128x512xf32>
    %438 = vector.shape_cast %437 : vector<1x128x512xf32> to vector<128x512xf32>
    %cst_171 = arith.constant dense<0.000000e+00> : vector<2x512xf32>
    %439 = tpu.matmul %432, %438, %cst_171 {dimension_numbers = #tpu.dot_dimension_numbers<[1], [0], [0], [1], [0, 0, 1, 1], [], []>} : vector<2x128xf32>, vector<128x512xf32>, vector<2x512xf32> -> vector<2x512xf32>
    %440 = arith.addf %436, %439 : vector<2x512xf32>
    %441 = vector.extract_strided_slice %440 {offsets = [0, 0], sizes = [2, 128], strides = [1, 1]} : vector<2x512xf32> to vector<2x128xf32>
    %442 = arith.negf %441 : vector<2x128xf32>
    %443 = math.exp %442 : vector<2x128xf32>
    %cst_172 = arith.constant 1.000000e+00 : f32
    %444 = vector.broadcast %cst_172 : f32 to vector<2x128xf32>
    %445 = arith.addf %444, %443 : vector<2x128xf32>
    %446 = arith.divf %444, %445 : vector<2x128xf32>
    %447 = vector.extract_strided_slice %440 {offsets = [0, 128], sizes = [2, 128], strides = [1, 1]} : vector<2x512xf32> to vector<2x128xf32>
    %448 = arith.negf %447 : vector<2x128xf32>
    %449 = math.exp %448 : vector<2x128xf32>
    %cst_173 = arith.constant 1.000000e+00 : f32
    %450 = vector.broadcast %cst_173 : f32 to vector<2x128xf32>
    %451 = arith.addf %450, %449 : vector<2x128xf32>
    %452 = arith.divf %450, %451 : vector<2x128xf32>
    %453 = vector.extract_strided_slice %440 {offsets = [0, 256], sizes = [2, 128], strides = [1, 1]} : vector<2x512xf32> to vector<2x128xf32>
    %454 = math.tanh %453 : vector<2x128xf32>
    %455 = vector.extract_strided_slice %440 {offsets = [0, 384], sizes = [2, 128], strides = [1, 1]} : vector<2x512xf32> to vector<2x128xf32>
    %456 = arith.negf %455 : vector<2x128xf32>
    %457 = math.exp %456 : vector<2x128xf32>
    %cst_174 = arith.constant 1.000000e+00 : f32
    %458 = vector.broadcast %cst_174 : f32 to vector<2x128xf32>
    %459 = arith.addf %458, %457 : vector<2x128xf32>
    %460 = arith.divf %458, %459 : vector<2x128xf32>
    %461 = arith.mulf %452, %430 : vector<2x128xf32>
    %462 = arith.mulf %446, %454 : vector<2x128xf32>
    %463 = arith.addf %461, %462 : vector<2x128xf32>
    %464 = math.tanh %463 : vector<2x128xf32>
    %465 = arith.mulf %460, %464 : vector<2x128xf32>
    %c0_175 = arith.constant 0 : index
    %c10_176 = arith.constant 10 : index
    %c0_177 = arith.constant 0 : index
    %466 = vector.load %arg8[%c0_175, %c10_176, %c0_177] : memref<1x16x128xf32, #tpu.memory_space<vmem>>, vector<1x2x128xf32>
    %467 = vector.shape_cast %466 : vector<1x2x128xf32> to vector<2x128xf32>
    %468 = vector.shape_cast %465 : vector<2x128xf32> to vector<1x2x128xf32>
    tpu.vector_store %arg8[%c0_175, %c10_176, %c0_177], %468 {strides = array<i32>} : memref<1x16x128xf32, #tpu.memory_space<vmem>>, vector<1x2x128xf32>,
    %c12_178 = arith.constant 12 : index
    %c0_179 = arith.constant 0 : index
    %469 = vector.load %arg9[%c12_178, %c0_179] : memref<16x512xf32, #tpu.memory_space<vmem>>, vector<2x512xf32>
    %c0_180 = arith.constant 0 : index
    %c0_181 = arith.constant 0 : index
    %c0_182 = arith.constant 0 : index
    %470 = vector.load %arg6[%c0_180, %c0_181, %c0_182] : memref<1x128x512xf32, #tpu.memory_space<vmem>>, vector<1x128x512xf32>
    %471 = vector.shape_cast %470 : vector<1x128x512xf32> to vector<128x512xf32>
    %cst_183 = arith.constant dense<0.000000e+00> : vector<2x512xf32>
    %472 = tpu.matmul %465, %471, %cst_183 {dimension_numbers = #tpu.dot_dimension_numbers<[1], [0], [0], [1], [0, 0, 1, 1], [], []>} : vector<2x128xf32>, vector<128x512xf32>, vector<2x512xf32> -> vector<2x512xf32>
    %473 = arith.addf %469, %472 : vector<2x512xf32>
    %474 = vector.extract_strided_slice %473 {offsets = [0, 0], sizes = [2, 128], strides = [1, 1]} : vector<2x512xf32> to vector<2x128xf32>
    %475 = arith.negf %474 : vector<2x128xf32>
    %476 = math.exp %475 : vector<2x128xf32>
    %cst_184 = arith.constant 1.000000e+00 : f32
    %477 = vector.broadcast %cst_184 : f32 to vector<2x128xf32>
    %478 = arith.addf %477, %476 : vector<2x128xf32>
    %479 = arith.divf %477, %478 : vector<2x128xf32>
    %480 = vector.extract_strided_slice %473 {offsets = [0, 128], sizes = [2, 128], strides = [1, 1]} : vector<2x512xf32> to vector<2x128xf32>
    %481 = arith.negf %480 : vector<2x128xf32>
    %482 = math.exp %481 : vector<2x128xf32>
    %cst_185 = arith.constant 1.000000e+00 : f32
    %483 = vector.broadcast %cst_185 : f32 to vector<2x128xf32>
    %484 = arith.addf %483, %482 : vector<2x128xf32>
    %485 = arith.divf %483, %484 : vector<2x128xf32>
    %486 = vector.extract_strided_slice %473 {offsets = [0, 256], sizes = [2, 128], strides = [1, 1]} : vector<2x512xf32> to vector<2x128xf32>
    %487 = math.tanh %486 : vector<2x128xf32>
    %488 = vector.extract_strided_slice %473 {offsets = [0, 384], sizes = [2, 128], strides = [1, 1]} : vector<2x512xf32> to vector<2x128xf32>
    %489 = arith.negf %488 : vector<2x128xf32>
    %490 = math.exp %489 : vector<2x128xf32>
    %cst_186 = arith.constant 1.000000e+00 : f32
    %491 = vector.broadcast %cst_186 : f32 to vector<2x128xf32>
    %492 = arith.addf %491, %490 : vector<2x128xf32>
    %493 = arith.divf %491, %492 : vector<2x128xf32>
    %494 = arith.mulf %485, %463 : vector<2x128xf32>
    %495 = arith.mulf %479, %487 : vector<2x128xf32>
    %496 = arith.addf %494, %495 : vector<2x128xf32>
    %497 = math.tanh %496 : vector<2x128xf32>
    %498 = arith.mulf %493, %497 : vector<2x128xf32>
    %c0_187 = arith.constant 0 : index
    %c12_188 = arith.constant 12 : index
    %c0_189 = arith.constant 0 : index
    %499 = vector.load %arg8[%c0_187, %c12_188, %c0_189] : memref<1x16x128xf32, #tpu.memory_space<vmem>>, vector<1x2x128xf32>
    %500 = vector.shape_cast %499 : vector<1x2x128xf32> to vector<2x128xf32>
    %501 = vector.shape_cast %498 : vector<2x128xf32> to vector<1x2x128xf32>
    tpu.vector_store %arg8[%c0_187, %c12_188, %c0_189], %501 {strides = array<i32>} : memref<1x16x128xf32, #tpu.memory_space<vmem>>, vector<1x2x128xf32>,
    %c14_190 = arith.constant 14 : index
    %c0_191 = arith.constant 0 : index
    %502 = vector.load %arg9[%c14_190, %c0_191] : memref<16x512xf32, #tpu.memory_space<vmem>>, vector<2x512xf32>
    %c0_192 = arith.constant 0 : index
    %c0_193 = arith.constant 0 : index
    %c0_194 = arith.constant 0 : index
    %503 = vector.load %arg6[%c0_192, %c0_193, %c0_194] : memref<1x128x512xf32, #tpu.memory_space<vmem>>, vector<1x128x512xf32>
    %504 = vector.shape_cast %503 : vector<1x128x512xf32> to vector<128x512xf32>
    %cst_195 = arith.constant dense<0.000000e+00> : vector<2x512xf32>
    %505 = tpu.matmul %498, %504, %cst_195 {dimension_numbers = #tpu.dot_dimension_numbers<[1], [0], [0], [1], [0, 0, 1, 1], [], []>} : vector<2x128xf32>, vector<128x512xf32>, vector<2x512xf32> -> vector<2x512xf32>
    %506 = arith.addf %502, %505 : vector<2x512xf32>
    %507 = vector.extract_strided_slice %506 {offsets = [0, 0], sizes = [2, 128], strides = [1, 1]} : vector<2x512xf32> to vector<2x128xf32>
    %508 = arith.negf %507 : vector<2x128xf32>
    %509 = math.exp %508 : vector<2x128xf32>
    %cst_196 = arith.constant 1.000000e+00 : f32
    %510 = vector.broadcast %cst_196 : f32 to vector<2x128xf32>
    %511 = arith.addf %510, %509 : vector<2x128xf32>
    %512 = arith.divf %510, %511 : vector<2x128xf32>
    %513 = vector.extract_strided_slice %506 {offsets = [0, 128], sizes = [2, 128], strides = [1, 1]} : vector<2x512xf32> to vector<2x128xf32>
    %514 = arith.negf %513 : vector<2x128xf32>
    %515 = math.exp %514 : vector<2x128xf32>
    %cst_197 = arith.constant 1.000000e+00 : f32
    %516 = vector.broadcast %cst_197 : f32 to vector<2x128xf32>
    %517 = arith.addf %516, %515 : vector<2x128xf32>
    %518 = arith.divf %516, %517 : vector<2x128xf32>
    %519 = vector.extract_strided_slice %506 {offsets = [0, 256], sizes = [2, 128], strides = [1, 1]} : vector<2x512xf32> to vector<2x128xf32>
    %520 = math.tanh %519 : vector<2x128xf32>
    %521 = vector.extract_strided_slice %506 {offsets = [0, 384], sizes = [2, 128], strides = [1, 1]} : vector<2x512xf32> to vector<2x128xf32>
    %522 = arith.negf %521 : vector<2x128xf32>
    %523 = math.exp %522 : vector<2x128xf32>
    %cst_198 = arith.constant 1.000000e+00 : f32
    %524 = vector.broadcast %cst_198 : f32 to vector<2x128xf32>
    %525 = arith.addf %524, %523 : vector<2x128xf32>
    %526 = arith.divf %524, %525 : vector<2x128xf32>
    %527 = arith.mulf %518, %496 : vector<2x128xf32>
    %528 = arith.mulf %512, %520 : vector<2x128xf32>
    %529 = arith.addf %527, %528 : vector<2x128xf32>
    %530 = math.tanh %529 : vector<2x128xf32>
    %531 = arith.mulf %526, %530 : vector<2x128xf32>
    %c0_199 = arith.constant 0 : index
    %c14_200 = arith.constant 14 : index
    %c0_201 = arith.constant 0 : index
    %532 = vector.load %arg8[%c0_199, %c14_200, %c0_201] : memref<1x16x128xf32, #tpu.memory_space<vmem>>, vector<1x2x128xf32>
    %533 = vector.shape_cast %532 : vector<1x2x128xf32> to vector<2x128xf32>
    %534 = vector.shape_cast %531 : vector<2x128xf32> to vector<1x2x128xf32>
    tpu.vector_store %arg8[%c0_199, %c14_200, %c0_201], %534 {strides = array<i32>} : memref<1x16x128xf32, #tpu.memory_space<vmem>>, vector<1x2x128xf32>,
    return
  }
  func.func @transform_0(%arg0: i32) -> (i32, i32, i32) {
    %c0_i32 = arith.constant 0 : i32
    %c0_i32_0 = arith.constant 0 : i32
    %c0_i32_1 = arith.constant 0 : i32
    return %arg0, %c0_i32, %c0_i32_0 : i32, i32, i32
  }
  func.func @transform_1(%arg0: i32) -> (i32, i32, i32) {
    %c0_i32 = arith.constant 0 : i32
    %c0_i32_0 = arith.constant 0 : i32
    %c0_i32_1 = arith.constant 0 : i32
    return %arg0, %c0_i32, %c0_i32_0 : i32, i32, i32
  }
  func.func @transform_2(%arg0: i32) -> (i32, i32, i32) {
    %c0_i32 = arith.constant 0 : i32
    %c0_i32_0 = arith.constant 0 : i32
    %c0_i32_1 = arith.constant 0 : i32
    return %arg0, %c0_i32, %c0_i32_0 : i32, i32, i32
  }
  func.func @transform_3(%arg0: i32) -> (i32, i32, i32) {
    %c0_i32 = arith.constant 0 : i32
    %c0_i32_0 = arith.constant 0 : i32
    %c0_i32_1 = arith.constant 0 : i32
    return %arg0, %c0_i32, %c0_i32_0 : i32, i32, i32
  }
  func.func @transform_4(%arg0: i32) -> (i32, i32, i32) {
    %c0_i32 = arith.constant 0 : i32
    %c0_i32_0 = arith.constant 0 : i32
    %c0_i32_1 = arith.constant 0 : i32
    return %arg0, %c0_i32, %c0_i32_0 : i32, i32, i32
  }
  func.func @transform_5(%arg0: i32) -> (i32, i32, i32) {
    %c0_i32 = arith.constant 0 : i32
    %c0_i32_0 = arith.constant 0 : i32
    %c0_i32_1 = arith.constant 0 : i32
    return %arg0, %c0_i32, %c0_i32_0 : i32, i32, i32
  }
  func.func @transform_6(%arg0: i32) -> (i32, i32, i32) {
    %c0_i32 = arith.constant 0 : i32
    %c0_i32_0 = arith.constant 0 : i32
    %c0_i32_1 = arith.constant 0 : i32
    return %arg0, %c0_i32, %c0_i32_0 : i32, i32, i32
  }
  func.func @transform_7(%arg0: i32) -> (i32, i32, i32) {
    %c0_i32 = arith.constant 0 : i32
    %c0_i32_0 = arith.constant 0 : i32
    %c0_i32_1 = arith.constant 0 : i32
    return %arg0, %c0_i32, %c0_i32_0 : i32, i32, i32
  }
}

module attributes {stable_mosaic.version = 11 : i64} {
  func.func @linear_kernel(%arg0: memref<2x2048xf32, #tpu.memory_space<vmem>>, %arg1: memref<2048x128xf32, #tpu.memory_space<vmem>>, %arg2: memref<1x128xf32, #tpu.memory_space<vmem>>, %arg3: memref<2x128xf32, #tpu.memory_space<vmem>>) attributes {dimension_semantics = [], scalar_prefetch = 0 : i64, scratch_operands = 0 : i64, tpu.core_type = #tpu.core_type<tc>} {
    %c0 = arith.constant 0 : index
    %c0_0 = arith.constant 0 : index
    %0 = vector.load %arg0[%c0, %c0_0] : memref<2x2048xf32, #tpu.memory_space<vmem>>, vector<2x2048xf32>
    %c0_1 = arith.constant 0 : index
    %c0_2 = arith.constant 0 : index
    %1 = vector.load %arg1[%c0_1, %c0_2] : memref<2048x128xf32, #tpu.memory_space<vmem>>, vector<2048x128xf32>
    %cst = arith.constant dense<0.000000e+00> : vector<2x128xf32>
    %2 = tpu.matmul %0, %1, %cst {dimension_numbers = #tpu.dot_dimension_numbers<[1], [0], [0], [1], [0, 0, 1, 1], [], []>} : vector<2x2048xf32>, vector<2048x128xf32>, vector<2x128xf32> -> vector<2x128xf32>
    %c0_3 = arith.constant 0 : index
    %c0_4 = arith.constant 0 : index
    %3 = vector.load %arg2[%c0_3, %c0_4] : memref<1x128xf32, #tpu.memory_space<vmem>>, vector<1x128xf32>
    %4 = vector.broadcast %3 : vector<1x128xf32> to vector<2x128xf32>
    %5 = arith.addf %2, %4 : vector<2x128xf32>
    %c0_5 = arith.constant 0 : index
    %c0_6 = arith.constant 0 : index
    %6 = vector.load %arg3[%c0_5, %c0_6] : memref<2x128xf32, #tpu.memory_space<vmem>>, vector<2x128xf32>
    tpu.vector_store %arg3[%c0_5, %c0_6], %5 {strides = array<i32>} : memref<2x128xf32, #tpu.memory_space<vmem>>, vector<2x128xf32>,
    return
  }
}

</mosaic_0001>

<llo_original>
// kernel: forward.3
$region0: #{forward.3}
  #allocation0 [shape = 'u32[]', space=smem, size = 0x4, offset = 0x4, fixed_abs, tag = 'smem constant byte address 0x4 - core index']
  #allocation1 [shape = 'u32[72,128]{1,0:T(1,128)}', space=vmem, size = 0x9000, scoped, tag = 'internal scratch']
  %s0 = inlined_call_operand.vmem [shape: f32[2,8,24,1], index: 0, kind: input, shape index: {}]
  %s1 = inlined_call_operand.vmem [shape: f32[2,5,1,64], index: 1, kind: input, shape index: {}]
  %s2 = inlined_call_operand.hbm [shape: f32[2,5,64,64], index: 2, kind: input, shape index: {}]
  %s3 = inlined_call_operand.hbm [shape: f32[2,5,64,64], index: 3, kind: input, shape index: {}]
  %s4 = inlined_call_operand.hbm [shape: f32[2,5,64,64], index: 4, kind: input, shape index: {}]
  %s5 = inlined_call_operand.vmem [shape: f32[2,1,64], index: 5, kind: input, shape index: {}, may-alias: {5,6,7,8}]
  %s6 = inlined_call_operand.vmem [shape: f32[2,1,64], index: 6, kind: input, shape index: {}, may-alias: {5,6,7,8}]
  %s7 = inlined_call_operand.vmem [shape: f32[2,1,64], index: 7, kind: input, shape index: {}, may-alias: {5,6,7,8}]
  %s8 = inlined_call_operand.vmem [shape: f32[2,1,64], index: 8, kind: input, shape index: {}, may-alias: {5,6,7,8}]
  %s9 = inlined_call_operand.vmem [shape: f32[2,8,8,64], index: 9, kind: output, shape index: {}]
  %s10 = sld [smem:[#allocation0]]
  $region81: #{forward.3} parent=0
    _
  %s12 = ssub.s32 1, %s10
  %s13 = scalar_select 0, %s12, %s10
  $region1: #{forward.3} parent=0
    #allocation2 [shape = 'u8[327680]{0}', space=vmem, size = 0x50000, scoped, tag = 'input window, operand 2']
    #allocation3 [shape = 's32[2]{0}', space=sflag, size = 0x8, scoped, tag = 'scoped memory for forward.3']
    #allocation4 [shape = 'u8[327680]{0}', space=vmem, size = 0x50000, scoped, tag = 'input window, operand 3']
    #allocation5 [shape = 's32[2]{0}', space=sflag, size = 0x8, scoped, tag = 'scoped memory for forward.3']
    #allocation6 [shape = 'u8[327680]{0}', space=vmem, size = 0x50000, scoped, tag = 'input window, operand 4']
    %14 = vsyncpa [#allocation3], 0
    %s15 = scalar_lea.sflag [#allocation3], 1
    %16 = vsyncpa %s15, 0
    %17 = vsyncpa [#allocation5], 0
    %s18 = scalar_lea.sflag [#allocation5], 1
    %19 = vsyncpa %s18, 0
    loop: start=0, step=1, limit=18
    $region2: #{forward.3} parent=1 // loop_pre_header
      _
    $region3: #{forward.3} parent=1 // loop_header
      %s21 = sphi 0, %s25
      %p22 = scmp.ge.s32.totalorder %s21, 18
      %s28 = sphi 0, %s40
      %s29 = sphi 0, %s36
      %s30 = sphi 0, %s28
      %s31 = sphi 0, %s29
      %s32 = sphi 0, %s30
      %s33 = sphi 0, %s31
      %s45 = sphi 0, %s47
      %s48 = sphi 0, %s45
      %s49 = sphi 0, %s48
      %s65 = sphi 0, %s49
      %s71 = sphi 0, %s73
      %s74 = sphi 0, %s71
      %s75 = sphi 0, %s74
      %s91 = sphi 0, %s75
      %s97 = sphi 0, %s99
      %s100 = sphi 0, %s97
      %s101 = sphi 0, %s100
      %s117 = sphi 0, %s101
      %s123 = sphi 0, %s125
      %s126 = sphi 0, %s123
      %s127 = sphi 0, %s126
      %s143 = sphi 0, %s127
      %s149 = sphi 0, %s151
      %s152 = sphi 0, %s149
      %s153 = sphi 0, %s152
      %s169 = sphi 0, %s153
      %s175 = sphi 0, %s177
      %s178 = sphi 0, %s175
      %s179 = sphi 0, %s178
      %s195 = sphi 0, %s179
      %s201 = sphi 0, %s203
      %s204 = sphi 0, %s201
      %s205 = sphi 0, %s204
      %s221 = sphi 0, %s205
      %s227 = sphi 0, %s229
      %s230 = sphi 0, %s227
      %s231 = sphi 0, %s230
      %s247 = sphi 0, %s231
      %s253 = sphi 0, %s255
      %s256 = sphi 0, %s253
      %s257 = sphi 0, %s256
      %s273 = sphi 0, %s257
      %s281 = sphi 0, %s283
      %s284 = sphi 0, %s281
      %s285 = sphi 0, %s284
      %s301 = sphi 0, %s285
    $region4: #{forward.3} parent=1 // loop_header_branch
      %24 = sbr.rel (%p22) target = $region8
    $region5: #{forward.3} parent=1 // loop_body
      %s26 = ssub.s32 %s21, 1
      %s27 = ssub.s32 %s21, 2
      %s34 = sadd.s32 1, %s29
      %p35 = scmp.ge.s32.totalorder %s34, 8
      %s36 = scalar_select %p35, 0, %s34
      %s37 = sadd.s32 1, %s28
      %s38 = scalar_select %p35, %s37, %s28
      %p39 = scmp.ge.s32.totalorder %s38, 2
      %s40 = scalar_select %p39, 0, %s38
      %s41 = ssub.s32 %s28, %s40
      %s42 = ssub.s32 %s29, %s36
      %s43 = sor.u32 %s41, %s42
      %p44 = scmp.eq.s32.totalorder %s43, 0
      %s46 = sadd.s32 %s45, 1
      %s47 = scalar_select %p44, %s45, %s46
      %p50 = pneg %p44
      %p51 = scmp.eq.s32.totalorder %s21, 15
      %p52 = por %p50, %p51
      %p53 = scmp.ne.s32.totalorder %s45, %s48
      %p54 = scmp.eq.s32.totalorder %s21, 0
      %p55 = por %p53, %p54
      %p56 = scmp.ne.s32.totalorder %s45, %s48
      %p57 = scmp.eq.s32.totalorder %s26, 15
      %p58 = por %p56, %p57
      %p59 = scmp.ne.s32.totalorder %s48, %s49
      %p60 = scmp.eq.s32.totalorder %s26, 0
      %p61 = por %p59, %p60
      %p62 = scmp.ne.s32.totalorder %s48, %s49
      %p63 = scmp.eq.s32.totalorder %s27, 15
      %p64 = por %p62, %p63
      %p66 = scmp.ne.s32.totalorder %s49, %s65
      %p67 = scmp.eq.s32.totalorder %s27, 0
      %p68 = por %p66, %p67
      %s69 = ssub.s32 %s28, %s40
      %p70 = scmp.eq.s32.totalorder %s69, 0
      %s72 = sadd.s32 %s71, 1
      %s73 = scalar_select %p70, %s71, %s72
      %p76 = pneg %p70
      %p77 = scmp.eq.s32.totalorder %s21, 15
      %p78 = por %p76, %p77
      %p79 = scmp.ne.s32.totalorder %s71, %s74
      %p80 = scmp.eq.s32.totalorder %s21, 0
      %p81 = por %p79, %p80
      %p82 = scmp.ne.s32.totalorder %s71, %s74
      %p83 = scmp.eq.s32.totalorder %s26, 15
      %p84 = por %p82, %p83
      %p85 = scmp.ne.s32.totalorder %s74, %s75
      %p86 = scmp.eq.s32.totalorder %s26, 0
      %p87 = por %p85, %p86
      %p88 = scmp.ne.s32.totalorder %s74, %s75
      %p89 = scmp.eq.s32.totalorder %s27, 15
      %p90 = por %p88, %p89
      %p92 = scmp.ne.s32.totalorder %s75, %s91
      %p93 = scmp.eq.s32.totalorder %s27, 0
      %p94 = por %p92, %p93
      %s95 = ssub.s32 %s28, %s40
      %p96 = scmp.eq.s32.totalorder %s95, 0
      %s98 = sadd.s32 %s97, 1
      %s99 = scalar_select %p96, %s97, %s98
      %p102 = pneg %p96
      %p103 = scmp.eq.s32.totalorder %s21, 15
      %p104 = por %p102, %p103
      %p105 = scmp.ne.s32.totalorder %s97, %s100
      %p106 = scmp.eq.s32.totalorder %s21, 0
      %p107 = por %p105, %p106
      %p108 = scmp.ne.s32.totalorder %s97, %s100
      %p109 = scmp.eq.s32.totalorder %s26, 15
      %p110 = por %p108, %p109
      %p111 = scmp.ne.s32.totalorder %s100, %s101
      %p112 = scmp.eq.s32.totalorder %s26, 0
      %p113 = por %p111, %p112
      %p114 = scmp.ne.s32.totalorder %s100, %s101
      %p115 = scmp.eq.s32.totalorder %s27, 15
      %p116 = por %p114, %p115
      %p118 = scmp.ne.s32.totalorder %s101, %s117
      %p119 = scmp.eq.s32.totalorder %s27, 0
      %p120 = por %p118, %p119
      %s121 = ssub.s32 %s28, %s40
      %p122 = scmp.eq.s32.totalorder %s121, 0
      %s124 = sadd.s32 %s123, 1
      %s125 = scalar_select %p122, %s123, %s124
      %p128 = pneg %p122
      %p129 = scmp.eq.s32.totalorder %s21, 15
      %p130 = por %p128, %p129
      %p131 = scmp.ne.s32.totalorder %s123, %s126
      %p132 = scmp.eq.s32.totalorder %s21, 0
      %p133 = por %p131, %p132
      %p134 = scmp.ne.s32.totalorder %s123, %s126
      %p135 = scmp.eq.s32.totalorder %s26, 15
      %p136 = por %p134, %p135
      %p137 = scmp.ne.s32.totalorder %s126, %s127
      %p138 = scmp.eq.s32.totalorder %s26, 0
      %p139 = por %p137, %p138
      %p140 = scmp.ne.s32.totalorder %s126, %s127
      %p141 = scmp.eq.s32.totalorder %s27, 15
      %p142 = por %p140, %p141
      %p144 = scmp.ne.s32.totalorder %s127, %s143
      %p145 = scmp.eq.s32.totalorder %s27, 0
      %p146 = por %p144, %p145
      %s147 = ssub.s32 %s28, %s40
      %p148 = scmp.eq.s32.totalorder %s147, 0
      %s150 = sadd.s32 %s149, 1
      %s151 = scalar_select %p148, %s149, %s150
      %p154 = pneg %p148
      %p155 = scmp.eq.s32.totalorder %s21, 15
      %p156 = por %p154, %p155
      %p157 = scmp.ne.s32.totalorder %s149, %s152
      %p158 = scmp.eq.s32.totalorder %s21, 0
      %p159 = por %p157, %p158
      %p160 = scmp.ne.s32.totalorder %s149, %s152
      %p161 = scmp.eq.s32.totalorder %s26, 15
      %p162 = por %p160, %p161
      %p163 = scmp.ne.s32.totalorder %s152, %s153
      %p164 = scmp.eq.s32.totalorder %s26, 0
      %p165 = por %p163, %p164
      %p166 = scmp.ne.s32.totalorder %s152, %s153
      %p167 = scmp.eq.s32.totalorder %s27, 15
      %p168 = por %p166, %p167
      %p170 = scmp.ne.s32.totalorder %s153, %s169
      %p171 = scmp.eq.s32.totalorder %s27, 0
      %p172 = por %p170, %p171
      %s173 = ssub.s32 %s28, %s40
      %p174 = scmp.eq.s32.totalorder %s173, 0
      %s176 = sadd.s32 %s175, 1
      %s177 = scalar_select %p174, %s175, %s176
      %p180 = pneg %p174
      %p181 = scmp.eq.s32.totalorder %s21, 15
      %p182 = por %p180, %p181
      %p183 = scmp.ne.s32.totalorder %s175, %s178
      %p184 = scmp.eq.s32.totalorder %s21, 0
      %p185 = por %p183, %p184
      %p186 = scmp.ne.s32.totalorder %s175, %s178
      %p187 = scmp.eq.s32.totalorder %s26, 15
      %p188 = por %p186, %p187
      %p189 = scmp.ne.s32.totalorder %s178, %s179
      %p190 = scmp.eq.s32.totalorder %s26, 0
      %p191 = por %p189, %p190
      %p192 = scmp.ne.s32.totalorder %s178, %s179
      %p193 = scmp.eq.s32.totalorder %s27, 15
      %p194 = por %p192, %p193
      %p196 = scmp.ne.s32.totalorder %s179, %s195
      %p197 = scmp.eq.s32.totalorder %s27, 0
      %p198 = por %p196, %p197
      %s199 = ssub.s32 %s28, %s40
      %p200 = scmp.eq.s32.totalorder %s199, 0
      %s202 = sadd.s32 %s201, 1
      %s203 = scalar_select %p200, %s201, %s202
      %p206 = pneg %p200
      %p207 = scmp.eq.s32.totalorder %s21, 15
      %p208 = por %p206, %p207
      %p209 = scmp.ne.s32.totalorder %s201, %s204
      %p210 = scmp.eq.s32.totalorder %s21, 0
      %p211 = por %p209, %p210
      %p212 = scmp.ne.s32.totalorder %s201, %s204
      %p213 = scmp.eq.s32.totalorder %s26, 15
      %p214 = por %p212, %p213
      %p215 = scmp.ne.s32.totalorder %s204, %s205
      %p216 = scmp.eq.s32.totalorder %s26, 0
      %p217 = por %p215, %p216
      %p218 = scmp.ne.s32.totalorder %s204, %s205
      %p219 = scmp.eq.s32.totalorder %s27, 15
      %p220 = por %p218, %p219
      %p222 = scmp.ne.s32.totalorder %s205, %s221
      %p223 = scmp.eq.s32.totalorder %s27, 0
      %p224 = por %p222, %p223
      %s225 = ssub.s32 %s28, %s40
      %p226 = scmp.eq.s32.totalorder %s225, 0
      %s228 = sadd.s32 %s227, 1
      %s229 = scalar_select %p226, %s227, %s228
      %p232 = pneg %p226
      %p233 = scmp.eq.s32.totalorder %s21, 15
      %p234 = por %p232, %p233
      %p235 = scmp.ne.s32.totalorder %s227, %s230
      %p236 = scmp.eq.s32.totalorder %s21, 0
      %p237 = por %p235, %p236
      %p238 = scmp.ne.s32.totalorder %s227, %s230
      %p239 = scmp.eq.s32.totalorder %s26, 15
      %p240 = por %p238, %p239
      %p241 = scmp.ne.s32.totalorder %s230, %s231
      %p242 = scmp.eq.s32.totalorder %s26, 0
      %p243 = por %p241, %p242
      %p244 = scmp.ne.s32.totalorder %s230, %s231
      %p245 = scmp.eq.s32.totalorder %s27, 15
      %p246 = por %p244, %p245
      %p248 = scmp.ne.s32.totalorder %s231, %s247
      %p249 = scmp.eq.s32.totalorder %s27, 0
      %p250 = por %p248, %p249
      %s251 = ssub.s32 %s28, %s40
      %p252 = scmp.eq.s32.totalorder %s251, 0
      %s254 = sadd.s32 %s253, 1
      %s255 = scalar_select %p252, %s253, %s254
      %p258 = pneg %p252
      %p259 = scmp.eq.s32.totalorder %s21, 15
      %p260 = por %p258, %p259
      %p261 = scmp.ne.s32.totalorder %s253, %s256
      %p262 = scmp.eq.s32.totalorder %s21, 0
      %p263 = por %p261, %p262
      %p264 = scmp.ne.s32.totalorder %s253, %s256
      %p265 = scmp.eq.s32.totalorder %s26, 15
      %p266 = por %p264, %p265
      %p267 = scmp.ne.s32.totalorder %s256, %s257
      %p268 = scmp.eq.s32.totalorder %s26, 0
      %p269 = por %p267, %p268
      %p270 = scmp.ne.s32.totalorder %s256, %s257
      %p271 = scmp.eq.s32.totalorder %s27, 15
      %p272 = por %p270, %p271
      %p274 = scmp.ne.s32.totalorder %s257, %s273
      %p275 = scmp.eq.s32.totalorder %s27, 0
      %p276 = por %p274, %p275
      %s277 = ssub.s32 %s28, %s40
      %s278 = ssub.s32 %s29, %s36
      %s279 = sor.u32 %s277, %s278
      %p280 = scmp.eq.s32.totalorder %s279, 0
      %s282 = sadd.s32 %s281, 1
      %s283 = scalar_select %p280, %s281, %s282
      %p286 = pneg %p280
      %p287 = scmp.eq.s32.totalorder %s21, 15
      %p288 = por %p286, %p287
      %p289 = scmp.ne.s32.totalorder %s281, %s284
      %p290 = scmp.eq.s32.totalorder %s21, 0
      %p291 = por %p289, %p290
      %p292 = scmp.ne.s32.totalorder %s281, %s284
      %p293 = scmp.eq.s32.totalorder %s26, 15
      %p294 = por %p292, %p293
      %p295 = scmp.ne.s32.totalorder %s284, %s285
      %p296 = scmp.eq.s32.totalorder %s26, 0
      %p297 = por %p295, %p296
      %p298 = scmp.ne.s32.totalorder %s284, %s285
      %p299 = scmp.eq.s32.totalorder %s27, 15
      %p300 = por %p298, %p299
      %p302 = scmp.ne.s32.totalorder %s285, %s301
      %p303 = scmp.eq.s32.totalorder %s27, 0
      %p304 = por %p302, %p303
      %p305 = scmp.le.s32.totalorder 1, %s21
      %p306 = scmp.lt.s32.totalorder %s21, 17
      %p307 = pnand %p305, %p306
      %p308 = pneg %p307
      // Predicated region
      $region9: #{forward.3} parent=5 // pred_check
        _
      $region10: #{forward.3} parent=5 // pred_check_branch
        %310 = sbr.rel (%p307) target = $region12
      $region11: #{forward.3} parent=5 // pred_region
        %s311 = ssub.s32 %s21, 1
      $region12: #{forward.3} parent=5 // pred_fallthru
        _
      %p312 = scmp.lt.s32.totalorder %s21, 16
      // Predicated region
      $region13: #{forward.3} parent=5 // pred_check
        %p313 = pneg %p312
      $region14: #{forward.3} parent=5 // pred_check_branch
        %315 = sbr.rel (%p313) target = $region16
      $region15: #{forward.3} parent=5 // pred_region
        // Predicated region
        $region17: #{forward.3} parent=15 // pred_check
          %p316 = pneg %p55
        $region18: #{forward.3} parent=15 // pred_check_branch
          %318 = sbr.rel (%p316) target = $region20
        $region19: #{forward.3} parent=15 // pred_region
          %p319 = scmp.lt.s32.totalorder %s28, 1
          %s320 = scalar_select %p319, %s28, 1
          %p321 = scmp.lt.s32.totalorder %s29, 7
          %s322 = scalar_select %p321, %s29, 7
          %s323 = smul.addr %s322, 3
          %s324 = smul.addr %s320, 24
          %s325 = sadd.s32 %s323, %s324
          %s326 = smul.addr %s325, 8
          %s327 = scalar_lea.vmem %s0, %s326
        $region20: #{forward.3} parent=15 // pred_fallthru
          _
        // Predicated region
        $region21: #{forward.3} parent=15 // pred_check
          %p328 = pneg %p81
        $region22: #{forward.3} parent=15 // pred_check_branch
          %330 = sbr.rel (%p328) target = $region24
        $region23: #{forward.3} parent=15 // pred_region
          %p331 = scmp.lt.s32.totalorder %s28, 1
          %s332 = scalar_select %p331, %s28, 1
          %s333 = smul.addr %s332, 5
          %s334 = scalar_lea.vmem %s1, %s333
        $region24: #{forward.3} parent=15 // pred_fallthru
          _
        // Predicated region
        $region25: #{forward.3} parent=15 // pred_check
          %p335 = pneg %p107
        $region26: #{forward.3} parent=15 // pred_check_branch
          %337 = sbr.rel (%p335) target = $region28
        $region27: #{forward.3} parent=15 // pred_region
          %s338 = sand.u32 %s97, 1
          %s339 = scalar_lea.sflag [#allocation3], %s338
          %s340 = sand.u32 %s97, 1
          %s341 = smul.addr %s340, 320
          %s342 = scalar_lea.vmem [#allocation2], %s341
          %344 = vsyncadd %s339, 0
          %s345 = smul.addr %s28, 40
          %s346 = smul.addr %s345, 8
          %s347 = scalar_lea.hbm %s2, %s346
          %s348 = sshll.u32 %s347, 4
          %s349 = int_to_ptr.hbm [resolvable:$true] %s348
          %s350 = sshll.u32 %s342, 4
          %s351 = int_to_ptr.vmem [resolvable:$true] %s350
          %356 = dma.hbm_to_vmem [thread:$0]  %s349, 5120, %s351, %s339, 128, 128, 8
        $region28: #{forward.3} parent=15 // pred_fallthru
          _
        // Predicated region
        $region29: #{forward.3} parent=15 // pred_check
          %p357 = pneg %p133
        $region30: #{forward.3} parent=15 // pred_check_branch
          %359 = sbr.rel (%p357) target = $region32
        $region31: #{forward.3} parent=15 // pred_region
          %s360 = sand.u32 %s21, 1
          %s361 = scalar_lea.sflag [#allocation5], %s360
          %s362 = sand.u32 %s123, 1
          %s363 = smul.addr %s362, 320
          %s364 = scalar_lea.vmem [#allocation4], %s363
          %366 = vsyncadd %s361, 0
          %s367 = smul.addr %s28, 40
          %s368 = smul.addr %s367, 8
          %s369 = scalar_lea.hbm %s3, %s368
          %s370 = sshll.u32 %s369, 4
          %s371 = int_to_ptr.hbm [resolvable:$true] %s370
          %s372 = sshll.u32 %s364, 4
          %s373 = int_to_ptr.vmem [resolvable:$true] %s372
          %378 = dma.hbm_to_vmem [thread:$0]  %s371, 5120, %s373, %s361, 128, 128, 8
        $region32: #{forward.3} parent=15 // pred_fallthru
          _
        // Predicated region
        $region33: #{forward.3} parent=15 // pred_check
          %p379 = pneg %p159
        $region34: #{forward.3} parent=15 // pred_check_branch
          %381 = sbr.rel (%p379) target = $region36
        $region35: #{forward.3} parent=15 // pred_region
          %s382 = sand.u32 %s21, 1
          %s383 = scalar_lea.sflag [#allocation5], %s382
          %s384 = sand.u32 %s149, 1
          %s385 = smul.addr %s384, 320
          %s386 = scalar_lea.vmem [#allocation6], %s385
          %388 = vsyncadd %s383, 0
          %s389 = smul.addr %s28, 40
          %s390 = smul.addr %s389, 8
          %s391 = scalar_lea.hbm %s4, %s390
          %s392 = sshll.u32 %s391, 4
          %s393 = int_to_ptr.hbm [resolvable:$true] %s392
          %s394 = sshll.u32 %s386, 4
          %s395 = int_to_ptr.vmem [resolvable:$true] %s394
          %400 = dma.hbm_to_vmem [thread:$0]  %s393, 5120, %s395, %s383, 128, 128, 8
        $region36: #{forward.3} parent=15 // pred_fallthru
          _
        // Predicated region
        $region37: #{forward.3} parent=15 // pred_check
          %p401 = pneg %p185
        $region38: #{forward.3} parent=15 // pred_check_branch
          %403 = sbr.rel (%p401) target = $region40
        $region39: #{forward.3} parent=15 // pred_region
          %p404 = scmp.lt.s32.totalorder %s28, 1
          %s405 = scalar_select %p404, %s28, 1
          %s406 = scalar_lea.vmem %s5, %s405
        $region40: #{forward.3} parent=15 // pred_fallthru
          _
        // Predicated region
        $region41: #{forward.3} parent=15 // pred_check
          %p407 = pneg %p211
        $region42: #{forward.3} parent=15 // pred_check_branch
          %409 = sbr.rel (%p407) target = $region44
        $region43: #{forward.3} parent=15 // pred_region
          %p410 = scmp.lt.s32.totalorder %s28, 1
          %s411 = scalar_select %p410, %s28, 1
          %s412 = scalar_lea.vmem %s6, %s411
        $region44: #{forward.3} parent=15 // pred_fallthru
          _
        // Predicated region
        $region45: #{forward.3} parent=15 // pred_check
          %p413 = pneg %p237
        $region46: #{forward.3} parent=15 // pred_check_branch
          %415 = sbr.rel (%p413) target = $region48
        $region47: #{forward.3} parent=15 // pred_region
          %p416 = scmp.lt.s32.totalorder %s28, 1
          %s417 = scalar_select %p416, %s28, 1
          %s418 = scalar_lea.vmem %s7, %s417
        $region48: #{forward.3} parent=15 // pred_fallthru
          _
        // Predicated region
        $region49: #{forward.3} parent=15 // pred_check
          %p419 = pneg %p263
        $region50: #{forward.3} parent=15 // pred_check_branch
          %421 = sbr.rel (%p419) target = $region52
        $region51: #{forward.3} parent=15 // pred_region
          %p422 = scmp.lt.s32.totalorder %s28, 1
          %s423 = scalar_select %p422, %s28, 1
          %s424 = scalar_lea.vmem %s8, %s423
        $region52: #{forward.3} parent=15 // pred_fallthru
          _
      $region16: #{forward.3} parent=5 // pred_fallthru
        _
      %p425 = scmp.le.s32.totalorder 1, %s21
      %p426 = scmp.lt.s32.totalorder %s21, 17
      %p427 = pnand %p425, %p426
      %p428 = pneg %p427
      // Predicated region
      $region53: #{forward.3} parent=5 // pred_check
        _
      $region54: #{forward.3} parent=5 // pred_check_branch
        %430 = sbr.rel (%p427) target = $region56
      $region55: #{forward.3} parent=5 // pred_region
        %s431 = ssub.s32 %s21, 1
        %s432 = sand.u32 %s100, 1
        %s433 = scalar_lea.sflag [#allocation3], %s432
        %s434 = sand.u32 %s100, 1
        %s435 = smul.addr %s434, 320
        %s436 = scalar_lea.vmem [#allocation2], %s435
        // Predicated region
        $region57: #{forward.3} parent=55 // pred_check
          %p437 = pneg %p113
        $region58: #{forward.3} parent=55 // pred_check_branch
          %439 = sbr.rel (%p437) target = $region60
        $region59: #{forward.3} parent=55 // pred_region
          %441 = dma.done %s433, 5120
        $region60: #{forward.3} parent=55 // pred_fallthru
          _
        %s442 = sand.u32 %s26, 1
        %s443 = scalar_lea.sflag [#allocation5], %s442
        %s444 = sand.u32 %s126, 1
        %s445 = smul.addr %s444, 320
        %s446 = scalar_lea.vmem [#allocation4], %s445
        // Predicated region
        $region61: #{forward.3} parent=55 // pred_check
          %p447 = pneg %p139
        $region62: #{forward.3} parent=55 // pred_check_branch
          %449 = sbr.rel (%p447) target = $region64
        $region63: #{forward.3} parent=55 // pred_region
          %451 = dma.done %s443, 5120
        $region64: #{forward.3} parent=55 // pred_fallthru
          _
        %s452 = sand.u32 %s26, 1
        %s453 = scalar_lea.sflag [#allocation5], %s452
        %s454 = sand.u32 %s152, 1
        %s455 = smul.addr %s454, 320
        %s456 = scalar_lea.vmem [#allocation6], %s455
        // Predicated region
        $region65: #{forward.3} parent=55 // pred_check
          %p457 = pneg %p165
        $region66: #{forward.3} parent=55 // pred_check_branch
          %459 = sbr.rel (%p457) target = $region68
        $region67: #{forward.3} parent=55 // pred_region
          %461 = dma.done %s453, 5120
        $region68: #{forward.3} parent=55 // pred_fallthru
          _
        %p462 = scmp.lt.s32.totalorder %s30, 1
        %s463 = scalar_select %p462, %s30, 1
        %p464 = scmp.lt.s32.totalorder %s31, 7
        %s465 = scalar_select %p464, %s31, 7
        %s466 = smul.addr %s465, 3
        %s467 = smul.addr %s463, 24
        %s468 = sadd.s32 %s466, %s467
        %s469 = smul.addr %s468, 8
        %s470 = scalar_lea.vmem %s0, %s469
        %p471 = pneg %p61
        %p472 = pneg %p58
        %p473 = scmp.lt.s32.totalorder %s30, 1
        %s474 = scalar_select %p473, %s30, 1
        %s475 = smul.addr %s474, 5
        %s476 = scalar_lea.vmem %s1, %s475
        %p477 = pneg %p87
        %p478 = pneg %p84
        %s479 = sand.u32 %s100, 1
        %s480 = scalar_lea.sflag [#allocation3], %s479
        %s481 = sand.u32 %s100, 1
        %s482 = smul.addr %s481, 320
        %s483 = scalar_lea.vmem [#allocation2], %s482
        %p484 = pneg %p113
        %p485 = pneg %p110
        %s486 = sand.u32 %s26, 1
        %s487 = scalar_lea.sflag [#allocation5], %s486
        %s488 = sand.u32 %s126, 1
        %s489 = smul.addr %s488, 320
        %s490 = scalar_lea.vmem [#allocation4], %s489
        %p491 = pneg %p139
        %p492 = pneg %p136
        %s493 = sand.u32 %s26, 1
        %s494 = scalar_lea.sflag [#allocation5], %s493
        %s495 = sand.u32 %s152, 1
        %s496 = smul.addr %s495, 320
        %s497 = scalar_lea.vmem [#allocation6], %s496
        %p498 = pneg %p165
        %p499 = pneg %p162
        %p500 = scmp.lt.s32.totalorder %s30, 1
        %s501 = scalar_select %p500, %s30, 1
        %s502 = scalar_lea.vmem %s5, %s501
        %p503 = pneg %p191
        %p504 = pneg %p188
        %p505 = scmp.lt.s32.totalorder %s30, 1
        %s506 = scalar_select %p505, %s30, 1
        %s507 = scalar_lea.vmem %s6, %s506
        %p508 = pneg %p217
        %p509 = pneg %p214
        %p510 = scmp.lt.s32.totalorder %s30, 1
        %s511 = scalar_select %p510, %s30, 1
        %s512 = scalar_lea.vmem %s7, %s511
        %p513 = pneg %p243
        %p514 = pneg %p240
        %p515 = scmp.lt.s32.totalorder %s30, 1
        %s516 = scalar_select %p515, %s30, 1
        %s517 = scalar_lea.vmem %s8, %s516
        %p518 = pneg %p269
        %p519 = pneg %p266
        %p520 = pneg %p297
        %p521 = pneg %p294
        %p522 = scmp.lt.s32.totalorder %s30, 1
        %s523 = scalar_select %p522, %s30, 1
        %p524 = scmp.lt.s32.totalorder %s31, 7
        %s525 = scalar_select %p524, %s31, 7
        %s526 = smul.addr %s523, 8
        %s527 = sadd.s32 %s525, %s526
        %s528 = smul.addr %s527, 8
        %s529 = scalar_lea.vmem %s9, %s528
        %p530 = scmp.lt.s32.totalorder %s30, 1
        %s531 = scalar_select %p530, %s30, 1
        %p532 = scmp.lt.s32.totalorder %s31, 7
        %s533 = scalar_select %p532, %s31, 7
        %s534 = smul.addr %s533, 3
        %s535 = smul.addr %s531, 24
        %s536 = sadd.s32 %s534, %s535
        %s537 = smul.addr %s536, 8
        %s538 = scalar_lea.vmem %s0, %s537
        %p539 = scmp.lt.s32.totalorder %s30, 1
        %s540 = scalar_select %p539, %s30, 1
        %s541 = smul.addr %s540, 5
        %s542 = scalar_lea.vmem %s1, %s541
        %p543 = scmp.lt.s32.totalorder %s30, 1
        %s544 = scalar_select %p543, %s30, 1
        %s545 = scalar_lea.vmem %s5, %s544
        %p546 = scmp.lt.s32.totalorder %s30, 1
        %s547 = scalar_select %p546, %s30, 1
        %s548 = scalar_lea.vmem %s6, %s547
        %p549 = scmp.lt.s32.totalorder %s30, 1
        %s550 = scalar_select %p549, %s30, 1
        %s551 = scalar_lea.vmem %s7, %s550
        %p552 = scmp.lt.s32.totalorder %s30, 1
        %s553 = scalar_select %p552, %s30, 1
        %s554 = scalar_lea.vmem %s8, %s553
        %p555 = scmp.lt.s32.totalorder %s30, 1
        %s556 = scalar_select %p555, %s30, 1
        %p557 = scmp.lt.s32.totalorder %s31, 7
        %s558 = scalar_select %p557, %s31, 7
        %s559 = smul.addr %s556, 8
        %s560 = sadd.s32 %s558, %s559
        %s561 = smul.addr %s560, 8
        %s562 = scalar_lea.vmem %s9, %s561
        %v563 = vld [vmem:[%s538] sm:$0xff]
        %v564 = vld [vmem:[%s538 + $0x8] sm:$0xff]
        %v565 = vld [vmem:[%s538 + $0x10] sm:$0xff]
        %v566 = vld [vmem:[%s542] sm:$0x1]
        %568 = vset.pattern.permute.xlu0 0
        %569 = vperm.xlu0 %568, %v563
        %v570 = vpop.permute.xlu0 %569
        %573 = vset.pattern.permute.xlu0 0
        %574 = vperm.xlu0 %573, %v564
        %v575 = vpop.permute.xlu0 %574
        %578 = vset.pattern.permute.xlu0 0
        %579 = vperm.xlu0 %578, %v565
        %v580 = vpop.permute.xlu0 %579
        %v583 = vperm.slane %v566, 0
        %v585 = vmul.f32 %v570, %v583
        %v586 = vmul.f32 %v575, %v583
        %v587 = vmul.f32 %v580, %v583
        %v588 = vadd.f32 %v585, 0.0
        %v589 = vadd.f32 %v586, 0.0
        %v590 = vadd.f32 %v587, 0.0
        %s591 = scalar_lea.vmem %s542, 1
        %v592 = vld [vmem:[%s591] sm:$0x1]
        %v594 = vperm.slane %v592, 0
        %v596 = vmul.f32 %v570, %v594
        %v597 = vmul.f32 %v575, %v594
        %v598 = vmul.f32 %v580, %v594
        %vm602 = vcmask 1046528
        %v603 = vrot.slane %v596, 1
        %v604 = vrot.slane %v597, 1
        %v605 = vsel %vm602, %v603, %v604
        %v606 = vrot.slane %v598, 1
        %v607 = vsel %vm602, %v604, %v606
        %v611 = vadd.f32 %v588, %v605
        %v612 = vadd.f32 %v589, %v607
        %v613 = vadd.f32 %v590, %v606
        %s614 = scalar_lea.vmem %s542, 2
        %v615 = vld [vmem:[%s614] sm:$0x1]
        %v617 = vperm.slane %v615, 0
        %v619 = vmul.f32 %v570, %v617
        %v620 = vmul.f32 %v575, %v617
        %v621 = vmul.f32 %v580, %v617
        %vm625 = vcmask 1045504
        %v626 = vrot.slane %v619, 2
        %v627 = vrot.slane %v620, 2
        %v628 = vsel %vm625, %v626, %v627
        %v629 = vrot.slane %v621, 2
        %v630 = vsel %vm625, %v627, %v629
        %v634 = vadd.f32 %v611, %v628
        %v635 = vadd.f32 %v612, %v630
        %v636 = vadd.f32 %v613, %v629
        %s637 = scalar_lea.vmem %s542, 3
        %v638 = vld [vmem:[%s637] sm:$0x1]
        %v640 = vperm.slane %v638, 0
        %v642 = vmul.f32 %v570, %v640
        %v643 = vmul.f32 %v575, %v640
        %v644 = vmul.f32 %v580, %v640
        %vm648 = vcmask 1044480
        %v649 = vrot.slane %v642, 3
        %v650 = vrot.slane %v643, 3
        %v651 = vsel %vm648, %v649, %v650
        %v652 = vrot.slane %v644, 3
        %v653 = vsel %vm648, %v650, %v652
        %v657 = vadd.f32 %v634, %v651
        %v658 = vadd.f32 %v635, %v653
        %v659 = vadd.f32 %v636, %v652
        %s660 = scalar_lea.vmem %s542, 4
        %v661 = vld [vmem:[%s660] sm:$0x1]
        %v663 = vperm.slane %v661, 0
        %v665 = vmul.f32 %v570, %v663
        %v666 = vmul.f32 %v575, %v663
        %v667 = vmul.f32 %v580, %v663
        %vm671 = vcmask 1043456
        %v672 = vrot.slane %v665, 4
        %v673 = vrot.slane %v666, 4
        %v674 = vsel %vm671, %v672, %v673
        %v675 = vrot.slane %v667, 4
        %v676 = vsel %vm671, %v673, %v675
        %v680 = vadd.f32 %v657, %v674
        %v681 = vadd.f32 %v658, %v676
        %v682 = vadd.f32 %v659, %v675
        %v683 = vld [vmem:[%s545] sm:$0x1]
        %v685 = vperm.slane %v683, 0
        %v687 = vadd.f32 %v680, %v685
        %v688 = vadd.f32 %v681, %v685
        %v689 = vadd.f32 %v682, %v685
        %v690 = vld [vmem:[%s436] sm:$0xff]
        %v691 = vld [vmem:[%s436 + $0x8] sm:$0xff]
        %v692 = vld [vmem:[%s436 + $0x10] sm:$0xff]
        %v693 = vld [vmem:[%s436 + $0x18] sm:$0xff]
        %v694 = vld [vmem:[%s436 + $0x20] sm:$0xff]
        %v695 = vld [vmem:[%s436 + $0x28] sm:$0xff]
        %v696 = vld [vmem:[%s436 + $0x30] sm:$0xff]
        %v697 = vld [vmem:[%s436 + $0x38] sm:$0xff]
        %s698 = scalar_lea.vmem %s436, 64 [#allocation2]
        %v699 = vld [vmem:[%s698] sm:$0xff]
        %v700 = vld [vmem:[%s698 + $0x8] sm:$0xff]
        %v701 = vld [vmem:[%s698 + $0x10] sm:$0xff]
        %v702 = vld [vmem:[%s698 + $0x18] sm:$0xff]
        %v703 = vld [vmem:[%s698 + $0x20] sm:$0xff]
        %v704 = vld [vmem:[%s698 + $0x28] sm:$0xff]
        %v705 = vld [vmem:[%s698 + $0x30] sm:$0xff]
        %v706 = vld [vmem:[%s698 + $0x38] sm:$0xff]
        %v710 = vrot.slane %v687, 1
        %v711 = vrot.slane %v688, 1
        %v712 = vsel %vm602, %v710, %v711
        %v713 = vrot.slane %v689, 1
        %v714 = vsel %vm602, %v711, %v713
        %vm715 = vcmask 523264
        %v716 = vsel %vm715, %v712, 0
        %v718 = vsel %vm715, %v714, 0
        %720 = vmatpush.msra.mxu0 0.0
        %721 = vmatpush.msra.mxu0 0.0
        %722 = vmatpush.msra.mxu0 0.0
        %723 = vmatpush.msra.mxu0 0.0
        %724 = vmatpush.msra.mxu0 0.0
        %725 = vmatpush.msra.mxu0 0.0
        %726 = vmatpush.msra.mxu0 0.0
        %727 = vmatpush.msra.mxu0 0.0
        %728 = vmatpush.msra.mxu0 %v706
        %729 = vmatpush.msra.mxu0 %v705
        %730 = vmatpush.msra.mxu0 %v704
        %731 = vmatpush.msra.mxu0 %v703
        %732 = vmatpush.msra.mxu0 %v702
        %733 = vmatpush.msra.mxu0 %v701
        %734 = vmatpush.msra.mxu0 %v700
        %735 = vmatpush.msra.mxu0 %v699
        %736 = vmatmul.f32.gmra.mxu0 %v716
        %v737 = vpop.f32.mrf.mxu0
        %v738 = vadd.f32 0.0, %v737
        %739 = vmatmul.f32.gmra.mxu0 %v718
        %v740 = vpop.f32.mrf.mxu0
        %v741 = vadd.f32 0.0, %v740
        %742 = vdwg.mxu0
        %v743 = vsel %vm715, %v687, 0
        %v745 = vsel %vm715, %v688, 0
        %747 = vmatpush.msra.mxu0 0.0
        %748 = vmatpush.msra.mxu0 0.0
        %749 = vmatpush.msra.mxu0 0.0
        %750 = vmatpush.msra.mxu0 0.0
        %751 = vmatpush.msra.mxu0 0.0
        %752 = vmatpush.msra.mxu0 0.0
        %753 = vmatpush.msra.mxu0 0.0
        %754 = vmatpush.msra.mxu0 0.0
        %755 = vmatpush.msra.mxu0 %v697
        %756 = vmatpush.msra.mxu0 %v696
        %757 = vmatpush.msra.mxu0 %v695
        %758 = vmatpush.msra.mxu0 %v694
        %759 = vmatpush.msra.mxu0 %v693
        %760 = vmatpush.msra.mxu0 %v692
        %761 = vmatpush.msra.mxu0 %v691
        %762 = vmatpush.msra.mxu0 %v690
        %763 = vmatmul.f32.gmra.mxu0 %v743
        %v764 = vpop.f32.mrf.mxu0
        %v765 = vadd.f32 %v738, %v764
        %766 = vmatmul.f32.gmra.mxu0 %v745
        %v767 = vpop.f32.mrf.mxu0
        %v768 = vadd.f32 %v741, %v767
        %769 = vdwg.mxu0
        %s770 = scalar_lea.vmem %s436, 128 [#allocation2]
        %v771 = vld [vmem:[%s770] sm:$0xff]
        %v772 = vld [vmem:[%s770 + $0x8] sm:$0xff]
        %v773 = vld [vmem:[%s770 + $0x10] sm:$0xff]
        %v774 = vld [vmem:[%s770 + $0x18] sm:$0xff]
        %v775 = vld [vmem:[%s770 + $0x20] sm:$0xff]
        %v776 = vld [vmem:[%s770 + $0x28] sm:$0xff]
        %v777 = vld [vmem:[%s770 + $0x30] sm:$0xff]
        %v778 = vld [vmem:[%s770 + $0x38] sm:$0xff]
        %v779 = vrot.slane %v687, 2
        %v780 = vrot.slane %v688, 2
        %v781 = vsel %vm625, %v779, %v780
        %v782 = vrot.slane %v689, 2
        %v783 = vsel %vm625, %v780, %v782
        %v784 = vsel %vm715, %v781, 0
        %v786 = vsel %vm715, %v783, 0
        %788 = vmatpush.msra.mxu0 0.0
        %789 = vmatpush.msra.mxu0 0.0
        %790 = vmatpush.msra.mxu0 0.0
        %791 = vmatpush.msra.mxu0 0.0
        %792 = vmatpush.msra.mxu0 0.0
        %793 = vmatpush.msra.mxu0 0.0
        %794 = vmatpush.msra.mxu0 0.0
        %795 = vmatpush.msra.mxu0 0.0
        %796 = vmatpush.msra.mxu0 %v778
        %797 = vmatpush.msra.mxu0 %v777
        %798 = vmatpush.msra.mxu0 %v776
        %799 = vmatpush.msra.mxu0 %v775
        %800 = vmatpush.msra.mxu0 %v774
        %801 = vmatpush.msra.mxu0 %v773
        %802 = vmatpush.msra.mxu0 %v772
        %803 = vmatpush.msra.mxu0 %v771
        %804 = vmatmul.f32.gmra.mxu0 %v784
        %v805 = vpop.f32.mrf.mxu0
        %v806 = vadd.f32 0.0, %v805
        %807 = vmatmul.f32.gmra.mxu0 %v786
        %v808 = vpop.f32.mrf.mxu0
        %v809 = vadd.f32 0.0, %v808
        %810 = vdwg.mxu0
        %v811 = vadd.f32 %v765, %v806
        %v812 = vadd.f32 %v768, %v809
        %s813 = scalar_lea.vmem %s436, 192 [#allocation2]
        %v814 = vld [vmem:[%s813] sm:$0xff]
        %v815 = vld [vmem:[%s813 + $0x8] sm:$0xff]
        %v816 = vld [vmem:[%s813 + $0x10] sm:$0xff]
        %v817 = vld [vmem:[%s813 + $0x18] sm:$0xff]
        %v818 = vld [vmem:[%s813 + $0x20] sm:$0xff]
        %v819 = vld [vmem:[%s813 + $0x28] sm:$0xff]
        %v820 = vld [vmem:[%s813 + $0x30] sm:$0xff]
        %v821 = vld [vmem:[%s813 + $0x38] sm:$0xff]
        %v822 = vrot.slane %v687, 3
        %v823 = vrot.slane %v688, 3
        %v824 = vsel %vm648, %v822, %v823
        %v825 = vrot.slane %v689, 3
        %v826 = vsel %vm648, %v823, %v825
        %v827 = vsel %vm715, %v824, 0
        %v829 = vsel %vm715, %v826, 0
        %831 = vmatpush.msra.mxu0 0.0
        %832 = vmatpush.msra.mxu0 0.0
        %833 = vmatpush.msra.mxu0 0.0
        %834 = vmatpush.msra.mxu0 0.0
        %835 = vmatpush.msra.mxu0 0.0
        %836 = vmatpush.msra.mxu0 0.0
        %837 = vmatpush.msra.mxu0 0.0
        %838 = vmatpush.msra.mxu0 0.0
        %839 = vmatpush.msra.mxu0 %v821
        %840 = vmatpush.msra.mxu0 %v820
        %841 = vmatpush.msra.mxu0 %v819
        %842 = vmatpush.msra.mxu0 %v818
        %843 = vmatpush.msra.mxu0 %v817
        %844 = vmatpush.msra.mxu0 %v816
        %845 = vmatpush.msra.mxu0 %v815
        %846 = vmatpush.msra.mxu0 %v814
        %847 = vmatmul.f32.gmra.mxu0 %v827
        %v848 = vpop.f32.mrf.mxu0
        %v849 = vadd.f32 0.0, %v848
        %850 = vmatmul.f32.gmra.mxu0 %v829
        %v851 = vpop.f32.mrf.mxu0
        %v852 = vadd.f32 0.0, %v851
        %853 = vdwg.mxu0
        %v854 = vadd.f32 %v811, %v849
        %v855 = vadd.f32 %v812, %v852
        %s856 = scalar_lea.vmem %s436, 256 [#allocation2]
        %v857 = vld [vmem:[%s856] sm:$0xff]
        %v858 = vld [vmem:[%s856 + $0x8] sm:$0xff]
        %v859 = vld [vmem:[%s856 + $0x10] sm:$0xff]
        %v860 = vld [vmem:[%s856 + $0x18] sm:$0xff]
        %v861 = vld [vmem:[%s856 + $0x20] sm:$0xff]
        %v862 = vld [vmem:[%s856 + $0x28] sm:$0xff]
        %v863 = vld [vmem:[%s856 + $0x30] sm:$0xff]
        %v864 = vld [vmem:[%s856 + $0x38] sm:$0xff]
        %v865 = vrot.slane %v687, 4
        %v866 = vrot.slane %v688, 4
        %v867 = vsel %vm671, %v865, %v866
        %v868 = vrot.slane %v689, 4
        %v869 = vsel %vm671, %v866, %v868
        %v870 = vsel %vm715, %v867, 0
        %v872 = vsel %vm715, %v869, 0
        %874 = vmatpush.msra.mxu0 0.0
        %875 = vmatpush.msra.mxu0 0.0
        %876 = vmatpush.msra.mxu0 0.0
        %877 = vmatpush.msra.mxu0 0.0
        %878 = vmatpush.msra.mxu0 0.0
        %879 = vmatpush.msra.mxu0 0.0
        %880 = vmatpush.msra.mxu0 0.0
        %881 = vmatpush.msra.mxu0 0.0
        %882 = vmatpush.msra.mxu0 %v864
        %883 = vmatpush.msra.mxu0 %v863
        %884 = vmatpush.msra.mxu0 %v862
        %885 = vmatpush.msra.mxu0 %v861
        %886 = vmatpush.msra.mxu0 %v860
        %887 = vmatpush.msra.mxu0 %v859
        %888 = vmatpush.msra.mxu0 %v858
        %889 = vmatpush.msra.mxu0 %v857
        %890 = vmatmul.f32.gmra.mxu0 %v870
        %v891 = vpop.f32.mrf.mxu0
        %v892 = vadd.f32 0.0, %v891
        %893 = vmatmul.f32.gmra.mxu0 %v872
        %v894 = vpop.f32.mrf.mxu0
        %v895 = vadd.f32 0.0, %v894
        %896 = vdwg.mxu0
        %v897 = vadd.f32 %v854, %v892
        %v898 = vadd.f32 %v855, %v895
        %v899 = vld [vmem:[%s548] sm:$0x1]
        %v901 = vperm.slane %v899, 0
        %v903 = vadd.f32 %v897, %v901
        %v904 = vadd.f32 %v898, %v901
        %v905 = vld [vmem:[%s446] sm:$0xff]
        %v906 = vld [vmem:[%s446 + $0x8] sm:$0xff]
        %v907 = vld [vmem:[%s446 + $0x10] sm:$0xff]
        %v908 = vld [vmem:[%s446 + $0x18] sm:$0xff]
        %v909 = vld [vmem:[%s446 + $0x20] sm:$0xff]
        %v910 = vld [vmem:[%s446 + $0x28] sm:$0xff]
        %v911 = vld [vmem:[%s446 + $0x30] sm:$0xff]
        %v912 = vld [vmem:[%s446 + $0x38] sm:$0xff]
        %s913 = scalar_lea.vmem %s446, 64 [#allocation4]
        %v914 = vld [vmem:[%s913] sm:$0xff]
        %v915 = vld [vmem:[%s913 + $0x8] sm:$0xff]
        %v916 = vld [vmem:[%s913 + $0x10] sm:$0xff]
        %v917 = vld [vmem:[%s913 + $0x18] sm:$0xff]
        %v918 = vld [vmem:[%s913 + $0x20] sm:$0xff]
        %v919 = vld [vmem:[%s913 + $0x28] sm:$0xff]
        %v920 = vld [vmem:[%s913 + $0x30] sm:$0xff]
        %v921 = vld [vmem:[%s913 + $0x38] sm:$0xff]
        %v924 = vrot.slane %v903, 1
        %v925 = vrot.slane %v904, 1
        %v926 = vsel %vm602, %v924, %v925
        %v927 = vsel %vm715, %v926, 0
        %v929 = vsel %vm715, %v925, 0
        %931 = vmatpush.msra.mxu0 0.0
        %932 = vmatpush.msra.mxu0 0.0
        %933 = vmatpush.msra.mxu0 0.0
        %934 = vmatpush.msra.mxu0 0.0
        %935 = vmatpush.msra.mxu0 0.0
        %936 = vmatpush.msra.mxu0 0.0
        %937 = vmatpush.msra.mxu0 0.0
        %938 = vmatpush.msra.mxu0 0.0
        %939 = vmatpush.msra.mxu0 %v921
        %940 = vmatpush.msra.mxu0 %v920
        %941 = vmatpush.msra.mxu0 %v919
        %942 = vmatpush.msra.mxu0 %v918
        %943 = vmatpush.msra.mxu0 %v917
        %944 = vmatpush.msra.mxu0 %v916
        %945 = vmatpush.msra.mxu0 %v915
        %946 = vmatpush.msra.mxu0 %v914
        %947 = vmatmul.f32.gmra.mxu0 %v927
        %v948 = vpop.f32.mrf.mxu0
        %v949 = vadd.f32 0.0, %v948
        %950 = vmatmul.f32.gmra.mxu0 %v929
        %v951 = vpop.f32.mrf.mxu0
        %v952 = vadd.f32 0.0, %v951
        %953 = vdwg.mxu0
        %v954 = vsel %vm715, %v903, 0
        %v956 = vsel %vm715, %v904, 0
        %958 = vmatpush.msra.mxu0 0.0
        %959 = vmatpush.msra.mxu0 0.0
        %960 = vmatpush.msra.mxu0 0.0
        %961 = vmatpush.msra.mxu0 0.0
        %962 = vmatpush.msra.mxu0 0.0
        %963 = vmatpush.msra.mxu0 0.0
        %964 = vmatpush.msra.mxu0 0.0
        %965 = vmatpush.msra.mxu0 0.0
        %966 = vmatpush.msra.mxu0 %v912
        %967 = vmatpush.msra.mxu0 %v911
        %968 = vmatpush.msra.mxu0 %v910
        %969 = vmatpush.msra.mxu0 %v909
        %970 = vmatpush.msra.mxu0 %v908
        %971 = vmatpush.msra.mxu0 %v907
        %972 = vmatpush.msra.mxu0 %v906
        %973 = vmatpush.msra.mxu0 %v905
        %974 = vmatmul.f32.gmra.mxu0 %v954
        %v975 = vpop.f32.mrf.mxu0
        %v976 = vadd.f32 %v949, %v975
        %977 = vmatmul.f32.gmra.mxu0 %v956
        %v978 = vpop.f32.mrf.mxu0
        %v979 = vadd.f32 %v952, %v978
        %980 = vdwg.mxu0
        %s981 = scalar_lea.vmem %s446, 128 [#allocation4]
        %v982 = vld [vmem:[%s981] sm:$0xff]
        %v983 = vld [vmem:[%s981 + $0x8] sm:$0xff]
        %v984 = vld [vmem:[%s981 + $0x10] sm:$0xff]
        %v985 = vld [vmem:[%s981 + $0x18] sm:$0xff]
        %v986 = vld [vmem:[%s981 + $0x20] sm:$0xff]
        %v987 = vld [vmem:[%s981 + $0x28] sm:$0xff]
        %v988 = vld [vmem:[%s981 + $0x30] sm:$0xff]
        %v989 = vld [vmem:[%s981 + $0x38] sm:$0xff]
        %v990 = vrot.slane %v903, 2
        %v991 = vrot.slane %v904, 2
        %v992 = vsel %vm625, %v990, %v991
        %v993 = vsel %vm715, %v992, 0
        %v995 = vsel %vm715, %v991, 0
        %997 = vmatpush.msra.mxu0 0.0
        %998 = vmatpush.msra.mxu0 0.0
        %999 = vmatpush.msra.mxu0 0.0
        %1000 = vmatpush.msra.mxu0 0.0
        %1001 = vmatpush.msra.mxu0 0.0
        %1002 = vmatpush.msra.mxu0 0.0
        %1003 = vmatpush.msra.mxu0 0.0
        %1004 = vmatpush.msra.mxu0 0.0
        %1005 = vmatpush.msra.mxu0 %v989
        %1006 = vmatpush.msra.mxu0 %v988
        %1007 = vmatpush.msra.mxu0 %v987
        %1008 = vmatpush.msra.mxu0 %v986
        %1009 = vmatpush.msra.mxu0 %v985
        %1010 = vmatpush.msra.mxu0 %v984
        %1011 = vmatpush.msra.mxu0 %v983
        %1012 = vmatpush.msra.mxu0 %v982
        %1013 = vmatmul.f32.gmra.mxu0 %v993
        %v1014 = vpop.f32.mrf.mxu0
        %v1015 = vadd.f32 0.0, %v1014
        %1016 = vmatmul.f32.gmra.mxu0 %v995
        %v1017 = vpop.f32.mrf.mxu0
        %v1018 = vadd.f32 0.0, %v1017
        %1019 = vdwg.mxu0
        %v1020 = vadd.f32 %v976, %v1015
        %v1021 = vadd.f32 %v979, %v1018
        %s1022 = scalar_lea.vmem %s446, 192 [#allocation4]
        %v1023 = vld [vmem:[%s1022] sm:$0xff]
        %v1024 = vld [vmem:[%s1022 + $0x8] sm:$0xff]
        %v1025 = vld [vmem:[%s1022 + $0x10] sm:$0xff]
        %v1026 = vld [vmem:[%s1022 + $0x18] sm:$0xff]
        %v1027 = vld [vmem:[%s1022 + $0x20] sm:$0xff]
        %v1028 = vld [vmem:[%s1022 + $0x28] sm:$0xff]
        %v1029 = vld [vmem:[%s1022 + $0x30] sm:$0xff]
        %v1030 = vld [vmem:[%s1022 + $0x38] sm:$0xff]
        %v1031 = vrot.slane %v903, 3
        %v1032 = vrot.slane %v904, 3
        %v1033 = vsel %vm648, %v1031, %v1032
        %v1034 = vsel %vm715, %v1033, 0
        %v1036 = vsel %vm715, %v1032, 0
        %1038 = vmatpush.msra.mxu0 0.0
        %1039 = vmatpush.msra.mxu0 0.0
        %1040 = vmatpush.msra.mxu0 0.0
        %1041 = vmatpush.msra.mxu0 0.0
        %1042 = vmatpush.msra.mxu0 0.0
        %1043 = vmatpush.msra.mxu0 0.0
        %1044 = vmatpush.msra.mxu0 0.0
        %1045 = vmatpush.msra.mxu0 0.0
        %1046 = vmatpush.msra.mxu0 %v1030
        %1047 = vmatpush.msra.mxu0 %v1029
        %1048 = vmatpush.msra.mxu0 %v1028
        %1049 = vmatpush.msra.mxu0 %v1027
        %1050 = vmatpush.msra.mxu0 %v1026
        %1051 = vmatpush.msra.mxu0 %v1025
        %1052 = vmatpush.msra.mxu0 %v1024
        %1053 = vmatpush.msra.mxu0 %v1023
        %1054 = vmatmul.f32.gmra.mxu0 %v1034
        %v1055 = vpop.f32.mrf.mxu0
        %v1056 = vadd.f32 0.0, %v1055
        %1057 = vmatmul.f32.gmra.mxu0 %v1036
        %v1058 = vpop.f32.mrf.mxu0
        %v1059 = vadd.f32 0.0, %v1058
        %1060 = vdwg.mxu0
        %v1061 = vadd.f32 %v1020, %v1056
        %v1062 = vadd.f32 %v1021, %v1059
        %s1063 = scalar_lea.vmem %s446, 256 [#allocation4]
        %v1064 = vld [vmem:[%s1063] sm:$0xff]
        %v1065 = vld [vmem:[%s1063 + $0x8] sm:$0xff]
        %v1066 = vld [vmem:[%s1063 + $0x10] sm:$0xff]
        %v1067 = vld [vmem:[%s1063 + $0x18] sm:$0xff]
        %v1068 = vld [vmem:[%s1063 + $0x20] sm:$0xff]
        %v1069 = vld [vmem:[%s1063 + $0x28] sm:$0xff]
        %v1070 = vld [vmem:[%s1063 + $0x30] sm:$0xff]
        %v1071 = vld [vmem:[%s1063 + $0x38] sm:$0xff]
        %v1072 = vrot.slane %v903, 4
        %v1073 = vrot.slane %v904, 4
        %v1074 = vsel %vm671, %v1072, %v1073
        %v1075 = vsel %vm715, %v1074, 0
        %v1077 = vsel %vm715, %v1073, 0
        %1079 = vmatpush.msra.mxu0 0.0
        %1080 = vmatpush.msra.mxu0 0.0
        %1081 = vmatpush.msra.mxu0 0.0
        %1082 = vmatpush.msra.mxu0 0.0
        %1083 = vmatpush.msra.mxu0 0.0
        %1084 = vmatpush.msra.mxu0 0.0
        %1085 = vmatpush.msra.mxu0 0.0
        %1086 = vmatpush.msra.mxu0 0.0
        %1087 = vmatpush.msra.mxu0 %v1071
        %1088 = vmatpush.msra.mxu0 %v1070
        %1089 = vmatpush.msra.mxu0 %v1069
        %1090 = vmatpush.msra.mxu0 %v1068
        %1091 = vmatpush.msra.mxu0 %v1067
        %1092 = vmatpush.msra.mxu0 %v1066
        %1093 = vmatpush.msra.mxu0 %v1065
        %1094 = vmatpush.msra.mxu0 %v1064
        %1095 = vmatmul.f32.gmra.mxu0 %v1075
        %v1096 = vpop.f32.mrf.mxu0
        %v1097 = vadd.f32 0.0, %v1096
        %1098 = vmatmul.f32.gmra.mxu0 %v1077
        %v1099 = vpop.f32.mrf.mxu0
        %v1100 = vadd.f32 0.0, %v1099
        %1101 = vdwg.mxu0
        %v1102 = vadd.f32 %v1061, %v1097
        %v1103 = vadd.f32 %v1062, %v1100
        %v1104 = vld [vmem:[%s551] sm:$0x1]
        %v1106 = vperm.slane %v1104, 0
        %v1108 = vadd.f32 %v1102, %v1106
        %v1109 = vadd.f32 %v1103, %v1106
        %v1110 = vld [vmem:[%s456] sm:$0xff]
        %v1111 = vld [vmem:[%s456 + $0x8] sm:$0xff]
        %v1112 = vld [vmem:[%s456 + $0x10] sm:$0xff]
        %v1113 = vld [vmem:[%s456 + $0x18] sm:$0xff]
        %v1114 = vld [vmem:[%s456 + $0x20] sm:$0xff]
        %v1115 = vld [vmem:[%s456 + $0x28] sm:$0xff]
        %v1116 = vld [vmem:[%s456 + $0x30] sm:$0xff]
        %v1117 = vld [vmem:[%s456 + $0x38] sm:$0xff]
        %s1118 = scalar_lea.vmem %s456, 64 [#allocation6]
        %v1119 = vld [vmem:[%s1118] sm:$0xff]
        %v1120 = vld [vmem:[%s1118 + $0x8] sm:$0xff]
        %v1121 = vld [vmem:[%s1118 + $0x10] sm:$0xff]
        %v1122 = vld [vmem:[%s1118 + $0x18] sm:$0xff]
        %v1123 = vld [vmem:[%s1118 + $0x20] sm:$0xff]
        %v1124 = vld [vmem:[%s1118 + $0x28] sm:$0xff]
        %v1125 = vld [vmem:[%s1118 + $0x30] sm:$0xff]
        %v1126 = vld [vmem:[%s1118 + $0x38] sm:$0xff]
        %v1129 = vrot.slane %v1108, 1
        %v1130 = vrot.slane %v1109, 1
        %v1131 = vsel %vm602, %v1129, %v1130
        %v1132 = vsel %vm715, %v1131, 0
        %1134 = vmatpush.msra.mxu0 0.0
        %1135 = vmatpush.msra.mxu0 0.0
        %1136 = vmatpush.msra.mxu0 0.0
        %1137 = vmatpush.msra.mxu0 0.0
        %1138 = vmatpush.msra.mxu0 0.0
        %1139 = vmatpush.msra.mxu0 0.0
        %1140 = vmatpush.msra.mxu0 0.0
        %1141 = vmatpush.msra.mxu0 0.0
        %1142 = vmatpush.msra.mxu0 %v1126
        %1143 = vmatpush.msra.mxu0 %v1125
        %1144 = vmatpush.msra.mxu0 %v1124
        %1145 = vmatpush.msra.mxu0 %v1123
        %1146 = vmatpush.msra.mxu0 %v1122
        %1147 = vmatpush.msra.mxu0 %v1121
        %1148 = vmatpush.msra.mxu0 %v1120
        %1149 = vmatpush.msra.mxu0 %v1119
        %1150 = vmatmul.f32.gmra.mxu0 %v1132
        %v1151 = vpop.f32.mrf.mxu0
        %v1152 = vadd.f32 0.0, %v1151
        %1153 = vdwg.mxu0
        %v1154 = vsel %vm715, %v1108, 0
        %1156 = vmatpush.msra.mxu0 0.0
        %1157 = vmatpush.msra.mxu0 0.0
        %1158 = vmatpush.msra.mxu0 0.0
        %1159 = vmatpush.msra.mxu0 0.0
        %1160 = vmatpush.msra.mxu0 0.0
        %1161 = vmatpush.msra.mxu0 0.0
        %1162 = vmatpush.msra.mxu0 0.0
        %1163 = vmatpush.msra.mxu0 0.0
        %1164 = vmatpush.msra.mxu0 %v1117
        %1165 = vmatpush.msra.mxu0 %v1116
        %1166 = vmatpush.msra.mxu0 %v1115
        %1167 = vmatpush.msra.mxu0 %v1114
        %1168 = vmatpush.msra.mxu0 %v1113
        %1169 = vmatpush.msra.mxu0 %v1112
        %1170 = vmatpush.msra.mxu0 %v1111
        %1171 = vmatpush.msra.mxu0 %v1110
        %1172 = vmatmul.f32.gmra.mxu0 %v1154
        %v1173 = vpop.f32.mrf.mxu0
        %v1174 = vadd.f32 %v1152, %v1173
        %1175 = vdwg.mxu0
        %s1176 = scalar_lea.vmem %s456, 128 [#allocation6]
        %v1177 = vld [vmem:[%s1176] sm:$0xff]
        %v1178 = vld [vmem:[%s1176 + $0x8] sm:$0xff]
        %v1179 = vld [vmem:[%s1176 + $0x10] sm:$0xff]
        %v1180 = vld [vmem:[%s1176 + $0x18] sm:$0xff]
        %v1181 = vld [vmem:[%s1176 + $0x20] sm:$0xff]
        %v1182 = vld [vmem:[%s1176 + $0x28] sm:$0xff]
        %v1183 = vld [vmem:[%s1176 + $0x30] sm:$0xff]
        %v1184 = vld [vmem:[%s1176 + $0x38] sm:$0xff]
        %v1185 = vrot.slane %v1108, 2
        %v1186 = vrot.slane %v1109, 2
        %v1187 = vsel %vm625, %v1185, %v1186
        %v1188 = vsel %vm715, %v1187, 0
        %1190 = vmatpush.msra.mxu0 0.0
        %1191 = vmatpush.msra.mxu0 0.0
        %1192 = vmatpush.msra.mxu0 0.0
        %1193 = vmatpush.msra.mxu0 0.0
        %1194 = vmatpush.msra.mxu0 0.0
        %1195 = vmatpush.msra.mxu0 0.0
        %1196 = vmatpush.msra.mxu0 0.0
        %1197 = vmatpush.msra.mxu0 0.0
        %1198 = vmatpush.msra.mxu0 %v1184
        %1199 = vmatpush.msra.mxu0 %v1183
        %1200 = vmatpush.msra.mxu0 %v1182
        %1201 = vmatpush.msra.mxu0 %v1181
        %1202 = vmatpush.msra.mxu0 %v1180
        %1203 = vmatpush.msra.mxu0 %v1179
        %1204 = vmatpush.msra.mxu0 %v1178
        %1205 = vmatpush.msra.mxu0 %v1177
        %1206 = vmatmul.f32.gmra.mxu0 %v1188
        %v1207 = vpop.f32.mrf.mxu0
        %v1208 = vadd.f32 0.0, %v1207
        %1209 = vdwg.mxu0
        %v1210 = vadd.f32 %v1174, %v1208
        %s1211 = scalar_lea.vmem %s456, 192 [#allocation6]
        %v1212 = vld [vmem:[%s1211] sm:$0xff]
        %v1213 = vld [vmem:[%s1211 + $0x8] sm:$0xff]
        %v1214 = vld [vmem:[%s1211 + $0x10] sm:$0xff]
        %v1215 = vld [vmem:[%s1211 + $0x18] sm:$0xff]
        %v1216 = vld [vmem:[%s1211 + $0x20] sm:$0xff]
        %v1217 = vld [vmem:[%s1211 + $0x28] sm:$0xff]
        %v1218 = vld [vmem:[%s1211 + $0x30] sm:$0xff]
        %v1219 = vld [vmem:[%s1211 + $0x38] sm:$0xff]
        %v1220 = vrot.slane %v1108, 3
        %v1221 = vrot.slane %v1109, 3
        %v1222 = vsel %vm648, %v1220, %v1221
        %v1223 = vsel %vm715, %v1222, 0
        %1225 = vmatpush.msra.mxu0 0.0
        %1226 = vmatpush.msra.mxu0 0.0
        %1227 = vmatpush.msra.mxu0 0.0
        %1228 = vmatpush.msra.mxu0 0.0
        %1229 = vmatpush.msra.mxu0 0.0
        %1230 = vmatpush.msra.mxu0 0.0
        %1231 = vmatpush.msra.mxu0 0.0
        %1232 = vmatpush.msra.mxu0 0.0
        %1233 = vmatpush.msra.mxu0 %v1219
        %1234 = vmatpush.msra.mxu0 %v1218
        %1235 = vmatpush.msra.mxu0 %v1217
        %1236 = vmatpush.msra.mxu0 %v1216
        %1237 = vmatpush.msra.mxu0 %v1215
        %1238 = vmatpush.msra.mxu0 %v1214
        %1239 = vmatpush.msra.mxu0 %v1213
        %1240 = vmatpush.msra.mxu0 %v1212
        %1241 = vmatmul.f32.gmra.mxu0 %v1223
        %v1242 = vpop.f32.mrf.mxu0
        %v1243 = vadd.f32 0.0, %v1242
        %1244 = vdwg.mxu0
        %v1245 = vadd.f32 %v1210, %v1243
        %s1246 = scalar_lea.vmem %s456, 256 [#allocation6]
        %v1247 = vld [vmem:[%s1246] sm:$0xff]
        %v1248 = vld [vmem:[%s1246 + $0x8] sm:$0xff]
        %v1249 = vld [vmem:[%s1246 + $0x10] sm:$0xff]
        %v1250 = vld [vmem:[%s1246 + $0x18] sm:$0xff]
        %v1251 = vld [vmem:[%s1246 + $0x20] sm:$0xff]
        %v1252 = vld [vmem:[%s1246 + $0x28] sm:$0xff]
        %v1253 = vld [vmem:[%s1246 + $0x30] sm:$0xff]
        %v1254 = vld [vmem:[%s1246 + $0x38] sm:$0xff]
        %v1255 = vrot.slane %v1108, 4
        %v1256 = vrot.slane %v1109, 4
        %v1257 = vsel %vm671, %v1255, %v1256
        %v1258 = vsel %vm715, %v1257, 0
        %1260 = vmatpush.msra.mxu0 0.0
        %1261 = vmatpush.msra.mxu0 0.0
        %1262 = vmatpush.msra.mxu0 0.0
        %1263 = vmatpush.msra.mxu0 0.0
        %1264 = vmatpush.msra.mxu0 0.0
        %1265 = vmatpush.msra.mxu0 0.0
        %1266 = vmatpush.msra.mxu0 0.0
        %1267 = vmatpush.msra.mxu0 0.0
        %1268 = vmatpush.msra.mxu0 %v1254
        %1269 = vmatpush.msra.mxu0 %v1253
        %1270 = vmatpush.msra.mxu0 %v1252
        %1271 = vmatpush.msra.mxu0 %v1251
        %1272 = vmatpush.msra.mxu0 %v1250
        %1273 = vmatpush.msra.mxu0 %v1249
        %1274 = vmatpush.msra.mxu0 %v1248
        %1275 = vmatpush.msra.mxu0 %v1247
        %1276 = vmatmul.f32.gmra.mxu0 %v1258
        %v1277 = vpop.f32.mrf.mxu0
        %v1278 = vadd.f32 0.0, %v1277
        %1279 = vdwg.mxu0
        %v1280 = vadd.f32 %v1245, %v1278
        %v1281 = vld [vmem:[%s554] sm:$0x1]
        %v1283 = vperm.slane %v1281, 0
        %v1285 = vadd.f32 %v1280, %v1283
        %1286 = vst.msk [vmem:[%s562] sm:$0xff] %vm715, %v1285
        %p1287 = scmp.lt.s32.totalorder %s30, 1
        %s1288 = scalar_select %p1287, %s30, 1
        %p1289 = scmp.lt.s32.totalorder %s31, 7
        %s1290 = scalar_select %p1289, %s31, 7
        %s1291 = smul.addr %s1288, 8
        %s1292 = sadd.s32 %s1290, %s1291
        %s1293 = smul.addr %s1292, 8
        %s1294 = scalar_lea.vmem %s9, %s1293
        // Predicated region
        $region69: #{forward.3} parent=55 // pred_check
          %p1295 = pneg %p294
        $region70: #{forward.3} parent=55 // pred_check_branch
          %1297 = sbr.rel (%p1295) target = $region72
        $region71: #{forward.3} parent=55 // pred_region
          _
        $region72: #{forward.3} parent=55 // pred_fallthru
          _
      $region56: #{forward.3} parent=5 // pred_fallthru
        _
      %p1298 = scmp.le.s32.totalorder 2, %s21
      // Predicated region
      $region73: #{forward.3} parent=5 // pred_check
        %p1299 = pneg %p1298
      $region74: #{forward.3} parent=5 // pred_check_branch
        %1301 = sbr.rel (%p1299) target = $region76
      $region75: #{forward.3} parent=5 // pred_region
        %s1302 = ssub.s32 %s21, 2
        // Predicated region
        $region77: #{forward.3} parent=75 // pred_check
          %p1303 = pneg %p300
        $region78: #{forward.3} parent=75 // pred_check_branch
          %1305 = sbr.rel (%p1303) target = $region80
        $region79: #{forward.3} parent=75 // pred_region
          %p1306 = scmp.lt.s32.totalorder %s32, 1
          %s1307 = scalar_select %p1306, %s32, 1
          %p1308 = scmp.lt.s32.totalorder %s33, 7
          %s1309 = scalar_select %p1308, %s33, 7
          %s1310 = smul.addr %s1307, 8
          %s1311 = sadd.s32 %s1309, %s1310
          %s1312 = smul.addr %s1311, 8
          %s1313 = scalar_lea.vmem %s9, %s1312
        $region80: #{forward.3} parent=75 // pred_fallthru
          _
      $region76: #{forward.3} parent=5 // pred_fallthru
        _
    $region6: #{forward.3} parent=1 // loop_footer
      %s25 = sadd.s32 1, %s21
    $region7: #{forward.3} parent=1 // loop_footer_branch
      %20 = sbr.rel target = $region3
    $region8: #{forward.3} parent=1 // loop_exit
      _
    %1314 = vsyncpa [#allocation3], 1
    %s1315 = scalar_lea.sflag [#allocation3], 1
    %1316 = vsyncpa %s1315, 1
    %1317 = vsyncpa [#allocation5], 1
    %s1318 = scalar_lea.sflag [#allocation5], 1
    %1319 = vsyncpa %s1318, 1

// kernel: forward.5
$region0: #{forward.5}
  #allocation0 [shape = 'u32[]', space=smem, size = 0x4, offset = 0x4, fixed_abs, tag = 'smem constant byte address 0x4 - core index']
  #allocation1 [shape = 'u32[72,128]{1,0:T(1,128)}', space=vmem, size = 0x9000, scoped, tag = 'internal scratch']
  %s0 = inlined_call_operand.vmem [shape: f32[2,2048], index: 0, kind: input, shape index: {}]
  %s1 = inlined_call_operand.vmem [shape: f32[2048,128], index: 1, kind: input, shape index: {}]
  %s2 = inlined_call_operand.vmem [shape: f32[1,128], index: 2, kind: input, shape index: {}]
  %s3 = inlined_call_operand.vmem [shape: f32[2,128], index: 3, kind: output, shape index: {}]
  %s4 = sld [smem:[#allocation0]]
  $region22: #{forward.5} parent=0
    _
  %s6 = ssub.s32 1, %s4
  %s7 = scalar_select 0, %s6, %s4
  // Predicated region
  $region2: #{forward.5} parent=0 // pred_check
    _
  $region3: #{forward.5} parent=0 // pred_check_branch
    %9 = sbr.rel (0) target = $region5
  $region4: #{forward.5} parent=0 // pred_region
    _
  $region5: #{forward.5} parent=0 // pred_fallthru
    _
  // Predicated region
  $region6: #{forward.5} parent=0 // pred_check
    _
  $region7: #{forward.5} parent=0 // pred_check_branch
    %11 = sbr.rel (0) target = $region9
  $region8: #{forward.5} parent=0 // pred_region
    _
  $region9: #{forward.5} parent=0 // pred_fallthru
    _
  // Predicated region
  $region10: #{forward.5} parent=0 // pred_check
    _
  $region11: #{forward.5} parent=0 // pred_check_branch
    %13 = sbr.rel (0) target = $region13
  $region12: #{forward.5} parent=0 // pred_region
    _
  $region13: #{forward.5} parent=0 // pred_fallthru
    _
  %v14 = vld [vmem:[%s0] sm:$0xff]
  %v15 = vld [vmem:[%s0 + $0x8] sm:$0xff]
  %v16 = vld [vmem:[%s0 + $0x10] sm:$0xff]
  %v17 = vld [vmem:[%s0 + $0x18] sm:$0xff]
  %v18 = vld [vmem:[%s1] sm:$0xff]
  %v19 = vld [vmem:[%s1 + $0x8] sm:$0xff]
  %v20 = vld [vmem:[%s1 + $0x10] sm:$0xff]
  %v21 = vld [vmem:[%s1 + $0x18] sm:$0xff]
  %v22 = vld [vmem:[%s1 + $0x20] sm:$0xff]
  %v23 = vld [vmem:[%s1 + $0x28] sm:$0xff]
  %v24 = vld [vmem:[%s1 + $0x30] sm:$0xff]
  %v25 = vld [vmem:[%s1 + $0x38] sm:$0xff]
  %v26 = vld [vmem:[%s1 + $0x40] sm:$0xff]
  %v27 = vld [vmem:[%s1 + $0x48] sm:$0xff]
  %v28 = vld [vmem:[%s1 + $0x50] sm:$0xff]
  %v29 = vld [vmem:[%s1 + $0x58] sm:$0xff]
  %v30 = vld [vmem:[%s1 + $0x60] sm:$0xff]
  %v31 = vld [vmem:[%s1 + $0x68] sm:$0xff]
  %v32 = vld [vmem:[%s1 + $0x70] sm:$0xff]
  %v33 = vld [vmem:[%s1 + $0x78] sm:$0xff]
  %v34 = vld [vmem:[%s1 + $0x80] sm:$0xff]
  %v35 = vld [vmem:[%s1 + $0x88] sm:$0xff]
  %v36 = vld [vmem:[%s1 + $0x90] sm:$0xff]
  %v37 = vld [vmem:[%s1 + $0x98] sm:$0xff]
  %v38 = vld [vmem:[%s1 + $0xa0] sm:$0xff]
  %v39 = vld [vmem:[%s1 + $0xa8] sm:$0xff]
  %v40 = vld [vmem:[%s1 + $0xb0] sm:$0xff]
  %v41 = vld [vmem:[%s1 + $0xb8] sm:$0xff]
  %v42 = vld [vmem:[%s1 + $0xc0] sm:$0xff]
  %v43 = vld [vmem:[%s1 + $0xc8] sm:$0xff]
  %v44 = vld [vmem:[%s1 + $0xd0] sm:$0xff]
  %v45 = vld [vmem:[%s1 + $0xd8] sm:$0xff]
  %v46 = vld [vmem:[%s1 + $0xe0] sm:$0xff]
  %v47 = vld [vmem:[%s1 + $0xe8] sm:$0xff]
  %v48 = vld [vmem:[%s1 + $0xf0] sm:$0xff]
  %v49 = vld [vmem:[%s1 + $0xf8] sm:$0xff]
  %v50 = vld [vmem:[%s1 + $0x100] sm:$0xff]
  %v51 = vld [vmem:[%s1 + $0x108] sm:$0xff]
  %v52 = vld [vmem:[%s1 + $0x110] sm:$0xff]
  %v53 = vld [vmem:[%s1 + $0x118] sm:$0xff]
  %v54 = vld [vmem:[%s1 + $0x120] sm:$0xff]
  %v55 = vld [vmem:[%s1 + $0x128] sm:$0xff]
  %v56 = vld [vmem:[%s1 + $0x130] sm:$0xff]
  %v57 = vld [vmem:[%s1 + $0x138] sm:$0xff]
  %v58 = vld [vmem:[%s1 + $0x140] sm:$0xff]
  %v59 = vld [vmem:[%s1 + $0x148] sm:$0xff]
  %v60 = vld [vmem:[%s1 + $0x150] sm:$0xff]
  %v61 = vld [vmem:[%s1 + $0x158] sm:$0xff]
  %v62 = vld [vmem:[%s1 + $0x160] sm:$0xff]
  %v63 = vld [vmem:[%s1 + $0x168] sm:$0xff]
  %v64 = vld [vmem:[%s1 + $0x170] sm:$0xff]
  %v65 = vld [vmem:[%s1 + $0x178] sm:$0xff]
  %v66 = vld [vmem:[%s1 + $0x180] sm:$0xff]
  %v67 = vld [vmem:[%s1 + $0x188] sm:$0xff]
  %v68 = vld [vmem:[%s1 + $0x190] sm:$0xff]
  %v69 = vld [vmem:[%s1 + $0x198] sm:$0xff]
  %v70 = vld [vmem:[%s1 + $0x1a0] sm:$0xff]
  %v71 = vld [vmem:[%s1 + $0x1a8] sm:$0xff]
  %v72 = vld [vmem:[%s1 + $0x1b0] sm:$0xff]
  %v73 = vld [vmem:[%s1 + $0x1b8] sm:$0xff]
  %v74 = vld [vmem:[%s1 + $0x1c0] sm:$0xff]
  %v75 = vld [vmem:[%s1 + $0x1c8] sm:$0xff]
  %v76 = vld [vmem:[%s1 + $0x1d0] sm:$0xff]
  %v77 = vld [vmem:[%s1 + $0x1d8] sm:$0xff]
  %v78 = vld [vmem:[%s1 + $0x1e0] sm:$0xff]
  %v79 = vld [vmem:[%s1 + $0x1e8] sm:$0xff]
  %v80 = vld [vmem:[%s1 + $0x1f0] sm:$0xff]
  %v81 = vld [vmem:[%s1 + $0x1f8] sm:$0xff]
  %v82 = vld [vmem:[%s1 + $0x200] sm:$0xff]
  %v83 = vld [vmem:[%s1 + $0x208] sm:$0xff]
  %v84 = vld [vmem:[%s1 + $0x210] sm:$0xff]
  %v85 = vld [vmem:[%s1 + $0x218] sm:$0xff]
  %v86 = vld [vmem:[%s1 + $0x220] sm:$0xff]
  %v87 = vld [vmem:[%s1 + $0x228] sm:$0xff]
  %v88 = vld [vmem:[%s1 + $0x230] sm:$0xff]
  %v89 = vld [vmem:[%s1 + $0x238] sm:$0xff]
  %v90 = vld [vmem:[%s1 + $0x240] sm:$0xff]
  %v91 = vld [vmem:[%s1 + $0x248] sm:$0xff]
  %v92 = vld [vmem:[%s1 + $0x250] sm:$0xff]
  %v93 = vld [vmem:[%s1 + $0x258] sm:$0xff]
  %v94 = vld [vmem:[%s1 + $0x260] sm:$0xff]
  %v95 = vld [vmem:[%s1 + $0x268] sm:$0xff]
  %v96 = vld [vmem:[%s1 + $0x270] sm:$0xff]
  %v97 = vld [vmem:[%s1 + $0x278] sm:$0xff]
  %v98 = vld [vmem:[%s1 + $0x280] sm:$0xff]
  %v99 = vld [vmem:[%s1 + $0x288] sm:$0xff]
  %v100 = vld [vmem:[%s1 + $0x290] sm:$0xff]
  %v101 = vld [vmem:[%s1 + $0x298] sm:$0xff]
  %v102 = vld [vmem:[%s1 + $0x2a0] sm:$0xff]
  %v103 = vld [vmem:[%s1 + $0x2a8] sm:$0xff]
  %v104 = vld [vmem:[%s1 + $0x2b0] sm:$0xff]
  %v105 = vld [vmem:[%s1 + $0x2b8] sm:$0xff]
  %v106 = vld [vmem:[%s1 + $0x2c0] sm:$0xff]
  %v107 = vld [vmem:[%s1 + $0x2c8] sm:$0xff]
  %v108 = vld [vmem:[%s1 + $0x2d0] sm:$0xff]
  %v109 = vld [vmem:[%s1 + $0x2d8] sm:$0xff]
  %v110 = vld [vmem:[%s1 + $0x2e0] sm:$0xff]
  %v111 = vld [vmem:[%s1 + $0x2e8] sm:$0xff]
  %v112 = vld [vmem:[%s1 + $0x2f0] sm:$0xff]
  %v113 = vld [vmem:[%s1 + $0x2f8] sm:$0xff]
  %v114 = vld [vmem:[%s1 + $0x300] sm:$0xff]
  %v115 = vld [vmem:[%s1 + $0x308] sm:$0xff]
  %v116 = vld [vmem:[%s1 + $0x310] sm:$0xff]
  %v117 = vld [vmem:[%s1 + $0x318] sm:$0xff]
  %v118 = vld [vmem:[%s1 + $0x320] sm:$0xff]
  %v119 = vld [vmem:[%s1 + $0x328] sm:$0xff]
  %v120 = vld [vmem:[%s1 + $0x330] sm:$0xff]
  %v121 = vld [vmem:[%s1 + $0x338] sm:$0xff]
  %v122 = vld [vmem:[%s1 + $0x340] sm:$0xff]
  %v123 = vld [vmem:[%s1 + $0x348] sm:$0xff]
  %v124 = vld [vmem:[%s1 + $0x350] sm:$0xff]
  %v125 = vld [vmem:[%s1 + $0x358] sm:$0xff]
  %v126 = vld [vmem:[%s1 + $0x360] sm:$0xff]
  %v127 = vld [vmem:[%s1 + $0x368] sm:$0xff]
  %v128 = vld [vmem:[%s1 + $0x370] sm:$0xff]
  %v129 = vld [vmem:[%s1 + $0x378] sm:$0xff]
  %v130 = vld [vmem:[%s1 + $0x380] sm:$0xff]
  %v131 = vld [vmem:[%s1 + $0x388] sm:$0xff]
  %v132 = vld [vmem:[%s1 + $0x390] sm:$0xff]
  %v133 = vld [vmem:[%s1 + $0x398] sm:$0xff]
  %v134 = vld [vmem:[%s1 + $0x3a0] sm:$0xff]
  %v135 = vld [vmem:[%s1 + $0x3a8] sm:$0xff]
  %v136 = vld [vmem:[%s1 + $0x3b0] sm:$0xff]
  %v137 = vld [vmem:[%s1 + $0x3b8] sm:$0xff]
  %v138 = vld [vmem:[%s1 + $0x3c0] sm:$0xff]
  %v139 = vld [vmem:[%s1 + $0x3c8] sm:$0xff]
  %v140 = vld [vmem:[%s1 + $0x3d0] sm:$0xff]
  %v141 = vld [vmem:[%s1 + $0x3d8] sm:$0xff]
  %v142 = vld [vmem:[%s1 + $0x3e0] sm:$0xff]
  %v143 = vld [vmem:[%s1 + $0x3e8] sm:$0xff]
  %v144 = vld [vmem:[%s1 + $0x3f0] sm:$0xff]
  %v145 = vld [vmem:[%s1 + $0x3f8] sm:$0xff]
  %v146 = vld [vmem:[%s1 + $0x400] sm:$0xff]
  %v147 = vld [vmem:[%s1 + $0x408] sm:$0xff]
  %v148 = vld [vmem:[%s1 + $0x410] sm:$0xff]
  %v149 = vld [vmem:[%s1 + $0x418] sm:$0xff]
  %v150 = vld [vmem:[%s1 + $0x420] sm:$0xff]
  %v151 = vld [vmem:[%s1 + $0x428] sm:$0xff]
  %v152 = vld [vmem:[%s1 + $0x430] sm:$0xff]
  %v153 = vld [vmem:[%s1 + $0x438] sm:$0xff]
  %v154 = vld [vmem:[%s1 + $0x440] sm:$0xff]
  %v155 = vld [vmem:[%s1 + $0x448] sm:$0xff]
  %v156 = vld [vmem:[%s1 + $0x450] sm:$0xff]
  %v157 = vld [vmem:[%s1 + $0x458] sm:$0xff]
  %v158 = vld [vmem:[%s1 + $0x460] sm:$0xff]
  %v159 = vld [vmem:[%s1 + $0x468] sm:$0xff]
  %v160 = vld [vmem:[%s1 + $0x470] sm:$0xff]
  %v161 = vld [vmem:[%s1 + $0x478] sm:$0xff]
  %v162 = vld [vmem:[%s1 + $0x480] sm:$0xff]
  %v163 = vld [vmem:[%s1 + $0x488] sm:$0xff]
  %v164 = vld [vmem:[%s1 + $0x490] sm:$0xff]
  %v165 = vld [vmem:[%s1 + $0x498] sm:$0xff]
  %v166 = vld [vmem:[%s1 + $0x4a0] sm:$0xff]
  %v167 = vld [vmem:[%s1 + $0x4a8] sm:$0xff]
  %v168 = vld [vmem:[%s1 + $0x4b0] sm:$0xff]
  %v169 = vld [vmem:[%s1 + $0x4b8] sm:$0xff]
  %v170 = vld [vmem:[%s1 + $0x4c0] sm:$0xff]
  %v171 = vld [vmem:[%s1 + $0x4c8] sm:$0xff]
  %v172 = vld [vmem:[%s1 + $0x4d0] sm:$0xff]
  %v173 = vld [vmem:[%s1 + $0x4d8] sm:$0xff]
  %v174 = vld [vmem:[%s1 + $0x4e0] sm:$0xff]
  %v175 = vld [vmem:[%s1 + $0x4e8] sm:$0xff]
  %v176 = vld [vmem:[%s1 + $0x4f0] sm:$0xff]
  %v177 = vld [vmem:[%s1 + $0x4f8] sm:$0xff]
  %v178 = vld [vmem:[%s1 + $0x500] sm:$0xff]
  %v179 = vld [vmem:[%s1 + $0x508] sm:$0xff]
  %v180 = vld [vmem:[%s1 + $0x510] sm:$0xff]
  %v181 = vld [vmem:[%s1 + $0x518] sm:$0xff]
  %v182 = vld [vmem:[%s1 + $0x520] sm:$0xff]
  %v183 = vld [vmem:[%s1 + $0x528] sm:$0xff]
  %v184 = vld [vmem:[%s1 + $0x530] sm:$0xff]
  %v185 = vld [vmem:[%s1 + $0x538] sm:$0xff]
  %v186 = vld [vmem:[%s1 + $0x540] sm:$0xff]
  %v187 = vld [vmem:[%s1 + $0x548] sm:$0xff]
  %v188 = vld [vmem:[%s1 + $0x550] sm:$0xff]
  %v189 = vld [vmem:[%s1 + $0x558] sm:$0xff]
  %v190 = vld [vmem:[%s1 + $0x560] sm:$0xff]
  %v191 = vld [vmem:[%s1 + $0x568] sm:$0xff]
  %v192 = vld [vmem:[%s1 + $0x570] sm:$0xff]
  %v193 = vld [vmem:[%s1 + $0x578] sm:$0xff]
  %v194 = vld [vmem:[%s1 + $0x580] sm:$0xff]
  %v195 = vld [vmem:[%s1 + $0x588] sm:$0xff]
  %v196 = vld [vmem:[%s1 + $0x590] sm:$0xff]
  %v197 = vld [vmem:[%s1 + $0x598] sm:$0xff]
  %v198 = vld [vmem:[%s1 + $0x5a0] sm:$0xff]
  %v199 = vld [vmem:[%s1 + $0x5a8] sm:$0xff]
  %v200 = vld [vmem:[%s1 + $0x5b0] sm:$0xff]
  %v201 = vld [vmem:[%s1 + $0x5b8] sm:$0xff]
  %v202 = vld [vmem:[%s1 + $0x5c0] sm:$0xff]
  %v203 = vld [vmem:[%s1 + $0x5c8] sm:$0xff]
  %v204 = vld [vmem:[%s1 + $0x5d0] sm:$0xff]
  %v205 = vld [vmem:[%s1 + $0x5d8] sm:$0xff]
  %v206 = vld [vmem:[%s1 + $0x5e0] sm:$0xff]
  %v207 = vld [vmem:[%s1 + $0x5e8] sm:$0xff]
  %v208 = vld [vmem:[%s1 + $0x5f0] sm:$0xff]
  %v209 = vld [vmem:[%s1 + $0x5f8] sm:$0xff]
  %v210 = vld [vmem:[%s1 + $0x600] sm:$0xff]
  %v211 = vld [vmem:[%s1 + $0x608] sm:$0xff]
  %v212 = vld [vmem:[%s1 + $0x610] sm:$0xff]
  %v213 = vld [vmem:[%s1 + $0x618] sm:$0xff]
  %v214 = vld [vmem:[%s1 + $0x620] sm:$0xff]
  %v215 = vld [vmem:[%s1 + $0x628] sm:$0xff]
  %v216 = vld [vmem:[%s1 + $0x630] sm:$0xff]
  %v217 = vld [vmem:[%s1 + $0x638] sm:$0xff]
  %v218 = vld [vmem:[%s1 + $0x640] sm:$0xff]
  %v219 = vld [vmem:[%s1 + $0x648] sm:$0xff]
  %v220 = vld [vmem:[%s1 + $0x650] sm:$0xff]
  %v221 = vld [vmem:[%s1 + $0x658] sm:$0xff]
  %v222 = vld [vmem:[%s1 + $0x660] sm:$0xff]
  %v223 = vld [vmem:[%s1 + $0x668] sm:$0xff]
  %v224 = vld [vmem:[%s1 + $0x670] sm:$0xff]
  %v225 = vld [vmem:[%s1 + $0x678] sm:$0xff]
  %v226 = vld [vmem:[%s1 + $0x680] sm:$0xff]
  %v227 = vld [vmem:[%s1 + $0x688] sm:$0xff]
  %v228 = vld [vmem:[%s1 + $0x690] sm:$0xff]
  %v229 = vld [vmem:[%s1 + $0x698] sm:$0xff]
  %v230 = vld [vmem:[%s1 + $0x6a0] sm:$0xff]
  %v231 = vld [vmem:[%s1 + $0x6a8] sm:$0xff]
  %v232 = vld [vmem:[%s1 + $0x6b0] sm:$0xff]
  %v233 = vld [vmem:[%s1 + $0x6b8] sm:$0xff]
  %v234 = vld [vmem:[%s1 + $0x6c0] sm:$0xff]
  %v235 = vld [vmem:[%s1 + $0x6c8] sm:$0xff]
  %v236 = vld [vmem:[%s1 + $0x6d0] sm:$0xff]
  %v237 = vld [vmem:[%s1 + $0x6d8] sm:$0xff]
  %v238 = vld [vmem:[%s1 + $0x6e0] sm:$0xff]
  %v239 = vld [vmem:[%s1 + $0x6e8] sm:$0xff]
  %v240 = vld [vmem:[%s1 + $0x6f0] sm:$0xff]
  %v241 = vld [vmem:[%s1 + $0x6f8] sm:$0xff]
  %v242 = vld [vmem:[%s1 + $0x700] sm:$0xff]
  %v243 = vld [vmem:[%s1 + $0x708] sm:$0xff]
  %v244 = vld [vmem:[%s1 + $0x710] sm:$0xff]
  %v245 = vld [vmem:[%s1 + $0x718] sm:$0xff]
  %v246 = vld [vmem:[%s1 + $0x720] sm:$0xff]
  %v247 = vld [vmem:[%s1 + $0x728] sm:$0xff]
  %v248 = vld [vmem:[%s1 + $0x730] sm:$0xff]
  %v249 = vld [vmem:[%s1 + $0x738] sm:$0xff]
  %v250 = vld [vmem:[%s1 + $0x740] sm:$0xff]
  %v251 = vld [vmem:[%s1 + $0x748] sm:$0xff]
  %v252 = vld [vmem:[%s1 + $0x750] sm:$0xff]
  %v253 = vld [vmem:[%s1 + $0x758] sm:$0xff]
  %v254 = vld [vmem:[%s1 + $0x760] sm:$0xff]
  %v255 = vld [vmem:[%s1 + $0x768] sm:$0xff]
  %v256 = vld [vmem:[%s1 + $0x770] sm:$0xff]
  %v257 = vld [vmem:[%s1 + $0x778] sm:$0xff]
  %v258 = vld [vmem:[%s1 + $0x780] sm:$0xff]
  %v259 = vld [vmem:[%s1 + $0x788] sm:$0xff]
  %v260 = vld [vmem:[%s1 + $0x790] sm:$0xff]
  %v261 = vld [vmem:[%s1 + $0x798] sm:$0xff]
  %v262 = vld [vmem:[%s1 + $0x7a0] sm:$0xff]
  %v263 = vld [vmem:[%s1 + $0x7a8] sm:$0xff]
  %v264 = vld [vmem:[%s1 + $0x7b0] sm:$0xff]
  %v265 = vld [vmem:[%s1 + $0x7b8] sm:$0xff]
  %v266 = vld [vmem:[%s1 + $0x7c0] sm:$0xff]
  %v267 = vld [vmem:[%s1 + $0x7c8] sm:$0xff]
  %v268 = vld [vmem:[%s1 + $0x7d0] sm:$0xff]
  %v269 = vld [vmem:[%s1 + $0x7d8] sm:$0xff]
  %v270 = vld [vmem:[%s1 + $0x7e0] sm:$0xff]
  %v271 = vld [vmem:[%s1 + $0x7e8] sm:$0xff]
  %v272 = vld [vmem:[%s1 + $0x7f0] sm:$0xff]
  %v273 = vld [vmem:[%s1 + $0x7f8] sm:$0xff]
  %v274 = vld [vmem:[%s2] sm:$0x1]
  %v276 = vperm.slane %v274, 0
  %282 = vst [vmem:[#allocation1] ss:$4 sm:$0xff] %v14
  %s283 = scalar_lea.vmem [#allocation1], 32
  %284 = vst [vmem:[%s283] ss:$4 sm:$0xff] %v15
  %v285 = vld.sshfl [vmem:[#allocation1] sm:$0xff pattern:$0x73625140]
  %v286 = vld.sshfl [vmem:[#allocation1 + $0x8] sm:$0xff pattern:$0x73625140]
  %v287 = vld.sshfl [vmem:[#allocation1 + $0x10] sm:$0xff pattern:$0x73625140]
  %v288 = vld.sshfl [vmem:[#allocation1 + $0x18] sm:$0xff pattern:$0x73625140]
  %v289 = vld.sshfl [vmem:[#allocation1 + $0x20] sm:$0xff pattern:$0x73625140]
  %v290 = vld.sshfl [vmem:[#allocation1 + $0x28] sm:$0xff pattern:$0x73625140]
  %v291 = vld.sshfl [vmem:[#allocation1 + $0x30] sm:$0xff pattern:$0x73625140]
  %v292 = vld.sshfl [vmem:[#allocation1 + $0x38] sm:$0xff pattern:$0x73625140]
  %293 = vst [vmem:[#allocation1] ss:$4 sm:$0xff] %v16
  %294 = vst [vmem:[%s283] ss:$4 sm:$0xff] %v17
  %v295 = vld.sshfl [vmem:[#allocation1] sm:$0xff pattern:$0x73625140]
  %v296 = vld.sshfl [vmem:[#allocation1 + $0x8] sm:$0xff pattern:$0x73625140]
  %v297 = vld.sshfl [vmem:[#allocation1 + $0x10] sm:$0xff pattern:$0x73625140]
  %v298 = vld.sshfl [vmem:[#allocation1 + $0x18] sm:$0xff pattern:$0x73625140]
  %v299 = vld.sshfl [vmem:[#allocation1 + $0x20] sm:$0xff pattern:$0x73625140]
  %v300 = vld.sshfl [vmem:[#allocation1 + $0x28] sm:$0xff pattern:$0x73625140]
  %v301 = vld.sshfl [vmem:[#allocation1 + $0x30] sm:$0xff pattern:$0x73625140]
  %v302 = vld.sshfl [vmem:[#allocation1 + $0x38] sm:$0xff pattern:$0x73625140]
  %319 = vmatpush.msra.mxu0 %v33
  %320 = vmatpush.msra.mxu0 %v32
  %321 = vmatpush.msra.mxu0 %v31
  %322 = vmatpush.msra.mxu0 %v30
  %323 = vmatpush.msra.mxu0 %v29
  %324 = vmatpush.msra.mxu0 %v28
  %325 = vmatpush.msra.mxu0 %v27
  %326 = vmatpush.msra.mxu0 %v26
  %327 = vmatpush.msra.mxu0 %v25
  %328 = vmatpush.msra.mxu0 %v24
  %329 = vmatpush.msra.mxu0 %v23
  %330 = vmatpush.msra.mxu0 %v22
  %331 = vmatpush.msra.mxu0 %v21
  %332 = vmatpush.msra.mxu0 %v20
  %333 = vmatpush.msra.mxu0 %v19
  %334 = vmatpush.msra.mxu0 %v18
  %335 = vmatmul.f32.gmra.mxu0 %v285
  %v336 = vpop.f32.mrf.mxu0
  %v337 = vadd.f32 %v276, %v336
  %338 = vdwg.mxu0
  %339 = vmatpush.msra.mxu0 %v49
  %340 = vmatpush.msra.mxu0 %v48
  %341 = vmatpush.msra.mxu0 %v47
  %342 = vmatpush.msra.mxu0 %v46
  %343 = vmatpush.msra.mxu0 %v45
  %344 = vmatpush.msra.mxu0 %v44
  %345 = vmatpush.msra.mxu0 %v43
  %346 = vmatpush.msra.mxu0 %v42
  %347 = vmatpush.msra.mxu0 %v41
  %348 = vmatpush.msra.mxu0 %v40
  %349 = vmatpush.msra.mxu0 %v39
  %350 = vmatpush.msra.mxu0 %v38
  %351 = vmatpush.msra.mxu0 %v37
  %352 = vmatpush.msra.mxu0 %v36
  %353 = vmatpush.msra.mxu0 %v35
  %354 = vmatpush.msra.mxu0 %v34
  %355 = vmatmul.f32.gmra.mxu0 %v286
  %v356 = vpop.f32.mrf.mxu0
  %v357 = vadd.f32 %v337, %v356
  %358 = vdwg.mxu0
  %359 = vmatpush.msra.mxu0 %v65
  %360 = vmatpush.msra.mxu0 %v64
  %361 = vmatpush.msra.mxu0 %v63
  %362 = vmatpush.msra.mxu0 %v62
  %363 = vmatpush.msra.mxu0 %v61
  %364 = vmatpush.msra.mxu0 %v60
  %365 = vmatpush.msra.mxu0 %v59
  %366 = vmatpush.msra.mxu0 %v58
  %367 = vmatpush.msra.mxu0 %v57
  %368 = vmatpush.msra.mxu0 %v56
  %369 = vmatpush.msra.mxu0 %v55
  %370 = vmatpush.msra.mxu0 %v54
  %371 = vmatpush.msra.mxu0 %v53
  %372 = vmatpush.msra.mxu0 %v52
  %373 = vmatpush.msra.mxu0 %v51
  %374 = vmatpush.msra.mxu0 %v50
  %375 = vmatmul.f32.gmra.mxu0 %v287
  %v376 = vpop.f32.mrf.mxu0
  %v377 = vadd.f32 %v357, %v376
  %378 = vdwg.mxu0
  %379 = vmatpush.msra.mxu0 %v81
  %380 = vmatpush.msra.mxu0 %v80
  %381 = vmatpush.msra.mxu0 %v79
  %382 = vmatpush.msra.mxu0 %v78
  %383 = vmatpush.msra.mxu0 %v77
  %384 = vmatpush.msra.mxu0 %v76
  %385 = vmatpush.msra.mxu0 %v75
  %386 = vmatpush.msra.mxu0 %v74
  %387 = vmatpush.msra.mxu0 %v73
  %388 = vmatpush.msra.mxu0 %v72
  %389 = vmatpush.msra.mxu0 %v71
  %390 = vmatpush.msra.mxu0 %v70
  %391 = vmatpush.msra.mxu0 %v69
  %392 = vmatpush.msra.mxu0 %v68
  %393 = vmatpush.msra.mxu0 %v67
  %394 = vmatpush.msra.mxu0 %v66
  %395 = vmatmul.f32.gmra.mxu0 %v288
  %v396 = vpop.f32.mrf.mxu0
  %v397 = vadd.f32 %v377, %v396
  %398 = vdwg.mxu0
  %399 = vmatpush.msra.mxu0 %v97
  %400 = vmatpush.msra.mxu0 %v96
  %401 = vmatpush.msra.mxu0 %v95
  %402 = vmatpush.msra.mxu0 %v94
  %403 = vmatpush.msra.mxu0 %v93
  %404 = vmatpush.msra.mxu0 %v92
  %405 = vmatpush.msra.mxu0 %v91
  %406 = vmatpush.msra.mxu0 %v90
  %407 = vmatpush.msra.mxu0 %v89
  %408 = vmatpush.msra.mxu0 %v88
  %409 = vmatpush.msra.mxu0 %v87
  %410 = vmatpush.msra.mxu0 %v86
  %411 = vmatpush.msra.mxu0 %v85
  %412 = vmatpush.msra.mxu0 %v84
  %413 = vmatpush.msra.mxu0 %v83
  %414 = vmatpush.msra.mxu0 %v82
  %415 = vmatmul.f32.gmra.mxu0 %v289
  %v416 = vpop.f32.mrf.mxu0
  %v417 = vadd.f32 %v397, %v416
  %418 = vdwg.mxu0
  %419 = vmatpush.msra.mxu0 %v113
  %420 = vmatpush.msra.mxu0 %v112
  %421 = vmatpush.msra.mxu0 %v111
  %422 = vmatpush.msra.mxu0 %v110
  %423 = vmatpush.msra.mxu0 %v109
  %424 = vmatpush.msra.mxu0 %v108
  %425 = vmatpush.msra.mxu0 %v107
  %426 = vmatpush.msra.mxu0 %v106
  %427 = vmatpush.msra.mxu0 %v105
  %428 = vmatpush.msra.mxu0 %v104
  %429 = vmatpush.msra.mxu0 %v103
  %430 = vmatpush.msra.mxu0 %v102
  %431 = vmatpush.msra.mxu0 %v101
  %432 = vmatpush.msra.mxu0 %v100
  %433 = vmatpush.msra.mxu0 %v99
  %434 = vmatpush.msra.mxu0 %v98
  %435 = vmatmul.f32.gmra.mxu0 %v290
  %v436 = vpop.f32.mrf.mxu0
  %v437 = vadd.f32 %v417, %v436
  %438 = vdwg.mxu0
  %439 = vmatpush.msra.mxu0 %v129
  %440 = vmatpush.msra.mxu0 %v128
  %441 = vmatpush.msra.mxu0 %v127
  %442 = vmatpush.msra.mxu0 %v126
  %443 = vmatpush.msra.mxu0 %v125
  %444 = vmatpush.msra.mxu0 %v124
  %445 = vmatpush.msra.mxu0 %v123
  %446 = vmatpush.msra.mxu0 %v122
  %447 = vmatpush.msra.mxu0 %v121
  %448 = vmatpush.msra.mxu0 %v120
  %449 = vmatpush.msra.mxu0 %v119
  %450 = vmatpush.msra.mxu0 %v118
  %451 = vmatpush.msra.mxu0 %v117
  %452 = vmatpush.msra.mxu0 %v116
  %453 = vmatpush.msra.mxu0 %v115
  %454 = vmatpush.msra.mxu0 %v114
  %455 = vmatmul.f32.gmra.mxu0 %v291
  %v456 = vpop.f32.mrf.mxu0
  %v457 = vadd.f32 %v437, %v456
  %458 = vdwg.mxu0
  %459 = vmatpush.msra.mxu0 %v145
  %460 = vmatpush.msra.mxu0 %v144
  %461 = vmatpush.msra.mxu0 %v143
  %462 = vmatpush.msra.mxu0 %v142
  %463 = vmatpush.msra.mxu0 %v141
  %464 = vmatpush.msra.mxu0 %v140
  %465 = vmatpush.msra.mxu0 %v139
  %466 = vmatpush.msra.mxu0 %v138
  %467 = vmatpush.msra.mxu0 %v137
  %468 = vmatpush.msra.mxu0 %v136
  %469 = vmatpush.msra.mxu0 %v135
  %470 = vmatpush.msra.mxu0 %v134
  %471 = vmatpush.msra.mxu0 %v133
  %472 = vmatpush.msra.mxu0 %v132
  %473 = vmatpush.msra.mxu0 %v131
  %474 = vmatpush.msra.mxu0 %v130
  %475 = vmatmul.f32.gmra.mxu0 %v292
  %v476 = vpop.f32.mrf.mxu0
  %v477 = vadd.f32 %v457, %v476
  %478 = vdwg.mxu0
  %479 = vmatpush.msra.mxu0 %v161
  %480 = vmatpush.msra.mxu0 %v160
  %481 = vmatpush.msra.mxu0 %v159
  %482 = vmatpush.msra.mxu0 %v158
  %483 = vmatpush.msra.mxu0 %v157
  %484 = vmatpush.msra.mxu0 %v156
  %485 = vmatpush.msra.mxu0 %v155
  %486 = vmatpush.msra.mxu0 %v154
  %487 = vmatpush.msra.mxu0 %v153
  %488 = vmatpush.msra.mxu0 %v152
  %489 = vmatpush.msra.mxu0 %v151
  %490 = vmatpush.msra.mxu0 %v150
  %491 = vmatpush.msra.mxu0 %v149
  %492 = vmatpush.msra.mxu0 %v148
  %493 = vmatpush.msra.mxu0 %v147
  %494 = vmatpush.msra.mxu0 %v146
  %495 = vmatmul.f32.gmra.mxu0 %v295
  %v496 = vpop.f32.mrf.mxu0
  %v497 = vadd.f32 %v477, %v496
  %498 = vdwg.mxu0
  %499 = vmatpush.msra.mxu0 %v177
  %500 = vmatpush.msra.mxu0 %v176
  %501 = vmatpush.msra.mxu0 %v175
  %502 = vmatpush.msra.mxu0 %v174
  %503 = vmatpush.msra.mxu0 %v173
  %504 = vmatpush.msra.mxu0 %v172
  %505 = vmatpush.msra.mxu0 %v171
  %506 = vmatpush.msra.mxu0 %v170
  %507 = vmatpush.msra.mxu0 %v169
  %508 = vmatpush.msra.mxu0 %v168
  %509 = vmatpush.msra.mxu0 %v167
  %510 = vmatpush.msra.mxu0 %v166
  %511 = vmatpush.msra.mxu0 %v165
  %512 = vmatpush.msra.mxu0 %v164
  %513 = vmatpush.msra.mxu0 %v163
  %514 = vmatpush.msra.mxu0 %v162
  %515 = vmatmul.f32.gmra.mxu0 %v296
  %v516 = vpop.f32.mrf.mxu0
  %v517 = vadd.f32 %v497, %v516
  %518 = vdwg.mxu0
  %519 = vmatpush.msra.mxu0 %v193
  %520 = vmatpush.msra.mxu0 %v192
  %521 = vmatpush.msra.mxu0 %v191
  %522 = vmatpush.msra.mxu0 %v190
  %523 = vmatpush.msra.mxu0 %v189
  %524 = vmatpush.msra.mxu0 %v188
  %525 = vmatpush.msra.mxu0 %v187
  %526 = vmatpush.msra.mxu0 %v186
  %527 = vmatpush.msra.mxu0 %v185
  %528 = vmatpush.msra.mxu0 %v184
  %529 = vmatpush.msra.mxu0 %v183
  %530 = vmatpush.msra.mxu0 %v182
  %531 = vmatpush.msra.mxu0 %v181
  %532 = vmatpush.msra.mxu0 %v180
  %533 = vmatpush.msra.mxu0 %v179
  %534 = vmatpush.msra.mxu0 %v178
  %535 = vmatmul.f32.gmra.mxu0 %v297
  %v536 = vpop.f32.mrf.mxu0
  %v537 = vadd.f32 %v517, %v536
  %538 = vdwg.mxu0
  %539 = vmatpush.msra.mxu0 %v209
  %540 = vmatpush.msra.mxu0 %v208
  %541 = vmatpush.msra.mxu0 %v207
  %542 = vmatpush.msra.mxu0 %v206
  %543 = vmatpush.msra.mxu0 %v205
  %544 = vmatpush.msra.mxu0 %v204
  %545 = vmatpush.msra.mxu0 %v203
  %546 = vmatpush.msra.mxu0 %v202
  %547 = vmatpush.msra.mxu0 %v201
  %548 = vmatpush.msra.mxu0 %v200
  %549 = vmatpush.msra.mxu0 %v199
  %550 = vmatpush.msra.mxu0 %v198
  %551 = vmatpush.msra.mxu0 %v197
  %552 = vmatpush.msra.mxu0 %v196
  %553 = vmatpush.msra.mxu0 %v195
  %554 = vmatpush.msra.mxu0 %v194
  %555 = vmatmul.f32.gmra.mxu0 %v298
  %v556 = vpop.f32.mrf.mxu0
  %v557 = vadd.f32 %v537, %v556
  %558 = vdwg.mxu0
  %559 = vmatpush.msra.mxu0 %v225
  %560 = vmatpush.msra.mxu0 %v224
  %561 = vmatpush.msra.mxu0 %v223
  %562 = vmatpush.msra.mxu0 %v222
  %563 = vmatpush.msra.mxu0 %v221
  %564 = vmatpush.msra.mxu0 %v220
  %565 = vmatpush.msra.mxu0 %v219
  %566 = vmatpush.msra.mxu0 %v218
  %567 = vmatpush.msra.mxu0 %v217
  %568 = vmatpush.msra.mxu0 %v216
  %569 = vmatpush.msra.mxu0 %v215
  %570 = vmatpush.msra.mxu0 %v214
  %571 = vmatpush.msra.mxu0 %v213
  %572 = vmatpush.msra.mxu0 %v212
  %573 = vmatpush.msra.mxu0 %v211
  %574 = vmatpush.msra.mxu0 %v210
  %575 = vmatmul.f32.gmra.mxu0 %v299
  %v576 = vpop.f32.mrf.mxu0
  %v577 = vadd.f32 %v557, %v576
  %578 = vdwg.mxu0
  %579 = vmatpush.msra.mxu0 %v241
  %580 = vmatpush.msra.mxu0 %v240
  %581 = vmatpush.msra.mxu0 %v239
  %582 = vmatpush.msra.mxu0 %v238
  %583 = vmatpush.msra.mxu0 %v237
  %584 = vmatpush.msra.mxu0 %v236
  %585 = vmatpush.msra.mxu0 %v235
  %586 = vmatpush.msra.mxu0 %v234
  %587 = vmatpush.msra.mxu0 %v233
  %588 = vmatpush.msra.mxu0 %v232
  %589 = vmatpush.msra.mxu0 %v231
  %590 = vmatpush.msra.mxu0 %v230
  %591 = vmatpush.msra.mxu0 %v229
  %592 = vmatpush.msra.mxu0 %v228
  %593 = vmatpush.msra.mxu0 %v227
  %594 = vmatpush.msra.mxu0 %v226
  %595 = vmatmul.f32.gmra.mxu0 %v300
  %v596 = vpop.f32.mrf.mxu0
  %v597 = vadd.f32 %v577, %v596
  %598 = vdwg.mxu0
  %599 = vmatpush.msra.mxu0 %v257
  %600 = vmatpush.msra.mxu0 %v256
  %601 = vmatpush.msra.mxu0 %v255
  %602 = vmatpush.msra.mxu0 %v254
  %603 = vmatpush.msra.mxu0 %v253
  %604 = vmatpush.msra.mxu0 %v252
  %605 = vmatpush.msra.mxu0 %v251
  %606 = vmatpush.msra.mxu0 %v250
  %607 = vmatpush.msra.mxu0 %v249
  %608 = vmatpush.msra.mxu0 %v248
  %609 = vmatpush.msra.mxu0 %v247
  %610 = vmatpush.msra.mxu0 %v246
  %611 = vmatpush.msra.mxu0 %v245
  %612 = vmatpush.msra.mxu0 %v244
  %613 = vmatpush.msra.mxu0 %v243
  %614 = vmatpush.msra.mxu0 %v242
  %615 = vmatmul.f32.gmra.mxu0 %v301
  %v616 = vpop.f32.mrf.mxu0
  %v617 = vadd.f32 %v597, %v616
  %618 = vdwg.mxu0
  %619 = vmatpush.msra.mxu0 %v273
  %620 = vmatpush.msra.mxu0 %v272
  %621 = vmatpush.msra.mxu0 %v271
  %622 = vmatpush.msra.mxu0 %v270
  %623 = vmatpush.msra.mxu0 %v269
  %624 = vmatpush.msra.mxu0 %v268
  %625 = vmatpush.msra.mxu0 %v267
  %626 = vmatpush.msra.mxu0 %v266
  %627 = vmatpush.msra.mxu0 %v265
  %628 = vmatpush.msra.mxu0 %v264
  %629 = vmatpush.msra.mxu0 %v263
  %630 = vmatpush.msra.mxu0 %v262
  %631 = vmatpush.msra.mxu0 %v261
  %632 = vmatpush.msra.mxu0 %v260
  %633 = vmatpush.msra.mxu0 %v259
  %634 = vmatpush.msra.mxu0 %v258
  %635 = vmatmul.f32.gmra.mxu0 %v302
  %v636 = vpop.f32.mrf.mxu0
  %v637 = vadd.f32 %v617, %v636
  %638 = vdwg.mxu0
  %639 = vst [vmem:[%s3] sm:$0x3] %v637
  // Predicated region
  $region14: #{forward.5} parent=0 // pred_check
    _
  $region15: #{forward.5} parent=0 // pred_check_branch
    %641 = sbr.rel (0) target = $region17
  $region16: #{forward.5} parent=0 // pred_region
    _
  $region17: #{forward.5} parent=0 // pred_fallthru
    _
  // Predicated region
  $region18: #{forward.5} parent=0 // pred_check
    _
  $region19: #{forward.5} parent=0 // pred_check_branch
    %643 = sbr.rel (0) target = $region21
  $region20: #{forward.5} parent=0 // pred_region
    _
  $region21: #{forward.5} parent=0 // pred_fallthru
    _

// kernel: forward.4
$region0: #{forward.4}
  #allocation0 [shape = 'u32[]', space=smem, size = 0x4, offset = 0x4, fixed_abs, tag = 'smem constant byte address 0x4 - core index']
  #allocation1 [shape = 'u32[72,128]{1,0:T(1,128)}', space=vmem, size = 0x9000, scoped, tag = 'internal scratch']
  #allocation2 [shape = 'f32[16,512]{1,0:T(8,128)}', space=vmem, size = 0x8000, scoped, tag = 'scratch operand']
  #allocation3 [shape = 'f32[16,128]{1,0:T(8,128)}', space=vmem, size = 0x2000, scoped, tag = 'scratch operand']
  %s0 = inlined_call_operand.vmem [shape: f32[2,16,256], index: 0, kind: input, shape index: {}]
  %s1 = inlined_call_operand.vmem [shape: f32[2,256,512], index: 1, kind: input, shape index: {}]
  %s2 = inlined_call_operand.vmem [shape: f32[2,128,512], index: 2, kind: input, shape index: {}]
  %s3 = inlined_call_operand.vmem [shape: f32[2,1,512], index: 3, kind: input, shape index: {}, may-alias: {3,6}]
  %s4 = inlined_call_operand.vmem [shape: f32[2,128,512], index: 4, kind: input, shape index: {}]
  %s5 = inlined_call_operand.hbm [shape: f32[2,128,512], index: 5, kind: input, shape index: {}]
  %s6 = inlined_call_operand.vmem [shape: f32[2,1,512], index: 6, kind: input, shape index: {}, may-alias: {3,6}]
  %s7 = inlined_call_operand.vmem [shape: f32[2,16,128], index: 7, kind: output, shape index: {}]
  %s8 = sld [smem:[#allocation0]]
  $region65: #{forward.4} parent=0
    _
  %s10 = ssub.s32 1, %s8
  %s11 = scalar_select 0, %s10, %s8
  $region1: #{forward.4} parent=0
    #allocation4 [shape = 'u8[524288]{0}', space=vmem, size = 0x80000, scoped, tag = 'input window, operand 5']
    #allocation5 [shape = 's32[2]{0}', space=sflag, size = 0x8, scoped, tag = 'scoped memory for forward.4']
    %12 = vsyncpa [#allocation5], 0
    %s13 = scalar_lea.sflag [#allocation5], 1
    %14 = vsyncpa %s13, 0
    loop: start=0, step=1, limit=4
    $region2: #{forward.4} parent=1 // loop_pre_header
      _
    $region3: #{forward.4} parent=1 // loop_header
      %s16 = sphi 0, %s20
      %p17 = scmp.ge.s32.totalorder %s16, 4
      %s26 = sphi 0, %s28
      %s29 = sphi 0, %s26
      %s30 = sphi 0, %s29
      %s46 = sphi 0, %s30
      %s52 = sphi 0, %s54
      %s55 = sphi 0, %s52
      %s56 = sphi 0, %s55
      %s72 = sphi 0, %s56
      %s78 = sphi 0, %s80
      %s81 = sphi 0, %s78
      %s82 = sphi 0, %s81
      %s98 = sphi 0, %s82
      %s104 = sphi 0, %s106
      %s107 = sphi 0, %s104
      %s108 = sphi 0, %s107
      %s124 = sphi 0, %s108
      %s130 = sphi 0, %s132
      %s133 = sphi 0, %s130
      %s134 = sphi 0, %s133
      %s150 = sphi 0, %s134
      %s156 = sphi 0, %s158
      %s159 = sphi 0, %s156
      %s160 = sphi 0, %s159
      %s176 = sphi 0, %s160
      %s182 = sphi 0, %s184
      %s185 = sphi 0, %s182
      %s186 = sphi 0, %s185
      %s202 = sphi 0, %s186
      %s208 = sphi 0, %s210
      %s211 = sphi 0, %s208
      %s212 = sphi 0, %s211
      %s228 = sphi 0, %s212
    $region4: #{forward.4} parent=1 // loop_header_branch
      %19 = sbr.rel (%p17) target = $region8
    $region5: #{forward.4} parent=1 // loop_body
      %s21 = ssub.s32 %s16, 1
      %s22 = ssub.s32 %s16, 2
      %s23 = sadd.s32 %s16, 1
      %s24 = ssub.s32 %s16, %s23
      %p25 = scmp.eq.s32.totalorder %s24, 0
      %s27 = sadd.s32 %s26, 1
      %s28 = scalar_select %p25, %s26, %s27
      %p31 = pneg %p25
      %p32 = scmp.eq.s32.totalorder %s16, 1
      %p33 = por %p31, %p32
      %p34 = scmp.ne.s32.totalorder %s26, %s29
      %p35 = scmp.eq.s32.totalorder %s16, 0
      %p36 = por %p34, %p35
      %p37 = scmp.ne.s32.totalorder %s26, %s29
      %p38 = scmp.eq.s32.totalorder %s21, 1
      %p39 = por %p37, %p38
      %p40 = scmp.ne.s32.totalorder %s29, %s30
      %p41 = scmp.eq.s32.totalorder %s21, 0
      %p42 = por %p40, %p41
      %p43 = scmp.ne.s32.totalorder %s29, %s30
      %p44 = scmp.eq.s32.totalorder %s22, 1
      %p45 = por %p43, %p44
      %p47 = scmp.ne.s32.totalorder %s30, %s46
      %p48 = scmp.eq.s32.totalorder %s22, 0
      %p49 = por %p47, %p48
      %s50 = ssub.s32 %s16, %s23
      %p51 = scmp.eq.s32.totalorder %s50, 0
      %s53 = sadd.s32 %s52, 1
      %s54 = scalar_select %p51, %s52, %s53
      %p57 = pneg %p51
      %p58 = scmp.eq.s32.totalorder %s16, 1
      %p59 = por %p57, %p58
      %p60 = scmp.ne.s32.totalorder %s52, %s55
      %p61 = scmp.eq.s32.totalorder %s16, 0
      %p62 = por %p60, %p61
      %p63 = scmp.ne.s32.totalorder %s52, %s55
      %p64 = scmp.eq.s32.totalorder %s21, 1
      %p65 = por %p63, %p64
      %p66 = scmp.ne.s32.totalorder %s55, %s56
      %p67 = scmp.eq.s32.totalorder %s21, 0
      %p68 = por %p66, %p67
      %p69 = scmp.ne.s32.totalorder %s55, %s56
      %p70 = scmp.eq.s32.totalorder %s22, 1
      %p71 = por %p69, %p70
      %p73 = scmp.ne.s32.totalorder %s56, %s72
      %p74 = scmp.eq.s32.totalorder %s22, 0
      %p75 = por %p73, %p74
      %s76 = ssub.s32 %s16, %s23
      %p77 = scmp.eq.s32.totalorder %s76, 0
      %s79 = sadd.s32 %s78, 1
      %s80 = scalar_select %p77, %s78, %s79
      %p83 = pneg %p77
      %p84 = scmp.eq.s32.totalorder %s16, 1
      %p85 = por %p83, %p84
      %p86 = scmp.ne.s32.totalorder %s78, %s81
      %p87 = scmp.eq.s32.totalorder %s16, 0
      %p88 = por %p86, %p87
      %p89 = scmp.ne.s32.totalorder %s78, %s81
      %p90 = scmp.eq.s32.totalorder %s21, 1
      %p91 = por %p89, %p90
      %p92 = scmp.ne.s32.totalorder %s81, %s82
      %p93 = scmp.eq.s32.totalorder %s21, 0
      %p94 = por %p92, %p93
      %p95 = scmp.ne.s32.totalorder %s81, %s82
      %p96 = scmp.eq.s32.totalorder %s22, 1
      %p97 = por %p95, %p96
      %p99 = scmp.ne.s32.totalorder %s82, %s98
      %p100 = scmp.eq.s32.totalorder %s22, 0
      %p101 = por %p99, %p100
      %s102 = ssub.s32 %s16, %s23
      %p103 = scmp.eq.s32.totalorder %s102, 0
      %s105 = sadd.s32 %s104, 1
      %s106 = scalar_select %p103, %s104, %s105
      %p109 = pneg %p103
      %p110 = scmp.eq.s32.totalorder %s16, 1
      %p111 = por %p109, %p110
      %p112 = scmp.ne.s32.totalorder %s104, %s107
      %p113 = scmp.eq.s32.totalorder %s16, 0
      %p114 = por %p112, %p113
      %p115 = scmp.ne.s32.totalorder %s104, %s107
      %p116 = scmp.eq.s32.totalorder %s21, 1
      %p117 = por %p115, %p116
      %p118 = scmp.ne.s32.totalorder %s107, %s108
      %p119 = scmp.eq.s32.totalorder %s21, 0
      %p120 = por %p118, %p119
      %p121 = scmp.ne.s32.totalorder %s107, %s108
      %p122 = scmp.eq.s32.totalorder %s22, 1
      %p123 = por %p121, %p122
      %p125 = scmp.ne.s32.totalorder %s108, %s124
      %p126 = scmp.eq.s32.totalorder %s22, 0
      %p127 = por %p125, %p126
      %s128 = ssub.s32 %s16, %s23
      %p129 = scmp.eq.s32.totalorder %s128, 0
      %s131 = sadd.s32 %s130, 1
      %s132 = scalar_select %p129, %s130, %s131
      %p135 = pneg %p129
      %p136 = scmp.eq.s32.totalorder %s16, 1
      %p137 = por %p135, %p136
      %p138 = scmp.ne.s32.totalorder %s130, %s133
      %p139 = scmp.eq.s32.totalorder %s16, 0
      %p140 = por %p138, %p139
      %p141 = scmp.ne.s32.totalorder %s130, %s133
      %p142 = scmp.eq.s32.totalorder %s21, 1
      %p143 = por %p141, %p142
      %p144 = scmp.ne.s32.totalorder %s133, %s134
      %p145 = scmp.eq.s32.totalorder %s21, 0
      %p146 = por %p144, %p145
      %p147 = scmp.ne.s32.totalorder %s133, %s134
      %p148 = scmp.eq.s32.totalorder %s22, 1
      %p149 = por %p147, %p148
      %p151 = scmp.ne.s32.totalorder %s134, %s150
      %p152 = scmp.eq.s32.totalorder %s22, 0
      %p153 = por %p151, %p152
      %s154 = ssub.s32 %s16, %s23
      %p155 = scmp.eq.s32.totalorder %s154, 0
      %s157 = sadd.s32 %s156, 1
      %s158 = scalar_select %p155, %s156, %s157
      %p161 = pneg %p155
      %p162 = scmp.eq.s32.totalorder %s16, 1
      %p163 = por %p161, %p162
      %p164 = scmp.ne.s32.totalorder %s156, %s159
      %p165 = scmp.eq.s32.totalorder %s16, 0
      %p166 = por %p164, %p165
      %p167 = scmp.ne.s32.totalorder %s156, %s159
      %p168 = scmp.eq.s32.totalorder %s21, 1
      %p169 = por %p167, %p168
      %p170 = scmp.ne.s32.totalorder %s159, %s160
      %p171 = scmp.eq.s32.totalorder %s21, 0
      %p172 = por %p170, %p171
      %p173 = scmp.ne.s32.totalorder %s159, %s160
      %p174 = scmp.eq.s32.totalorder %s22, 1
      %p175 = por %p173, %p174
      %p177 = scmp.ne.s32.totalorder %s160, %s176
      %p178 = scmp.eq.s32.totalorder %s22, 0
      %p179 = por %p177, %p178
      %s180 = ssub.s32 %s16, %s23
      %p181 = scmp.eq.s32.totalorder %s180, 0
      %s183 = sadd.s32 %s182, 1
      %s184 = scalar_select %p181, %s182, %s183
      %p187 = pneg %p181
      %p188 = scmp.eq.s32.totalorder %s16, 1
      %p189 = por %p187, %p188
      %p190 = scmp.ne.s32.totalorder %s182, %s185
      %p191 = scmp.eq.s32.totalorder %s16, 0
      %p192 = por %p190, %p191
      %p193 = scmp.ne.s32.totalorder %s182, %s185
      %p194 = scmp.eq.s32.totalorder %s21, 1
      %p195 = por %p193, %p194
      %p196 = scmp.ne.s32.totalorder %s185, %s186
      %p197 = scmp.eq.s32.totalorder %s21, 0
      %p198 = por %p196, %p197
      %p199 = scmp.ne.s32.totalorder %s185, %s186
      %p200 = scmp.eq.s32.totalorder %s22, 1
      %p201 = por %p199, %p200
      %p203 = scmp.ne.s32.totalorder %s186, %s202
      %p204 = scmp.eq.s32.totalorder %s22, 0
      %p205 = por %p203, %p204
      %s206 = ssub.s32 %s16, %s23
      %p207 = scmp.eq.s32.totalorder %s206, 0
      %s209 = sadd.s32 %s208, 1
      %s210 = scalar_select %p207, %s208, %s209
      %p213 = pneg %p207
      %p214 = scmp.eq.s32.totalorder %s16, 1
      %p215 = por %p213, %p214
      %p216 = scmp.ne.s32.totalorder %s208, %s211
      %p217 = scmp.eq.s32.totalorder %s16, 0
      %p218 = por %p216, %p217
      %p219 = scmp.ne.s32.totalorder %s208, %s211
      %p220 = scmp.eq.s32.totalorder %s21, 1
      %p221 = por %p219, %p220
      %p222 = scmp.ne.s32.totalorder %s211, %s212
      %p223 = scmp.eq.s32.totalorder %s21, 0
      %p224 = por %p222, %p223
      %p225 = scmp.ne.s32.totalorder %s211, %s212
      %p226 = scmp.eq.s32.totalorder %s22, 1
      %p227 = por %p225, %p226
      %p229 = scmp.ne.s32.totalorder %s212, %s228
      %p230 = scmp.eq.s32.totalorder %s22, 0
      %p231 = por %p229, %p230
      %p232 = scmp.le.s32.totalorder 1, %s16
      %p233 = scmp.lt.s32.totalorder %s16, 3
      %p234 = pnand %p232, %p233
      %p235 = pneg %p234
      // Predicated region
      $region9: #{forward.4} parent=5 // pred_check
        _
      $region10: #{forward.4} parent=5 // pred_check_branch
        %237 = sbr.rel (%p234) target = $region12
      $region11: #{forward.4} parent=5 // pred_region
        %s238 = ssub.s32 %s16, 1
      $region12: #{forward.4} parent=5 // pred_fallthru
        _
      %p239 = scmp.lt.s32.totalorder %s16, 2
      // Predicated region
      $region13: #{forward.4} parent=5 // pred_check
        %p240 = pneg %p239
      $region14: #{forward.4} parent=5 // pred_check_branch
        %242 = sbr.rel (%p240) target = $region16
      $region15: #{forward.4} parent=5 // pred_region
        // Predicated region
        $region17: #{forward.4} parent=15 // pred_check
          %p243 = pneg %p36
        $region18: #{forward.4} parent=15 // pred_check_branch
          %245 = sbr.rel (%p243) target = $region20
        $region19: #{forward.4} parent=15 // pred_region
          %p246 = scmp.lt.s32.totalorder %s16, 1
          %s247 = scalar_select %p246, %s16, 1
          %s248 = smul.addr %s247, 4
          %s249 = smul.addr %s248, 8
          %s250 = scalar_lea.vmem %s0, %s249
        $region20: #{forward.4} parent=15 // pred_fallthru
          _
        // Predicated region
        $region21: #{forward.4} parent=15 // pred_check
          %p251 = pneg %p62
        $region22: #{forward.4} parent=15 // pred_check_branch
          %253 = sbr.rel (%p251) target = $region24
        $region23: #{forward.4} parent=15 // pred_region
          %p254 = scmp.lt.s32.totalorder %s16, 1
          %s255 = scalar_select %p254, %s16, 1
          %s256 = smul.addr %s255, 128
          %s257 = smul.addr %s256, 8
          %s258 = scalar_lea.vmem %s1, %s257
        $region24: #{forward.4} parent=15 // pred_fallthru
          _
        // Predicated region
        $region25: #{forward.4} parent=15 // pred_check
          %p259 = pneg %p88
        $region26: #{forward.4} parent=15 // pred_check_branch
          %261 = sbr.rel (%p259) target = $region28
        $region27: #{forward.4} parent=15 // pred_region
          %p262 = scmp.lt.s32.totalorder %s16, 1
          %s263 = scalar_select %p262, %s16, 1
          %s264 = smul.addr %s263, 64
          %s265 = smul.addr %s264, 8
          %s266 = scalar_lea.vmem %s2, %s265
        $region28: #{forward.4} parent=15 // pred_fallthru
          _
        // Predicated region
        $region29: #{forward.4} parent=15 // pred_check
          %p267 = pneg %p114
        $region30: #{forward.4} parent=15 // pred_check_branch
          %269 = sbr.rel (%p267) target = $region32
        $region31: #{forward.4} parent=15 // pred_region
          %p270 = scmp.lt.s32.totalorder %s16, 1
          %s271 = scalar_select %p270, %s16, 1
          %s272 = smul.addr %s271, 4
          %s273 = scalar_lea.vmem %s3, %s272
        $region32: #{forward.4} parent=15 // pred_fallthru
          _
        // Predicated region
        $region33: #{forward.4} parent=15 // pred_check
          %p274 = pneg %p140
        $region34: #{forward.4} parent=15 // pred_check_branch
          %276 = sbr.rel (%p274) target = $region36
        $region35: #{forward.4} parent=15 // pred_region
          %p277 = scmp.lt.s32.totalorder %s16, 1
          %s278 = scalar_select %p277, %s16, 1
          %s279 = smul.addr %s278, 64
          %s280 = smul.addr %s279, 8
          %s281 = scalar_lea.vmem %s4, %s280
        $region36: #{forward.4} parent=15 // pred_fallthru
          _
        // Predicated region
        $region37: #{forward.4} parent=15 // pred_check
          %p282 = pneg %p166
        $region38: #{forward.4} parent=15 // pred_check_branch
          %284 = sbr.rel (%p282) target = $region40
        $region39: #{forward.4} parent=15 // pred_region
          %s285 = sand.u32 %s156, 1
          %s286 = scalar_lea.sflag [#allocation5], %s285
          %s287 = sand.u32 %s156, 1
          %s288 = smul.addr %s287, 512
          %s289 = scalar_lea.vmem [#allocation4], %s288
          %291 = vsyncadd %s286, 0
          %s292 = smul.addr %s16, 64
          %s293 = smul.addr %s292, 8
          %s294 = scalar_lea.hbm %s5, %s293
          %s295 = sshll.u32 %s294, 4
          %s296 = int_to_ptr.hbm [resolvable:$true] %s295
          %s297 = sshll.u32 %s289, 4
          %s298 = int_to_ptr.vmem [resolvable:$true] %s297
          %303 = dma.hbm_to_vmem [thread:$0]  %s296, 8192, %s298, %s286, 512, 512, 32
        $region40: #{forward.4} parent=15 // pred_fallthru
          _
        // Predicated region
        $region41: #{forward.4} parent=15 // pred_check
          %p304 = pneg %p192
        $region42: #{forward.4} parent=15 // pred_check_branch
          %306 = sbr.rel (%p304) target = $region44
        $region43: #{forward.4} parent=15 // pred_region
          %p307 = scmp.lt.s32.totalorder %s16, 1
          %s308 = scalar_select %p307, %s16, 1
          %s309 = smul.addr %s308, 4
          %s310 = scalar_lea.vmem %s6, %s309
        $region44: #{forward.4} parent=15 // pred_fallthru
          _
      $region16: #{forward.4} parent=5 // pred_fallthru
        _
      %p311 = scmp.le.s32.totalorder 1, %s16
      %p312 = scmp.lt.s32.totalorder %s16, 3
      %p313 = pnand %p311, %p312
      %p314 = pneg %p313
      // Predicated region
      $region45: #{forward.4} parent=5 // pred_check
        _
      $region46: #{forward.4} parent=5 // pred_check_branch
        %316 = sbr.rel (%p313) target = $region48
      $region47: #{forward.4} parent=5 // pred_region
        %s317 = ssub.s32 %s16, 1
        %s318 = sand.u32 %s159, 1
        %s319 = scalar_lea.sflag [#allocation5], %s318
        %s320 = sand.u32 %s159, 1
        %s321 = smul.addr %s320, 512
        %s322 = scalar_lea.vmem [#allocation4], %s321
        // Predicated region
        $region49: #{forward.4} parent=47 // pred_check
          %p323 = pneg %p172
        $region50: #{forward.4} parent=47 // pred_check_branch
          %325 = sbr.rel (%p323) target = $region52
        $region51: #{forward.4} parent=47 // pred_region
          %327 = dma.done %s319, 8192
        $region52: #{forward.4} parent=47 // pred_fallthru
          _
        %p328 = scmp.lt.s32.totalorder %s21, 1
        %s329 = scalar_select %p328, %s21, 1
        %s330 = smul.addr %s329, 4
        %s331 = smul.addr %s330, 8
        %s332 = scalar_lea.vmem %s0, %s331
        %p333 = pneg %p42
        %p334 = pneg %p39
        %p335 = scmp.lt.s32.totalorder %s21, 1
        %s336 = scalar_select %p335, %s21, 1
        %s337 = smul.addr %s336, 128
        %s338 = smul.addr %s337, 8
        %s339 = scalar_lea.vmem %s1, %s338
        %p340 = pneg %p68
        %p341 = pneg %p65
        %p342 = scmp.lt.s32.totalorder %s21, 1
        %s343 = scalar_select %p342, %s21, 1
        %s344 = smul.addr %s343, 64
        %s345 = smul.addr %s344, 8
        %s346 = scalar_lea.vmem %s2, %s345
        %p347 = pneg %p94
        %p348 = pneg %p91
        %p349 = scmp.lt.s32.totalorder %s21, 1
        %s350 = scalar_select %p349, %s21, 1
        %s351 = smul.addr %s350, 4
        %s352 = scalar_lea.vmem %s3, %s351
        %p353 = pneg %p120
        %p354 = pneg %p117
        %p355 = scmp.lt.s32.totalorder %s21, 1
        %s356 = scalar_select %p355, %s21, 1
        %s357 = smul.addr %s356, 64
        %s358 = smul.addr %s357, 8
        %s359 = scalar_lea.vmem %s4, %s358
        %p360 = pneg %p146
        %p361 = pneg %p143
        %s362 = sand.u32 %s159, 1
        %s363 = scalar_lea.sflag [#allocation5], %s362
        %s364 = sand.u32 %s159, 1
        %s365 = smul.addr %s364, 512
        %s366 = scalar_lea.vmem [#allocation4], %s365
        %p367 = pneg %p172
        %p368 = pneg %p169
        %p369 = scmp.lt.s32.totalorder %s21, 1
        %s370 = scalar_select %p369, %s21, 1
        %s371 = smul.addr %s370, 4
        %s372 = scalar_lea.vmem %s6, %s371
        %p373 = pneg %p198
        %p374 = pneg %p195
        %p375 = pneg %p224
        %p376 = pneg %p221
        %p377 = scmp.lt.s32.totalorder %s21, 1
        %s378 = scalar_select %p377, %s21, 1
        %s379 = smul.addr %s378, 2
        %s380 = smul.addr %s379, 8
        %s381 = scalar_lea.vmem %s7, %s380
        %p382 = scmp.lt.s32.totalorder %s21, 1
        %s383 = scalar_select %p382, %s21, 1
        %s384 = smul.addr %s383, 4
        %s385 = smul.addr %s384, 8
        %s386 = scalar_lea.vmem %s0, %s385
        %p387 = scmp.lt.s32.totalorder %s21, 1
        %s388 = scalar_select %p387, %s21, 1
        %s389 = smul.addr %s388, 128
        %s390 = smul.addr %s389, 8
        %s391 = scalar_lea.vmem %s1, %s390
        %p392 = scmp.lt.s32.totalorder %s21, 1
        %s393 = scalar_select %p392, %s21, 1
        %s394 = smul.addr %s393, 64
        %s395 = smul.addr %s394, 8
        %s396 = scalar_lea.vmem %s2, %s395
        %p397 = scmp.lt.s32.totalorder %s21, 1
        %s398 = scalar_select %p397, %s21, 1
        %s399 = smul.addr %s398, 4
        %s400 = scalar_lea.vmem %s3, %s399
        %p401 = scmp.lt.s32.totalorder %s21, 1
        %s402 = scalar_select %p401, %s21, 1
        %s403 = smul.addr %s402, 64
        %s404 = smul.addr %s403, 8
        %s405 = scalar_lea.vmem %s4, %s404
        %p406 = scmp.lt.s32.totalorder %s21, 1
        %s407 = scalar_select %p406, %s21, 1
        %s408 = smul.addr %s407, 4
        %s409 = scalar_lea.vmem %s6, %s408
        %p410 = scmp.lt.s32.totalorder %s21, 1
        %s411 = scalar_select %p410, %s21, 1
        %s412 = smul.addr %s411, 2
        %s413 = smul.addr %s412, 8
        %s414 = scalar_lea.vmem %s7, %s413
        %v415 = vld [vmem:[%s386] sm:$0xff]
        %v416 = vld [vmem:[%s386 + $0x8] sm:$0xff]
        %v417 = vld [vmem:[%s386 + $0x10] sm:$0xff]
        %v418 = vld [vmem:[%s386 + $0x18] sm:$0xff]
        %v419 = vld [vmem:[%s391] sm:$0xff]
        %v420 = vld [vmem:[%s391 + $0x8] sm:$0xff]
        %v421 = vld [vmem:[%s391 + $0x10] sm:$0xff]
        %v422 = vld [vmem:[%s391 + $0x18] sm:$0xff]
        %v423 = vld [vmem:[%s391 + $0x20] sm:$0xff]
        %v424 = vld [vmem:[%s391 + $0x28] sm:$0xff]
        %v425 = vld [vmem:[%s391 + $0x30] sm:$0xff]
        %v426 = vld [vmem:[%s391 + $0x38] sm:$0xff]
        %v427 = vld [vmem:[%s391 + $0x40] sm:$0xff]
        %v428 = vld [vmem:[%s391 + $0x48] sm:$0xff]
        %v429 = vld [vmem:[%s391 + $0x50] sm:$0xff]
        %v430 = vld [vmem:[%s391 + $0x58] sm:$0xff]
        %v431 = vld [vmem:[%s391 + $0x60] sm:$0xff]
        %v432 = vld [vmem:[%s391 + $0x68] sm:$0xff]
        %v433 = vld [vmem:[%s391 + $0x70] sm:$0xff]
        %v434 = vld [vmem:[%s391 + $0x78] sm:$0xff]
        %v435 = vld [vmem:[%s391 + $0x80] sm:$0xff]
        %v436 = vld [vmem:[%s391 + $0x88] sm:$0xff]
        %v437 = vld [vmem:[%s391 + $0x90] sm:$0xff]
        %v438 = vld [vmem:[%s391 + $0x98] sm:$0xff]
        %v439 = vld [vmem:[%s391 + $0xa0] sm:$0xff]
        %v440 = vld [vmem:[%s391 + $0xa8] sm:$0xff]
        %v441 = vld [vmem:[%s391 + $0xb0] sm:$0xff]
        %v442 = vld [vmem:[%s391 + $0xb8] sm:$0xff]
        %v443 = vld [vmem:[%s391 + $0xc0] sm:$0xff]
        %v444 = vld [vmem:[%s391 + $0xc8] sm:$0xff]
        %v445 = vld [vmem:[%s391 + $0xd0] sm:$0xff]
        %v446 = vld [vmem:[%s391 + $0xd8] sm:$0xff]
        %v447 = vld [vmem:[%s391 + $0xe0] sm:$0xff]
        %v448 = vld [vmem:[%s391 + $0xe8] sm:$0xff]
        %v449 = vld [vmem:[%s391 + $0xf0] sm:$0xff]
        %v450 = vld [vmem:[%s391 + $0xf8] sm:$0xff]
        %v451 = vld [vmem:[%s391 + $0x100] sm:$0xff]
        %v452 = vld [vmem:[%s391 + $0x108] sm:$0xff]
        %v453 = vld [vmem:[%s391 + $0x110] sm:$0xff]
        %v454 = vld [vmem:[%s391 + $0x118] sm:$0xff]
        %v455 = vld [vmem:[%s391 + $0x120] sm:$0xff]
        %v456 = vld [vmem:[%s391 + $0x128] sm:$0xff]
        %v457 = vld [vmem:[%s391 + $0x130] sm:$0xff]
        %v458 = vld [vmem:[%s391 + $0x138] sm:$0xff]
        %v459 = vld [vmem:[%s391 + $0x140] sm:$0xff]
        %v460 = vld [vmem:[%s391 + $0x148] sm:$0xff]
        %v461 = vld [vmem:[%s391 + $0x150] sm:$0xff]
        %v462 = vld [vmem:[%s391 + $0x158] sm:$0xff]
        %v463 = vld [vmem:[%s391 + $0x160] sm:$0xff]
        %v464 = vld [vmem:[%s391 + $0x168] sm:$0xff]
        %v465 = vld [vmem:[%s391 + $0x170] sm:$0xff]
        %v466 = vld [vmem:[%s391 + $0x178] sm:$0xff]
        %v467 = vld [vmem:[%s391 + $0x180] sm:$0xff]
        %v468 = vld [vmem:[%s391 + $0x188] sm:$0xff]
        %v469 = vld [vmem:[%s391 + $0x190] sm:$0xff]
        %v470 = vld [vmem:[%s391 + $0x198] sm:$0xff]
        %v471 = vld [vmem:[%s391 + $0x1a0] sm:$0xff]
        %v472 = vld [vmem:[%s391 + $0x1a8] sm:$0xff]
        %v473 = vld [vmem:[%s391 + $0x1b0] sm:$0xff]
        %v474 = vld [vmem:[%s391 + $0x1b8] sm:$0xff]
        %v475 = vld [vmem:[%s391 + $0x1c0] sm:$0xff]
        %v476 = vld [vmem:[%s391 + $0x1c8] sm:$0xff]
        %v477 = vld [vmem:[%s391 + $0x1d0] sm:$0xff]
        %v478 = vld [vmem:[%s391 + $0x1d8] sm:$0xff]
        %v479 = vld [vmem:[%s391 + $0x1e0] sm:$0xff]
        %v480 = vld [vmem:[%s391 + $0x1e8] sm:$0xff]
        %v481 = vld [vmem:[%s391 + $0x1f0] sm:$0xff]
        %v482 = vld [vmem:[%s391 + $0x1f8] sm:$0xff]
        %v483 = vld [vmem:[%s391 + $0x200] sm:$0xff]
        %v484 = vld [vmem:[%s391 + $0x208] sm:$0xff]
        %v485 = vld [vmem:[%s391 + $0x210] sm:$0xff]
        %v486 = vld [vmem:[%s391 + $0x218] sm:$0xff]
        %v487 = vld [vmem:[%s391 + $0x220] sm:$0xff]
        %v488 = vld [vmem:[%s391 + $0x228] sm:$0xff]
        %v489 = vld [vmem:[%s391 + $0x230] sm:$0xff]
        %v490 = vld [vmem:[%s391 + $0x238] sm:$0xff]
        %v491 = vld [vmem:[%s391 + $0x240] sm:$0xff]
        %v492 = vld [vmem:[%s391 + $0x248] sm:$0xff]
        %v493 = vld [vmem:[%s391 + $0x250] sm:$0xff]
        %v494 = vld [vmem:[%s391 + $0x258] sm:$0xff]
        %v495 = vld [vmem:[%s391 + $0x260] sm:$0xff]
        %v496 = vld [vmem:[%s391 + $0x268] sm:$0xff]
        %v497 = vld [vmem:[%s391 + $0x270] sm:$0xff]
        %v498 = vld [vmem:[%s391 + $0x278] sm:$0xff]
        %v499 = vld [vmem:[%s391 + $0x280] sm:$0xff]
        %v500 = vld [vmem:[%s391 + $0x288] sm:$0xff]
        %v501 = vld [vmem:[%s391 + $0x290] sm:$0xff]
        %v502 = vld [vmem:[%s391 + $0x298] sm:$0xff]
        %v503 = vld [vmem:[%s391 + $0x2a0] sm:$0xff]
        %v504 = vld [vmem:[%s391 + $0x2a8] sm:$0xff]
        %v505 = vld [vmem:[%s391 + $0x2b0] sm:$0xff]
        %v506 = vld [vmem:[%s391 + $0x2b8] sm:$0xff]
        %v507 = vld [vmem:[%s391 + $0x2c0] sm:$0xff]
        %v508 = vld [vmem:[%s391 + $0x2c8] sm:$0xff]
        %v509 = vld [vmem:[%s391 + $0x2d0] sm:$0xff]
        %v510 = vld [vmem:[%s391 + $0x2d8] sm:$0xff]
        %v511 = vld [vmem:[%s391 + $0x2e0] sm:$0xff]
        %v512 = vld [vmem:[%s391 + $0x2e8] sm:$0xff]
        %v513 = vld [vmem:[%s391 + $0x2f0] sm:$0xff]
        %v514 = vld [vmem:[%s391 + $0x2f8] sm:$0xff]
        %v515 = vld [vmem:[%s391 + $0x300] sm:$0xff]
        %v516 = vld [vmem:[%s391 + $0x308] sm:$0xff]
        %v517 = vld [vmem:[%s391 + $0x310] sm:$0xff]
        %v518 = vld [vmem:[%s391 + $0x318] sm:$0xff]
        %v519 = vld [vmem:[%s391 + $0x320] sm:$0xff]
        %v520 = vld [vmem:[%s391 + $0x328] sm:$0xff]
        %v521 = vld [vmem:[%s391 + $0x330] sm:$0xff]
        %v522 = vld [vmem:[%s391 + $0x338] sm:$0xff]
        %v523 = vld [vmem:[%s391 + $0x340] sm:$0xff]
        %v524 = vld [vmem:[%s391 + $0x348] sm:$0xff]
        %v525 = vld [vmem:[%s391 + $0x350] sm:$0xff]
        %v526 = vld [vmem:[%s391 + $0x358] sm:$0xff]
        %v527 = vld [vmem:[%s391 + $0x360] sm:$0xff]
        %v528 = vld [vmem:[%s391 + $0x368] sm:$0xff]
        %v529 = vld [vmem:[%s391 + $0x370] sm:$0xff]
        %v530 = vld [vmem:[%s391 + $0x378] sm:$0xff]
        %v531 = vld [vmem:[%s391 + $0x380] sm:$0xff]
        %v532 = vld [vmem:[%s391 + $0x388] sm:$0xff]
        %v533 = vld [vmem:[%s391 + $0x390] sm:$0xff]
        %v534 = vld [vmem:[%s391 + $0x398] sm:$0xff]
        %v535 = vld [vmem:[%s391 + $0x3a0] sm:$0xff]
        %v536 = vld [vmem:[%s391 + $0x3a8] sm:$0xff]
        %v537 = vld [vmem:[%s391 + $0x3b0] sm:$0xff]
        %v538 = vld [vmem:[%s391 + $0x3b8] sm:$0xff]
        %v539 = vld [vmem:[%s391 + $0x3c0] sm:$0xff]
        %v540 = vld [vmem:[%s391 + $0x3c8] sm:$0xff]
        %v541 = vld [vmem:[%s391 + $0x3d0] sm:$0xff]
        %v542 = vld [vmem:[%s391 + $0x3d8] sm:$0xff]
        %v543 = vld [vmem:[%s391 + $0x3e0] sm:$0xff]
        %v544 = vld [vmem:[%s391 + $0x3e8] sm:$0xff]
        %v545 = vld [vmem:[%s391 + $0x3f0] sm:$0xff]
        %v546 = vld [vmem:[%s391 + $0x3f8] sm:$0xff]
        %v547 = vld [vmem:[%s400] sm:$0xf]
        %v549 = vperm.slane %v547, 0
        %v550 = vperm.slane %v547, 1
        %v551 = vperm.slane %v547, 2
        %v552 = vperm.slane %v547, 3
        %557 = vmatpush.msra.mxu0 %v479
        %558 = vmatpush.msra.mxu0 %v475
        %559 = vmatpush.msra.mxu0 %v471
        %560 = vmatpush.msra.mxu0 %v467
        %561 = vmatpush.msra.mxu0 %v463
        %562 = vmatpush.msra.mxu0 %v459
        %563 = vmatpush.msra.mxu0 %v455
        %564 = vmatpush.msra.mxu0 %v451
        %565 = vmatpush.msra.mxu0 %v447
        %566 = vmatpush.msra.mxu0 %v443
        %567 = vmatpush.msra.mxu0 %v439
        %568 = vmatpush.msra.mxu0 %v435
        %569 = vmatpush.msra.mxu0 %v431
        %570 = vmatpush.msra.mxu0 %v427
        %571 = vmatpush.msra.mxu0 %v423
        %572 = vmatpush.msra.mxu0 %v419
        %573 = vmatmul.f32.gmra.mxu0 %v415
        %v574 = vpop.f32.mrf.mxu0
        %v575 = vadd.f32 %v549, %v574
        %576 = vmatmul.f32.gmra.mxu0 %v417
        %v577 = vpop.f32.mrf.mxu0
        %v578 = vadd.f32 %v549, %v577
        %579 = vdwg.mxu0
        %580 = vmatpush.msra.mxu0 %v543
        %581 = vmatpush.msra.mxu0 %v539
        %582 = vmatpush.msra.mxu0 %v535
        %583 = vmatpush.msra.mxu0 %v531
        %584 = vmatpush.msra.mxu0 %v527
        %585 = vmatpush.msra.mxu0 %v523
        %586 = vmatpush.msra.mxu0 %v519
        %587 = vmatpush.msra.mxu0 %v515
        %588 = vmatpush.msra.mxu0 %v511
        %589 = vmatpush.msra.mxu0 %v507
        %590 = vmatpush.msra.mxu0 %v503
        %591 = vmatpush.msra.mxu0 %v499
        %592 = vmatpush.msra.mxu0 %v495
        %593 = vmatpush.msra.mxu0 %v491
        %594 = vmatpush.msra.mxu0 %v487
        %595 = vmatpush.msra.mxu0 %v483
        %596 = vmatmul.f32.gmra.mxu0 %v416
        %v597 = vpop.f32.mrf.mxu0
        %v598 = vadd.f32 %v575, %v597
        %599 = vmatmul.f32.gmra.mxu0 %v418
        %v600 = vpop.f32.mrf.mxu0
        %v601 = vadd.f32 %v578, %v600
        %602 = vdwg.mxu0
        %603 = vmatpush.msra.mxu0 %v480
        %604 = vmatpush.msra.mxu0 %v476
        %605 = vmatpush.msra.mxu0 %v472
        %606 = vmatpush.msra.mxu0 %v468
        %607 = vmatpush.msra.mxu0 %v464
        %608 = vmatpush.msra.mxu0 %v460
        %609 = vmatpush.msra.mxu0 %v456
        %610 = vmatpush.msra.mxu0 %v452
        %611 = vmatpush.msra.mxu0 %v448
        %612 = vmatpush.msra.mxu0 %v444
        %613 = vmatpush.msra.mxu0 %v440
        %614 = vmatpush.msra.mxu0 %v436
        %615 = vmatpush.msra.mxu0 %v432
        %616 = vmatpush.msra.mxu0 %v428
        %617 = vmatpush.msra.mxu0 %v424
        %618 = vmatpush.msra.mxu0 %v420
        %619 = vmatmul.f32.gmra.mxu0 %v415
        %v620 = vpop.f32.mrf.mxu0
        %v621 = vadd.f32 %v550, %v620
        %622 = vmatmul.f32.gmra.mxu0 %v417
        %v623 = vpop.f32.mrf.mxu0
        %v624 = vadd.f32 %v550, %v623
        %625 = vdwg.mxu0
        %626 = vmatpush.msra.mxu0 %v544
        %627 = vmatpush.msra.mxu0 %v540
        %628 = vmatpush.msra.mxu0 %v536
        %629 = vmatpush.msra.mxu0 %v532
        %630 = vmatpush.msra.mxu0 %v528
        %631 = vmatpush.msra.mxu0 %v524
        %632 = vmatpush.msra.mxu0 %v520
        %633 = vmatpush.msra.mxu0 %v516
        %634 = vmatpush.msra.mxu0 %v512
        %635 = vmatpush.msra.mxu0 %v508
        %636 = vmatpush.msra.mxu0 %v504
        %637 = vmatpush.msra.mxu0 %v500
        %638 = vmatpush.msra.mxu0 %v496
        %639 = vmatpush.msra.mxu0 %v492
        %640 = vmatpush.msra.mxu0 %v488
        %641 = vmatpush.msra.mxu0 %v484
        %642 = vmatmul.f32.gmra.mxu0 %v416
        %v643 = vpop.f32.mrf.mxu0
        %v644 = vadd.f32 %v621, %v643
        %645 = vmatmul.f32.gmra.mxu0 %v418
        %v646 = vpop.f32.mrf.mxu0
        %v647 = vadd.f32 %v624, %v646
        %648 = vdwg.mxu0
        %649 = vmatpush.msra.mxu0 %v481
        %650 = vmatpush.msra.mxu0 %v477
        %651 = vmatpush.msra.mxu0 %v473
        %652 = vmatpush.msra.mxu0 %v469
        %653 = vmatpush.msra.mxu0 %v465
        %654 = vmatpush.msra.mxu0 %v461
        %655 = vmatpush.msra.mxu0 %v457
        %656 = vmatpush.msra.mxu0 %v453
        %657 = vmatpush.msra.mxu0 %v449
        %658 = vmatpush.msra.mxu0 %v445
        %659 = vmatpush.msra.mxu0 %v441
        %660 = vmatpush.msra.mxu0 %v437
        %661 = vmatpush.msra.mxu0 %v433
        %662 = vmatpush.msra.mxu0 %v429
        %663 = vmatpush.msra.mxu0 %v425
        %664 = vmatpush.msra.mxu0 %v421
        %665 = vmatmul.f32.gmra.mxu0 %v415
        %v666 = vpop.f32.mrf.mxu0
        %v667 = vadd.f32 %v551, %v666
        %668 = vmatmul.f32.gmra.mxu0 %v417
        %v669 = vpop.f32.mrf.mxu0
        %v670 = vadd.f32 %v551, %v669
        %671 = vdwg.mxu0
        %672 = vmatpush.msra.mxu0 %v545
        %673 = vmatpush.msra.mxu0 %v541
        %674 = vmatpush.msra.mxu0 %v537
        %675 = vmatpush.msra.mxu0 %v533
        %676 = vmatpush.msra.mxu0 %v529
        %677 = vmatpush.msra.mxu0 %v525
        %678 = vmatpush.msra.mxu0 %v521
        %679 = vmatpush.msra.mxu0 %v517
        %680 = vmatpush.msra.mxu0 %v513
        %681 = vmatpush.msra.mxu0 %v509
        %682 = vmatpush.msra.mxu0 %v505
        %683 = vmatpush.msra.mxu0 %v501
        %684 = vmatpush.msra.mxu0 %v497
        %685 = vmatpush.msra.mxu0 %v493
        %686 = vmatpush.msra.mxu0 %v489
        %687 = vmatpush.msra.mxu0 %v485
        %688 = vmatmul.f32.gmra.mxu0 %v416
        %v689 = vpop.f32.mrf.mxu0
        %v690 = vadd.f32 %v667, %v689
        %691 = vmatmul.f32.gmra.mxu0 %v418
        %v692 = vpop.f32.mrf.mxu0
        %v693 = vadd.f32 %v670, %v692
        %694 = vdwg.mxu0
        %695 = vmatpush.msra.mxu0 %v482
        %696 = vmatpush.msra.mxu0 %v478
        %697 = vmatpush.msra.mxu0 %v474
        %698 = vmatpush.msra.mxu0 %v470
        %699 = vmatpush.msra.mxu0 %v466
        %700 = vmatpush.msra.mxu0 %v462
        %701 = vmatpush.msra.mxu0 %v458
        %702 = vmatpush.msra.mxu0 %v454
        %703 = vmatpush.msra.mxu0 %v450
        %704 = vmatpush.msra.mxu0 %v446
        %705 = vmatpush.msra.mxu0 %v442
        %706 = vmatpush.msra.mxu0 %v438
        %707 = vmatpush.msra.mxu0 %v434
        %708 = vmatpush.msra.mxu0 %v430
        %709 = vmatpush.msra.mxu0 %v426
        %710 = vmatpush.msra.mxu0 %v422
        %711 = vmatmul.f32.gmra.mxu0 %v415
        %v712 = vpop.f32.mrf.mxu0
        %v713 = vadd.f32 %v552, %v712
        %714 = vmatmul.f32.gmra.mxu0 %v417
        %v715 = vpop.f32.mrf.mxu0
        %v716 = vadd.f32 %v552, %v715
        %717 = vdwg.mxu0
        %718 = vmatpush.msra.mxu0 %v546
        %719 = vmatpush.msra.mxu0 %v542
        %720 = vmatpush.msra.mxu0 %v538
        %721 = vmatpush.msra.mxu0 %v534
        %722 = vmatpush.msra.mxu0 %v530
        %723 = vmatpush.msra.mxu0 %v526
        %724 = vmatpush.msra.mxu0 %v522
        %725 = vmatpush.msra.mxu0 %v518
        %726 = vmatpush.msra.mxu0 %v514
        %727 = vmatpush.msra.mxu0 %v510
        %728 = vmatpush.msra.mxu0 %v506
        %729 = vmatpush.msra.mxu0 %v502
        %730 = vmatpush.msra.mxu0 %v498
        %731 = vmatpush.msra.mxu0 %v494
        %732 = vmatpush.msra.mxu0 %v490
        %733 = vmatpush.msra.mxu0 %v486
        %734 = vmatmul.f32.gmra.mxu0 %v416
        %v735 = vpop.f32.mrf.mxu0
        %v736 = vadd.f32 %v713, %v735
        %737 = vmatmul.f32.gmra.mxu0 %v418
        %v738 = vpop.f32.mrf.mxu0
        %v739 = vadd.f32 %v716, %v738
        %740 = vdwg.mxu0
        %741 = vst [vmem:[#allocation2] sm:$0xff] %v598
        %742 = vst [vmem:[#allocation2 + $0x8] sm:$0xff] %v644
        %743 = vst [vmem:[#allocation2 + $0x10] sm:$0xff] %v690
        %744 = vst [vmem:[#allocation2 + $0x18] sm:$0xff] %v736
        %745 = vst [vmem:[#allocation2 + $0x20] sm:$0xff] %v601
        %746 = vst [vmem:[#allocation2 + $0x28] sm:$0xff] %v647
        %747 = vst [vmem:[#allocation2 + $0x30] sm:$0xff] %v693
        %748 = vst [vmem:[#allocation2 + $0x38] sm:$0xff] %v739
        %v749 = vld [vmem:[#allocation2] sm:$0x3]
        %v750 = vld [vmem:[#allocation2 + $0x8] sm:$0x3]
        %v751 = vld [vmem:[#allocation2 + $0x10] sm:$0x3]
        %v752 = vld [vmem:[#allocation2 + $0x18] sm:$0x3]
        %v753 = vld [vmem:[%s396] sm:$0xff]
        %v754 = vld [vmem:[%s396 + $0x8] sm:$0xff]
        %v755 = vld [vmem:[%s396 + $0x10] sm:$0xff]
        %v756 = vld [vmem:[%s396 + $0x18] sm:$0xff]
        %v757 = vld [vmem:[%s396 + $0x20] sm:$0xff]
        %v758 = vld [vmem:[%s396 + $0x28] sm:$0xff]
        %v759 = vld [vmem:[%s396 + $0x30] sm:$0xff]
        %v760 = vld [vmem:[%s396 + $0x38] sm:$0xff]
        %v761 = vld [vmem:[%s396 + $0x40] sm:$0xff]
        %v762 = vld [vmem:[%s396 + $0x48] sm:$0xff]
        %v763 = vld [vmem:[%s396 + $0x50] sm:$0xff]
        %v764 = vld [vmem:[%s396 + $0x58] sm:$0xff]
        %v765 = vld [vmem:[%s396 + $0x60] sm:$0xff]
        %v766 = vld [vmem:[%s396 + $0x68] sm:$0xff]
        %v767 = vld [vmem:[%s396 + $0x70] sm:$0xff]
        %v768 = vld [vmem:[%s396 + $0x78] sm:$0xff]
        %v769 = vld [vmem:[%s396 + $0x80] sm:$0xff]
        %v770 = vld [vmem:[%s396 + $0x88] sm:$0xff]
        %v771 = vld [vmem:[%s396 + $0x90] sm:$0xff]
        %v772 = vld [vmem:[%s396 + $0x98] sm:$0xff]
        %v773 = vld [vmem:[%s396 + $0xa0] sm:$0xff]
        %v774 = vld [vmem:[%s396 + $0xa8] sm:$0xff]
        %v775 = vld [vmem:[%s396 + $0xb0] sm:$0xff]
        %v776 = vld [vmem:[%s396 + $0xb8] sm:$0xff]
        %v777 = vld [vmem:[%s396 + $0xc0] sm:$0xff]
        %v778 = vld [vmem:[%s396 + $0xc8] sm:$0xff]
        %v779 = vld [vmem:[%s396 + $0xd0] sm:$0xff]
        %v780 = vld [vmem:[%s396 + $0xd8] sm:$0xff]
        %v781 = vld [vmem:[%s396 + $0xe0] sm:$0xff]
        %v782 = vld [vmem:[%s396 + $0xe8] sm:$0xff]
        %v783 = vld [vmem:[%s396 + $0xf0] sm:$0xff]
        %v784 = vld [vmem:[%s396 + $0xf8] sm:$0xff]
        %v785 = vld [vmem:[%s396 + $0x100] sm:$0xff]
        %v786 = vld [vmem:[%s396 + $0x108] sm:$0xff]
        %v787 = vld [vmem:[%s396 + $0x110] sm:$0xff]
        %v788 = vld [vmem:[%s396 + $0x118] sm:$0xff]
        %v789 = vld [vmem:[%s396 + $0x120] sm:$0xff]
        %v790 = vld [vmem:[%s396 + $0x128] sm:$0xff]
        %v791 = vld [vmem:[%s396 + $0x130] sm:$0xff]
        %v792 = vld [vmem:[%s396 + $0x138] sm:$0xff]
        %v793 = vld [vmem:[%s396 + $0x140] sm:$0xff]
        %v794 = vld [vmem:[%s396 + $0x148] sm:$0xff]
        %v795 = vld [vmem:[%s396 + $0x150] sm:$0xff]
        %v796 = vld [vmem:[%s396 + $0x158] sm:$0xff]
        %v797 = vld [vmem:[%s396 + $0x160] sm:$0xff]
        %v798 = vld [vmem:[%s396 + $0x168] sm:$0xff]
        %v799 = vld [vmem:[%s396 + $0x170] sm:$0xff]
        %v800 = vld [vmem:[%s396 + $0x178] sm:$0xff]
        %v801 = vld [vmem:[%s396 + $0x180] sm:$0xff]
        %v802 = vld [vmem:[%s396 + $0x188] sm:$0xff]
        %v803 = vld [vmem:[%s396 + $0x190] sm:$0xff]
        %v804 = vld [vmem:[%s396 + $0x198] sm:$0xff]
        %v805 = vld [vmem:[%s396 + $0x1a0] sm:$0xff]
        %v806 = vld [vmem:[%s396 + $0x1a8] sm:$0xff]
        %v807 = vld [vmem:[%s396 + $0x1b0] sm:$0xff]
        %v808 = vld [vmem:[%s396 + $0x1b8] sm:$0xff]
        %v809 = vld [vmem:[%s396 + $0x1c0] sm:$0xff]
        %v810 = vld [vmem:[%s396 + $0x1c8] sm:$0xff]
        %v811 = vld [vmem:[%s396 + $0x1d0] sm:$0xff]
        %v812 = vld [vmem:[%s396 + $0x1d8] sm:$0xff]
        %v813 = vld [vmem:[%s396 + $0x1e0] sm:$0xff]
        %v814 = vld [vmem:[%s396 + $0x1e8] sm:$0xff]
        %v815 = vld [vmem:[%s396 + $0x1f0] sm:$0xff]
        %v816 = vld [vmem:[%s396 + $0x1f8] sm:$0xff]
        %817 = vmatpush.msra.mxu0 %v813
        %818 = vmatpush.msra.mxu0 %v809
        %819 = vmatpush.msra.mxu0 %v805
        %820 = vmatpush.msra.mxu0 %v801
        %821 = vmatpush.msra.mxu0 %v797
        %822 = vmatpush.msra.mxu0 %v793
        %823 = vmatpush.msra.mxu0 %v789
        %824 = vmatpush.msra.mxu0 %v785
        %825 = vmatpush.msra.mxu0 %v781
        %826 = vmatpush.msra.mxu0 %v777
        %827 = vmatpush.msra.mxu0 %v773
        %828 = vmatpush.msra.mxu0 %v769
        %829 = vmatpush.msra.mxu0 %v765
        %830 = vmatpush.msra.mxu0 %v761
        %831 = vmatpush.msra.mxu0 %v757
        %832 = vmatpush.msra.mxu0 %v753
        %833 = vmatmul.f32.gmra.mxu0 0.0
        %v834 = vpop.f32.mrf.mxu0
        %v835 = vadd.f32 0.0, %v834
        %836 = vdwg.mxu0
        %837 = vmatpush.msra.mxu0 %v814
        %838 = vmatpush.msra.mxu0 %v810
        %839 = vmatpush.msra.mxu0 %v806
        %840 = vmatpush.msra.mxu0 %v802
        %841 = vmatpush.msra.mxu0 %v798
        %842 = vmatpush.msra.mxu0 %v794
        %843 = vmatpush.msra.mxu0 %v790
        %844 = vmatpush.msra.mxu0 %v786
        %845 = vmatpush.msra.mxu0 %v782
        %846 = vmatpush.msra.mxu0 %v778
        %847 = vmatpush.msra.mxu0 %v774
        %848 = vmatpush.msra.mxu0 %v770
        %849 = vmatpush.msra.mxu0 %v766
        %850 = vmatpush.msra.mxu0 %v762
        %851 = vmatpush.msra.mxu0 %v758
        %852 = vmatpush.msra.mxu0 %v754
        %853 = vmatmul.f32.gmra.mxu0 0.0
        %v854 = vpop.f32.mrf.mxu0
        %v855 = vadd.f32 0.0, %v854
        %856 = vdwg.mxu0
        %857 = vmatpush.msra.mxu0 %v815
        %858 = vmatpush.msra.mxu0 %v811
        %859 = vmatpush.msra.mxu0 %v807
        %860 = vmatpush.msra.mxu0 %v803
        %861 = vmatpush.msra.mxu0 %v799
        %862 = vmatpush.msra.mxu0 %v795
        %863 = vmatpush.msra.mxu0 %v791
        %864 = vmatpush.msra.mxu0 %v787
        %865 = vmatpush.msra.mxu0 %v783
        %866 = vmatpush.msra.mxu0 %v779
        %867 = vmatpush.msra.mxu0 %v775
        %868 = vmatpush.msra.mxu0 %v771
        %869 = vmatpush.msra.mxu0 %v767
        %870 = vmatpush.msra.mxu0 %v763
        %871 = vmatpush.msra.mxu0 %v759
        %872 = vmatpush.msra.mxu0 %v755
        %873 = vmatmul.f32.gmra.mxu0 0.0
        %v874 = vpop.f32.mrf.mxu0
        %v875 = vadd.f32 0.0, %v874
        %876 = vdwg.mxu0
        %877 = vmatpush.msra.mxu0 %v816
        %878 = vmatpush.msra.mxu0 %v812
        %879 = vmatpush.msra.mxu0 %v808
        %880 = vmatpush.msra.mxu0 %v804
        %881 = vmatpush.msra.mxu0 %v800
        %882 = vmatpush.msra.mxu0 %v796
        %883 = vmatpush.msra.mxu0 %v792
        %884 = vmatpush.msra.mxu0 %v788
        %885 = vmatpush.msra.mxu0 %v784
        %886 = vmatpush.msra.mxu0 %v780
        %887 = vmatpush.msra.mxu0 %v776
        %888 = vmatpush.msra.mxu0 %v772
        %889 = vmatpush.msra.mxu0 %v768
        %890 = vmatpush.msra.mxu0 %v764
        %891 = vmatpush.msra.mxu0 %v760
        %892 = vmatpush.msra.mxu0 %v756
        %893 = vmatmul.f32.gmra.mxu0 0.0
        %v894 = vpop.f32.mrf.mxu0
        %v895 = vadd.f32 0.0, %v894
        %896 = vdwg.mxu0
        %v897 = vadd.f32 %v749, %v835
        %v898 = vadd.f32 %v750, %v855
        %v899 = vadd.f32 %v751, %v875
        %v900 = vadd.f32 %v752, %v895
        %v901 = vxor.u32 %v897, 2147483648
        %v902 = vmul.f32 %v901, 1.442695
        %v903 = vpow.pop %v902
        %v904 = vadd.f32 %v903, 1.0
        %v905 = vrcp.pop %v904
        %v906 = vmul.f32 %v904, %v905
        %v907 = vsub.f32 1.0, %v906
        %v908 = vmul.f32 %v905, %v907
        %v909 = vadd.f32 %v905, %v908
        %vm910 = vweird.f32 %v904
        %vm911 = vweird.f32 %v905
        %vm912 = vmor %vm910, %vm911
        %v913 = vsel %vm912, %v905, %v909
        %v914 = vand.u32 2147483647, %v904
        %vm915 = vcmp.eq.f32.partialorder %v914, 8.507059e+37
        %v916 = vand.u32 %v904, 2147483648
        %v917 = vor.u32 1.1754944e-38, %v916
        %v918 = vsel %vm915, %v917, %v913
        %v919 = vmul.f32 1.0, %v918
        %v920 = vxor.u32 %v898, 2147483648
        %v921 = vmul.f32 %v920, 1.442695
        %v922 = vpow.pop %v921
        %v923 = vadd.f32 %v922, 1.0
        %v924 = vrcp.pop %v923
        %v925 = vmul.f32 %v923, %v924
        %v926 = vsub.f32 1.0, %v925
        %v927 = vmul.f32 %v924, %v926
        %v928 = vadd.f32 %v924, %v927
        %vm929 = vweird.f32 %v923
        %vm930 = vweird.f32 %v924
        %vm931 = vmor %vm929, %vm930
        %v932 = vsel %vm931, %v924, %v928
        %v933 = vand.u32 2147483647, %v923
        %vm934 = vcmp.eq.f32.partialorder %v933, 8.507059e+37
        %v935 = vand.u32 %v923, 2147483648
        %v936 = vor.u32 1.1754944e-38, %v935
        %v937 = vsel %vm934, %v936, %v932
        %v938 = vmul.f32 1.0, %v937
        %v939 = vtanh.pop %v899
        %v940 = vxor.u32 %v900, 2147483648
        %v941 = vmul.f32 %v940, 1.442695
        %v942 = vpow.pop %v941
        %v943 = vadd.f32 %v942, 1.0
        %v944 = vrcp.pop %v943
        %v945 = vmul.f32 %v943, %v944
        %v946 = vsub.f32 1.0, %v945
        %v947 = vmul.f32 %v944, %v946
        %v948 = vadd.f32 %v944, %v947
        %vm949 = vweird.f32 %v943
        %vm950 = vweird.f32 %v944
        %vm951 = vmor %vm949, %vm950
        %v952 = vsel %vm951, %v944, %v948
        %v953 = vand.u32 2147483647, %v943
        %vm954 = vcmp.eq.f32.partialorder %v953, 8.507059e+37
        %v955 = vand.u32 %v943, 2147483648
        %v956 = vor.u32 1.1754944e-38, %v955
        %v957 = vsel %vm954, %v956, %v952
        %v958 = vmul.f32 1.0, %v957
        %v959 = vmul.f32 %v938, 0.0
        %v960 = vmul.f32 %v919, %v939
        %v961 = vadd.f32 %v959, %v960
        %v962 = vtanh.pop %v961
        %v963 = vmul.f32 %v958, %v962
        %964 = vst [vmem:[#allocation3] sm:$0x3] %v963
        %v965 = vld [vmem:[#allocation2] sm:$0xc]
        %v966 = vld [vmem:[#allocation2 + $0x8] sm:$0xc]
        %v967 = vld [vmem:[#allocation2 + $0x10] sm:$0xc]
        %v968 = vld [vmem:[#allocation2 + $0x18] sm:$0xc]
        %v969 = vld [vmem:[%s396] sm:$0xff]
        %v970 = vld [vmem:[%s396 + $0x8] sm:$0xff]
        %v971 = vld [vmem:[%s396 + $0x10] sm:$0xff]
        %v972 = vld [vmem:[%s396 + $0x18] sm:$0xff]
        %v973 = vld [vmem:[%s396 + $0x20] sm:$0xff]
        %v974 = vld [vmem:[%s396 + $0x28] sm:$0xff]
        %v975 = vld [vmem:[%s396 + $0x30] sm:$0xff]
        %v976 = vld [vmem:[%s396 + $0x38] sm:$0xff]
        %v977 = vld [vmem:[%s396 + $0x40] sm:$0xff]
        %v978 = vld [vmem:[%s396 + $0x48] sm:$0xff]
        %v979 = vld [vmem:[%s396 + $0x50] sm:$0xff]
        %v980 = vld [vmem:[%s396 + $0x58] sm:$0xff]
        %v981 = vld [vmem:[%s396 + $0x60] sm:$0xff]
        %v982 = vld [vmem:[%s396 + $0x68] sm:$0xff]
        %v983 = vld [vmem:[%s396 + $0x70] sm:$0xff]
        %v984 = vld [vmem:[%s396 + $0x78] sm:$0xff]
        %v985 = vld [vmem:[%s396 + $0x80] sm:$0xff]
        %v986 = vld [vmem:[%s396 + $0x88] sm:$0xff]
        %v987 = vld [vmem:[%s396 + $0x90] sm:$0xff]
        %v988 = vld [vmem:[%s396 + $0x98] sm:$0xff]
        %v989 = vld [vmem:[%s396 + $0xa0] sm:$0xff]
        %v990 = vld [vmem:[%s396 + $0xa8] sm:$0xff]
        %v991 = vld [vmem:[%s396 + $0xb0] sm:$0xff]
        %v992 = vld [vmem:[%s396 + $0xb8] sm:$0xff]
        %v993 = vld [vmem:[%s396 + $0xc0] sm:$0xff]
        %v994 = vld [vmem:[%s396 + $0xc8] sm:$0xff]
        %v995 = vld [vmem:[%s396 + $0xd0] sm:$0xff]
        %v996 = vld [vmem:[%s396 + $0xd8] sm:$0xff]
        %v997 = vld [vmem:[%s396 + $0xe0] sm:$0xff]
        %v998 = vld [vmem:[%s396 + $0xe8] sm:$0xff]
        %v999 = vld [vmem:[%s396 + $0xf0] sm:$0xff]
        %v1000 = vld [vmem:[%s396 + $0xf8] sm:$0xff]
        %v1001 = vld [vmem:[%s396 + $0x100] sm:$0xff]
        %v1002 = vld [vmem:[%s396 + $0x108] sm:$0xff]
        %v1003 = vld [vmem:[%s396 + $0x110] sm:$0xff]
        %v1004 = vld [vmem:[%s396 + $0x118] sm:$0xff]
        %v1005 = vld [vmem:[%s396 + $0x120] sm:$0xff]
        %v1006 = vld [vmem:[%s396 + $0x128] sm:$0xff]
        %v1007 = vld [vmem:[%s396 + $0x130] sm:$0xff]
        %v1008 = vld [vmem:[%s396 + $0x138] sm:$0xff]
        %v1009 = vld [vmem:[%s396 + $0x140] sm:$0xff]
        %v1010 = vld [vmem:[%s396 + $0x148] sm:$0xff]
        %v1011 = vld [vmem:[%s396 + $0x150] sm:$0xff]
        %v1012 = vld [vmem:[%s396 + $0x158] sm:$0xff]
        %v1013 = vld [vmem:[%s396 + $0x160] sm:$0xff]
        %v1014 = vld [vmem:[%s396 + $0x168] sm:$0xff]
        %v1015 = vld [vmem:[%s396 + $0x170] sm:$0xff]
        %v1016 = vld [vmem:[%s396 + $0x178] sm:$0xff]
        %v1017 = vld [vmem:[%s396 + $0x180] sm:$0xff]
        %v1018 = vld [vmem:[%s396 + $0x188] sm:$0xff]
        %v1019 = vld [vmem:[%s396 + $0x190] sm:$0xff]
        %v1020 = vld [vmem:[%s396 + $0x198] sm:$0xff]
        %v1021 = vld [vmem:[%s396 + $0x1a0] sm:$0xff]
        %v1022 = vld [vmem:[%s396 + $0x1a8] sm:$0xff]
        %v1023 = vld [vmem:[%s396 + $0x1b0] sm:$0xff]
        %v1024 = vld [vmem:[%s396 + $0x1b8] sm:$0xff]
        %v1025 = vld [vmem:[%s396 + $0x1c0] sm:$0xff]
        %v1026 = vld [vmem:[%s396 + $0x1c8] sm:$0xff]
        %v1027 = vld [vmem:[%s396 + $0x1d0] sm:$0xff]
        %v1028 = vld [vmem:[%s396 + $0x1d8] sm:$0xff]
        %v1029 = vld [vmem:[%s396 + $0x1e0] sm:$0xff]
        %v1030 = vld [vmem:[%s396 + $0x1e8] sm:$0xff]
        %v1031 = vld [vmem:[%s396 + $0x1f0] sm:$0xff]
        %v1032 = vld [vmem:[%s396 + $0x1f8] sm:$0xff]
        %1033 = vmatpush.msra.mxu0 %v1029
        %1034 = vmatpush.msra.mxu0 %v1025
        %1035 = vmatpush.msra.mxu0 %v1021
        %1036 = vmatpush.msra.mxu0 %v1017
        %1037 = vmatpush.msra.mxu0 %v1013
        %1038 = vmatpush.msra.mxu0 %v1009
        %1039 = vmatpush.msra.mxu0 %v1005
        %1040 = vmatpush.msra.mxu0 %v1001
        %1041 = vmatpush.msra.mxu0 %v997
        %1042 = vmatpush.msra.mxu0 %v993
        %1043 = vmatpush.msra.mxu0 %v989
        %1044 = vmatpush.msra.mxu0 %v985
        %1045 = vmatpush.msra.mxu0 %v981
        %1046 = vmatpush.msra.mxu0 %v977
        %1047 = vmatpush.msra.mxu0 %v973
        %1048 = vmatpush.msra.mxu0 %v969
        %1049 = vmatmul.f32.gmra.mxu0 %v963
        %v1050 = vpop.f32.mrf.mxu0
        %v1051 = vadd.f32 0.0, %v1050
        %1052 = vdwg.mxu0
        %1053 = vmatpush.msra.mxu0 %v1030
        %1054 = vmatpush.msra.mxu0 %v1026
        %1055 = vmatpush.msra.mxu0 %v1022
        %1056 = vmatpush.msra.mxu0 %v1018
        %1057 = vmatpush.msra.mxu0 %v1014
        %1058 = vmatpush.msra.mxu0 %v1010
        %1059 = vmatpush.msra.mxu0 %v1006
        %1060 = vmatpush.msra.mxu0 %v1002
        %1061 = vmatpush.msra.mxu0 %v998
        %1062 = vmatpush.msra.mxu0 %v994
        %1063 = vmatpush.msra.mxu0 %v990
        %1064 = vmatpush.msra.mxu0 %v986
        %1065 = vmatpush.msra.mxu0 %v982
        %1066 = vmatpush.msra.mxu0 %v978
        %1067 = vmatpush.msra.mxu0 %v974
        %1068 = vmatpush.msra.mxu0 %v970
        %1069 = vmatmul.f32.gmra.mxu0 %v963
        %v1070 = vpop.f32.mrf.mxu0
        %v1071 = vadd.f32 0.0, %v1070
        %1072 = vdwg.mxu0
        %1073 = vmatpush.msra.mxu0 %v1031
        %1074 = vmatpush.msra.mxu0 %v1027
        %1075 = vmatpush.msra.mxu0 %v1023
        %1076 = vmatpush.msra.mxu0 %v1019
        %1077 = vmatpush.msra.mxu0 %v1015
        %1078 = vmatpush.msra.mxu0 %v1011
        %1079 = vmatpush.msra.mxu0 %v1007
        %1080 = vmatpush.msra.mxu0 %v1003
        %1081 = vmatpush.msra.mxu0 %v999
        %1082 = vmatpush.msra.mxu0 %v995
        %1083 = vmatpush.msra.mxu0 %v991
        %1084 = vmatpush.msra.mxu0 %v987
        %1085 = vmatpush.msra.mxu0 %v983
        %1086 = vmatpush.msra.mxu0 %v979
        %1087 = vmatpush.msra.mxu0 %v975
        %1088 = vmatpush.msra.mxu0 %v971
        %1089 = vmatmul.f32.gmra.mxu0 %v963
        %v1090 = vpop.f32.mrf.mxu0
        %v1091 = vadd.f32 0.0, %v1090
        %1092 = vdwg.mxu0
        %1093 = vmatpush.msra.mxu0 %v1032
        %1094 = vmatpush.msra.mxu0 %v1028
        %1095 = vmatpush.msra.mxu0 %v1024
        %1096 = vmatpush.msra.mxu0 %v1020
        %1097 = vmatpush.msra.mxu0 %v1016
        %1098 = vmatpush.msra.mxu0 %v1012
        %1099 = vmatpush.msra.mxu0 %v1008
        %1100 = vmatpush.msra.mxu0 %v1004
        %1101 = vmatpush.msra.mxu0 %v1000
        %1102 = vmatpush.msra.mxu0 %v996
        %1103 = vmatpush.msra.mxu0 %v992
        %1104 = vmatpush.msra.mxu0 %v988
        %1105 = vmatpush.msra.mxu0 %v984
        %1106 = vmatpush.msra.mxu0 %v980
        %1107 = vmatpush.msra.mxu0 %v976
        %1108 = vmatpush.msra.mxu0 %v972
        %1109 = vmatmul.f32.gmra.mxu0 %v963
        %v1110 = vpop.f32.mrf.mxu0
        %v1111 = vadd.f32 0.0, %v1110
        %1112 = vdwg.mxu0
        %v1117 = vrot.slane %v1051, 6
        %v1118 = vrot.slane %v1071, 6
        %v1119 = vrot.slane %v1091, 6
        %v1120 = vrot.slane %v1111, 6
        %v1125 = vadd.f32 %v965, %v1117
        %v1126 = vadd.f32 %v966, %v1118
        %v1127 = vadd.f32 %v967, %v1119
        %v1128 = vadd.f32 %v968, %v1120
        %v1129 = vxor.u32 %v1125, 2147483648
        %v1130 = vmul.f32 %v1129, 1.442695
        %v1131 = vpow.pop %v1130
        %v1132 = vadd.f32 %v1131, 1.0
        %v1133 = vrcp.pop %v1132
        %v1134 = vmul.f32 %v1132, %v1133
        %v1135 = vsub.f32 1.0, %v1134
        %v1136 = vmul.f32 %v1133, %v1135
        %v1137 = vadd.f32 %v1133, %v1136
        %vm1138 = vweird.f32 %v1132
        %vm1139 = vweird.f32 %v1133
        %vm1140 = vmor %vm1138, %vm1139
        %v1141 = vsel %vm1140, %v1133, %v1137
        %v1142 = vand.u32 2147483647, %v1132
        %vm1143 = vcmp.eq.f32.partialorder %v1142, 8.507059e+37
        %v1144 = vand.u32 %v1132, 2147483648
        %v1145 = vor.u32 1.1754944e-38, %v1144
        %v1146 = vsel %vm1143, %v1145, %v1141
        %v1147 = vmul.f32 1.0, %v1146
        %v1148 = vxor.u32 %v1126, 2147483648
        %v1149 = vmul.f32 %v1148, 1.442695
        %v1150 = vpow.pop %v1149
        %v1151 = vadd.f32 %v1150, 1.0
        %v1152 = vrcp.pop %v1151
        %v1153 = vmul.f32 %v1151, %v1152
        %v1154 = vsub.f32 1.0, %v1153
        %v1155 = vmul.f32 %v1152, %v1154
        %v1156 = vadd.f32 %v1152, %v1155
        %vm1157 = vweird.f32 %v1151
        %vm1158 = vweird.f32 %v1152
        %vm1159 = vmor %vm1157, %vm1158
        %v1160 = vsel %vm1159, %v1152, %v1156
        %v1161 = vand.u32 2147483647, %v1151
        %vm1162 = vcmp.eq.f32.partialorder %v1161, 8.507059e+37
        %v1163 = vand.u32 %v1151, 2147483648
        %v1164 = vor.u32 1.1754944e-38, %v1163
        %v1165 = vsel %vm1162, %v1164, %v1160
        %v1166 = vmul.f32 1.0, %v1165
        %v1167 = vtanh.pop %v1127
        %v1168 = vxor.u32 %v1128, 2147483648
        %v1169 = vmul.f32 %v1168, 1.442695
        %v1170 = vpow.pop %v1169
        %v1171 = vadd.f32 %v1170, 1.0
        %v1172 = vrcp.pop %v1171
        %v1173 = vmul.f32 %v1171, %v1172
        %v1174 = vsub.f32 1.0, %v1173
        %v1175 = vmul.f32 %v1172, %v1174
        %v1176 = vadd.f32 %v1172, %v1175
        %vm1177 = vweird.f32 %v1171
        %vm1178 = vweird.f32 %v1172
        %vm1179 = vmor %vm1177, %vm1178
        %v1180 = vsel %vm1179, %v1172, %v1176
        %v1181 = vand.u32 2147483647, %v1171
        %vm1182 = vcmp.eq.f32.partialorder %v1181, 8.507059e+37
        %v1183 = vand.u32 %v1171, 2147483648
        %v1184 = vor.u32 1.1754944e-38, %v1183
        %v1185 = vsel %vm1182, %v1184, %v1180
        %v1186 = vmul.f32 1.0, %v1185
        %v1188 = vrot.slane %v961, 6
        %v1190 = vmul.f32 %v1166, %v1188
        %v1191 = vmul.f32 %v1147, %v1167
        %v1192 = vadd.f32 %v1190, %v1191
        %v1193 = vtanh.pop %v1192
        %v1194 = vmul.f32 %v1186, %v1193
        %1195 = vst [vmem:[#allocation3] sm:$0xc] %v1194
        %v1196 = vld [vmem:[#allocation2] sm:$0x30]
        %v1197 = vld [vmem:[#allocation2 + $0x8] sm:$0x30]
        %v1198 = vld [vmem:[#allocation2 + $0x10] sm:$0x30]
        %v1199 = vld [vmem:[#allocation2 + $0x18] sm:$0x30]
        %v1200 = vld [vmem:[%s396] sm:$0xff]
        %v1201 = vld [vmem:[%s396 + $0x8] sm:$0xff]
        %v1202 = vld [vmem:[%s396 + $0x10] sm:$0xff]
        %v1203 = vld [vmem:[%s396 + $0x18] sm:$0xff]
        %v1204 = vld [vmem:[%s396 + $0x20] sm:$0xff]
        %v1205 = vld [vmem:[%s396 + $0x28] sm:$0xff]
        %v1206 = vld [vmem:[%s396 + $0x30] sm:$0xff]
        %v1207 = vld [vmem:[%s396 + $0x38] sm:$0xff]
        %v1208 = vld [vmem:[%s396 + $0x40] sm:$0xff]
        %v1209 = vld [vmem:[%s396 + $0x48] sm:$0xff]
        %v1210 = vld [vmem:[%s396 + $0x50] sm:$0xff]
        %v1211 = vld [vmem:[%s396 + $0x58] sm:$0xff]
        %v1212 = vld [vmem:[%s396 + $0x60] sm:$0xff]
        %v1213 = vld [vmem:[%s396 + $0x68] sm:$0xff]
        %v1214 = vld [vmem:[%s396 + $0x70] sm:$0xff]
        %v1215 = vld [vmem:[%s396 + $0x78] sm:$0xff]
        %v1216 = vld [vmem:[%s396 + $0x80] sm:$0xff]
        %v1217 = vld [vmem:[%s396 + $0x88] sm:$0xff]
        %v1218 = vld [vmem:[%s396 + $0x90] sm:$0xff]
        %v1219 = vld [vmem:[%s396 + $0x98] sm:$0xff]
        %v1220 = vld [vmem:[%s396 + $0xa0] sm:$0xff]
        %v1221 = vld [vmem:[%s396 + $0xa8] sm:$0xff]
        %v1222 = vld [vmem:[%s396 + $0xb0] sm:$0xff]
        %v1223 = vld [vmem:[%s396 + $0xb8] sm:$0xff]
        %v1224 = vld [vmem:[%s396 + $0xc0] sm:$0xff]
        %v1225 = vld [vmem:[%s396 + $0xc8] sm:$0xff]
        %v1226 = vld [vmem:[%s396 + $0xd0] sm:$0xff]
        %v1227 = vld [vmem:[%s396 + $0xd8] sm:$0xff]
        %v1228 = vld [vmem:[%s396 + $0xe0] sm:$0xff]
        %v1229 = vld [vmem:[%s396 + $0xe8] sm:$0xff]
        %v1230 = vld [vmem:[%s396 + $0xf0] sm:$0xff]
        %v1231 = vld [vmem:[%s396 + $0xf8] sm:$0xff]
        %v1232 = vld [vmem:[%s396 + $0x100] sm:$0xff]
        %v1233 = vld [vmem:[%s396 + $0x108] sm:$0xff]
        %v1234 = vld [vmem:[%s396 + $0x110] sm:$0xff]
        %v1235 = vld [vmem:[%s396 + $0x118] sm:$0xff]
        %v1236 = vld [vmem:[%s396 + $0x120] sm:$0xff]
        %v1237 = vld [vmem:[%s396 + $0x128] sm:$0xff]
        %v1238 = vld [vmem:[%s396 + $0x130] sm:$0xff]
        %v1239 = vld [vmem:[%s396 + $0x138] sm:$0xff]
        %v1240 = vld [vmem:[%s396 + $0x140] sm:$0xff]
        %v1241 = vld [vmem:[%s396 + $0x148] sm:$0xff]
        %v1242 = vld [vmem:[%s396 + $0x150] sm:$0xff]
        %v1243 = vld [vmem:[%s396 + $0x158] sm:$0xff]
        %v1244 = vld [vmem:[%s396 + $0x160] sm:$0xff]
        %v1245 = vld [vmem:[%s396 + $0x168] sm:$0xff]
        %v1246 = vld [vmem:[%s396 + $0x170] sm:$0xff]
        %v1247 = vld [vmem:[%s396 + $0x178] sm:$0xff]
        %v1248 = vld [vmem:[%s396 + $0x180] sm:$0xff]
        %v1249 = vld [vmem:[%s396 + $0x188] sm:$0xff]
        %v1250 = vld [vmem:[%s396 + $0x190] sm:$0xff]
        %v1251 = vld [vmem:[%s396 + $0x198] sm:$0xff]
        %v1252 = vld [vmem:[%s396 + $0x1a0] sm:$0xff]
        %v1253 = vld [vmem:[%s396 + $0x1a8] sm:$0xff]
        %v1254 = vld [vmem:[%s396 + $0x1b0] sm:$0xff]
        %v1255 = vld [vmem:[%s396 + $0x1b8] sm:$0xff]
        %v1256 = vld [vmem:[%s396 + $0x1c0] sm:$0xff]
        %v1257 = vld [vmem:[%s396 + $0x1c8] sm:$0xff]
        %v1258 = vld [vmem:[%s396 + $0x1d0] sm:$0xff]
        %v1259 = vld [vmem:[%s396 + $0x1d8] sm:$0xff]
        %v1260 = vld [vmem:[%s396 + $0x1e0] sm:$0xff]
        %v1261 = vld [vmem:[%s396 + $0x1e8] sm:$0xff]
        %v1262 = vld [vmem:[%s396 + $0x1f0] sm:$0xff]
        %v1263 = vld [vmem:[%s396 + $0x1f8] sm:$0xff]
        %v1265 = vrot.slane %v1194, 2
        %1267 = vmatpush.msra.mxu0 %v1260
        %1268 = vmatpush.msra.mxu0 %v1256
        %1269 = vmatpush.msra.mxu0 %v1252
        %1270 = vmatpush.msra.mxu0 %v1248
        %1271 = vmatpush.msra.mxu0 %v1244
        %1272 = vmatpush.msra.mxu0 %v1240
        %1273 = vmatpush.msra.mxu0 %v1236
        %1274 = vmatpush.msra.mxu0 %v1232
        %1275 = vmatpush.msra.mxu0 %v1228
        %1276 = vmatpush.msra.mxu0 %v1224
        %1277 = vmatpush.msra.mxu0 %v1220
        %1278 = vmatpush.msra.mxu0 %v1216
        %1279 = vmatpush.msra.mxu0 %v1212
        %1280 = vmatpush.msra.mxu0 %v1208
        %1281 = vmatpush.msra.mxu0 %v1204
        %1282 = vmatpush.msra.mxu0 %v1200
        %1283 = vmatmul.f32.gmra.mxu0 %v1265
        %v1284 = vpop.f32.mrf.mxu0
        %v1285 = vadd.f32 0.0, %v1284
        %1286 = vdwg.mxu0
        %1287 = vmatpush.msra.mxu0 %v1261
        %1288 = vmatpush.msra.mxu0 %v1257
        %1289 = vmatpush.msra.mxu0 %v1253
        %1290 = vmatpush.msra.mxu0 %v1249
        %1291 = vmatpush.msra.mxu0 %v1245
        %1292 = vmatpush.msra.mxu0 %v1241
        %1293 = vmatpush.msra.mxu0 %v1237
        %1294 = vmatpush.msra.mxu0 %v1233
        %1295 = vmatpush.msra.mxu0 %v1229
        %1296 = vmatpush.msra.mxu0 %v1225
        %1297 = vmatpush.msra.mxu0 %v1221
        %1298 = vmatpush.msra.mxu0 %v1217
        %1299 = vmatpush.msra.mxu0 %v1213
        %1300 = vmatpush.msra.mxu0 %v1209
        %1301 = vmatpush.msra.mxu0 %v1205
        %1302 = vmatpush.msra.mxu0 %v1201
        %1303 = vmatmul.f32.gmra.mxu0 %v1265
        %v1304 = vpop.f32.mrf.mxu0
        %v1305 = vadd.f32 0.0, %v1304
        %1306 = vdwg.mxu0
        %1307 = vmatpush.msra.mxu0 %v1262
        %1308 = vmatpush.msra.mxu0 %v1258
        %1309 = vmatpush.msra.mxu0 %v1254
        %1310 = vmatpush.msra.mxu0 %v1250
        %1311 = vmatpush.msra.mxu0 %v1246
        %1312 = vmatpush.msra.mxu0 %v1242
        %1313 = vmatpush.msra.mxu0 %v1238
        %1314 = vmatpush.msra.mxu0 %v1234
        %1315 = vmatpush.msra.mxu0 %v1230
        %1316 = vmatpush.msra.mxu0 %v1226
        %1317 = vmatpush.msra.mxu0 %v1222
        %1318 = vmatpush.msra.mxu0 %v1218
        %1319 = vmatpush.msra.mxu0 %v1214
        %1320 = vmatpush.msra.mxu0 %v1210
        %1321 = vmatpush.msra.mxu0 %v1206
        %1322 = vmatpush.msra.mxu0 %v1202
        %1323 = vmatmul.f32.gmra.mxu0 %v1265
        %v1324 = vpop.f32.mrf.mxu0
        %v1325 = vadd.f32 0.0, %v1324
        %1326 = vdwg.mxu0
        %1327 = vmatpush.msra.mxu0 %v1263
        %1328 = vmatpush.msra.mxu0 %v1259
        %1329 = vmatpush.msra.mxu0 %v1255
        %1330 = vmatpush.msra.mxu0 %v1251
        %1331 = vmatpush.msra.mxu0 %v1247
        %1332 = vmatpush.msra.mxu0 %v1243
        %1333 = vmatpush.msra.mxu0 %v1239
        %1334 = vmatpush.msra.mxu0 %v1235
        %1335 = vmatpush.msra.mxu0 %v1231
        %1336 = vmatpush.msra.mxu0 %v1227
        %1337 = vmatpush.msra.mxu0 %v1223
        %1338 = vmatpush.msra.mxu0 %v1219
        %1339 = vmatpush.msra.mxu0 %v1215
        %1340 = vmatpush.msra.mxu0 %v1211
        %1341 = vmatpush.msra.mxu0 %v1207
        %1342 = vmatpush.msra.mxu0 %v1203
        %1343 = vmatmul.f32.gmra.mxu0 %v1265
        %v1344 = vpop.f32.mrf.mxu0
        %v1345 = vadd.f32 0.0, %v1344
        %1346 = vdwg.mxu0
        %v1351 = vrot.slane %v1285, 4
        %v1352 = vrot.slane %v1305, 4
        %v1353 = vrot.slane %v1325, 4
        %v1354 = vrot.slane %v1345, 4
        %v1359 = vadd.f32 %v1196, %v1351
        %v1360 = vadd.f32 %v1197, %v1352
        %v1361 = vadd.f32 %v1198, %v1353
        %v1362 = vadd.f32 %v1199, %v1354
        %v1363 = vxor.u32 %v1359, 2147483648
        %v1364 = vmul.f32 %v1363, 1.442695
        %v1365 = vpow.pop %v1364
        %v1366 = vadd.f32 %v1365, 1.0
        %v1367 = vrcp.pop %v1366
        %v1368 = vmul.f32 %v1366, %v1367
        %v1369 = vsub.f32 1.0, %v1368
        %v1370 = vmul.f32 %v1367, %v1369
        %v1371 = vadd.f32 %v1367, %v1370
        %vm1372 = vweird.f32 %v1366
        %vm1373 = vweird.f32 %v1367
        %vm1374 = vmor %vm1372, %vm1373
        %v1375 = vsel %vm1374, %v1367, %v1371
        %v1376 = vand.u32 2147483647, %v1366
        %vm1377 = vcmp.eq.f32.partialorder %v1376, 8.507059e+37
        %v1378 = vand.u32 %v1366, 2147483648
        %v1379 = vor.u32 1.1754944e-38, %v1378
        %v1380 = vsel %vm1377, %v1379, %v1375
        %v1381 = vmul.f32 1.0, %v1380
        %v1382 = vxor.u32 %v1360, 2147483648
        %v1383 = vmul.f32 %v1382, 1.442695
        %v1384 = vpow.pop %v1383
        %v1385 = vadd.f32 %v1384, 1.0
        %v1386 = vrcp.pop %v1385
        %v1387 = vmul.f32 %v1385, %v1386
        %v1388 = vsub.f32 1.0, %v1387
        %v1389 = vmul.f32 %v1386, %v1388
        %v1390 = vadd.f32 %v1386, %v1389
        %vm1391 = vweird.f32 %v1385
        %vm1392 = vweird.f32 %v1386
        %vm1393 = vmor %vm1391, %vm1392
        %v1394 = vsel %vm1393, %v1386, %v1390
        %v1395 = vand.u32 2147483647, %v1385
        %vm1396 = vcmp.eq.f32.partialorder %v1395, 8.507059e+37
        %v1397 = vand.u32 %v1385, 2147483648
        %v1398 = vor.u32 1.1754944e-38, %v1397
        %v1399 = vsel %vm1396, %v1398, %v1394
        %v1400 = vmul.f32 1.0, %v1399
        %v1401 = vtanh.pop %v1361
        %v1402 = vxor.u32 %v1362, 2147483648
        %v1403 = vmul.f32 %v1402, 1.442695
        %v1404 = vpow.pop %v1403
        %v1405 = vadd.f32 %v1404, 1.0
        %v1406 = vrcp.pop %v1405
        %v1407 = vmul.f32 %v1405, %v1406
        %v1408 = vsub.f32 1.0, %v1407
        %v1409 = vmul.f32 %v1406, %v1408
        %v1410 = vadd.f32 %v1406, %v1409
        %vm1411 = vweird.f32 %v1405
        %vm1412 = vweird.f32 %v1406
        %vm1413 = vmor %vm1411, %vm1412
        %v1414 = vsel %vm1413, %v1406, %v1410
        %v1415 = vand.u32 2147483647, %v1405
        %vm1416 = vcmp.eq.f32.partialorder %v1415, 8.507059e+37
        %v1417 = vand.u32 %v1405, 2147483648
        %v1418 = vor.u32 1.1754944e-38, %v1417
        %v1419 = vsel %vm1416, %v1418, %v1414
        %v1420 = vmul.f32 1.0, %v1419
        %v1422 = vrot.slane %v1192, 6
        %v1424 = vmul.f32 %v1400, %v1422
        %v1425 = vmul.f32 %v1381, %v1401
        %v1426 = vadd.f32 %v1424, %v1425
        %v1427 = vtanh.pop %v1426
        %v1428 = vmul.f32 %v1420, %v1427
        %1429 = vst [vmem:[#allocation3] sm:$0x30] %v1428
        %v1430 = vld [vmem:[#allocation2] sm:$0xc0]
        %v1431 = vld [vmem:[#allocation2 + $0x8] sm:$0xc0]
        %v1432 = vld [vmem:[#allocation2 + $0x10] sm:$0xc0]
        %v1433 = vld [vmem:[#allocation2 + $0x18] sm:$0xc0]
        %v1434 = vld [vmem:[%s396] sm:$0xff]
        %v1435 = vld [vmem:[%s396 + $0x8] sm:$0xff]
        %v1436 = vld [vmem:[%s396 + $0x10] sm:$0xff]
        %v1437 = vld [vmem:[%s396 + $0x18] sm:$0xff]
        %v1438 = vld [vmem:[%s396 + $0x20] sm:$0xff]
        %v1439 = vld [vmem:[%s396 + $0x28] sm:$0xff]
        %v1440 = vld [vmem:[%s396 + $0x30] sm:$0xff]
        %v1441 = vld [vmem:[%s396 + $0x38] sm:$0xff]
        %v1442 = vld [vmem:[%s396 + $0x40] sm:$0xff]
        %v1443 = vld [vmem:[%s396 + $0x48] sm:$0xff]
        %v1444 = vld [vmem:[%s396 + $0x50] sm:$0xff]
        %v1445 = vld [vmem:[%s396 + $0x58] sm:$0xff]
        %v1446 = vld [vmem:[%s396 + $0x60] sm:$0xff]
        %v1447 = vld [vmem:[%s396 + $0x68] sm:$0xff]
        %v1448 = vld [vmem:[%s396 + $0x70] sm:$0xff]
        %v1449 = vld [vmem:[%s396 + $0x78] sm:$0xff]
        %v1450 = vld [vmem:[%s396 + $0x80] sm:$0xff]
        %v1451 = vld [vmem:[%s396 + $0x88] sm:$0xff]
        %v1452 = vld [vmem:[%s396 + $0x90] sm:$0xff]
        %v1453 = vld [vmem:[%s396 + $0x98] sm:$0xff]
        %v1454 = vld [vmem:[%s396 + $0xa0] sm:$0xff]
        %v1455 = vld [vmem:[%s396 + $0xa8] sm:$0xff]
        %v1456 = vld [vmem:[%s396 + $0xb0] sm:$0xff]
        %v1457 = vld [vmem:[%s396 + $0xb8] sm:$0xff]
        %v1458 = vld [vmem:[%s396 + $0xc0] sm:$0xff]
        %v1459 = vld [vmem:[%s396 + $0xc8] sm:$0xff]
        %v1460 = vld [vmem:[%s396 + $0xd0] sm:$0xff]
        %v1461 = vld [vmem:[%s396 + $0xd8] sm:$0xff]
        %v1462 = vld [vmem:[%s396 + $0xe0] sm:$0xff]
        %v1463 = vld [vmem:[%s396 + $0xe8] sm:$0xff]
        %v1464 = vld [vmem:[%s396 + $0xf0] sm:$0xff]
        %v1465 = vld [vmem:[%s396 + $0xf8] sm:$0xff]
        %v1466 = vld [vmem:[%s396 + $0x100] sm:$0xff]
        %v1467 = vld [vmem:[%s396 + $0x108] sm:$0xff]
        %v1468 = vld [vmem:[%s396 + $0x110] sm:$0xff]
        %v1469 = vld [vmem:[%s396 + $0x118] sm:$0xff]
        %v1470 = vld [vmem:[%s396 + $0x120] sm:$0xff]
        %v1471 = vld [vmem:[%s396 + $0x128] sm:$0xff]
        %v1472 = vld [vmem:[%s396 + $0x130] sm:$0xff]
        %v1473 = vld [vmem:[%s396 + $0x138] sm:$0xff]
        %v1474 = vld [vmem:[%s396 + $0x140] sm:$0xff]
        %v1475 = vld [vmem:[%s396 + $0x148] sm:$0xff]
        %v1476 = vld [vmem:[%s396 + $0x150] sm:$0xff]
        %v1477 = vld [vmem:[%s396 + $0x158] sm:$0xff]
        %v1478 = vld [vmem:[%s396 + $0x160] sm:$0xff]
        %v1479 = vld [vmem:[%s396 + $0x168] sm:$0xff]
        %v1480 = vld [vmem:[%s396 + $0x170] sm:$0xff]
        %v1481 = vld [vmem:[%s396 + $0x178] sm:$0xff]
        %v1482 = vld [vmem:[%s396 + $0x180] sm:$0xff]
        %v1483 = vld [vmem:[%s396 + $0x188] sm:$0xff]
        %v1484 = vld [vmem:[%s396 + $0x190] sm:$0xff]
        %v1485 = vld [vmem:[%s396 + $0x198] sm:$0xff]
        %v1486 = vld [vmem:[%s396 + $0x1a0] sm:$0xff]
        %v1487 = vld [vmem:[%s396 + $0x1a8] sm:$0xff]
        %v1488 = vld [vmem:[%s396 + $0x1b0] sm:$0xff]
        %v1489 = vld [vmem:[%s396 + $0x1b8] sm:$0xff]
        %v1490 = vld [vmem:[%s396 + $0x1c0] sm:$0xff]
        %v1491 = vld [vmem:[%s396 + $0x1c8] sm:$0xff]
        %v1492 = vld [vmem:[%s396 + $0x1d0] sm:$0xff]
        %v1493 = vld [vmem:[%s396 + $0x1d8] sm:$0xff]
        %v1494 = vld [vmem:[%s396 + $0x1e0] sm:$0xff]
        %v1495 = vld [vmem:[%s396 + $0x1e8] sm:$0xff]
        %v1496 = vld [vmem:[%s396 + $0x1f0] sm:$0xff]
        %v1497 = vld [vmem:[%s396 + $0x1f8] sm:$0xff]
        %v1499 = vrot.slane %v1428, 4
        %1501 = vmatpush.msra.mxu0 %v1494
        %1502 = vmatpush.msra.mxu0 %v1490
        %1503 = vmatpush.msra.mxu0 %v1486
        %1504 = vmatpush.msra.mxu0 %v1482
        %1505 = vmatpush.msra.mxu0 %v1478
        %1506 = vmatpush.msra.mxu0 %v1474
        %1507 = vmatpush.msra.mxu0 %v1470
        %1508 = vmatpush.msra.mxu0 %v1466
        %1509 = vmatpush.msra.mxu0 %v1462
        %1510 = vmatpush.msra.mxu0 %v1458
        %1511 = vmatpush.msra.mxu0 %v1454
        %1512 = vmatpush.msra.mxu0 %v1450
        %1513 = vmatpush.msra.mxu0 %v1446
        %1514 = vmatpush.msra.mxu0 %v1442
        %1515 = vmatpush.msra.mxu0 %v1438
        %1516 = vmatpush.msra.mxu0 %v1434
        %1517 = vmatmul.f32.gmra.mxu0 %v1499
        %v1518 = vpop.f32.mrf.mxu0
        %v1519 = vadd.f32 0.0, %v1518
        %1520 = vdwg.mxu0
        %1521 = vmatpush.msra.mxu0 %v1495
        %1522 = vmatpush.msra.mxu0 %v1491
        %1523 = vmatpush.msra.mxu0 %v1487
        %1524 = vmatpush.msra.mxu0 %v1483
        %1525 = vmatpush.msra.mxu0 %v1479
        %1526 = vmatpush.msra.mxu0 %v1475
        %1527 = vmatpush.msra.mxu0 %v1471
        %1528 = vmatpush.msra.mxu0 %v1467
        %1529 = vmatpush.msra.mxu0 %v1463
        %1530 = vmatpush.msra.mxu0 %v1459
        %1531 = vmatpush.msra.mxu0 %v1455
        %1532 = vmatpush.msra.mxu0 %v1451
        %1533 = vmatpush.msra.mxu0 %v1447
        %1534 = vmatpush.msra.mxu0 %v1443
        %1535 = vmatpush.msra.mxu0 %v1439
        %1536 = vmatpush.msra.mxu0 %v1435
        %1537 = vmatmul.f32.gmra.mxu0 %v1499
        %v1538 = vpop.f32.mrf.mxu0
        %v1539 = vadd.f32 0.0, %v1538
        %1540 = vdwg.mxu0
        %1541 = vmatpush.msra.mxu0 %v1496
        %1542 = vmatpush.msra.mxu0 %v1492
        %1543 = vmatpush.msra.mxu0 %v1488
        %1544 = vmatpush.msra.mxu0 %v1484
        %1545 = vmatpush.msra.mxu0 %v1480
        %1546 = vmatpush.msra.mxu0 %v1476
        %1547 = vmatpush.msra.mxu0 %v1472
        %1548 = vmatpush.msra.mxu0 %v1468
        %1549 = vmatpush.msra.mxu0 %v1464
        %1550 = vmatpush.msra.mxu0 %v1460
        %1551 = vmatpush.msra.mxu0 %v1456
        %1552 = vmatpush.msra.mxu0 %v1452
        %1553 = vmatpush.msra.mxu0 %v1448
        %1554 = vmatpush.msra.mxu0 %v1444
        %1555 = vmatpush.msra.mxu0 %v1440
        %1556 = vmatpush.msra.mxu0 %v1436
        %1557 = vmatmul.f32.gmra.mxu0 %v1499
        %v1558 = vpop.f32.mrf.mxu0
        %v1559 = vadd.f32 0.0, %v1558
        %1560 = vdwg.mxu0
        %1561 = vmatpush.msra.mxu0 %v1497
        %1562 = vmatpush.msra.mxu0 %v1493
        %1563 = vmatpush.msra.mxu0 %v1489
        %1564 = vmatpush.msra.mxu0 %v1485
        %1565 = vmatpush.msra.mxu0 %v1481
        %1566 = vmatpush.msra.mxu0 %v1477
        %1567 = vmatpush.msra.mxu0 %v1473
        %1568 = vmatpush.msra.mxu0 %v1469
        %1569 = vmatpush.msra.mxu0 %v1465
        %1570 = vmatpush.msra.mxu0 %v1461
        %1571 = vmatpush.msra.mxu0 %v1457
        %1572 = vmatpush.msra.mxu0 %v1453
        %1573 = vmatpush.msra.mxu0 %v1449
        %1574 = vmatpush.msra.mxu0 %v1445
        %1575 = vmatpush.msra.mxu0 %v1441
        %1576 = vmatpush.msra.mxu0 %v1437
        %1577 = vmatmul.f32.gmra.mxu0 %v1499
        %v1578 = vpop.f32.mrf.mxu0
        %v1579 = vadd.f32 0.0, %v1578
        %1580 = vdwg.mxu0
        %v1585 = vrot.slane %v1519, 2
        %v1586 = vrot.slane %v1539, 2
        %v1587 = vrot.slane %v1559, 2
        %v1588 = vrot.slane %v1579, 2
        %v1593 = vadd.f32 %v1430, %v1585
        %v1594 = vadd.f32 %v1431, %v1586
        %v1595 = vadd.f32 %v1432, %v1587
        %v1596 = vadd.f32 %v1433, %v1588
        %v1597 = vxor.u32 %v1593, 2147483648
        %v1598 = vmul.f32 %v1597, 1.442695
        %v1599 = vpow.pop %v1598
        %v1600 = vadd.f32 %v1599, 1.0
        %v1601 = vrcp.pop %v1600
        %v1602 = vmul.f32 %v1600, %v1601
        %v1603 = vsub.f32 1.0, %v1602
        %v1604 = vmul.f32 %v1601, %v1603
        %v1605 = vadd.f32 %v1601, %v1604
        %vm1606 = vweird.f32 %v1600
        %vm1607 = vweird.f32 %v1601
        %vm1608 = vmor %vm1606, %vm1607
        %v1609 = vsel %vm1608, %v1601, %v1605
        %v1610 = vand.u32 2147483647, %v1600
        %vm1611 = vcmp.eq.f32.partialorder %v1610, 8.507059e+37
        %v1612 = vand.u32 %v1600, 2147483648
        %v1613 = vor.u32 1.1754944e-38, %v1612
        %v1614 = vsel %vm1611, %v1613, %v1609
        %v1615 = vmul.f32 1.0, %v1614
        %v1616 = vxor.u32 %v1594, 2147483648
        %v1617 = vmul.f32 %v1616, 1.442695
        %v1618 = vpow.pop %v1617
        %v1619 = vadd.f32 %v1618, 1.0
        %v1620 = vrcp.pop %v1619
        %v1621 = vmul.f32 %v1619, %v1620
        %v1622 = vsub.f32 1.0, %v1621
        %v1623 = vmul.f32 %v1620, %v1622
        %v1624 = vadd.f32 %v1620, %v1623
        %vm1625 = vweird.f32 %v1619
        %vm1626 = vweird.f32 %v1620
        %vm1627 = vmor %vm1625, %vm1626
        %v1628 = vsel %vm1627, %v1620, %v1624
        %v1629 = vand.u32 2147483647, %v1619
        %vm1630 = vcmp.eq.f32.partialorder %v1629, 8.507059e+37
        %v1631 = vand.u32 %v1619, 2147483648
        %v1632 = vor.u32 1.1754944e-38, %v1631
        %v1633 = vsel %vm1630, %v1632, %v1628
        %v1634 = vmul.f32 1.0, %v1633
        %v1635 = vtanh.pop %v1595
        %v1636 = vxor.u32 %v1596, 2147483648
        %v1637 = vmul.f32 %v1636, 1.442695
        %v1638 = vpow.pop %v1637
        %v1639 = vadd.f32 %v1638, 1.0
        %v1640 = vrcp.pop %v1639
        %v1641 = vmul.f32 %v1639, %v1640
        %v1642 = vsub.f32 1.0, %v1641
        %v1643 = vmul.f32 %v1640, %v1642
        %v1644 = vadd.f32 %v1640, %v1643
        %vm1645 = vweird.f32 %v1639
        %vm1646 = vweird.f32 %v1640
        %vm1647 = vmor %vm1645, %vm1646
        %v1648 = vsel %vm1647, %v1640, %v1644
        %v1649 = vand.u32 2147483647, %v1639
        %vm1650 = vcmp.eq.f32.partialorder %v1649, 8.507059e+37
        %v1651 = vand.u32 %v1639, 2147483648
        %v1652 = vor.u32 1.1754944e-38, %v1651
        %v1653 = vsel %vm1650, %v1652, %v1648
        %v1654 = vmul.f32 1.0, %v1653
        %v1656 = vrot.slane %v1426, 6
        %v1658 = vmul.f32 %v1634, %v1656
        %v1659 = vmul.f32 %v1615, %v1635
        %v1660 = vadd.f32 %v1658, %v1659
        %v1661 = vtanh.pop %v1660
        %v1662 = vmul.f32 %v1654, %v1661
        %1663 = vst [vmem:[#allocation3] sm:$0xc0] %v1662
        %v1664 = vld [vmem:[#allocation2 + $0x20] sm:$0x3]
        %v1665 = vld [vmem:[#allocation2 + $0x28] sm:$0x3]
        %v1666 = vld [vmem:[#allocation2 + $0x30] sm:$0x3]
        %v1667 = vld [vmem:[#allocation2 + $0x38] sm:$0x3]
        %v1668 = vld [vmem:[%s396] sm:$0xff]
        %v1669 = vld [vmem:[%s396 + $0x8] sm:$0xff]
        %v1670 = vld [vmem:[%s396 + $0x10] sm:$0xff]
        %v1671 = vld [vmem:[%s396 + $0x18] sm:$0xff]
        %v1672 = vld [vmem:[%s396 + $0x20] sm:$0xff]
        %v1673 = vld [vmem:[%s396 + $0x28] sm:$0xff]
        %v1674 = vld [vmem:[%s396 + $0x30] sm:$0xff]
        %v1675 = vld [vmem:[%s396 + $0x38] sm:$0xff]
        %v1676 = vld [vmem:[%s396 + $0x40] sm:$0xff]
        %v1677 = vld [vmem:[%s396 + $0x48] sm:$0xff]
        %v1678 = vld [vmem:[%s396 + $0x50] sm:$0xff]
        %v1679 = vld [vmem:[%s396 + $0x58] sm:$0xff]
        %v1680 = vld [vmem:[%s396 + $0x60] sm:$0xff]
        %v1681 = vld [vmem:[%s396 + $0x68] sm:$0xff]
        %v1682 = vld [vmem:[%s396 + $0x70] sm:$0xff]
        %v1683 = vld [vmem:[%s396 + $0x78] sm:$0xff]
        %v1684 = vld [vmem:[%s396 + $0x80] sm:$0xff]
        %v1685 = vld [vmem:[%s396 + $0x88] sm:$0xff]
        %v1686 = vld [vmem:[%s396 + $0x90] sm:$0xff]
        %v1687 = vld [vmem:[%s396 + $0x98] sm:$0xff]
        %v1688 = vld [vmem:[%s396 + $0xa0] sm:$0xff]
        %v1689 = vld [vmem:[%s396 + $0xa8] sm:$0xff]
        %v1690 = vld [vmem:[%s396 + $0xb0] sm:$0xff]
        %v1691 = vld [vmem:[%s396 + $0xb8] sm:$0xff]
        %v1692 = vld [vmem:[%s396 + $0xc0] sm:$0xff]
        %v1693 = vld [vmem:[%s396 + $0xc8] sm:$0xff]
        %v1694 = vld [vmem:[%s396 + $0xd0] sm:$0xff]
        %v1695 = vld [vmem:[%s396 + $0xd8] sm:$0xff]
        %v1696 = vld [vmem:[%s396 + $0xe0] sm:$0xff]
        %v1697 = vld [vmem:[%s396 + $0xe8] sm:$0xff]
        %v1698 = vld [vmem:[%s396 + $0xf0] sm:$0xff]
        %v1699 = vld [vmem:[%s396 + $0xf8] sm:$0xff]
        %v1700 = vld [vmem:[%s396 + $0x100] sm:$0xff]
        %v1701 = vld [vmem:[%s396 + $0x108] sm:$0xff]
        %v1702 = vld [vmem:[%s396 + $0x110] sm:$0xff]
        %v1703 = vld [vmem:[%s396 + $0x118] sm:$0xff]
        %v1704 = vld [vmem:[%s396 + $0x120] sm:$0xff]
        %v1705 = vld [vmem:[%s396 + $0x128] sm:$0xff]
        %v1706 = vld [vmem:[%s396 + $0x130] sm:$0xff]
        %v1707 = vld [vmem:[%s396 + $0x138] sm:$0xff]
        %v1708 = vld [vmem:[%s396 + $0x140] sm:$0xff]
        %v1709 = vld [vmem:[%s396 + $0x148] sm:$0xff]
        %v1710 = vld [vmem:[%s396 + $0x150] sm:$0xff]
        %v1711 = vld [vmem:[%s396 + $0x158] sm:$0xff]
        %v1712 = vld [vmem:[%s396 + $0x160] sm:$0xff]
        %v1713 = vld [vmem:[%s396 + $0x168] sm:$0xff]
        %v1714 = vld [vmem:[%s396 + $0x170] sm:$0xff]
        %v1715 = vld [vmem:[%s396 + $0x178] sm:$0xff]
        %v1716 = vld [vmem:[%s396 + $0x180] sm:$0xff]
        %v1717 = vld [vmem:[%s396 + $0x188] sm:$0xff]
        %v1718 = vld [vmem:[%s396 + $0x190] sm:$0xff]
        %v1719 = vld [vmem:[%s396 + $0x198] sm:$0xff]
        %v1720 = vld [vmem:[%s396 + $0x1a0] sm:$0xff]
        %v1721 = vld [vmem:[%s396 + $0x1a8] sm:$0xff]
        %v1722 = vld [vmem:[%s396 + $0x1b0] sm:$0xff]
        %v1723 = vld [vmem:[%s396 + $0x1b8] sm:$0xff]
        %v1724 = vld [vmem:[%s396 + $0x1c0] sm:$0xff]
        %v1725 = vld [vmem:[%s396 + $0x1c8] sm:$0xff]
        %v1726 = vld [vmem:[%s396 + $0x1d0] sm:$0xff]
        %v1727 = vld [vmem:[%s396 + $0x1d8] sm:$0xff]
        %v1728 = vld [vmem:[%s396 + $0x1e0] sm:$0xff]
        %v1729 = vld [vmem:[%s396 + $0x1e8] sm:$0xff]
        %v1730 = vld [vmem:[%s396 + $0x1f0] sm:$0xff]
        %v1731 = vld [vmem:[%s396 + $0x1f8] sm:$0xff]
        %v1733 = vrot.slane %v1662, 6
        %1735 = vmatpush.msra.mxu0 %v1728
        %1736 = vmatpush.msra.mxu0 %v1724
        %1737 = vmatpush.msra.mxu0 %v1720
        %1738 = vmatpush.msra.mxu0 %v1716
        %1739 = vmatpush.msra.mxu0 %v1712
        %1740 = vmatpush.msra.mxu0 %v1708
        %1741 = vmatpush.msra.mxu0 %v1704
        %1742 = vmatpush.msra.mxu0 %v1700
        %1743 = vmatpush.msra.mxu0 %v1696
        %1744 = vmatpush.msra.mxu0 %v1692
        %1745 = vmatpush.msra.mxu0 %v1688
        %1746 = vmatpush.msra.mxu0 %v1684
        %1747 = vmatpush.msra.mxu0 %v1680
        %1748 = vmatpush.msra.mxu0 %v1676
        %1749 = vmatpush.msra.mxu0 %v1672
        %1750 = vmatpush.msra.mxu0 %v1668
        %1751 = vmatmul.f32.gmra.mxu0 %v1733
        %v1752 = vpop.f32.mrf.mxu0
        %v1753 = vadd.f32 0.0, %v1752
        %1754 = vdwg.mxu0
        %1755 = vmatpush.msra.mxu0 %v1729
        %1756 = vmatpush.msra.mxu0 %v1725
        %1757 = vmatpush.msra.mxu0 %v1721
        %1758 = vmatpush.msra.mxu0 %v1717
        %1759 = vmatpush.msra.mxu0 %v1713
        %1760 = vmatpush.msra.mxu0 %v1709
        %1761 = vmatpush.msra.mxu0 %v1705
        %1762 = vmatpush.msra.mxu0 %v1701
        %1763 = vmatpush.msra.mxu0 %v1697
        %1764 = vmatpush.msra.mxu0 %v1693
        %1765 = vmatpush.msra.mxu0 %v1689
        %1766 = vmatpush.msra.mxu0 %v1685
        %1767 = vmatpush.msra.mxu0 %v1681
        %1768 = vmatpush.msra.mxu0 %v1677
        %1769 = vmatpush.msra.mxu0 %v1673
        %1770 = vmatpush.msra.mxu0 %v1669
        %1771 = vmatmul.f32.gmra.mxu0 %v1733
        %v1772 = vpop.f32.mrf.mxu0
        %v1773 = vadd.f32 0.0, %v1772
        %1774 = vdwg.mxu0
        %1775 = vmatpush.msra.mxu0 %v1730
        %1776 = vmatpush.msra.mxu0 %v1726
        %1777 = vmatpush.msra.mxu0 %v1722
        %1778 = vmatpush.msra.mxu0 %v1718
        %1779 = vmatpush.msra.mxu0 %v1714
        %1780 = vmatpush.msra.mxu0 %v1710
        %1781 = vmatpush.msra.mxu0 %v1706
        %1782 = vmatpush.msra.mxu0 %v1702
        %1783 = vmatpush.msra.mxu0 %v1698
        %1784 = vmatpush.msra.mxu0 %v1694
        %1785 = vmatpush.msra.mxu0 %v1690
        %1786 = vmatpush.msra.mxu0 %v1686
        %1787 = vmatpush.msra.mxu0 %v1682
        %1788 = vmatpush.msra.mxu0 %v1678
        %1789 = vmatpush.msra.mxu0 %v1674
        %1790 = vmatpush.msra.mxu0 %v1670
        %1791 = vmatmul.f32.gmra.mxu0 %v1733
        %v1792 = vpop.f32.mrf.mxu0
        %v1793 = vadd.f32 0.0, %v1792
        %1794 = vdwg.mxu0
        %1795 = vmatpush.msra.mxu0 %v1731
        %1796 = vmatpush.msra.mxu0 %v1727
        %1797 = vmatpush.msra.mxu0 %v1723
        %1798 = vmatpush.msra.mxu0 %v1719
        %1799 = vmatpush.msra.mxu0 %v1715
        %1800 = vmatpush.msra.mxu0 %v1711
        %1801 = vmatpush.msra.mxu0 %v1707
        %1802 = vmatpush.msra.mxu0 %v1703
        %1803 = vmatpush.msra.mxu0 %v1699
        %1804 = vmatpush.msra.mxu0 %v1695
        %1805 = vmatpush.msra.mxu0 %v1691
        %1806 = vmatpush.msra.mxu0 %v1687
        %1807 = vmatpush.msra.mxu0 %v1683
        %1808 = vmatpush.msra.mxu0 %v1679
        %1809 = vmatpush.msra.mxu0 %v1675
        %1810 = vmatpush.msra.mxu0 %v1671
        %1811 = vmatmul.f32.gmra.mxu0 %v1733
        %v1812 = vpop.f32.mrf.mxu0
        %v1813 = vadd.f32 0.0, %v1812
        %1814 = vdwg.mxu0
        %v1815 = vadd.f32 %v1664, %v1753
        %v1816 = vadd.f32 %v1665, %v1773
        %v1817 = vadd.f32 %v1666, %v1793
        %v1818 = vadd.f32 %v1667, %v1813
        %v1819 = vxor.u32 %v1815, 2147483648
        %v1820 = vmul.f32 %v1819, 1.442695
        %v1821 = vpow.pop %v1820
        %v1822 = vadd.f32 %v1821, 1.0
        %v1823 = vrcp.pop %v1822
        %v1824 = vmul.f32 %v1822, %v1823
        %v1825 = vsub.f32 1.0, %v1824
        %v1826 = vmul.f32 %v1823, %v1825
        %v1827 = vadd.f32 %v1823, %v1826
        %vm1828 = vweird.f32 %v1822
        %vm1829 = vweird.f32 %v1823
        %vm1830 = vmor %vm1828, %vm1829
        %v1831 = vsel %vm1830, %v1823, %v1827
        %v1832 = vand.u32 2147483647, %v1822
        %vm1833 = vcmp.eq.f32.partialorder %v1832, 8.507059e+37
        %v1834 = vand.u32 %v1822, 2147483648
        %v1835 = vor.u32 1.1754944e-38, %v1834
        %v1836 = vsel %vm1833, %v1835, %v1831
        %v1837 = vmul.f32 1.0, %v1836
        %v1838 = vxor.u32 %v1816, 2147483648
        %v1839 = vmul.f32 %v1838, 1.442695
        %v1840 = vpow.pop %v1839
        %v1841 = vadd.f32 %v1840, 1.0
        %v1842 = vrcp.pop %v1841
        %v1843 = vmul.f32 %v1841, %v1842
        %v1844 = vsub.f32 1.0, %v1843
        %v1845 = vmul.f32 %v1842, %v1844
        %v1846 = vadd.f32 %v1842, %v1845
        %vm1847 = vweird.f32 %v1841
        %vm1848 = vweird.f32 %v1842
        %vm1849 = vmor %vm1847, %vm1848
        %v1850 = vsel %vm1849, %v1842, %v1846
        %v1851 = vand.u32 2147483647, %v1841
        %vm1852 = vcmp.eq.f32.partialorder %v1851, 8.507059e+37
        %v1853 = vand.u32 %v1841, 2147483648
        %v1854 = vor.u32 1.1754944e-38, %v1853
        %v1855 = vsel %vm1852, %v1854, %v1850
        %v1856 = vmul.f32 1.0, %v1855
        %v1857 = vtanh.pop %v1817
        %v1858 = vxor.u32 %v1818, 2147483648
        %v1859 = vmul.f32 %v1858, 1.442695
        %v1860 = vpow.pop %v1859
        %v1861 = vadd.f32 %v1860, 1.0
        %v1862 = vrcp.pop %v1861
        %v1863 = vmul.f32 %v1861, %v1862
        %v1864 = vsub.f32 1.0, %v1863
        %v1865 = vmul.f32 %v1862, %v1864
        %v1866 = vadd.f32 %v1862, %v1865
        %vm1867 = vweird.f32 %v1861
        %vm1868 = vweird.f32 %v1862
        %vm1869 = vmor %vm1867, %vm1868
        %v1870 = vsel %vm1869, %v1862, %v1866
        %v1871 = vand.u32 2147483647, %v1861
        %vm1872 = vcmp.eq.f32.partialorder %v1871, 8.507059e+37
        %v1873 = vand.u32 %v1861, 2147483648
        %v1874 = vor.u32 1.1754944e-38, %v1873
        %v1875 = vsel %vm1872, %v1874, %v1870
        %v1876 = vmul.f32 1.0, %v1875
        %v1878 = vrot.slane %v1660, 6
        %v1880 = vmul.f32 %v1856, %v1878
        %v1881 = vmul.f32 %v1837, %v1857
        %v1882 = vadd.f32 %v1880, %v1881
        %v1883 = vtanh.pop %v1882
        %v1884 = vmul.f32 %v1876, %v1883
        %1885 = vst [vmem:[#allocation3 + $0x8] sm:$0x3] %v1884
        %v1886 = vld [vmem:[#allocation2 + $0x20] sm:$0xc]
        %v1887 = vld [vmem:[#allocation2 + $0x28] sm:$0xc]
        %v1888 = vld [vmem:[#allocation2 + $0x30] sm:$0xc]
        %v1889 = vld [vmem:[#allocation2 + $0x38] sm:$0xc]
        %v1890 = vld [vmem:[%s396] sm:$0xff]
        %v1891 = vld [vmem:[%s396 + $0x8] sm:$0xff]
        %v1892 = vld [vmem:[%s396 + $0x10] sm:$0xff]
        %v1893 = vld [vmem:[%s396 + $0x18] sm:$0xff]
        %v1894 = vld [vmem:[%s396 + $0x20] sm:$0xff]
        %v1895 = vld [vmem:[%s396 + $0x28] sm:$0xff]
        %v1896 = vld [vmem:[%s396 + $0x30] sm:$0xff]
        %v1897 = vld [vmem:[%s396 + $0x38] sm:$0xff]
        %v1898 = vld [vmem:[%s396 + $0x40] sm:$0xff]
        %v1899 = vld [vmem:[%s396 + $0x48] sm:$0xff]
        %v1900 = vld [vmem:[%s396 + $0x50] sm:$0xff]
        %v1901 = vld [vmem:[%s396 + $0x58] sm:$0xff]
        %v1902 = vld [vmem:[%s396 + $0x60] sm:$0xff]
        %v1903 = vld [vmem:[%s396 + $0x68] sm:$0xff]
        %v1904 = vld [vmem:[%s396 + $0x70] sm:$0xff]
        %v1905 = vld [vmem:[%s396 + $0x78] sm:$0xff]
        %v1906 = vld [vmem:[%s396 + $0x80] sm:$0xff]
        %v1907 = vld [vmem:[%s396 + $0x88] sm:$0xff]
        %v1908 = vld [vmem:[%s396 + $0x90] sm:$0xff]
        %v1909 = vld [vmem:[%s396 + $0x98] sm:$0xff]
        %v1910 = vld [vmem:[%s396 + $0xa0] sm:$0xff]
        %v1911 = vld [vmem:[%s396 + $0xa8] sm:$0xff]
        %v1912 = vld [vmem:[%s396 + $0xb0] sm:$0xff]
        %v1913 = vld [vmem:[%s396 + $0xb8] sm:$0xff]
        %v1914 = vld [vmem:[%s396 + $0xc0] sm:$0xff]
        %v1915 = vld [vmem:[%s396 + $0xc8] sm:$0xff]
        %v1916 = vld [vmem:[%s396 + $0xd0] sm:$0xff]
        %v1917 = vld [vmem:[%s396 + $0xd8] sm:$0xff]
        %v1918 = vld [vmem:[%s396 + $0xe0] sm:$0xff]
        %v1919 = vld [vmem:[%s396 + $0xe8] sm:$0xff]
        %v1920 = vld [vmem:[%s396 + $0xf0] sm:$0xff]
        %v1921 = vld [vmem:[%s396 + $0xf8] sm:$0xff]
        %v1922 = vld [vmem:[%s396 + $0x100] sm:$0xff]
        %v1923 = vld [vmem:[%s396 + $0x108] sm:$0xff]
        %v1924 = vld [vmem:[%s396 + $0x110] sm:$0xff]
        %v1925 = vld [vmem:[%s396 + $0x118] sm:$0xff]
        %v1926 = vld [vmem:[%s396 + $0x120] sm:$0xff]
        %v1927 = vld [vmem:[%s396 + $0x128] sm:$0xff]
        %v1928 = vld [vmem:[%s396 + $0x130] sm:$0xff]
        %v1929 = vld [vmem:[%s396 + $0x138] sm:$0xff]
        %v1930 = vld [vmem:[%s396 + $0x140] sm:$0xff]
        %v1931 = vld [vmem:[%s396 + $0x148] sm:$0xff]
        %v1932 = vld [vmem:[%s396 + $0x150] sm:$0xff]
        %v1933 = vld [vmem:[%s396 + $0x158] sm:$0xff]
        %v1934 = vld [vmem:[%s396 + $0x160] sm:$0xff]
        %v1935 = vld [vmem:[%s396 + $0x168] sm:$0xff]
        %v1936 = vld [vmem:[%s396 + $0x170] sm:$0xff]
        %v1937 = vld [vmem:[%s396 + $0x178] sm:$0xff]
        %v1938 = vld [vmem:[%s396 + $0x180] sm:$0xff]
        %v1939 = vld [vmem:[%s396 + $0x188] sm:$0xff]
        %v1940 = vld [vmem:[%s396 + $0x190] sm:$0xff]
        %v1941 = vld [vmem:[%s396 + $0x198] sm:$0xff]
        %v1942 = vld [vmem:[%s396 + $0x1a0] sm:$0xff]
        %v1943 = vld [vmem:[%s396 + $0x1a8] sm:$0xff]
        %v1944 = vld [vmem:[%s396 + $0x1b0] sm:$0xff]
        %v1945 = vld [vmem:[%s396 + $0x1b8] sm:$0xff]
        %v1946 = vld [vmem:[%s396 + $0x1c0] sm:$0xff]
        %v1947 = vld [vmem:[%s396 + $0x1c8] sm:$0xff]
        %v1948 = vld [vmem:[%s396 + $0x1d0] sm:$0xff]
        %v1949 = vld [vmem:[%s396 + $0x1d8] sm:$0xff]
        %v1950 = vld [vmem:[%s396 + $0x1e0] sm:$0xff]
        %v1951 = vld [vmem:[%s396 + $0x1e8] sm:$0xff]
        %v1952 = vld [vmem:[%s396 + $0x1f0] sm:$0xff]
        %v1953 = vld [vmem:[%s396 + $0x1f8] sm:$0xff]
        %1954 = vmatpush.msra.mxu0 %v1950
        %1955 = vmatpush.msra.mxu0 %v1946
        %1956 = vmatpush.msra.mxu0 %v1942
        %1957 = vmatpush.msra.mxu0 %v1938
        %1958 = vmatpush.msra.mxu0 %v1934
        %1959 = vmatpush.msra.mxu0 %v1930
        %1960 = vmatpush.msra.mxu0 %v1926
        %1961 = vmatpush.msra.mxu0 %v1922
        %1962 = vmatpush.msra.mxu0 %v1918
        %1963 = vmatpush.msra.mxu0 %v1914
        %1964 = vmatpush.msra.mxu0 %v1910
        %1965 = vmatpush.msra.mxu0 %v1906
        %1966 = vmatpush.msra.mxu0 %v1902
        %1967 = vmatpush.msra.mxu0 %v1898
        %1968 = vmatpush.msra.mxu0 %v1894
        %1969 = vmatpush.msra.mxu0 %v1890
        %1970 = vmatmul.f32.gmra.mxu0 %v1884
        %v1971 = vpop.f32.mrf.mxu0
        %v1972 = vadd.f32 0.0, %v1971
        %1973 = vdwg.mxu0
        %1974 = vmatpush.msra.mxu0 %v1951
        %1975 = vmatpush.msra.mxu0 %v1947
        %1976 = vmatpush.msra.mxu0 %v1943
        %1977 = vmatpush.msra.mxu0 %v1939
        %1978 = vmatpush.msra.mxu0 %v1935
        %1979 = vmatpush.msra.mxu0 %v1931
        %1980 = vmatpush.msra.mxu0 %v1927
        %1981 = vmatpush.msra.mxu0 %v1923
        %1982 = vmatpush.msra.mxu0 %v1919
        %1983 = vmatpush.msra.mxu0 %v1915
        %1984 = vmatpush.msra.mxu0 %v1911
        %1985 = vmatpush.msra.mxu0 %v1907
        %1986 = vmatpush.msra.mxu0 %v1903
        %1987 = vmatpush.msra.mxu0 %v1899
        %1988 = vmatpush.msra.mxu0 %v1895
        %1989 = vmatpush.msra.mxu0 %v1891
        %1990 = vmatmul.f32.gmra.mxu0 %v1884
        %v1991 = vpop.f32.mrf.mxu0
        %v1992 = vadd.f32 0.0, %v1991
        %1993 = vdwg.mxu0
        %1994 = vmatpush.msra.mxu0 %v1952
        %1995 = vmatpush.msra.mxu0 %v1948
        %1996 = vmatpush.msra.mxu0 %v1944
        %1997 = vmatpush.msra.mxu0 %v1940
        %1998 = vmatpush.msra.mxu0 %v1936
        %1999 = vmatpush.msra.mxu0 %v1932
        %2000 = vmatpush.msra.mxu0 %v1928
        %2001 = vmatpush.msra.mxu0 %v1924
        %2002 = vmatpush.msra.mxu0 %v1920
        %2003 = vmatpush.msra.mxu0 %v1916
        %2004 = vmatpush.msra.mxu0 %v1912
        %2005 = vmatpush.msra.mxu0 %v1908
        %2006 = vmatpush.msra.mxu0 %v1904
        %2007 = vmatpush.msra.mxu0 %v1900
        %2008 = vmatpush.msra.mxu0 %v1896
        %2009 = vmatpush.msra.mxu0 %v1892
        %2010 = vmatmul.f32.gmra.mxu0 %v1884
        %v2011 = vpop.f32.mrf.mxu0
        %v2012 = vadd.f32 0.0, %v2011
        %2013 = vdwg.mxu0
        %2014 = vmatpush.msra.mxu0 %v1953
        %2015 = vmatpush.msra.mxu0 %v1949
        %2016 = vmatpush.msra.mxu0 %v1945
        %2017 = vmatpush.msra.mxu0 %v1941
        %2018 = vmatpush.msra.mxu0 %v1937
        %2019 = vmatpush.msra.mxu0 %v1933
        %2020 = vmatpush.msra.mxu0 %v1929
        %2021 = vmatpush.msra.mxu0 %v1925
        %2022 = vmatpush.msra.mxu0 %v1921
        %2023 = vmatpush.msra.mxu0 %v1917
        %2024 = vmatpush.msra.mxu0 %v1913
        %2025 = vmatpush.msra.mxu0 %v1909
        %2026 = vmatpush.msra.mxu0 %v1905
        %2027 = vmatpush.msra.mxu0 %v1901
        %2028 = vmatpush.msra.mxu0 %v1897
        %2029 = vmatpush.msra.mxu0 %v1893
        %2030 = vmatmul.f32.gmra.mxu0 %v1884
        %v2031 = vpop.f32.mrf.mxu0
        %v2032 = vadd.f32 0.0, %v2031
        %2033 = vdwg.mxu0
        %v2038 = vrot.slane %v1972, 6
        %v2039 = vrot.slane %v1992, 6
        %v2040 = vrot.slane %v2012, 6
        %v2041 = vrot.slane %v2032, 6
        %v2046 = vadd.f32 %v1886, %v2038
        %v2047 = vadd.f32 %v1887, %v2039
        %v2048 = vadd.f32 %v1888, %v2040
        %v2049 = vadd.f32 %v1889, %v2041
        %v2050 = vxor.u32 %v2046, 2147483648
        %v2051 = vmul.f32 %v2050, 1.442695
        %v2052 = vpow.pop %v2051
        %v2053 = vadd.f32 %v2052, 1.0
        %v2054 = vrcp.pop %v2053
        %v2055 = vmul.f32 %v2053, %v2054
        %v2056 = vsub.f32 1.0, %v2055
        %v2057 = vmul.f32 %v2054, %v2056
        %v2058 = vadd.f32 %v2054, %v2057
        %vm2059 = vweird.f32 %v2053
        %vm2060 = vweird.f32 %v2054
        %vm2061 = vmor %vm2059, %vm2060
        %v2062 = vsel %vm2061, %v2054, %v2058
        %v2063 = vand.u32 2147483647, %v2053
        %vm2064 = vcmp.eq.f32.partialorder %v2063, 8.507059e+37
        %v2065 = vand.u32 %v2053, 2147483648
        %v2066 = vor.u32 1.1754944e-38, %v2065
        %v2067 = vsel %vm2064, %v2066, %v2062
        %v2068 = vmul.f32 1.0, %v2067
        %v2069 = vxor.u32 %v2047, 2147483648
        %v2070 = vmul.f32 %v2069, 1.442695
        %v2071 = vpow.pop %v2070
        %v2072 = vadd.f32 %v2071, 1.0
        %v2073 = vrcp.pop %v2072
        %v2074 = vmul.f32 %v2072, %v2073
        %v2075 = vsub.f32 1.0, %v2074
        %v2076 = vmul.f32 %v2073, %v2075
        %v2077 = vadd.f32 %v2073, %v2076
        %vm2078 = vweird.f32 %v2072
        %vm2079 = vweird.f32 %v2073
        %vm2080 = vmor %vm2078, %vm2079
        %v2081 = vsel %vm2080, %v2073, %v2077
        %v2082 = vand.u32 2147483647, %v2072
        %vm2083 = vcmp.eq.f32.partialorder %v2082, 8.507059e+37
        %v2084 = vand.u32 %v2072, 2147483648
        %v2085 = vor.u32 1.1754944e-38, %v2084
        %v2086 = vsel %vm2083, %v2085, %v2081
        %v2087 = vmul.f32 1.0, %v2086
        %v2088 = vtanh.pop %v2048
        %v2089 = vxor.u32 %v2049, 2147483648
        %v2090 = vmul.f32 %v2089, 1.442695
        %v2091 = vpow.pop %v2090
        %v2092 = vadd.f32 %v2091, 1.0
        %v2093 = vrcp.pop %v2092
        %v2094 = vmul.f32 %v2092, %v2093
        %v2095 = vsub.f32 1.0, %v2094
        %v2096 = vmul.f32 %v2093, %v2095
        %v2097 = vadd.f32 %v2093, %v2096
        %vm2098 = vweird.f32 %v2092
        %vm2099 = vweird.f32 %v2093
        %vm2100 = vmor %vm2098, %vm2099
        %v2101 = vsel %vm2100, %v2093, %v2097
        %v2102 = vand.u32 2147483647, %v2092
        %vm2103 = vcmp.eq.f32.partialorder %v2102, 8.507059e+37
        %v2104 = vand.u32 %v2092, 2147483648
        %v2105 = vor.u32 1.1754944e-38, %v2104
        %v2106 = vsel %vm2103, %v2105, %v2101
        %v2107 = vmul.f32 1.0, %v2106
        %v2109 = vrot.slane %v1882, 6
        %v2111 = vmul.f32 %v2087, %v2109
        %v2112 = vmul.f32 %v2068, %v2088
        %v2113 = vadd.f32 %v2111, %v2112
        %v2114 = vtanh.pop %v2113
        %v2115 = vmul.f32 %v2107, %v2114
        %2116 = vst [vmem:[#allocation3 + $0x8] sm:$0xc] %v2115
        %v2117 = vld [vmem:[#allocation2 + $0x20] sm:$0x30]
        %v2118 = vld [vmem:[#allocation2 + $0x28] sm:$0x30]
        %v2119 = vld [vmem:[#allocation2 + $0x30] sm:$0x30]
        %v2120 = vld [vmem:[#allocation2 + $0x38] sm:$0x30]
        %v2121 = vld [vmem:[%s396] sm:$0xff]
        %v2122 = vld [vmem:[%s396 + $0x8] sm:$0xff]
        %v2123 = vld [vmem:[%s396 + $0x10] sm:$0xff]
        %v2124 = vld [vmem:[%s396 + $0x18] sm:$0xff]
        %v2125 = vld [vmem:[%s396 + $0x20] sm:$0xff]
        %v2126 = vld [vmem:[%s396 + $0x28] sm:$0xff]
        %v2127 = vld [vmem:[%s396 + $0x30] sm:$0xff]
        %v2128 = vld [vmem:[%s396 + $0x38] sm:$0xff]
        %v2129 = vld [vmem:[%s396 + $0x40] sm:$0xff]
        %v2130 = vld [vmem:[%s396 + $0x48] sm:$0xff]
        %v2131 = vld [vmem:[%s396 + $0x50] sm:$0xff]
        %v2132 = vld [vmem:[%s396 + $0x58] sm:$0xff]
        %v2133 = vld [vmem:[%s396 + $0x60] sm:$0xff]
        %v2134 = vld [vmem:[%s396 + $0x68] sm:$0xff]
        %v2135 = vld [vmem:[%s396 + $0x70] sm:$0xff]
        %v2136 = vld [vmem:[%s396 + $0x78] sm:$0xff]
        %v2137 = vld [vmem:[%s396 + $0x80] sm:$0xff]
        %v2138 = vld [vmem:[%s396 + $0x88] sm:$0xff]
        %v2139 = vld [vmem:[%s396 + $0x90] sm:$0xff]
        %v2140 = vld [vmem:[%s396 + $0x98] sm:$0xff]
        %v2141 = vld [vmem:[%s396 + $0xa0] sm:$0xff]
        %v2142 = vld [vmem:[%s396 + $0xa8] sm:$0xff]
        %v2143 = vld [vmem:[%s396 + $0xb0] sm:$0xff]
        %v2144 = vld [vmem:[%s396 + $0xb8] sm:$0xff]
        %v2145 = vld [vmem:[%s396 + $0xc0] sm:$0xff]
        %v2146 = vld [vmem:[%s396 + $0xc8] sm:$0xff]
        %v2147 = vld [vmem:[%s396 + $0xd0] sm:$0xff]
        %v2148 = vld [vmem:[%s396 + $0xd8] sm:$0xff]
        %v2149 = vld [vmem:[%s396 + $0xe0] sm:$0xff]
        %v2150 = vld [vmem:[%s396 + $0xe8] sm:$0xff]
        %v2151 = vld [vmem:[%s396 + $0xf0] sm:$0xff]
        %v2152 = vld [vmem:[%s396 + $0xf8] sm:$0xff]
        %v2153 = vld [vmem:[%s396 + $0x100] sm:$0xff]
        %v2154 = vld [vmem:[%s396 + $0x108] sm:$0xff]
        %v2155 = vld [vmem:[%s396 + $0x110] sm:$0xff]
        %v2156 = vld [vmem:[%s396 + $0x118] sm:$0xff]
        %v2157 = vld [vmem:[%s396 + $0x120] sm:$0xff]
        %v2158 = vld [vmem:[%s396 + $0x128] sm:$0xff]
        %v2159 = vld [vmem:[%s396 + $0x130] sm:$0xff]
        %v2160 = vld [vmem:[%s396 + $0x138] sm:$0xff]
        %v2161 = vld [vmem:[%s396 + $0x140] sm:$0xff]
        %v2162 = vld [vmem:[%s396 + $0x148] sm:$0xff]
        %v2163 = vld [vmem:[%s396 + $0x150] sm:$0xff]
        %v2164 = vld [vmem:[%s396 + $0x158] sm:$0xff]
        %v2165 = vld [vmem:[%s396 + $0x160] sm:$0xff]
        %v2166 = vld [vmem:[%s396 + $0x168] sm:$0xff]
        %v2167 = vld [vmem:[%s396 + $0x170] sm:$0xff]
        %v2168 = vld [vmem:[%s396 + $0x178] sm:$0xff]
        %v2169 = vld [vmem:[%s396 + $0x180] sm:$0xff]
        %v2170 = vld [vmem:[%s396 + $0x188] sm:$0xff]
        %v2171 = vld [vmem:[%s396 + $0x190] sm:$0xff]
        %v2172 = vld [vmem:[%s396 + $0x198] sm:$0xff]
        %v2173 = vld [vmem:[%s396 + $0x1a0] sm:$0xff]
        %v2174 = vld [vmem:[%s396 + $0x1a8] sm:$0xff]
        %v2175 = vld [vmem:[%s396 + $0x1b0] sm:$0xff]
        %v2176 = vld [vmem:[%s396 + $0x1b8] sm:$0xff]
        %v2177 = vld [vmem:[%s396 + $0x1c0] sm:$0xff]
        %v2178 = vld [vmem:[%s396 + $0x1c8] sm:$0xff]
        %v2179 = vld [vmem:[%s396 + $0x1d0] sm:$0xff]
        %v2180 = vld [vmem:[%s396 + $0x1d8] sm:$0xff]
        %v2181 = vld [vmem:[%s396 + $0x1e0] sm:$0xff]
        %v2182 = vld [vmem:[%s396 + $0x1e8] sm:$0xff]
        %v2183 = vld [vmem:[%s396 + $0x1f0] sm:$0xff]
        %v2184 = vld [vmem:[%s396 + $0x1f8] sm:$0xff]
        %v2186 = vrot.slane %v2115, 2
        %2188 = vmatpush.msra.mxu0 %v2181
        %2189 = vmatpush.msra.mxu0 %v2177
        %2190 = vmatpush.msra.mxu0 %v2173
        %2191 = vmatpush.msra.mxu0 %v2169
        %2192 = vmatpush.msra.mxu0 %v2165
        %2193 = vmatpush.msra.mxu0 %v2161
        %2194 = vmatpush.msra.mxu0 %v2157
        %2195 = vmatpush.msra.mxu0 %v2153
        %2196 = vmatpush.msra.mxu0 %v2149
        %2197 = vmatpush.msra.mxu0 %v2145
        %2198 = vmatpush.msra.mxu0 %v2141
        %2199 = vmatpush.msra.mxu0 %v2137
        %2200 = vmatpush.msra.mxu0 %v2133
        %2201 = vmatpush.msra.mxu0 %v2129
        %2202 = vmatpush.msra.mxu0 %v2125
        %2203 = vmatpush.msra.mxu0 %v2121
        %2204 = vmatmul.f32.gmra.mxu0 %v2186
        %v2205 = vpop.f32.mrf.mxu0
        %v2206 = vadd.f32 0.0, %v2205
        %2207 = vdwg.mxu0
        %2208 = vmatpush.msra.mxu0 %v2182
        %2209 = vmatpush.msra.mxu0 %v2178
        %2210 = vmatpush.msra.mxu0 %v2174
        %2211 = vmatpush.msra.mxu0 %v2170
        %2212 = vmatpush.msra.mxu0 %v2166
        %2213 = vmatpush.msra.mxu0 %v2162
        %2214 = vmatpush.msra.mxu0 %v2158
        %2215 = vmatpush.msra.mxu0 %v2154
        %2216 = vmatpush.msra.mxu0 %v2150
        %2217 = vmatpush.msra.mxu0 %v2146
        %2218 = vmatpush.msra.mxu0 %v2142
        %2219 = vmatpush.msra.mxu0 %v2138
        %2220 = vmatpush.msra.mxu0 %v2134
        %2221 = vmatpush.msra.mxu0 %v2130
        %2222 = vmatpush.msra.mxu0 %v2126
        %2223 = vmatpush.msra.mxu0 %v2122
        %2224 = vmatmul.f32.gmra.mxu0 %v2186
        %v2225 = vpop.f32.mrf.mxu0
        %v2226 = vadd.f32 0.0, %v2225
        %2227 = vdwg.mxu0
        %2228 = vmatpush.msra.mxu0 %v2183
        %2229 = vmatpush.msra.mxu0 %v2179
        %2230 = vmatpush.msra.mxu0 %v2175
        %2231 = vmatpush.msra.mxu0 %v2171
        %2232 = vmatpush.msra.mxu0 %v2167
        %2233 = vmatpush.msra.mxu0 %v2163
        %2234 = vmatpush.msra.mxu0 %v2159
        %2235 = vmatpush.msra.mxu0 %v2155
        %2236 = vmatpush.msra.mxu0 %v2151
        %2237 = vmatpush.msra.mxu0 %v2147
        %2238 = vmatpush.msra.mxu0 %v2143
        %2239 = vmatpush.msra.mxu0 %v2139
        %2240 = vmatpush.msra.mxu0 %v2135
        %2241 = vmatpush.msra.mxu0 %v2131
        %2242 = vmatpush.msra.mxu0 %v2127
        %2243 = vmatpush.msra.mxu0 %v2123
        %2244 = vmatmul.f32.gmra.mxu0 %v2186
        %v2245 = vpop.f32.mrf.mxu0
        %v2246 = vadd.f32 0.0, %v2245
        %2247 = vdwg.mxu0
        %2248 = vmatpush.msra.mxu0 %v2184
        %2249 = vmatpush.msra.mxu0 %v2180
        %2250 = vmatpush.msra.mxu0 %v2176
        %2251 = vmatpush.msra.mxu0 %v2172
        %2252 = vmatpush.msra.mxu0 %v2168
        %2253 = vmatpush.msra.mxu0 %v2164
        %2254 = vmatpush.msra.mxu0 %v2160
        %2255 = vmatpush.msra.mxu0 %v2156
        %2256 = vmatpush.msra.mxu0 %v2152
        %2257 = vmatpush.msra.mxu0 %v2148
        %2258 = vmatpush.msra.mxu0 %v2144
        %2259 = vmatpush.msra.mxu0 %v2140
        %2260 = vmatpush.msra.mxu0 %v2136
        %2261 = vmatpush.msra.mxu0 %v2132
        %2262 = vmatpush.msra.mxu0 %v2128
        %2263 = vmatpush.msra.mxu0 %v2124
        %2264 = vmatmul.f32.gmra.mxu0 %v2186
        %v2265 = vpop.f32.mrf.mxu0
        %v2266 = vadd.f32 0.0, %v2265
        %2267 = vdwg.mxu0
        %v2272 = vrot.slane %v2206, 4
        %v2273 = vrot.slane %v2226, 4
        %v2274 = vrot.slane %v2246, 4
        %v2275 = vrot.slane %v2266, 4
        %v2280 = vadd.f32 %v2117, %v2272
        %v2281 = vadd.f32 %v2118, %v2273
        %v2282 = vadd.f32 %v2119, %v2274
        %v2283 = vadd.f32 %v2120, %v2275
        %v2284 = vxor.u32 %v2280, 2147483648
        %v2285 = vmul.f32 %v2284, 1.442695
        %v2286 = vpow.pop %v2285
        %v2287 = vadd.f32 %v2286, 1.0
        %v2288 = vrcp.pop %v2287
        %v2289 = vmul.f32 %v2287, %v2288
        %v2290 = vsub.f32 1.0, %v2289
        %v2291 = vmul.f32 %v2288, %v2290
        %v2292 = vadd.f32 %v2288, %v2291
        %vm2293 = vweird.f32 %v2287
        %vm2294 = vweird.f32 %v2288
        %vm2295 = vmor %vm2293, %vm2294
        %v2296 = vsel %vm2295, %v2288, %v2292
        %v2297 = vand.u32 2147483647, %v2287
        %vm2298 = vcmp.eq.f32.partialorder %v2297, 8.507059e+37
        %v2299 = vand.u32 %v2287, 2147483648
        %v2300 = vor.u32 1.1754944e-38, %v2299
        %v2301 = vsel %vm2298, %v2300, %v2296
        %v2302 = vmul.f32 1.0, %v2301
        %v2303 = vxor.u32 %v2281, 2147483648
        %v2304 = vmul.f32 %v2303, 1.442695
        %v2305 = vpow.pop %v2304
        %v2306 = vadd.f32 %v2305, 1.0
        %v2307 = vrcp.pop %v2306
        %v2308 = vmul.f32 %v2306, %v2307
        %v2309 = vsub.f32 1.0, %v2308
        %v2310 = vmul.f32 %v2307, %v2309
        %v2311 = vadd.f32 %v2307, %v2310
        %vm2312 = vweird.f32 %v2306
        %vm2313 = vweird.f32 %v2307
        %vm2314 = vmor %vm2312, %vm2313
        %v2315 = vsel %vm2314, %v2307, %v2311
        %v2316 = vand.u32 2147483647, %v2306
        %vm2317 = vcmp.eq.f32.partialorder %v2316, 8.507059e+37
        %v2318 = vand.u32 %v2306, 2147483648
        %v2319 = vor.u32 1.1754944e-38, %v2318
        %v2320 = vsel %vm2317, %v2319, %v2315
        %v2321 = vmul.f32 1.0, %v2320
        %v2322 = vtanh.pop %v2282
        %v2323 = vxor.u32 %v2283, 2147483648
        %v2324 = vmul.f32 %v2323, 1.442695
        %v2325 = vpow.pop %v2324
        %v2326 = vadd.f32 %v2325, 1.0
        %v2327 = vrcp.pop %v2326
        %v2328 = vmul.f32 %v2326, %v2327
        %v2329 = vsub.f32 1.0, %v2328
        %v2330 = vmul.f32 %v2327, %v2329
        %v2331 = vadd.f32 %v2327, %v2330
        %vm2332 = vweird.f32 %v2326
        %vm2333 = vweird.f32 %v2327
        %vm2334 = vmor %vm2332, %vm2333
        %v2335 = vsel %vm2334, %v2327, %v2331
        %v2336 = vand.u32 2147483647, %v2326
        %vm2337 = vcmp.eq.f32.partialorder %v2336, 8.507059e+37
        %v2338 = vand.u32 %v2326, 2147483648
        %v2339 = vor.u32 1.1754944e-38, %v2338
        %v2340 = vsel %vm2337, %v2339, %v2335
        %v2341 = vmul.f32 1.0, %v2340
        %v2343 = vrot.slane %v2113, 6
        %v2345 = vmul.f32 %v2321, %v2343
        %v2346 = vmul.f32 %v2302, %v2322
        %v2347 = vadd.f32 %v2345, %v2346
        %v2348 = vtanh.pop %v2347
        %v2349 = vmul.f32 %v2341, %v2348
        %2350 = vst [vmem:[#allocation3 + $0x8] sm:$0x30] %v2349
        %v2351 = vld [vmem:[#allocation2 + $0x20] sm:$0xc0]
        %v2352 = vld [vmem:[#allocation2 + $0x28] sm:$0xc0]
        %v2353 = vld [vmem:[#allocation2 + $0x30] sm:$0xc0]
        %v2354 = vld [vmem:[#allocation2 + $0x38] sm:$0xc0]
        %v2355 = vld [vmem:[%s396] sm:$0xff]
        %v2356 = vld [vmem:[%s396 + $0x8] sm:$0xff]
        %v2357 = vld [vmem:[%s396 + $0x10] sm:$0xff]
        %v2358 = vld [vmem:[%s396 + $0x18] sm:$0xff]
        %v2359 = vld [vmem:[%s396 + $0x20] sm:$0xff]
        %v2360 = vld [vmem:[%s396 + $0x28] sm:$0xff]
        %v2361 = vld [vmem:[%s396 + $0x30] sm:$0xff]
        %v2362 = vld [vmem:[%s396 + $0x38] sm:$0xff]
        %v2363 = vld [vmem:[%s396 + $0x40] sm:$0xff]
        %v2364 = vld [vmem:[%s396 + $0x48] sm:$0xff]
        %v2365 = vld [vmem:[%s396 + $0x50] sm:$0xff]
        %v2366 = vld [vmem:[%s396 + $0x58] sm:$0xff]
        %v2367 = vld [vmem:[%s396 + $0x60] sm:$0xff]
        %v2368 = vld [vmem:[%s396 + $0x68] sm:$0xff]
        %v2369 = vld [vmem:[%s396 + $0x70] sm:$0xff]
        %v2370 = vld [vmem:[%s396 + $0x78] sm:$0xff]
        %v2371 = vld [vmem:[%s396 + $0x80] sm:$0xff]
        %v2372 = vld [vmem:[%s396 + $0x88] sm:$0xff]
        %v2373 = vld [vmem:[%s396 + $0x90] sm:$0xff]
        %v2374 = vld [vmem:[%s396 + $0x98] sm:$0xff]
        %v2375 = vld [vmem:[%s396 + $0xa0] sm:$0xff]
        %v2376 = vld [vmem:[%s396 + $0xa8] sm:$0xff]
        %v2377 = vld [vmem:[%s396 + $0xb0] sm:$0xff]
        %v2378 = vld [vmem:[%s396 + $0xb8] sm:$0xff]
        %v2379 = vld [vmem:[%s396 + $0xc0] sm:$0xff]
        %v2380 = vld [vmem:[%s396 + $0xc8] sm:$0xff]
        %v2381 = vld [vmem:[%s396 + $0xd0] sm:$0xff]
        %v2382 = vld [vmem:[%s396 + $0xd8] sm:$0xff]
        %v2383 = vld [vmem:[%s396 + $0xe0] sm:$0xff]
        %v2384 = vld [vmem:[%s396 + $0xe8] sm:$0xff]
        %v2385 = vld [vmem:[%s396 + $0xf0] sm:$0xff]
        %v2386 = vld [vmem:[%s396 + $0xf8] sm:$0xff]
        %v2387 = vld [vmem:[%s396 + $0x100] sm:$0xff]
        %v2388 = vld [vmem:[%s396 + $0x108] sm:$0xff]
        %v2389 = vld [vmem:[%s396 + $0x110] sm:$0xff]
        %v2390 = vld [vmem:[%s396 + $0x118] sm:$0xff]
        %v2391 = vld [vmem:[%s396 + $0x120] sm:$0xff]
        %v2392 = vld [vmem:[%s396 + $0x128] sm:$0xff]
        %v2393 = vld [vmem:[%s396 + $0x130] sm:$0xff]
        %v2394 = vld [vmem:[%s396 + $0x138] sm:$0xff]
        %v2395 = vld [vmem:[%s396 + $0x140] sm:$0xff]
        %v2396 = vld [vmem:[%s396 + $0x148] sm:$0xff]
        %v2397 = vld [vmem:[%s396 + $0x150] sm:$0xff]
        %v2398 = vld [vmem:[%s396 + $0x158] sm:$0xff]
        %v2399 = vld [vmem:[%s396 + $0x160] sm:$0xff]
        %v2400 = vld [vmem:[%s396 + $0x168] sm:$0xff]
        %v2401 = vld [vmem:[%s396 + $0x170] sm:$0xff]
        %v2402 = vld [vmem:[%s396 + $0x178] sm:$0xff]
        %v2403 = vld [vmem:[%s396 + $0x180] sm:$0xff]
        %v2404 = vld [vmem:[%s396 + $0x188] sm:$0xff]
        %v2405 = vld [vmem:[%s396 + $0x190] sm:$0xff]
        %v2406 = vld [vmem:[%s396 + $0x198] sm:$0xff]
        %v2407 = vld [vmem:[%s396 + $0x1a0] sm:$0xff]
        %v2408 = vld [vmem:[%s396 + $0x1a8] sm:$0xff]
        %v2409 = vld [vmem:[%s396 + $0x1b0] sm:$0xff]
        %v2410 = vld [vmem:[%s396 + $0x1b8] sm:$0xff]
        %v2411 = vld [vmem:[%s396 + $0x1c0] sm:$0xff]
        %v2412 = vld [vmem:[%s396 + $0x1c8] sm:$0xff]
        %v2413 = vld [vmem:[%s396 + $0x1d0] sm:$0xff]
        %v2414 = vld [vmem:[%s396 + $0x1d8] sm:$0xff]
        %v2415 = vld [vmem:[%s396 + $0x1e0] sm:$0xff]
        %v2416 = vld [vmem:[%s396 + $0x1e8] sm:$0xff]
        %v2417 = vld [vmem:[%s396 + $0x1f0] sm:$0xff]
        %v2418 = vld [vmem:[%s396 + $0x1f8] sm:$0xff]
        %v2420 = vrot.slane %v2349, 4
        %2422 = vmatpush.msra.mxu0 %v2415
        %2423 = vmatpush.msra.mxu0 %v2411
        %2424 = vmatpush.msra.mxu0 %v2407
        %2425 = vmatpush.msra.mxu0 %v2403
        %2426 = vmatpush.msra.mxu0 %v2399
        %2427 = vmatpush.msra.mxu0 %v2395
        %2428 = vmatpush.msra.mxu0 %v2391
        %2429 = vmatpush.msra.mxu0 %v2387
        %2430 = vmatpush.msra.mxu0 %v2383
        %2431 = vmatpush.msra.mxu0 %v2379
        %2432 = vmatpush.msra.mxu0 %v2375
        %2433 = vmatpush.msra.mxu0 %v2371
        %2434 = vmatpush.msra.mxu0 %v2367
        %2435 = vmatpush.msra.mxu0 %v2363
        %2436 = vmatpush.msra.mxu0 %v2359
        %2437 = vmatpush.msra.mxu0 %v2355
        %2438 = vmatmul.f32.gmra.mxu0 %v2420
        %v2439 = vpop.f32.mrf.mxu0
        %v2440 = vadd.f32 0.0, %v2439
        %2441 = vdwg.mxu0
        %2442 = vmatpush.msra.mxu0 %v2416
        %2443 = vmatpush.msra.mxu0 %v2412
        %2444 = vmatpush.msra.mxu0 %v2408
        %2445 = vmatpush.msra.mxu0 %v2404
        %2446 = vmatpush.msra.mxu0 %v2400
        %2447 = vmatpush.msra.mxu0 %v2396
        %2448 = vmatpush.msra.mxu0 %v2392
        %2449 = vmatpush.msra.mxu0 %v2388
        %2450 = vmatpush.msra.mxu0 %v2384
        %2451 = vmatpush.msra.mxu0 %v2380
        %2452 = vmatpush.msra.mxu0 %v2376
        %2453 = vmatpush.msra.mxu0 %v2372
        %2454 = vmatpush.msra.mxu0 %v2368
        %2455 = vmatpush.msra.mxu0 %v2364
        %2456 = vmatpush.msra.mxu0 %v2360
        %2457 = vmatpush.msra.mxu0 %v2356
        %2458 = vmatmul.f32.gmra.mxu0 %v2420
        %v2459 = vpop.f32.mrf.mxu0
        %v2460 = vadd.f32 0.0, %v2459
        %2461 = vdwg.mxu0
        %2462 = vmatpush.msra.mxu0 %v2417
        %2463 = vmatpush.msra.mxu0 %v2413
        %2464 = vmatpush.msra.mxu0 %v2409
        %2465 = vmatpush.msra.mxu0 %v2405
        %2466 = vmatpush.msra.mxu0 %v2401
        %2467 = vmatpush.msra.mxu0 %v2397
        %2468 = vmatpush.msra.mxu0 %v2393
        %2469 = vmatpush.msra.mxu0 %v2389
        %2470 = vmatpush.msra.mxu0 %v2385
        %2471 = vmatpush.msra.mxu0 %v2381
        %2472 = vmatpush.msra.mxu0 %v2377
        %2473 = vmatpush.msra.mxu0 %v2373
        %2474 = vmatpush.msra.mxu0 %v2369
        %2475 = vmatpush.msra.mxu0 %v2365
        %2476 = vmatpush.msra.mxu0 %v2361
        %2477 = vmatpush.msra.mxu0 %v2357
        %2478 = vmatmul.f32.gmra.mxu0 %v2420
        %v2479 = vpop.f32.mrf.mxu0
        %v2480 = vadd.f32 0.0, %v2479
        %2481 = vdwg.mxu0
        %2482 = vmatpush.msra.mxu0 %v2418
        %2483 = vmatpush.msra.mxu0 %v2414
        %2484 = vmatpush.msra.mxu0 %v2410
        %2485 = vmatpush.msra.mxu0 %v2406
        %2486 = vmatpush.msra.mxu0 %v2402
        %2487 = vmatpush.msra.mxu0 %v2398
        %2488 = vmatpush.msra.mxu0 %v2394
        %2489 = vmatpush.msra.mxu0 %v2390
        %2490 = vmatpush.msra.mxu0 %v2386
        %2491 = vmatpush.msra.mxu0 %v2382
        %2492 = vmatpush.msra.mxu0 %v2378
        %2493 = vmatpush.msra.mxu0 %v2374
        %2494 = vmatpush.msra.mxu0 %v2370
        %2495 = vmatpush.msra.mxu0 %v2366
        %2496 = vmatpush.msra.mxu0 %v2362
        %2497 = vmatpush.msra.mxu0 %v2358
        %2498 = vmatmul.f32.gmra.mxu0 %v2420
        %v2499 = vpop.f32.mrf.mxu0
        %v2500 = vadd.f32 0.0, %v2499
        %2501 = vdwg.mxu0
        %v2506 = vrot.slane %v2440, 2
        %v2507 = vrot.slane %v2460, 2
        %v2508 = vrot.slane %v2480, 2
        %v2509 = vrot.slane %v2500, 2
        %v2514 = vadd.f32 %v2351, %v2506
        %v2515 = vadd.f32 %v2352, %v2507
        %v2516 = vadd.f32 %v2353, %v2508
        %v2517 = vadd.f32 %v2354, %v2509
        %v2518 = vxor.u32 %v2514, 2147483648
        %v2519 = vmul.f32 %v2518, 1.442695
        %v2520 = vpow.pop %v2519
        %v2521 = vadd.f32 %v2520, 1.0
        %v2522 = vrcp.pop %v2521
        %v2523 = vmul.f32 %v2521, %v2522
        %v2524 = vsub.f32 1.0, %v2523
        %v2525 = vmul.f32 %v2522, %v2524
        %v2526 = vadd.f32 %v2522, %v2525
        %vm2527 = vweird.f32 %v2521
        %vm2528 = vweird.f32 %v2522
        %vm2529 = vmor %vm2527, %vm2528
        %v2530 = vsel %vm2529, %v2522, %v2526
        %v2531 = vand.u32 2147483647, %v2521
        %vm2532 = vcmp.eq.f32.partialorder %v2531, 8.507059e+37
        %v2533 = vand.u32 %v2521, 2147483648
        %v2534 = vor.u32 1.1754944e-38, %v2533
        %v2535 = vsel %vm2532, %v2534, %v2530
        %v2536 = vmul.f32 1.0, %v2535
        %v2537 = vxor.u32 %v2515, 2147483648
        %v2538 = vmul.f32 %v2537, 1.442695
        %v2539 = vpow.pop %v2538
        %v2540 = vadd.f32 %v2539, 1.0
        %v2541 = vrcp.pop %v2540
        %v2542 = vmul.f32 %v2540, %v2541
        %v2543 = vsub.f32 1.0, %v2542
        %v2544 = vmul.f32 %v2541, %v2543
        %v2545 = vadd.f32 %v2541, %v2544
        %vm2546 = vweird.f32 %v2540
        %vm2547 = vweird.f32 %v2541
        %vm2548 = vmor %vm2546, %vm2547
        %v2549 = vsel %vm2548, %v2541, %v2545
        %v2550 = vand.u32 2147483647, %v2540
        %vm2551 = vcmp.eq.f32.partialorder %v2550, 8.507059e+37
        %v2552 = vand.u32 %v2540, 2147483648
        %v2553 = vor.u32 1.1754944e-38, %v2552
        %v2554 = vsel %vm2551, %v2553, %v2549
        %v2555 = vmul.f32 1.0, %v2554
        %v2556 = vtanh.pop %v2516
        %v2557 = vxor.u32 %v2517, 2147483648
        %v2558 = vmul.f32 %v2557, 1.442695
        %v2559 = vpow.pop %v2558
        %v2560 = vadd.f32 %v2559, 1.0
        %v2561 = vrcp.pop %v2560
        %v2562 = vmul.f32 %v2560, %v2561
        %v2563 = vsub.f32 1.0, %v2562
        %v2564 = vmul.f32 %v2561, %v2563
        %v2565 = vadd.f32 %v2561, %v2564
        %vm2566 = vweird.f32 %v2560
        %vm2567 = vweird.f32 %v2561
        %vm2568 = vmor %vm2566, %vm2567
        %v2569 = vsel %vm2568, %v2561, %v2565
        %v2570 = vand.u32 2147483647, %v2560
        %vm2571 = vcmp.eq.f32.partialorder %v2570, 8.507059e+37
        %v2572 = vand.u32 %v2560, 2147483648
        %v2573 = vor.u32 1.1754944e-38, %v2572
        %v2574 = vsel %vm2571, %v2573, %v2569
        %v2575 = vmul.f32 1.0, %v2574
        %v2577 = vrot.slane %v2347, 6
        %v2579 = vmul.f32 %v2555, %v2577
        %v2580 = vmul.f32 %v2536, %v2556
        %v2581 = vadd.f32 %v2579, %v2580
        %v2582 = vtanh.pop %v2581
        %v2583 = vmul.f32 %v2575, %v2582
        %2584 = vst [vmem:[#allocation3 + $0x8] sm:$0xc0] %v2583
        %v2585 = vld [vmem:[#allocation3] sm:$0xff]
        %v2586 = vld [vmem:[#allocation3 + $0x8] sm:$0xff]
        %v2587 = vld [vmem:[%s405] sm:$0xff]
        %v2588 = vld [vmem:[%s405 + $0x8] sm:$0xff]
        %v2589 = vld [vmem:[%s405 + $0x10] sm:$0xff]
        %v2590 = vld [vmem:[%s405 + $0x18] sm:$0xff]
        %v2591 = vld [vmem:[%s405 + $0x20] sm:$0xff]
        %v2592 = vld [vmem:[%s405 + $0x28] sm:$0xff]
        %v2593 = vld [vmem:[%s405 + $0x30] sm:$0xff]
        %v2594 = vld [vmem:[%s405 + $0x38] sm:$0xff]
        %v2595 = vld [vmem:[%s405 + $0x40] sm:$0xff]
        %v2596 = vld [vmem:[%s405 + $0x48] sm:$0xff]
        %v2597 = vld [vmem:[%s405 + $0x50] sm:$0xff]
        %v2598 = vld [vmem:[%s405 + $0x58] sm:$0xff]
        %v2599 = vld [vmem:[%s405 + $0x60] sm:$0xff]
        %v2600 = vld [vmem:[%s405 + $0x68] sm:$0xff]
        %v2601 = vld [vmem:[%s405 + $0x70] sm:$0xff]
        %v2602 = vld [vmem:[%s405 + $0x78] sm:$0xff]
        %v2603 = vld [vmem:[%s405 + $0x80] sm:$0xff]
        %v2604 = vld [vmem:[%s405 + $0x88] sm:$0xff]
        %v2605 = vld [vmem:[%s405 + $0x90] sm:$0xff]
        %v2606 = vld [vmem:[%s405 + $0x98] sm:$0xff]
        %v2607 = vld [vmem:[%s405 + $0xa0] sm:$0xff]
        %v2608 = vld [vmem:[%s405 + $0xa8] sm:$0xff]
        %v2609 = vld [vmem:[%s405 + $0xb0] sm:$0xff]
        %v2610 = vld [vmem:[%s405 + $0xb8] sm:$0xff]
        %v2611 = vld [vmem:[%s405 + $0xc0] sm:$0xff]
        %v2612 = vld [vmem:[%s405 + $0xc8] sm:$0xff]
        %v2613 = vld [vmem:[%s405 + $0xd0] sm:$0xff]
        %v2614 = vld [vmem:[%s405 + $0xd8] sm:$0xff]
        %v2615 = vld [vmem:[%s405 + $0xe0] sm:$0xff]
        %v2616 = vld [vmem:[%s405 + $0xe8] sm:$0xff]
        %v2617 = vld [vmem:[%s405 + $0xf0] sm:$0xff]
        %v2618 = vld [vmem:[%s405 + $0xf8] sm:$0xff]
        %v2619 = vld [vmem:[%s405 + $0x100] sm:$0xff]
        %v2620 = vld [vmem:[%s405 + $0x108] sm:$0xff]
        %v2621 = vld [vmem:[%s405 + $0x110] sm:$0xff]
        %v2622 = vld [vmem:[%s405 + $0x118] sm:$0xff]
        %v2623 = vld [vmem:[%s405 + $0x120] sm:$0xff]
        %v2624 = vld [vmem:[%s405 + $0x128] sm:$0xff]
        %v2625 = vld [vmem:[%s405 + $0x130] sm:$0xff]
        %v2626 = vld [vmem:[%s405 + $0x138] sm:$0xff]
        %v2627 = vld [vmem:[%s405 + $0x140] sm:$0xff]
        %v2628 = vld [vmem:[%s405 + $0x148] sm:$0xff]
        %v2629 = vld [vmem:[%s405 + $0x150] sm:$0xff]
        %v2630 = vld [vmem:[%s405 + $0x158] sm:$0xff]
        %v2631 = vld [vmem:[%s405 + $0x160] sm:$0xff]
        %v2632 = vld [vmem:[%s405 + $0x168] sm:$0xff]
        %v2633 = vld [vmem:[%s405 + $0x170] sm:$0xff]
        %v2634 = vld [vmem:[%s405 + $0x178] sm:$0xff]
        %v2635 = vld [vmem:[%s405 + $0x180] sm:$0xff]
        %v2636 = vld [vmem:[%s405 + $0x188] sm:$0xff]
        %v2637 = vld [vmem:[%s405 + $0x190] sm:$0xff]
        %v2638 = vld [vmem:[%s405 + $0x198] sm:$0xff]
        %v2639 = vld [vmem:[%s405 + $0x1a0] sm:$0xff]
        %v2640 = vld [vmem:[%s405 + $0x1a8] sm:$0xff]
        %v2641 = vld [vmem:[%s405 + $0x1b0] sm:$0xff]
        %v2642 = vld [vmem:[%s405 + $0x1b8] sm:$0xff]
        %v2643 = vld [vmem:[%s405 + $0x1c0] sm:$0xff]
        %v2644 = vld [vmem:[%s405 + $0x1c8] sm:$0xff]
        %v2645 = vld [vmem:[%s405 + $0x1d0] sm:$0xff]
        %v2646 = vld [vmem:[%s405 + $0x1d8] sm:$0xff]
        %v2647 = vld [vmem:[%s405 + $0x1e0] sm:$0xff]
        %v2648 = vld [vmem:[%s405 + $0x1e8] sm:$0xff]
        %v2649 = vld [vmem:[%s405 + $0x1f0] sm:$0xff]
        %v2650 = vld [vmem:[%s405 + $0x1f8] sm:$0xff]
        %v2651 = vld [vmem:[%s409] sm:$0xf]
        %v2653 = vperm.slane %v2651, 0
        %v2654 = vperm.slane %v2651, 1
        %v2655 = vperm.slane %v2651, 2
        %v2656 = vperm.slane %v2651, 3
        %2661 = vmatpush.msra.mxu0 %v2647
        %2662 = vmatpush.msra.mxu0 %v2643
        %2663 = vmatpush.msra.mxu0 %v2639
        %2664 = vmatpush.msra.mxu0 %v2635
        %2665 = vmatpush.msra.mxu0 %v2631
        %2666 = vmatpush.msra.mxu0 %v2627
        %2667 = vmatpush.msra.mxu0 %v2623
        %2668 = vmatpush.msra.mxu0 %v2619
        %2669 = vmatpush.msra.mxu0 %v2615
        %2670 = vmatpush.msra.mxu0 %v2611
        %2671 = vmatpush.msra.mxu0 %v2607
        %2672 = vmatpush.msra.mxu0 %v2603
        %2673 = vmatpush.msra.mxu0 %v2599
        %2674 = vmatpush.msra.mxu0 %v2595
        %2675 = vmatpush.msra.mxu0 %v2591
        %2676 = vmatpush.msra.mxu0 %v2587
        %2677 = vmatmul.f32.gmra.mxu0 %v2585
        %v2678 = vpop.f32.mrf.mxu0
        %v2679 = vadd.f32 %v2653, %v2678
        %2680 = vmatmul.f32.gmra.mxu0 %v2586
        %v2681 = vpop.f32.mrf.mxu0
        %v2682 = vadd.f32 %v2653, %v2681
        %2683 = vdwg.mxu0
        %2684 = vmatpush.msra.mxu0 %v2648
        %2685 = vmatpush.msra.mxu0 %v2644
        %2686 = vmatpush.msra.mxu0 %v2640
        %2687 = vmatpush.msra.mxu0 %v2636
        %2688 = vmatpush.msra.mxu0 %v2632
        %2689 = vmatpush.msra.mxu0 %v2628
        %2690 = vmatpush.msra.mxu0 %v2624
        %2691 = vmatpush.msra.mxu0 %v2620
        %2692 = vmatpush.msra.mxu0 %v2616
        %2693 = vmatpush.msra.mxu0 %v2612
        %2694 = vmatpush.msra.mxu0 %v2608
        %2695 = vmatpush.msra.mxu0 %v2604
        %2696 = vmatpush.msra.mxu0 %v2600
        %2697 = vmatpush.msra.mxu0 %v2596
        %2698 = vmatpush.msra.mxu0 %v2592
        %2699 = vmatpush.msra.mxu0 %v2588
        %2700 = vmatmul.f32.gmra.mxu0 %v2585
        %v2701 = vpop.f32.mrf.mxu0
        %v2702 = vadd.f32 %v2654, %v2701
        %2703 = vmatmul.f32.gmra.mxu0 %v2586
        %v2704 = vpop.f32.mrf.mxu0
        %v2705 = vadd.f32 %v2654, %v2704
        %2706 = vdwg.mxu0
        %2707 = vmatpush.msra.mxu0 %v2649
        %2708 = vmatpush.msra.mxu0 %v2645
        %2709 = vmatpush.msra.mxu0 %v2641
        %2710 = vmatpush.msra.mxu0 %v2637
        %2711 = vmatpush.msra.mxu0 %v2633
        %2712 = vmatpush.msra.mxu0 %v2629
        %2713 = vmatpush.msra.mxu0 %v2625
        %2714 = vmatpush.msra.mxu0 %v2621
        %2715 = vmatpush.msra.mxu0 %v2617
        %2716 = vmatpush.msra.mxu0 %v2613
        %2717 = vmatpush.msra.mxu0 %v2609
        %2718 = vmatpush.msra.mxu0 %v2605
        %2719 = vmatpush.msra.mxu0 %v2601
        %2720 = vmatpush.msra.mxu0 %v2597
        %2721 = vmatpush.msra.mxu0 %v2593
        %2722 = vmatpush.msra.mxu0 %v2589
        %2723 = vmatmul.f32.gmra.mxu0 %v2585
        %v2724 = vpop.f32.mrf.mxu0
        %v2725 = vadd.f32 %v2655, %v2724
        %2726 = vmatmul.f32.gmra.mxu0 %v2586
        %v2727 = vpop.f32.mrf.mxu0
        %v2728 = vadd.f32 %v2655, %v2727
        %2729 = vdwg.mxu0
        %2730 = vmatpush.msra.mxu0 %v2650
        %2731 = vmatpush.msra.mxu0 %v2646
        %2732 = vmatpush.msra.mxu0 %v2642
        %2733 = vmatpush.msra.mxu0 %v2638
        %2734 = vmatpush.msra.mxu0 %v2634
        %2735 = vmatpush.msra.mxu0 %v2630
        %2736 = vmatpush.msra.mxu0 %v2626
        %2737 = vmatpush.msra.mxu0 %v2622
        %2738 = vmatpush.msra.mxu0 %v2618
        %2739 = vmatpush.msra.mxu0 %v2614
        %2740 = vmatpush.msra.mxu0 %v2610
        %2741 = vmatpush.msra.mxu0 %v2606
        %2742 = vmatpush.msra.mxu0 %v2602
        %2743 = vmatpush.msra.mxu0 %v2598
        %2744 = vmatpush.msra.mxu0 %v2594
        %2745 = vmatpush.msra.mxu0 %v2590
        %2746 = vmatmul.f32.gmra.mxu0 %v2585
        %v2747 = vpop.f32.mrf.mxu0
        %v2748 = vadd.f32 %v2656, %v2747
        %2749 = vmatmul.f32.gmra.mxu0 %v2586
        %v2750 = vpop.f32.mrf.mxu0
        %v2751 = vadd.f32 %v2656, %v2750
        %2752 = vdwg.mxu0
        %2753 = vst [vmem:[#allocation2] sm:$0xff] %v2679
        %2754 = vst [vmem:[#allocation2 + $0x8] sm:$0xff] %v2702
        %2755 = vst [vmem:[#allocation2 + $0x10] sm:$0xff] %v2725
        %2756 = vst [vmem:[#allocation2 + $0x18] sm:$0xff] %v2748
        %2757 = vst [vmem:[#allocation2 + $0x20] sm:$0xff] %v2682
        %2758 = vst [vmem:[#allocation2 + $0x28] sm:$0xff] %v2705
        %2759 = vst [vmem:[#allocation2 + $0x30] sm:$0xff] %v2728
        %2760 = vst [vmem:[#allocation2 + $0x38] sm:$0xff] %v2751
        %v2761 = vld [vmem:[#allocation2] sm:$0x3]
        %v2762 = vld [vmem:[#allocation2 + $0x8] sm:$0x3]
        %v2763 = vld [vmem:[#allocation2 + $0x10] sm:$0x3]
        %v2764 = vld [vmem:[#allocation2 + $0x18] sm:$0x3]
        %v2765 = vld [vmem:[%s322] sm:$0xff]
        %v2766 = vld [vmem:[%s322 + $0x8] sm:$0xff]
        %v2767 = vld [vmem:[%s322 + $0x10] sm:$0xff]
        %v2768 = vld [vmem:[%s322 + $0x18] sm:$0xff]
        %v2769 = vld [vmem:[%s322 + $0x20] sm:$0xff]
        %v2770 = vld [vmem:[%s322 + $0x28] sm:$0xff]
        %v2771 = vld [vmem:[%s322 + $0x30] sm:$0xff]
        %v2772 = vld [vmem:[%s322 + $0x38] sm:$0xff]
        %v2773 = vld [vmem:[%s322 + $0x40] sm:$0xff]
        %v2774 = vld [vmem:[%s322 + $0x48] sm:$0xff]
        %v2775 = vld [vmem:[%s322 + $0x50] sm:$0xff]
        %v2776 = vld [vmem:[%s322 + $0x58] sm:$0xff]
        %v2777 = vld [vmem:[%s322 + $0x60] sm:$0xff]
        %v2778 = vld [vmem:[%s322 + $0x68] sm:$0xff]
        %v2779 = vld [vmem:[%s322 + $0x70] sm:$0xff]
        %v2780 = vld [vmem:[%s322 + $0x78] sm:$0xff]
        %v2781 = vld [vmem:[%s322 + $0x80] sm:$0xff]
        %v2782 = vld [vmem:[%s322 + $0x88] sm:$0xff]
        %v2783 = vld [vmem:[%s322 + $0x90] sm:$0xff]
        %v2784 = vld [vmem:[%s322 + $0x98] sm:$0xff]
        %v2785 = vld [vmem:[%s322 + $0xa0] sm:$0xff]
        %v2786 = vld [vmem:[%s322 + $0xa8] sm:$0xff]
        %v2787 = vld [vmem:[%s322 + $0xb0] sm:$0xff]
        %v2788 = vld [vmem:[%s322 + $0xb8] sm:$0xff]
        %v2789 = vld [vmem:[%s322 + $0xc0] sm:$0xff]
        %v2790 = vld [vmem:[%s322 + $0xc8] sm:$0xff]
        %v2791 = vld [vmem:[%s322 + $0xd0] sm:$0xff]
        %v2792 = vld [vmem:[%s322 + $0xd8] sm:$0xff]
        %v2793 = vld [vmem:[%s322 + $0xe0] sm:$0xff]
        %v2794 = vld [vmem:[%s322 + $0xe8] sm:$0xff]
        %v2795 = vld [vmem:[%s322 + $0xf0] sm:$0xff]
        %v2796 = vld [vmem:[%s322 + $0xf8] sm:$0xff]
        %v2797 = vld [vmem:[%s322 + $0x100] sm:$0xff]
        %v2798 = vld [vmem:[%s322 + $0x108] sm:$0xff]
        %v2799 = vld [vmem:[%s322 + $0x110] sm:$0xff]
        %v2800 = vld [vmem:[%s322 + $0x118] sm:$0xff]
        %v2801 = vld [vmem:[%s322 + $0x120] sm:$0xff]
        %v2802 = vld [vmem:[%s322 + $0x128] sm:$0xff]
        %v2803 = vld [vmem:[%s322 + $0x130] sm:$0xff]
        %v2804 = vld [vmem:[%s322 + $0x138] sm:$0xff]
        %v2805 = vld [vmem:[%s322 + $0x140] sm:$0xff]
        %v2806 = vld [vmem:[%s322 + $0x148] sm:$0xff]
        %v2807 = vld [vmem:[%s322 + $0x150] sm:$0xff]
        %v2808 = vld [vmem:[%s322 + $0x158] sm:$0xff]
        %v2809 = vld [vmem:[%s322 + $0x160] sm:$0xff]
        %v2810 = vld [vmem:[%s322 + $0x168] sm:$0xff]
        %v2811 = vld [vmem:[%s322 + $0x170] sm:$0xff]
        %v2812 = vld [vmem:[%s322 + $0x178] sm:$0xff]
        %v2813 = vld [vmem:[%s322 + $0x180] sm:$0xff]
        %v2814 = vld [vmem:[%s322 + $0x188] sm:$0xff]
        %v2815 = vld [vmem:[%s322 + $0x190] sm:$0xff]
        %v2816 = vld [vmem:[%s322 + $0x198] sm:$0xff]
        %v2817 = vld [vmem:[%s322 + $0x1a0] sm:$0xff]
        %v2818 = vld [vmem:[%s322 + $0x1a8] sm:$0xff]
        %v2819 = vld [vmem:[%s322 + $0x1b0] sm:$0xff]
        %v2820 = vld [vmem:[%s322 + $0x1b8] sm:$0xff]
        %v2821 = vld [vmem:[%s322 + $0x1c0] sm:$0xff]
        %v2822 = vld [vmem:[%s322 + $0x1c8] sm:$0xff]
        %v2823 = vld [vmem:[%s322 + $0x1d0] sm:$0xff]
        %v2824 = vld [vmem:[%s322 + $0x1d8] sm:$0xff]
        %v2825 = vld [vmem:[%s322 + $0x1e0] sm:$0xff]
        %v2826 = vld [vmem:[%s322 + $0x1e8] sm:$0xff]
        %v2827 = vld [vmem:[%s322 + $0x1f0] sm:$0xff]
        %v2828 = vld [vmem:[%s322 + $0x1f8] sm:$0xff]
        %2829 = vmatpush.msra.mxu0 %v2825
        %2830 = vmatpush.msra.mxu0 %v2821
        %2831 = vmatpush.msra.mxu0 %v2817
        %2832 = vmatpush.msra.mxu0 %v2813
        %2833 = vmatpush.msra.mxu0 %v2809
        %2834 = vmatpush.msra.mxu0 %v2805
        %2835 = vmatpush.msra.mxu0 %v2801
        %2836 = vmatpush.msra.mxu0 %v2797
        %2837 = vmatpush.msra.mxu0 %v2793
        %2838 = vmatpush.msra.mxu0 %v2789
        %2839 = vmatpush.msra.mxu0 %v2785
        %2840 = vmatpush.msra.mxu0 %v2781
        %2841 = vmatpush.msra.mxu0 %v2777
        %2842 = vmatpush.msra.mxu0 %v2773
        %2843 = vmatpush.msra.mxu0 %v2769
        %2844 = vmatpush.msra.mxu0 %v2765
        %2845 = vmatmul.f32.gmra.mxu0 0.0
        %v2846 = vpop.f32.mrf.mxu0
        %v2847 = vadd.f32 0.0, %v2846
        %2848 = vdwg.mxu0
        %2849 = vmatpush.msra.mxu0 %v2826
        %2850 = vmatpush.msra.mxu0 %v2822
        %2851 = vmatpush.msra.mxu0 %v2818
        %2852 = vmatpush.msra.mxu0 %v2814
        %2853 = vmatpush.msra.mxu0 %v2810
        %2854 = vmatpush.msra.mxu0 %v2806
        %2855 = vmatpush.msra.mxu0 %v2802
        %2856 = vmatpush.msra.mxu0 %v2798
        %2857 = vmatpush.msra.mxu0 %v2794
        %2858 = vmatpush.msra.mxu0 %v2790
        %2859 = vmatpush.msra.mxu0 %v2786
        %2860 = vmatpush.msra.mxu0 %v2782
        %2861 = vmatpush.msra.mxu0 %v2778
        %2862 = vmatpush.msra.mxu0 %v2774
        %2863 = vmatpush.msra.mxu0 %v2770
        %2864 = vmatpush.msra.mxu0 %v2766
        %2865 = vmatmul.f32.gmra.mxu0 0.0
        %v2866 = vpop.f32.mrf.mxu0
        %v2867 = vadd.f32 0.0, %v2866
        %2868 = vdwg.mxu0
        %2869 = vmatpush.msra.mxu0 %v2827
        %2870 = vmatpush.msra.mxu0 %v2823
        %2871 = vmatpush.msra.mxu0 %v2819
        %2872 = vmatpush.msra.mxu0 %v2815
        %2873 = vmatpush.msra.mxu0 %v2811
        %2874 = vmatpush.msra.mxu0 %v2807
        %2875 = vmatpush.msra.mxu0 %v2803
        %2876 = vmatpush.msra.mxu0 %v2799
        %2877 = vmatpush.msra.mxu0 %v2795
        %2878 = vmatpush.msra.mxu0 %v2791
        %2879 = vmatpush.msra.mxu0 %v2787
        %2880 = vmatpush.msra.mxu0 %v2783
        %2881 = vmatpush.msra.mxu0 %v2779
        %2882 = vmatpush.msra.mxu0 %v2775
        %2883 = vmatpush.msra.mxu0 %v2771
        %2884 = vmatpush.msra.mxu0 %v2767
        %2885 = vmatmul.f32.gmra.mxu0 0.0
        %v2886 = vpop.f32.mrf.mxu0
        %v2887 = vadd.f32 0.0, %v2886
        %2888 = vdwg.mxu0
        %2889 = vmatpush.msra.mxu0 %v2828
        %2890 = vmatpush.msra.mxu0 %v2824
        %2891 = vmatpush.msra.mxu0 %v2820
        %2892 = vmatpush.msra.mxu0 %v2816
        %2893 = vmatpush.msra.mxu0 %v2812
        %2894 = vmatpush.msra.mxu0 %v2808
        %2895 = vmatpush.msra.mxu0 %v2804
        %2896 = vmatpush.msra.mxu0 %v2800
        %2897 = vmatpush.msra.mxu0 %v2796
        %2898 = vmatpush.msra.mxu0 %v2792
        %2899 = vmatpush.msra.mxu0 %v2788
        %2900 = vmatpush.msra.mxu0 %v2784
        %2901 = vmatpush.msra.mxu0 %v2780
        %2902 = vmatpush.msra.mxu0 %v2776
        %2903 = vmatpush.msra.mxu0 %v2772
        %2904 = vmatpush.msra.mxu0 %v2768
        %2905 = vmatmul.f32.gmra.mxu0 0.0
        %v2906 = vpop.f32.mrf.mxu0
        %v2907 = vadd.f32 0.0, %v2906
        %2908 = vdwg.mxu0
        %v2909 = vadd.f32 %v2761, %v2847
        %v2910 = vadd.f32 %v2762, %v2867
        %v2911 = vadd.f32 %v2763, %v2887
        %v2912 = vadd.f32 %v2764, %v2907
        %v2913 = vxor.u32 %v2909, 2147483648
        %v2914 = vmul.f32 %v2913, 1.442695
        %v2915 = vpow.pop %v2914
        %v2916 = vadd.f32 %v2915, 1.0
        %v2917 = vrcp.pop %v2916
        %v2918 = vmul.f32 %v2916, %v2917
        %v2919 = vsub.f32 1.0, %v2918
        %v2920 = vmul.f32 %v2917, %v2919
        %v2921 = vadd.f32 %v2917, %v2920
        %vm2922 = vweird.f32 %v2916
        %vm2923 = vweird.f32 %v2917
        %vm2924 = vmor %vm2922, %vm2923
        %v2925 = vsel %vm2924, %v2917, %v2921
        %v2926 = vand.u32 2147483647, %v2916
        %vm2927 = vcmp.eq.f32.partialorder %v2926, 8.507059e+37
        %v2928 = vand.u32 %v2916, 2147483648
        %v2929 = vor.u32 1.1754944e-38, %v2928
        %v2930 = vsel %vm2927, %v2929, %v2925
        %v2931 = vmul.f32 1.0, %v2930
        %v2932 = vxor.u32 %v2910, 2147483648
        %v2933 = vmul.f32 %v2932, 1.442695
        %v2934 = vpow.pop %v2933
        %v2935 = vadd.f32 %v2934, 1.0
        %v2936 = vrcp.pop %v2935
        %v2937 = vmul.f32 %v2935, %v2936
        %v2938 = vsub.f32 1.0, %v2937
        %v2939 = vmul.f32 %v2936, %v2938
        %v2940 = vadd.f32 %v2936, %v2939
        %vm2941 = vweird.f32 %v2935
        %vm2942 = vweird.f32 %v2936
        %vm2943 = vmor %vm2941, %vm2942
        %v2944 = vsel %vm2943, %v2936, %v2940
        %v2945 = vand.u32 2147483647, %v2935
        %vm2946 = vcmp.eq.f32.partialorder %v2945, 8.507059e+37
        %v2947 = vand.u32 %v2935, 2147483648
        %v2948 = vor.u32 1.1754944e-38, %v2947
        %v2949 = vsel %vm2946, %v2948, %v2944
        %v2950 = vmul.f32 1.0, %v2949
        %v2951 = vtanh.pop %v2911
        %v2952 = vxor.u32 %v2912, 2147483648
        %v2953 = vmul.f32 %v2952, 1.442695
        %v2954 = vpow.pop %v2953
        %v2955 = vadd.f32 %v2954, 1.0
        %v2956 = vrcp.pop %v2955
        %v2957 = vmul.f32 %v2955, %v2956
        %v2958 = vsub.f32 1.0, %v2957
        %v2959 = vmul.f32 %v2956, %v2958
        %v2960 = vadd.f32 %v2956, %v2959
        %vm2961 = vweird.f32 %v2955
        %vm2962 = vweird.f32 %v2956
        %vm2963 = vmor %vm2961, %vm2962
        %v2964 = vsel %vm2963, %v2956, %v2960
        %v2965 = vand.u32 2147483647, %v2955
        %vm2966 = vcmp.eq.f32.partialorder %v2965, 8.507059e+37
        %v2967 = vand.u32 %v2955, 2147483648
        %v2968 = vor.u32 1.1754944e-38, %v2967
        %v2969 = vsel %vm2966, %v2968, %v2964
        %v2970 = vmul.f32 1.0, %v2969
        %v2971 = vmul.f32 %v2950, 0.0
        %v2972 = vmul.f32 %v2931, %v2951
        %v2973 = vadd.f32 %v2971, %v2972
        %v2974 = vtanh.pop %v2973
        %v2975 = vmul.f32 %v2970, %v2974
        %2976 = vst [vmem:[%s414] sm:$0x3] %v2975
        %v2977 = vld [vmem:[#allocation2] sm:$0xc]
        %v2978 = vld [vmem:[#allocation2 + $0x8] sm:$0xc]
        %v2979 = vld [vmem:[#allocation2 + $0x10] sm:$0xc]
        %v2980 = vld [vmem:[#allocation2 + $0x18] sm:$0xc]
        %v2981 = vld [vmem:[%s322] sm:$0xff]
        %v2982 = vld [vmem:[%s322 + $0x8] sm:$0xff]
        %v2983 = vld [vmem:[%s322 + $0x10] sm:$0xff]
        %v2984 = vld [vmem:[%s322 + $0x18] sm:$0xff]
        %v2985 = vld [vmem:[%s322 + $0x20] sm:$0xff]
        %v2986 = vld [vmem:[%s322 + $0x28] sm:$0xff]
        %v2987 = vld [vmem:[%s322 + $0x30] sm:$0xff]
        %v2988 = vld [vmem:[%s322 + $0x38] sm:$0xff]
        %v2989 = vld [vmem:[%s322 + $0x40] sm:$0xff]
        %v2990 = vld [vmem:[%s322 + $0x48] sm:$0xff]
        %v2991 = vld [vmem:[%s322 + $0x50] sm:$0xff]
        %v2992 = vld [vmem:[%s322 + $0x58] sm:$0xff]
        %v2993 = vld [vmem:[%s322 + $0x60] sm:$0xff]
        %v2994 = vld [vmem:[%s322 + $0x68] sm:$0xff]
        %v2995 = vld [vmem:[%s322 + $0x70] sm:$0xff]
        %v2996 = vld [vmem:[%s322 + $0x78] sm:$0xff]
        %v2997 = vld [vmem:[%s322 + $0x80] sm:$0xff]
        %v2998 = vld [vmem:[%s322 + $0x88] sm:$0xff]
        %v2999 = vld [vmem:[%s322 + $0x90] sm:$0xff]
        %v3000 = vld [vmem:[%s322 + $0x98] sm:$0xff]
        %v3001 = vld [vmem:[%s322 + $0xa0] sm:$0xff]
        %v3002 = vld [vmem:[%s322 + $0xa8] sm:$0xff]
        %v3003 = vld [vmem:[%s322 + $0xb0] sm:$0xff]
        %v3004 = vld [vmem:[%s322 + $0xb8] sm:$0xff]
        %v3005 = vld [vmem:[%s322 + $0xc0] sm:$0xff]
        %v3006 = vld [vmem:[%s322 + $0xc8] sm:$0xff]
        %v3007 = vld [vmem:[%s322 + $0xd0] sm:$0xff]
        %v3008 = vld [vmem:[%s322 + $0xd8] sm:$0xff]
        %v3009 = vld [vmem:[%s322 + $0xe0] sm:$0xff]
        %v3010 = vld [vmem:[%s322 + $0xe8] sm:$0xff]
        %v3011 = vld [vmem:[%s322 + $0xf0] sm:$0xff]
        %v3012 = vld [vmem:[%s322 + $0xf8] sm:$0xff]
        %v3013 = vld [vmem:[%s322 + $0x100] sm:$0xff]
        %v3014 = vld [vmem:[%s322 + $0x108] sm:$0xff]
        %v3015 = vld [vmem:[%s322 + $0x110] sm:$0xff]
        %v3016 = vld [vmem:[%s322 + $0x118] sm:$0xff]
        %v3017 = vld [vmem:[%s322 + $0x120] sm:$0xff]
        %v3018 = vld [vmem:[%s322 + $0x128] sm:$0xff]
        %v3019 = vld [vmem:[%s322 + $0x130] sm:$0xff]
        %v3020 = vld [vmem:[%s322 + $0x138] sm:$0xff]
        %v3021 = vld [vmem:[%s322 + $0x140] sm:$0xff]
        %v3022 = vld [vmem:[%s322 + $0x148] sm:$0xff]
        %v3023 = vld [vmem:[%s322 + $0x150] sm:$0xff]
        %v3024 = vld [vmem:[%s322 + $0x158] sm:$0xff]
        %v3025 = vld [vmem:[%s322 + $0x160] sm:$0xff]
        %v3026 = vld [vmem:[%s322 + $0x168] sm:$0xff]
        %v3027 = vld [vmem:[%s322 + $0x170] sm:$0xff]
        %v3028 = vld [vmem:[%s322 + $0x178] sm:$0xff]
        %v3029 = vld [vmem:[%s322 + $0x180] sm:$0xff]
        %v3030 = vld [vmem:[%s322 + $0x188] sm:$0xff]
        %v3031 = vld [vmem:[%s322 + $0x190] sm:$0xff]
        %v3032 = vld [vmem:[%s322 + $0x198] sm:$0xff]
        %v3033 = vld [vmem:[%s322 + $0x1a0] sm:$0xff]
        %v3034 = vld [vmem:[%s322 + $0x1a8] sm:$0xff]
        %v3035 = vld [vmem:[%s322 + $0x1b0] sm:$0xff]
        %v3036 = vld [vmem:[%s322 + $0x1b8] sm:$0xff]
        %v3037 = vld [vmem:[%s322 + $0x1c0] sm:$0xff]
        %v3038 = vld [vmem:[%s322 + $0x1c8] sm:$0xff]
        %v3039 = vld [vmem:[%s322 + $0x1d0] sm:$0xff]
        %v3040 = vld [vmem:[%s322 + $0x1d8] sm:$0xff]
        %v3041 = vld [vmem:[%s322 + $0x1e0] sm:$0xff]
        %v3042 = vld [vmem:[%s322 + $0x1e8] sm:$0xff]
        %v3043 = vld [vmem:[%s322 + $0x1f0] sm:$0xff]
        %v3044 = vld [vmem:[%s322 + $0x1f8] sm:$0xff]
        %3045 = vmatpush.msra.mxu0 %v3041
        %3046 = vmatpush.msra.mxu0 %v3037
        %3047 = vmatpush.msra.mxu0 %v3033
        %3048 = vmatpush.msra.mxu0 %v3029
        %3049 = vmatpush.msra.mxu0 %v3025
        %3050 = vmatpush.msra.mxu0 %v3021
        %3051 = vmatpush.msra.mxu0 %v3017
        %3052 = vmatpush.msra.mxu0 %v3013
        %3053 = vmatpush.msra.mxu0 %v3009
        %3054 = vmatpush.msra.mxu0 %v3005
        %3055 = vmatpush.msra.mxu0 %v3001
        %3056 = vmatpush.msra.mxu0 %v2997
        %3057 = vmatpush.msra.mxu0 %v2993
        %3058 = vmatpush.msra.mxu0 %v2989
        %3059 = vmatpush.msra.mxu0 %v2985
        %3060 = vmatpush.msra.mxu0 %v2981
        %3061 = vmatmul.f32.gmra.mxu0 %v2975
        %v3062 = vpop.f32.mrf.mxu0
        %v3063 = vadd.f32 0.0, %v3062
        %3064 = vdwg.mxu0
        %3065 = vmatpush.msra.mxu0 %v3042
        %3066 = vmatpush.msra.mxu0 %v3038
        %3067 = vmatpush.msra.mxu0 %v3034
        %3068 = vmatpush.msra.mxu0 %v3030
        %3069 = vmatpush.msra.mxu0 %v3026
        %3070 = vmatpush.msra.mxu0 %v3022
        %3071 = vmatpush.msra.mxu0 %v3018
        %3072 = vmatpush.msra.mxu0 %v3014
        %3073 = vmatpush.msra.mxu0 %v3010
        %3074 = vmatpush.msra.mxu0 %v3006
        %3075 = vmatpush.msra.mxu0 %v3002
        %3076 = vmatpush.msra.mxu0 %v2998
        %3077 = vmatpush.msra.mxu0 %v2994
        %3078 = vmatpush.msra.mxu0 %v2990
        %3079 = vmatpush.msra.mxu0 %v2986
        %3080 = vmatpush.msra.mxu0 %v2982
        %3081 = vmatmul.f32.gmra.mxu0 %v2975
        %v3082 = vpop.f32.mrf.mxu0
        %v3083 = vadd.f32 0.0, %v3082
        %3084 = vdwg.mxu0
        %3085 = vmatpush.msra.mxu0 %v3043
        %3086 = vmatpush.msra.mxu0 %v3039
        %3087 = vmatpush.msra.mxu0 %v3035
        %3088 = vmatpush.msra.mxu0 %v3031
        %3089 = vmatpush.msra.mxu0 %v3027
        %3090 = vmatpush.msra.mxu0 %v3023
        %3091 = vmatpush.msra.mxu0 %v3019
        %3092 = vmatpush.msra.mxu0 %v3015
        %3093 = vmatpush.msra.mxu0 %v3011
        %3094 = vmatpush.msra.mxu0 %v3007
        %3095 = vmatpush.msra.mxu0 %v3003
        %3096 = vmatpush.msra.mxu0 %v2999
        %3097 = vmatpush.msra.mxu0 %v2995
        %3098 = vmatpush.msra.mxu0 %v2991
        %3099 = vmatpush.msra.mxu0 %v2987
        %3100 = vmatpush.msra.mxu0 %v2983
        %3101 = vmatmul.f32.gmra.mxu0 %v2975
        %v3102 = vpop.f32.mrf.mxu0
        %v3103 = vadd.f32 0.0, %v3102
        %3104 = vdwg.mxu0
        %3105 = vmatpush.msra.mxu0 %v3044
        %3106 = vmatpush.msra.mxu0 %v3040
        %3107 = vmatpush.msra.mxu0 %v3036
        %3108 = vmatpush.msra.mxu0 %v3032
        %3109 = vmatpush.msra.mxu0 %v3028
        %3110 = vmatpush.msra.mxu0 %v3024
        %3111 = vmatpush.msra.mxu0 %v3020
        %3112 = vmatpush.msra.mxu0 %v3016
        %3113 = vmatpush.msra.mxu0 %v3012
        %3114 = vmatpush.msra.mxu0 %v3008
        %3115 = vmatpush.msra.mxu0 %v3004
        %3116 = vmatpush.msra.mxu0 %v3000
        %3117 = vmatpush.msra.mxu0 %v2996
        %3118 = vmatpush.msra.mxu0 %v2992
        %3119 = vmatpush.msra.mxu0 %v2988
        %3120 = vmatpush.msra.mxu0 %v2984
        %3121 = vmatmul.f32.gmra.mxu0 %v2975
        %v3122 = vpop.f32.mrf.mxu0
        %v3123 = vadd.f32 0.0, %v3122
        %3124 = vdwg.mxu0
        %v3129 = vrot.slane %v3063, 6
        %v3130 = vrot.slane %v3083, 6
        %v3131 = vrot.slane %v3103, 6
        %v3132 = vrot.slane %v3123, 6
        %v3137 = vadd.f32 %v2977, %v3129
        %v3138 = vadd.f32 %v2978, %v3130
        %v3139 = vadd.f32 %v2979, %v3131
        %v3140 = vadd.f32 %v2980, %v3132
        %v3141 = vxor.u32 %v3137, 2147483648
        %v3142 = vmul.f32 %v3141, 1.442695
        %v3143 = vpow.pop %v3142
        %v3144 = vadd.f32 %v3143, 1.0
        %v3145 = vrcp.pop %v3144
        %v3146 = vmul.f32 %v3144, %v3145
        %v3147 = vsub.f32 1.0, %v3146
        %v3148 = vmul.f32 %v3145, %v3147
        %v3149 = vadd.f32 %v3145, %v3148
        %vm3150 = vweird.f32 %v3144
        %vm3151 = vweird.f32 %v3145
        %vm3152 = vmor %vm3150, %vm3151
        %v3153 = vsel %vm3152, %v3145, %v3149
        %v3154 = vand.u32 2147483647, %v3144
        %vm3155 = vcmp.eq.f32.partialorder %v3154, 8.507059e+37
        %v3156 = vand.u32 %v3144, 2147483648
        %v3157 = vor.u32 1.1754944e-38, %v3156
        %v3158 = vsel %vm3155, %v3157, %v3153
        %v3159 = vmul.f32 1.0, %v3158
        %v3160 = vxor.u32 %v3138, 2147483648
        %v3161 = vmul.f32 %v3160, 1.442695
        %v3162 = vpow.pop %v3161
        %v3163 = vadd.f32 %v3162, 1.0
        %v3164 = vrcp.pop %v3163
        %v3165 = vmul.f32 %v3163, %v3164
        %v3166 = vsub.f32 1.0, %v3165
        %v3167 = vmul.f32 %v3164, %v3166
        %v3168 = vadd.f32 %v3164, %v3167
        %vm3169 = vweird.f32 %v3163
        %vm3170 = vweird.f32 %v3164
        %vm3171 = vmor %vm3169, %vm3170
        %v3172 = vsel %vm3171, %v3164, %v3168
        %v3173 = vand.u32 2147483647, %v3163
        %vm3174 = vcmp.eq.f32.partialorder %v3173, 8.507059e+37
        %v3175 = vand.u32 %v3163, 2147483648
        %v3176 = vor.u32 1.1754944e-38, %v3175
        %v3177 = vsel %vm3174, %v3176, %v3172
        %v3178 = vmul.f32 1.0, %v3177
        %v3179 = vtanh.pop %v3139
        %v3180 = vxor.u32 %v3140, 2147483648
        %v3181 = vmul.f32 %v3180, 1.442695
        %v3182 = vpow.pop %v3181
        %v3183 = vadd.f32 %v3182, 1.0
        %v3184 = vrcp.pop %v3183
        %v3185 = vmul.f32 %v3183, %v3184
        %v3186 = vsub.f32 1.0, %v3185
        %v3187 = vmul.f32 %v3184, %v3186
        %v3188 = vadd.f32 %v3184, %v3187
        %vm3189 = vweird.f32 %v3183
        %vm3190 = vweird.f32 %v3184
        %vm3191 = vmor %vm3189, %vm3190
        %v3192 = vsel %vm3191, %v3184, %v3188
        %v3193 = vand.u32 2147483647, %v3183
        %vm3194 = vcmp.eq.f32.partialorder %v3193, 8.507059e+37
        %v3195 = vand.u32 %v3183, 2147483648
        %v3196 = vor.u32 1.1754944e-38, %v3195
        %v3197 = vsel %vm3194, %v3196, %v3192
        %v3198 = vmul.f32 1.0, %v3197
        %v3200 = vrot.slane %v2973, 6
        %v3202 = vmul.f32 %v3178, %v3200
        %v3203 = vmul.f32 %v3159, %v3179
        %v3204 = vadd.f32 %v3202, %v3203
        %v3205 = vtanh.pop %v3204
        %v3206 = vmul.f32 %v3198, %v3205
        %3207 = vst [vmem:[%s414] sm:$0xc] %v3206
        %v3208 = vld [vmem:[#allocation2] sm:$0x30]
        %v3209 = vld [vmem:[#allocation2 + $0x8] sm:$0x30]
        %v3210 = vld [vmem:[#allocation2 + $0x10] sm:$0x30]
        %v3211 = vld [vmem:[#allocation2 + $0x18] sm:$0x30]
        %v3212 = vld [vmem:[%s322] sm:$0xff]
        %v3213 = vld [vmem:[%s322 + $0x8] sm:$0xff]
        %v3214 = vld [vmem:[%s322 + $0x10] sm:$0xff]
        %v3215 = vld [vmem:[%s322 + $0x18] sm:$0xff]
        %v3216 = vld [vmem:[%s322 + $0x20] sm:$0xff]
        %v3217 = vld [vmem:[%s322 + $0x28] sm:$0xff]
        %v3218 = vld [vmem:[%s322 + $0x30] sm:$0xff]
        %v3219 = vld [vmem:[%s322 + $0x38] sm:$0xff]
        %v3220 = vld [vmem:[%s322 + $0x40] sm:$0xff]
        %v3221 = vld [vmem:[%s322 + $0x48] sm:$0xff]
        %v3222 = vld [vmem:[%s322 + $0x50] sm:$0xff]
        %v3223 = vld [vmem:[%s322 + $0x58] sm:$0xff]
        %v3224 = vld [vmem:[%s322 + $0x60] sm:$0xff]
        %v3225 = vld [vmem:[%s322 + $0x68] sm:$0xff]
        %v3226 = vld [vmem:[%s322 + $0x70] sm:$0xff]
        %v3227 = vld [vmem:[%s322 + $0x78] sm:$0xff]
        %v3228 = vld [vmem:[%s322 + $0x80] sm:$0xff]
        %v3229 = vld [vmem:[%s322 + $0x88] sm:$0xff]
        %v3230 = vld [vmem:[%s322 + $0x90] sm:$0xff]
        %v3231 = vld [vmem:[%s322 + $0x98] sm:$0xff]
        %v3232 = vld [vmem:[%s322 + $0xa0] sm:$0xff]
        %v3233 = vld [vmem:[%s322 + $0xa8] sm:$0xff]
        %v3234 = vld [vmem:[%s322 + $0xb0] sm:$0xff]
        %v3235 = vld [vmem:[%s322 + $0xb8] sm:$0xff]
        %v3236 = vld [vmem:[%s322 + $0xc0] sm:$0xff]
        %v3237 = vld [vmem:[%s322 + $0xc8] sm:$0xff]
        %v3238 = vld [vmem:[%s322 + $0xd0] sm:$0xff]
        %v3239 = vld [vmem:[%s322 + $0xd8] sm:$0xff]
        %v3240 = vld [vmem:[%s322 + $0xe0] sm:$0xff]
        %v3241 = vld [vmem:[%s322 + $0xe8] sm:$0xff]
        %v3242 = vld [vmem:[%s322 + $0xf0] sm:$0xff]
        %v3243 = vld [vmem:[%s322 + $0xf8] sm:$0xff]
        %v3244 = vld [vmem:[%s322 + $0x100] sm:$0xff]
        %v3245 = vld [vmem:[%s322 + $0x108] sm:$0xff]
        %v3246 = vld [vmem:[%s322 + $0x110] sm:$0xff]
        %v3247 = vld [vmem:[%s322 + $0x118] sm:$0xff]
        %v3248 = vld [vmem:[%s322 + $0x120] sm:$0xff]
        %v3249 = vld [vmem:[%s322 + $0x128] sm:$0xff]
        %v3250 = vld [vmem:[%s322 + $0x130] sm:$0xff]
        %v3251 = vld [vmem:[%s322 + $0x138] sm:$0xff]
        %v3252 = vld [vmem:[%s322 + $0x140] sm:$0xff]
        %v3253 = vld [vmem:[%s322 + $0x148] sm:$0xff]
        %v3254 = vld [vmem:[%s322 + $0x150] sm:$0xff]
        %v3255 = vld [vmem:[%s322 + $0x158] sm:$0xff]
        %v3256 = vld [vmem:[%s322 + $0x160] sm:$0xff]
        %v3257 = vld [vmem:[%s322 + $0x168] sm:$0xff]
        %v3258 = vld [vmem:[%s322 + $0x170] sm:$0xff]
        %v3259 = vld [vmem:[%s322 + $0x178] sm:$0xff]
        %v3260 = vld [vmem:[%s322 + $0x180] sm:$0xff]
        %v3261 = vld [vmem:[%s322 + $0x188] sm:$0xff]
        %v3262 = vld [vmem:[%s322 + $0x190] sm:$0xff]
        %v3263 = vld [vmem:[%s322 + $0x198] sm:$0xff]
        %v3264 = vld [vmem:[%s322 + $0x1a0] sm:$0xff]
        %v3265 = vld [vmem:[%s322 + $0x1a8] sm:$0xff]
        %v3266 = vld [vmem:[%s322 + $0x1b0] sm:$0xff]
        %v3267 = vld [vmem:[%s322 + $0x1b8] sm:$0xff]
        %v3268 = vld [vmem:[%s322 + $0x1c0] sm:$0xff]
        %v3269 = vld [vmem:[%s322 + $0x1c8] sm:$0xff]
        %v3270 = vld [vmem:[%s322 + $0x1d0] sm:$0xff]
        %v3271 = vld [vmem:[%s322 + $0x1d8] sm:$0xff]
        %v3272 = vld [vmem:[%s322 + $0x1e0] sm:$0xff]
        %v3273 = vld [vmem:[%s322 + $0x1e8] sm:$0xff]
        %v3274 = vld [vmem:[%s322 + $0x1f0] sm:$0xff]
        %v3275 = vld [vmem:[%s322 + $0x1f8] sm:$0xff]
        %v3277 = vrot.slane %v3206, 2
        %3279 = vmatpush.msra.mxu0 %v3272
        %3280 = vmatpush.msra.mxu0 %v3268
        %3281 = vmatpush.msra.mxu0 %v3264
        %3282 = vmatpush.msra.mxu0 %v3260
        %3283 = vmatpush.msra.mxu0 %v3256
        %3284 = vmatpush.msra.mxu0 %v3252
        %3285 = vmatpush.msra.mxu0 %v3248
        %3286 = vmatpush.msra.mxu0 %v3244
        %3287 = vmatpush.msra.mxu0 %v3240
        %3288 = vmatpush.msra.mxu0 %v3236
        %3289 = vmatpush.msra.mxu0 %v3232
        %3290 = vmatpush.msra.mxu0 %v3228
        %3291 = vmatpush.msra.mxu0 %v3224
        %3292 = vmatpush.msra.mxu0 %v3220
        %3293 = vmatpush.msra.mxu0 %v3216
        %3294 = vmatpush.msra.mxu0 %v3212
        %3295 = vmatmul.f32.gmra.mxu0 %v3277
        %v3296 = vpop.f32.mrf.mxu0
        %v3297 = vadd.f32 0.0, %v3296
        %3298 = vdwg.mxu0
        %3299 = vmatpush.msra.mxu0 %v3273
        %3300 = vmatpush.msra.mxu0 %v3269
        %3301 = vmatpush.msra.mxu0 %v3265
        %3302 = vmatpush.msra.mxu0 %v3261
        %3303 = vmatpush.msra.mxu0 %v3257
        %3304 = vmatpush.msra.mxu0 %v3253
        %3305 = vmatpush.msra.mxu0 %v3249
        %3306 = vmatpush.msra.mxu0 %v3245
        %3307 = vmatpush.msra.mxu0 %v3241
        %3308 = vmatpush.msra.mxu0 %v3237
        %3309 = vmatpush.msra.mxu0 %v3233
        %3310 = vmatpush.msra.mxu0 %v3229
        %3311 = vmatpush.msra.mxu0 %v3225
        %3312 = vmatpush.msra.mxu0 %v3221
        %3313 = vmatpush.msra.mxu0 %v3217
        %3314 = vmatpush.msra.mxu0 %v3213
        %3315 = vmatmul.f32.gmra.mxu0 %v3277
        %v3316 = vpop.f32.mrf.mxu0
        %v3317 = vadd.f32 0.0, %v3316
        %3318 = vdwg.mxu0
        %3319 = vmatpush.msra.mxu0 %v3274
        %3320 = vmatpush.msra.mxu0 %v3270
        %3321 = vmatpush.msra.mxu0 %v3266
        %3322 = vmatpush.msra.mxu0 %v3262
        %3323 = vmatpush.msra.mxu0 %v3258
        %3324 = vmatpush.msra.mxu0 %v3254
        %3325 = vmatpush.msra.mxu0 %v3250
        %3326 = vmatpush.msra.mxu0 %v3246
        %3327 = vmatpush.msra.mxu0 %v3242
        %3328 = vmatpush.msra.mxu0 %v3238
        %3329 = vmatpush.msra.mxu0 %v3234
        %3330 = vmatpush.msra.mxu0 %v3230
        %3331 = vmatpush.msra.mxu0 %v3226
        %3332 = vmatpush.msra.mxu0 %v3222
        %3333 = vmatpush.msra.mxu0 %v3218
        %3334 = vmatpush.msra.mxu0 %v3214
        %3335 = vmatmul.f32.gmra.mxu0 %v3277
        %v3336 = vpop.f32.mrf.mxu0
        %v3337 = vadd.f32 0.0, %v3336
        %3338 = vdwg.mxu0
        %3339 = vmatpush.msra.mxu0 %v3275
        %3340 = vmatpush.msra.mxu0 %v3271
        %3341 = vmatpush.msra.mxu0 %v3267
        %3342 = vmatpush.msra.mxu0 %v3263
        %3343 = vmatpush.msra.mxu0 %v3259
        %3344 = vmatpush.msra.mxu0 %v3255
        %3345 = vmatpush.msra.mxu0 %v3251
        %3346 = vmatpush.msra.mxu0 %v3247
        %3347 = vmatpush.msra.mxu0 %v3243
        %3348 = vmatpush.msra.mxu0 %v3239
        %3349 = vmatpush.msra.mxu0 %v3235
        %3350 = vmatpush.msra.mxu0 %v3231
        %3351 = vmatpush.msra.mxu0 %v3227
        %3352 = vmatpush.msra.mxu0 %v3223
        %3353 = vmatpush.msra.mxu0 %v3219
        %3354 = vmatpush.msra.mxu0 %v3215
        %3355 = vmatmul.f32.gmra.mxu0 %v3277
        %v3356 = vpop.f32.mrf.mxu0
        %v3357 = vadd.f32 0.0, %v3356
        %3358 = vdwg.mxu0
        %v3363 = vrot.slane %v3297, 4
        %v3364 = vrot.slane %v3317, 4
        %v3365 = vrot.slane %v3337, 4
        %v3366 = vrot.slane %v3357, 4
        %v3371 = vadd.f32 %v3208, %v3363
        %v3372 = vadd.f32 %v3209, %v3364
        %v3373 = vadd.f32 %v3210, %v3365
        %v3374 = vadd.f32 %v3211, %v3366
        %v3375 = vxor.u32 %v3371, 2147483648
        %v3376 = vmul.f32 %v3375, 1.442695
        %v3377 = vpow.pop %v3376
        %v3378 = vadd.f32 %v3377, 1.0
        %v3379 = vrcp.pop %v3378
        %v3380 = vmul.f32 %v3378, %v3379
        %v3381 = vsub.f32 1.0, %v3380
        %v3382 = vmul.f32 %v3379, %v3381
        %v3383 = vadd.f32 %v3379, %v3382
        %vm3384 = vweird.f32 %v3378
        %vm3385 = vweird.f32 %v3379
        %vm3386 = vmor %vm3384, %vm3385
        %v3387 = vsel %vm3386, %v3379, %v3383
        %v3388 = vand.u32 2147483647, %v3378
        %vm3389 = vcmp.eq.f32.partialorder %v3388, 8.507059e+37
        %v3390 = vand.u32 %v3378, 2147483648
        %v3391 = vor.u32 1.1754944e-38, %v3390
        %v3392 = vsel %vm3389, %v3391, %v3387
        %v3393 = vmul.f32 1.0, %v3392
        %v3394 = vxor.u32 %v3372, 2147483648
        %v3395 = vmul.f32 %v3394, 1.442695
        %v3396 = vpow.pop %v3395
        %v3397 = vadd.f32 %v3396, 1.0
        %v3398 = vrcp.pop %v3397
        %v3399 = vmul.f32 %v3397, %v3398
        %v3400 = vsub.f32 1.0, %v3399
        %v3401 = vmul.f32 %v3398, %v3400
        %v3402 = vadd.f32 %v3398, %v3401
        %vm3403 = vweird.f32 %v3397
        %vm3404 = vweird.f32 %v3398
        %vm3405 = vmor %vm3403, %vm3404
        %v3406 = vsel %vm3405, %v3398, %v3402
        %v3407 = vand.u32 2147483647, %v3397
        %vm3408 = vcmp.eq.f32.partialorder %v3407, 8.507059e+37
        %v3409 = vand.u32 %v3397, 2147483648
        %v3410 = vor.u32 1.1754944e-38, %v3409
        %v3411 = vsel %vm3408, %v3410, %v3406
        %v3412 = vmul.f32 1.0, %v3411
        %v3413 = vtanh.pop %v3373
        %v3414 = vxor.u32 %v3374, 2147483648
        %v3415 = vmul.f32 %v3414, 1.442695
        %v3416 = vpow.pop %v3415
        %v3417 = vadd.f32 %v3416, 1.0
        %v3418 = vrcp.pop %v3417
        %v3419 = vmul.f32 %v3417, %v3418
        %v3420 = vsub.f32 1.0, %v3419
        %v3421 = vmul.f32 %v3418, %v3420
        %v3422 = vadd.f32 %v3418, %v3421
        %vm3423 = vweird.f32 %v3417
        %vm3424 = vweird.f32 %v3418
        %vm3425 = vmor %vm3423, %vm3424
        %v3426 = vsel %vm3425, %v3418, %v3422
        %v3427 = vand.u32 2147483647, %v3417
        %vm3428 = vcmp.eq.f32.partialorder %v3427, 8.507059e+37
        %v3429 = vand.u32 %v3417, 2147483648
        %v3430 = vor.u32 1.1754944e-38, %v3429
        %v3431 = vsel %vm3428, %v3430, %v3426
        %v3432 = vmul.f32 1.0, %v3431
        %v3434 = vrot.slane %v3204, 6
        %v3436 = vmul.f32 %v3412, %v3434
        %v3437 = vmul.f32 %v3393, %v3413
        %v3438 = vadd.f32 %v3436, %v3437
        %v3439 = vtanh.pop %v3438
        %v3440 = vmul.f32 %v3432, %v3439
        %3441 = vst [vmem:[%s414] sm:$0x30] %v3440
        %v3442 = vld [vmem:[#allocation2] sm:$0xc0]
        %v3443 = vld [vmem:[#allocation2 + $0x8] sm:$0xc0]
        %v3444 = vld [vmem:[#allocation2 + $0x10] sm:$0xc0]
        %v3445 = vld [vmem:[#allocation2 + $0x18] sm:$0xc0]
        %v3446 = vld [vmem:[%s322] sm:$0xff]
        %v3447 = vld [vmem:[%s322 + $0x8] sm:$0xff]
        %v3448 = vld [vmem:[%s322 + $0x10] sm:$0xff]
        %v3449 = vld [vmem:[%s322 + $0x18] sm:$0xff]
        %v3450 = vld [vmem:[%s322 + $0x20] sm:$0xff]
        %v3451 = vld [vmem:[%s322 + $0x28] sm:$0xff]
        %v3452 = vld [vmem:[%s322 + $0x30] sm:$0xff]
        %v3453 = vld [vmem:[%s322 + $0x38] sm:$0xff]
        %v3454 = vld [vmem:[%s322 + $0x40] sm:$0xff]
        %v3455 = vld [vmem:[%s322 + $0x48] sm:$0xff]
        %v3456 = vld [vmem:[%s322 + $0x50] sm:$0xff]
        %v3457 = vld [vmem:[%s322 + $0x58] sm:$0xff]
        %v3458 = vld [vmem:[%s322 + $0x60] sm:$0xff]
        %v3459 = vld [vmem:[%s322 + $0x68] sm:$0xff]
        %v3460 = vld [vmem:[%s322 + $0x70] sm:$0xff]
        %v3461 = vld [vmem:[%s322 + $0x78] sm:$0xff]
        %v3462 = vld [vmem:[%s322 + $0x80] sm:$0xff]
        %v3463 = vld [vmem:[%s322 + $0x88] sm:$0xff]
        %v3464 = vld [vmem:[%s322 + $0x90] sm:$0xff]
        %v3465 = vld [vmem:[%s322 + $0x98] sm:$0xff]
        %v3466 = vld [vmem:[%s322 + $0xa0] sm:$0xff]
        %v3467 = vld [vmem:[%s322 + $0xa8] sm:$0xff]
        %v3468 = vld [vmem:[%s322 + $0xb0] sm:$0xff]
        %v3469 = vld [vmem:[%s322 + $0xb8] sm:$0xff]
        %v3470 = vld [vmem:[%s322 + $0xc0] sm:$0xff]
        %v3471 = vld [vmem:[%s322 + $0xc8] sm:$0xff]
        %v3472 = vld [vmem:[%s322 + $0xd0] sm:$0xff]
        %v3473 = vld [vmem:[%s322 + $0xd8] sm:$0xff]
        %v3474 = vld [vmem:[%s322 + $0xe0] sm:$0xff]
        %v3475 = vld [vmem:[%s322 + $0xe8] sm:$0xff]
        %v3476 = vld [vmem:[%s322 + $0xf0] sm:$0xff]
        %v3477 = vld [vmem:[%s322 + $0xf8] sm:$0xff]
        %v3478 = vld [vmem:[%s322 + $0x100] sm:$0xff]
        %v3479 = vld [vmem:[%s322 + $0x108] sm:$0xff]
        %v3480 = vld [vmem:[%s322 + $0x110] sm:$0xff]
        %v3481 = vld [vmem:[%s322 + $0x118] sm:$0xff]
        %v3482 = vld [vmem:[%s322 + $0x120] sm:$0xff]
        %v3483 = vld [vmem:[%s322 + $0x128] sm:$0xff]
        %v3484 = vld [vmem:[%s322 + $0x130] sm:$0xff]
        %v3485 = vld [vmem:[%s322 + $0x138] sm:$0xff]
        %v3486 = vld [vmem:[%s322 + $0x140] sm:$0xff]
        %v3487 = vld [vmem:[%s322 + $0x148] sm:$0xff]
        %v3488 = vld [vmem:[%s322 + $0x150] sm:$0xff]
        %v3489 = vld [vmem:[%s322 + $0x158] sm:$0xff]
        %v3490 = vld [vmem:[%s322 + $0x160] sm:$0xff]
        %v3491 = vld [vmem:[%s322 + $0x168] sm:$0xff]
        %v3492 = vld [vmem:[%s322 + $0x170] sm:$0xff]
        %v3493 = vld [vmem:[%s322 + $0x178] sm:$0xff]
        %v3494 = vld [vmem:[%s322 + $0x180] sm:$0xff]
        %v3495 = vld [vmem:[%s322 + $0x188] sm:$0xff]
        %v3496 = vld [vmem:[%s322 + $0x190] sm:$0xff]
        %v3497 = vld [vmem:[%s322 + $0x198] sm:$0xff]
        %v3498 = vld [vmem:[%s322 + $0x1a0] sm:$0xff]
        %v3499 = vld [vmem:[%s322 + $0x1a8] sm:$0xff]
        %v3500 = vld [vmem:[%s322 + $0x1b0] sm:$0xff]
        %v3501 = vld [vmem:[%s322 + $0x1b8] sm:$0xff]
        %v3502 = vld [vmem:[%s322 + $0x1c0] sm:$0xff]
        %v3503 = vld [vmem:[%s322 + $0x1c8] sm:$0xff]
        %v3504 = vld [vmem:[%s322 + $0x1d0] sm:$0xff]
        %v3505 = vld [vmem:[%s322 + $0x1d8] sm:$0xff]
        %v3506 = vld [vmem:[%s322 + $0x1e0] sm:$0xff]
        %v3507 = vld [vmem:[%s322 + $0x1e8] sm:$0xff]
        %v3508 = vld [vmem:[%s322 + $0x1f0] sm:$0xff]
        %v3509 = vld [vmem:[%s322 + $0x1f8] sm:$0xff]
        %v3511 = vrot.slane %v3440, 4
        %3513 = vmatpush.msra.mxu0 %v3506
        %3514 = vmatpush.msra.mxu0 %v3502
        %3515 = vmatpush.msra.mxu0 %v3498
        %3516 = vmatpush.msra.mxu0 %v3494
        %3517 = vmatpush.msra.mxu0 %v3490
        %3518 = vmatpush.msra.mxu0 %v3486
        %3519 = vmatpush.msra.mxu0 %v3482
        %3520 = vmatpush.msra.mxu0 %v3478
        %3521 = vmatpush.msra.mxu0 %v3474
        %3522 = vmatpush.msra.mxu0 %v3470
        %3523 = vmatpush.msra.mxu0 %v3466
        %3524 = vmatpush.msra.mxu0 %v3462
        %3525 = vmatpush.msra.mxu0 %v3458
        %3526 = vmatpush.msra.mxu0 %v3454
        %3527 = vmatpush.msra.mxu0 %v3450
        %3528 = vmatpush.msra.mxu0 %v3446
        %3529 = vmatmul.f32.gmra.mxu0 %v3511
        %v3530 = vpop.f32.mrf.mxu0
        %v3531 = vadd.f32 0.0, %v3530
        %3532 = vdwg.mxu0
        %3533 = vmatpush.msra.mxu0 %v3507
        %3534 = vmatpush.msra.mxu0 %v3503
        %3535 = vmatpush.msra.mxu0 %v3499
        %3536 = vmatpush.msra.mxu0 %v3495
        %3537 = vmatpush.msra.mxu0 %v3491
        %3538 = vmatpush.msra.mxu0 %v3487
        %3539 = vmatpush.msra.mxu0 %v3483
        %3540 = vmatpush.msra.mxu0 %v3479
        %3541 = vmatpush.msra.mxu0 %v3475
        %3542 = vmatpush.msra.mxu0 %v3471
        %3543 = vmatpush.msra.mxu0 %v3467
        %3544 = vmatpush.msra.mxu0 %v3463
        %3545 = vmatpush.msra.mxu0 %v3459
        %3546 = vmatpush.msra.mxu0 %v3455
        %3547 = vmatpush.msra.mxu0 %v3451
        %3548 = vmatpush.msra.mxu0 %v3447
        %3549 = vmatmul.f32.gmra.mxu0 %v3511
        %v3550 = vpop.f32.mrf.mxu0
        %v3551 = vadd.f32 0.0, %v3550
        %3552 = vdwg.mxu0
        %3553 = vmatpush.msra.mxu0 %v3508
        %3554 = vmatpush.msra.mxu0 %v3504
        %3555 = vmatpush.msra.mxu0 %v3500
        %3556 = vmatpush.msra.mxu0 %v3496
        %3557 = vmatpush.msra.mxu0 %v3492
        %3558 = vmatpush.msra.mxu0 %v3488
        %3559 = vmatpush.msra.mxu0 %v3484
        %3560 = vmatpush.msra.mxu0 %v3480
        %3561 = vmatpush.msra.mxu0 %v3476
        %3562 = vmatpush.msra.mxu0 %v3472
        %3563 = vmatpush.msra.mxu0 %v3468
        %3564 = vmatpush.msra.mxu0 %v3464
        %3565 = vmatpush.msra.mxu0 %v3460
        %3566 = vmatpush.msra.mxu0 %v3456
        %3567 = vmatpush.msra.mxu0 %v3452
        %3568 = vmatpush.msra.mxu0 %v3448
        %3569 = vmatmul.f32.gmra.mxu0 %v3511
        %v3570 = vpop.f32.mrf.mxu0
        %v3571 = vadd.f32 0.0, %v3570
        %3572 = vdwg.mxu0
        %3573 = vmatpush.msra.mxu0 %v3509
        %3574 = vmatpush.msra.mxu0 %v3505
        %3575 = vmatpush.msra.mxu0 %v3501
        %3576 = vmatpush.msra.mxu0 %v3497
        %3577 = vmatpush.msra.mxu0 %v3493
        %3578 = vmatpush.msra.mxu0 %v3489
        %3579 = vmatpush.msra.mxu0 %v3485
        %3580 = vmatpush.msra.mxu0 %v3481
        %3581 = vmatpush.msra.mxu0 %v3477
        %3582 = vmatpush.msra.mxu0 %v3473
        %3583 = vmatpush.msra.mxu0 %v3469
        %3584 = vmatpush.msra.mxu0 %v3465
        %3585 = vmatpush.msra.mxu0 %v3461
        %3586 = vmatpush.msra.mxu0 %v3457
        %3587 = vmatpush.msra.mxu0 %v3453
        %3588 = vmatpush.msra.mxu0 %v3449
        %3589 = vmatmul.f32.gmra.mxu0 %v3511
        %v3590 = vpop.f32.mrf.mxu0
        %v3591 = vadd.f32 0.0, %v3590
        %3592 = vdwg.mxu0
        %v3597 = vrot.slane %v3531, 2
        %v3598 = vrot.slane %v3551, 2
        %v3599 = vrot.slane %v3571, 2
        %v3600 = vrot.slane %v3591, 2
        %v3605 = vadd.f32 %v3442, %v3597
        %v3606 = vadd.f32 %v3443, %v3598
        %v3607 = vadd.f32 %v3444, %v3599
        %v3608 = vadd.f32 %v3445, %v3600
        %v3609 = vxor.u32 %v3605, 2147483648
        %v3610 = vmul.f32 %v3609, 1.442695
        %v3611 = vpow.pop %v3610
        %v3612 = vadd.f32 %v3611, 1.0
        %v3613 = vrcp.pop %v3612
        %v3614 = vmul.f32 %v3612, %v3613
        %v3615 = vsub.f32 1.0, %v3614
        %v3616 = vmul.f32 %v3613, %v3615
        %v3617 = vadd.f32 %v3613, %v3616
        %vm3618 = vweird.f32 %v3612
        %vm3619 = vweird.f32 %v3613
        %vm3620 = vmor %vm3618, %vm3619
        %v3621 = vsel %vm3620, %v3613, %v3617
        %v3622 = vand.u32 2147483647, %v3612
        %vm3623 = vcmp.eq.f32.partialorder %v3622, 8.507059e+37
        %v3624 = vand.u32 %v3612, 2147483648
        %v3625 = vor.u32 1.1754944e-38, %v3624
        %v3626 = vsel %vm3623, %v3625, %v3621
        %v3627 = vmul.f32 1.0, %v3626
        %v3628 = vxor.u32 %v3606, 2147483648
        %v3629 = vmul.f32 %v3628, 1.442695
        %v3630 = vpow.pop %v3629
        %v3631 = vadd.f32 %v3630, 1.0
        %v3632 = vrcp.pop %v3631
        %v3633 = vmul.f32 %v3631, %v3632
        %v3634 = vsub.f32 1.0, %v3633
        %v3635 = vmul.f32 %v3632, %v3634
        %v3636 = vadd.f32 %v3632, %v3635
        %vm3637 = vweird.f32 %v3631
        %vm3638 = vweird.f32 %v3632
        %vm3639 = vmor %vm3637, %vm3638
        %v3640 = vsel %vm3639, %v3632, %v3636
        %v3641 = vand.u32 2147483647, %v3631
        %vm3642 = vcmp.eq.f32.partialorder %v3641, 8.507059e+37
        %v3643 = vand.u32 %v3631, 2147483648
        %v3644 = vor.u32 1.1754944e-38, %v3643
        %v3645 = vsel %vm3642, %v3644, %v3640
        %v3646 = vmul.f32 1.0, %v3645
        %v3647 = vtanh.pop %v3607
        %v3648 = vxor.u32 %v3608, 2147483648
        %v3649 = vmul.f32 %v3648, 1.442695
        %v3650 = vpow.pop %v3649
        %v3651 = vadd.f32 %v3650, 1.0
        %v3652 = vrcp.pop %v3651
        %v3653 = vmul.f32 %v3651, %v3652
        %v3654 = vsub.f32 1.0, %v3653
        %v3655 = vmul.f32 %v3652, %v3654
        %v3656 = vadd.f32 %v3652, %v3655
        %vm3657 = vweird.f32 %v3651
        %vm3658 = vweird.f32 %v3652
        %vm3659 = vmor %vm3657, %vm3658
        %v3660 = vsel %vm3659, %v3652, %v3656
        %v3661 = vand.u32 2147483647, %v3651
        %vm3662 = vcmp.eq.f32.partialorder %v3661, 8.507059e+37
        %v3663 = vand.u32 %v3651, 2147483648
        %v3664 = vor.u32 1.1754944e-38, %v3663
        %v3665 = vsel %vm3662, %v3664, %v3660
        %v3666 = vmul.f32 1.0, %v3665
        %v3668 = vrot.slane %v3438, 6
        %v3670 = vmul.f32 %v3646, %v3668
        %v3671 = vmul.f32 %v3627, %v3647
        %v3672 = vadd.f32 %v3670, %v3671
        %v3673 = vtanh.pop %v3672
        %v3674 = vmul.f32 %v3666, %v3673
        %3675 = vst [vmem:[%s414] sm:$0xc0] %v3674
        %v3676 = vld [vmem:[#allocation2 + $0x20] sm:$0x3]
        %v3677 = vld [vmem:[#allocation2 + $0x28] sm:$0x3]
        %v3678 = vld [vmem:[#allocation2 + $0x30] sm:$0x3]
        %v3679 = vld [vmem:[#allocation2 + $0x38] sm:$0x3]
        %v3680 = vld [vmem:[%s322] sm:$0xff]
        %v3681 = vld [vmem:[%s322 + $0x8] sm:$0xff]
        %v3682 = vld [vmem:[%s322 + $0x10] sm:$0xff]
        %v3683 = vld [vmem:[%s322 + $0x18] sm:$0xff]
        %v3684 = vld [vmem:[%s322 + $0x20] sm:$0xff]
        %v3685 = vld [vmem:[%s322 + $0x28] sm:$0xff]
        %v3686 = vld [vmem:[%s322 + $0x30] sm:$0xff]
        %v3687 = vld [vmem:[%s322 + $0x38] sm:$0xff]
        %v3688 = vld [vmem:[%s322 + $0x40] sm:$0xff]
        %v3689 = vld [vmem:[%s322 + $0x48] sm:$0xff]
        %v3690 = vld [vmem:[%s322 + $0x50] sm:$0xff]
        %v3691 = vld [vmem:[%s322 + $0x58] sm:$0xff]
        %v3692 = vld [vmem:[%s322 + $0x60] sm:$0xff]
        %v3693 = vld [vmem:[%s322 + $0x68] sm:$0xff]
        %v3694 = vld [vmem:[%s322 + $0x70] sm:$0xff]
        %v3695 = vld [vmem:[%s322 + $0x78] sm:$0xff]
        %v3696 = vld [vmem:[%s322 + $0x80] sm:$0xff]
        %v3697 = vld [vmem:[%s322 + $0x88] sm:$0xff]
        %v3698 = vld [vmem:[%s322 + $0x90] sm:$0xff]
        %v3699 = vld [vmem:[%s322 + $0x98] sm:$0xff]
        %v3700 = vld [vmem:[%s322 + $0xa0] sm:$0xff]
        %v3701 = vld [vmem:[%s322 + $0xa8] sm:$0xff]
        %v3702 = vld [vmem:[%s322 + $0xb0] sm:$0xff]
        %v3703 = vld [vmem:[%s322 + $0xb8] sm:$0xff]
        %v3704 = vld [vmem:[%s322 + $0xc0] sm:$0xff]
        %v3705 = vld [vmem:[%s322 + $0xc8] sm:$0xff]
        %v3706 = vld [vmem:[%s322 + $0xd0] sm:$0xff]
        %v3707 = vld [vmem:[%s322 + $0xd8] sm:$0xff]
        %v3708 = vld [vmem:[%s322 + $0xe0] sm:$0xff]
        %v3709 = vld [vmem:[%s322 + $0xe8] sm:$0xff]
        %v3710 = vld [vmem:[%s322 + $0xf0] sm:$0xff]
        %v3711 = vld [vmem:[%s322 + $0xf8] sm:$0xff]
        %v3712 = vld [vmem:[%s322 + $0x100] sm:$0xff]
        %v3713 = vld [vmem:[%s322 + $0x108] sm:$0xff]
        %v3714 = vld [vmem:[%s322 + $0x110] sm:$0xff]
        %v3715 = vld [vmem:[%s322 + $0x118] sm:$0xff]
        %v3716 = vld [vmem:[%s322 + $0x120] sm:$0xff]
        %v3717 = vld [vmem:[%s322 + $0x128] sm:$0xff]
        %v3718 = vld [vmem:[%s322 + $0x130] sm:$0xff]
        %v3719 = vld [vmem:[%s322 + $0x138] sm:$0xff]
        %v3720 = vld [vmem:[%s322 + $0x140] sm:$0xff]
        %v3721 = vld [vmem:[%s322 + $0x148] sm:$0xff]
        %v3722 = vld [vmem:[%s322 + $0x150] sm:$0xff]
        %v3723 = vld [vmem:[%s322 + $0x158] sm:$0xff]
        %v3724 = vld [vmem:[%s322 + $0x160] sm:$0xff]
        %v3725 = vld [vmem:[%s322 + $0x168] sm:$0xff]
        %v3726 = vld [vmem:[%s322 + $0x170] sm:$0xff]
        %v3727 = vld [vmem:[%s322 + $0x178] sm:$0xff]
        %v3728 = vld [vmem:[%s322 + $0x180] sm:$0xff]
        %v3729 = vld [vmem:[%s322 + $0x188] sm:$0xff]
        %v3730 = vld [vmem:[%s322 + $0x190] sm:$0xff]
        %v3731 = vld [vmem:[%s322 + $0x198] sm:$0xff]
        %v3732 = vld [vmem:[%s322 + $0x1a0] sm:$0xff]
        %v3733 = vld [vmem:[%s322 + $0x1a8] sm:$0xff]
        %v3734 = vld [vmem:[%s322 + $0x1b0] sm:$0xff]
        %v3735 = vld [vmem:[%s322 + $0x1b8] sm:$0xff]
        %v3736 = vld [vmem:[%s322 + $0x1c0] sm:$0xff]
        %v3737 = vld [vmem:[%s322 + $0x1c8] sm:$0xff]
        %v3738 = vld [vmem:[%s322 + $0x1d0] sm:$0xff]
        %v3739 = vld [vmem:[%s322 + $0x1d8] sm:$0xff]
        %v3740 = vld [vmem:[%s322 + $0x1e0] sm:$0xff]
        %v3741 = vld [vmem:[%s322 + $0x1e8] sm:$0xff]
        %v3742 = vld [vmem:[%s322 + $0x1f0] sm:$0xff]
        %v3743 = vld [vmem:[%s322 + $0x1f8] sm:$0xff]
        %v3745 = vrot.slane %v3674, 6
        %3747 = vmatpush.msra.mxu0 %v3740
        %3748 = vmatpush.msra.mxu0 %v3736
        %3749 = vmatpush.msra.mxu0 %v3732
        %3750 = vmatpush.msra.mxu0 %v3728
        %3751 = vmatpush.msra.mxu0 %v3724
        %3752 = vmatpush.msra.mxu0 %v3720
        %3753 = vmatpush.msra.mxu0 %v3716
        %3754 = vmatpush.msra.mxu0 %v3712
        %3755 = vmatpush.msra.mxu0 %v3708
        %3756 = vmatpush.msra.mxu0 %v3704
        %3757 = vmatpush.msra.mxu0 %v3700
        %3758 = vmatpush.msra.mxu0 %v3696
        %3759 = vmatpush.msra.mxu0 %v3692
        %3760 = vmatpush.msra.mxu0 %v3688
        %3761 = vmatpush.msra.mxu0 %v3684
        %3762 = vmatpush.msra.mxu0 %v3680
        %3763 = vmatmul.f32.gmra.mxu0 %v3745
        %v3764 = vpop.f32.mrf.mxu0
        %v3765 = vadd.f32 0.0, %v3764
        %3766 = vdwg.mxu0
        %3767 = vmatpush.msra.mxu0 %v3741
        %3768 = vmatpush.msra.mxu0 %v3737
        %3769 = vmatpush.msra.mxu0 %v3733
        %3770 = vmatpush.msra.mxu0 %v3729
        %3771 = vmatpush.msra.mxu0 %v3725
        %3772 = vmatpush.msra.mxu0 %v3721
        %3773 = vmatpush.msra.mxu0 %v3717
        %3774 = vmatpush.msra.mxu0 %v3713
        %3775 = vmatpush.msra.mxu0 %v3709
        %3776 = vmatpush.msra.mxu0 %v3705
        %3777 = vmatpush.msra.mxu0 %v3701
        %3778 = vmatpush.msra.mxu0 %v3697
        %3779 = vmatpush.msra.mxu0 %v3693
        %3780 = vmatpush.msra.mxu0 %v3689
        %3781 = vmatpush.msra.mxu0 %v3685
        %3782 = vmatpush.msra.mxu0 %v3681
        %3783 = vmatmul.f32.gmra.mxu0 %v3745
        %v3784 = vpop.f32.mrf.mxu0
        %v3785 = vadd.f32 0.0, %v3784
        %3786 = vdwg.mxu0
        %3787 = vmatpush.msra.mxu0 %v3742
        %3788 = vmatpush.msra.mxu0 %v3738
        %3789 = vmatpush.msra.mxu0 %v3734
        %3790 = vmatpush.msra.mxu0 %v3730
        %3791 = vmatpush.msra.mxu0 %v3726
        %3792 = vmatpush.msra.mxu0 %v3722
        %3793 = vmatpush.msra.mxu0 %v3718
        %3794 = vmatpush.msra.mxu0 %v3714
        %3795 = vmatpush.msra.mxu0 %v3710
        %3796 = vmatpush.msra.mxu0 %v3706
        %3797 = vmatpush.msra.mxu0 %v3702
        %3798 = vmatpush.msra.mxu0 %v3698
        %3799 = vmatpush.msra.mxu0 %v3694
        %3800 = vmatpush.msra.mxu0 %v3690
        %3801 = vmatpush.msra.mxu0 %v3686
        %3802 = vmatpush.msra.mxu0 %v3682
        %3803 = vmatmul.f32.gmra.mxu0 %v3745
        %v3804 = vpop.f32.mrf.mxu0
        %v3805 = vadd.f32 0.0, %v3804
        %3806 = vdwg.mxu0
        %3807 = vmatpush.msra.mxu0 %v3743
        %3808 = vmatpush.msra.mxu0 %v3739
        %3809 = vmatpush.msra.mxu0 %v3735
        %3810 = vmatpush.msra.mxu0 %v3731
        %3811 = vmatpush.msra.mxu0 %v3727
        %3812 = vmatpush.msra.mxu0 %v3723
        %3813 = vmatpush.msra.mxu0 %v3719
        %3814 = vmatpush.msra.mxu0 %v3715
        %3815 = vmatpush.msra.mxu0 %v3711
        %3816 = vmatpush.msra.mxu0 %v3707
        %3817 = vmatpush.msra.mxu0 %v3703
        %3818 = vmatpush.msra.mxu0 %v3699
        %3819 = vmatpush.msra.mxu0 %v3695
        %3820 = vmatpush.msra.mxu0 %v3691
        %3821 = vmatpush.msra.mxu0 %v3687
        %3822 = vmatpush.msra.mxu0 %v3683
        %3823 = vmatmul.f32.gmra.mxu0 %v3745
        %v3824 = vpop.f32.mrf.mxu0
        %v3825 = vadd.f32 0.0, %v3824
        %3826 = vdwg.mxu0
        %v3827 = vadd.f32 %v3676, %v3765
        %v3828 = vadd.f32 %v3677, %v3785
        %v3829 = vadd.f32 %v3678, %v3805
        %v3830 = vadd.f32 %v3679, %v3825
        %v3831 = vxor.u32 %v3827, 2147483648
        %v3832 = vmul.f32 %v3831, 1.442695
        %v3833 = vpow.pop %v3832
        %v3834 = vadd.f32 %v3833, 1.0
        %v3835 = vrcp.pop %v3834
        %v3836 = vmul.f32 %v3834, %v3835
        %v3837 = vsub.f32 1.0, %v3836
        %v3838 = vmul.f32 %v3835, %v3837
        %v3839 = vadd.f32 %v3835, %v3838
        %vm3840 = vweird.f32 %v3834
        %vm3841 = vweird.f32 %v3835
        %vm3842 = vmor %vm3840, %vm3841
        %v3843 = vsel %vm3842, %v3835, %v3839
        %v3844 = vand.u32 2147483647, %v3834
        %vm3845 = vcmp.eq.f32.partialorder %v3844, 8.507059e+37
        %v3846 = vand.u32 %v3834, 2147483648
        %v3847 = vor.u32 1.1754944e-38, %v3846
        %v3848 = vsel %vm3845, %v3847, %v3843
        %v3849 = vmul.f32 1.0, %v3848
        %v3850 = vxor.u32 %v3828, 2147483648
        %v3851 = vmul.f32 %v3850, 1.442695
        %v3852 = vpow.pop %v3851
        %v3853 = vadd.f32 %v3852, 1.0
        %v3854 = vrcp.pop %v3853
        %v3855 = vmul.f32 %v3853, %v3854
        %v3856 = vsub.f32 1.0, %v3855
        %v3857 = vmul.f32 %v3854, %v3856
        %v3858 = vadd.f32 %v3854, %v3857
        %vm3859 = vweird.f32 %v3853
        %vm3860 = vweird.f32 %v3854
        %vm3861 = vmor %vm3859, %vm3860
        %v3862 = vsel %vm3861, %v3854, %v3858
        %v3863 = vand.u32 2147483647, %v3853
        %vm3864 = vcmp.eq.f32.partialorder %v3863, 8.507059e+37
        %v3865 = vand.u32 %v3853, 2147483648
        %v3866 = vor.u32 1.1754944e-38, %v3865
        %v3867 = vsel %vm3864, %v3866, %v3862
        %v3868 = vmul.f32 1.0, %v3867
        %v3869 = vtanh.pop %v3829
        %v3870 = vxor.u32 %v3830, 2147483648
        %v3871 = vmul.f32 %v3870, 1.442695
        %v3872 = vpow.pop %v3871
        %v3873 = vadd.f32 %v3872, 1.0
        %v3874 = vrcp.pop %v3873
        %v3875 = vmul.f32 %v3873, %v3874
        %v3876 = vsub.f32 1.0, %v3875
        %v3877 = vmul.f32 %v3874, %v3876
        %v3878 = vadd.f32 %v3874, %v3877
        %vm3879 = vweird.f32 %v3873
        %vm3880 = vweird.f32 %v3874
        %vm3881 = vmor %vm3879, %vm3880
        %v3882 = vsel %vm3881, %v3874, %v3878
        %v3883 = vand.u32 2147483647, %v3873
        %vm3884 = vcmp.eq.f32.partialorder %v3883, 8.507059e+37
        %v3885 = vand.u32 %v3873, 2147483648
        %v3886 = vor.u32 1.1754944e-38, %v3885
        %v3887 = vsel %vm3884, %v3886, %v3882
        %v3888 = vmul.f32 1.0, %v3887
        %v3890 = vrot.slane %v3672, 6
        %v3892 = vmul.f32 %v3868, %v3890
        %v3893 = vmul.f32 %v3849, %v3869
        %v3894 = vadd.f32 %v3892, %v3893
        %v3895 = vtanh.pop %v3894
        %v3896 = vmul.f32 %v3888, %v3895
        %3897 = vst [vmem:[%s414 + $0x8] sm:$0x3] %v3896
        %v3898 = vld [vmem:[#allocation2 + $0x20] sm:$0xc]
        %v3899 = vld [vmem:[#allocation2 + $0x28] sm:$0xc]
        %v3900 = vld [vmem:[#allocation2 + $0x30] sm:$0xc]
        %v3901 = vld [vmem:[#allocation2 + $0x38] sm:$0xc]
        %v3902 = vld [vmem:[%s322] sm:$0xff]
        %v3903 = vld [vmem:[%s322 + $0x8] sm:$0xff]
        %v3904 = vld [vmem:[%s322 + $0x10] sm:$0xff]
        %v3905 = vld [vmem:[%s322 + $0x18] sm:$0xff]
        %v3906 = vld [vmem:[%s322 + $0x20] sm:$0xff]
        %v3907 = vld [vmem:[%s322 + $0x28] sm:$0xff]
        %v3908 = vld [vmem:[%s322 + $0x30] sm:$0xff]
        %v3909 = vld [vmem:[%s322 + $0x38] sm:$0xff]
        %v3910 = vld [vmem:[%s322 + $0x40] sm:$0xff]
        %v3911 = vld [vmem:[%s322 + $0x48] sm:$0xff]
        %v3912 = vld [vmem:[%s322 + $0x50] sm:$0xff]
        %v3913 = vld [vmem:[%s322 + $0x58] sm:$0xff]
        %v3914 = vld [vmem:[%s322 + $0x60] sm:$0xff]
        %v3915 = vld [vmem:[%s322 + $0x68] sm:$0xff]
        %v3916 = vld [vmem:[%s322 + $0x70] sm:$0xff]
        %v3917 = vld [vmem:[%s322 + $0x78] sm:$0xff]
        %v3918 = vld [vmem:[%s322 + $0x80] sm:$0xff]
        %v3919 = vld [vmem:[%s322 + $0x88] sm:$0xff]
        %v3920 = vld [vmem:[%s322 + $0x90] sm:$0xff]
        %v3921 = vld [vmem:[%s322 + $0x98] sm:$0xff]
        %v3922 = vld [vmem:[%s322 + $0xa0] sm:$0xff]
        %v3923 = vld [vmem:[%s322 + $0xa8] sm:$0xff]
        %v3924 = vld [vmem:[%s322 + $0xb0] sm:$0xff]
        %v3925 = vld [vmem:[%s322 + $0xb8] sm:$0xff]
        %v3926 = vld [vmem:[%s322 + $0xc0] sm:$0xff]
        %v3927 = vld [vmem:[%s322 + $0xc8] sm:$0xff]
        %v3928 = vld [vmem:[%s322 + $0xd0] sm:$0xff]
        %v3929 = vld [vmem:[%s322 + $0xd8] sm:$0xff]
        %v3930 = vld [vmem:[%s322 + $0xe0] sm:$0xff]
        %v3931 = vld [vmem:[%s322 + $0xe8] sm:$0xff]
        %v3932 = vld [vmem:[%s322 + $0xf0] sm:$0xff]
        %v3933 = vld [vmem:[%s322 + $0xf8] sm:$0xff]
        %v3934 = vld [vmem:[%s322 + $0x100] sm:$0xff]
        %v3935 = vld [vmem:[%s322 + $0x108] sm:$0xff]
        %v3936 = vld [vmem:[%s322 + $0x110] sm:$0xff]
        %v3937 = vld [vmem:[%s322 + $0x118] sm:$0xff]
        %v3938 = vld [vmem:[%s322 + $0x120] sm:$0xff]
        %v3939 = vld [vmem:[%s322 + $0x128] sm:$0xff]
        %v3940 = vld [vmem:[%s322 + $0x130] sm:$0xff]
        %v3941 = vld [vmem:[%s322 + $0x138] sm:$0xff]
        %v3942 = vld [vmem:[%s322 + $0x140] sm:$0xff]
        %v3943 = vld [vmem:[%s322 + $0x148] sm:$0xff]
        %v3944 = vld [vmem:[%s322 + $0x150] sm:$0xff]
        %v3945 = vld [vmem:[%s322 + $0x158] sm:$0xff]
        %v3946 = vld [vmem:[%s322 + $0x160] sm:$0xff]
        %v3947 = vld [vmem:[%s322 + $0x168] sm:$0xff]
        %v3948 = vld [vmem:[%s322 + $0x170] sm:$0xff]
        %v3949 = vld [vmem:[%s322 + $0x178] sm:$0xff]
        %v3950 = vld [vmem:[%s322 + $0x180] sm:$0xff]
        %v3951 = vld [vmem:[%s322 + $0x188] sm:$0xff]
        %v3952 = vld [vmem:[%s322 + $0x190] sm:$0xff]
        %v3953 = vld [vmem:[%s322 + $0x198] sm:$0xff]
        %v3954 = vld [vmem:[%s322 + $0x1a0] sm:$0xff]
        %v3955 = vld [vmem:[%s322 + $0x1a8] sm:$0xff]
        %v3956 = vld [vmem:[%s322 + $0x1b0] sm:$0xff]
        %v3957 = vld [vmem:[%s322 + $0x1b8] sm:$0xff]
        %v3958 = vld [vmem:[%s322 + $0x1c0] sm:$0xff]
        %v3959 = vld [vmem:[%s322 + $0x1c8] sm:$0xff]
        %v3960 = vld [vmem:[%s322 + $0x1d0] sm:$0xff]
        %v3961 = vld [vmem:[%s322 + $0x1d8] sm:$0xff]
        %v3962 = vld [vmem:[%s322 + $0x1e0] sm:$0xff]
        %v3963 = vld [vmem:[%s322 + $0x1e8] sm:$0xff]
        %v3964 = vld [vmem:[%s322 + $0x1f0] sm:$0xff]
        %v3965 = vld [vmem:[%s322 + $0x1f8] sm:$0xff]
        %3966 = vmatpush.msra.mxu0 %v3962
        %3967 = vmatpush.msra.mxu0 %v3958
        %3968 = vmatpush.msra.mxu0 %v3954
        %3969 = vmatpush.msra.mxu0 %v3950
        %3970 = vmatpush.msra.mxu0 %v3946
        %3971 = vmatpush.msra.mxu0 %v3942
        %3972 = vmatpush.msra.mxu0 %v3938
        %3973 = vmatpush.msra.mxu0 %v3934
        %3974 = vmatpush.msra.mxu0 %v3930
        %3975 = vmatpush.msra.mxu0 %v3926
        %3976 = vmatpush.msra.mxu0 %v3922
        %3977 = vmatpush.msra.mxu0 %v3918
        %3978 = vmatpush.msra.mxu0 %v3914
        %3979 = vmatpush.msra.mxu0 %v3910
        %3980 = vmatpush.msra.mxu0 %v3906
        %3981 = vmatpush.msra.mxu0 %v3902
        %3982 = vmatmul.f32.gmra.mxu0 %v3896
        %v3983 = vpop.f32.mrf.mxu0
        %v3984 = vadd.f32 0.0, %v3983
        %3985 = vdwg.mxu0
        %3986 = vmatpush.msra.mxu0 %v3963
        %3987 = vmatpush.msra.mxu0 %v3959
        %3988 = vmatpush.msra.mxu0 %v3955
        %3989 = vmatpush.msra.mxu0 %v3951
        %3990 = vmatpush.msra.mxu0 %v3947
        %3991 = vmatpush.msra.mxu0 %v3943
        %3992 = vmatpush.msra.mxu0 %v3939
        %3993 = vmatpush.msra.mxu0 %v3935
        %3994 = vmatpush.msra.mxu0 %v3931
        %3995 = vmatpush.msra.mxu0 %v3927
        %3996 = vmatpush.msra.mxu0 %v3923
        %3997 = vmatpush.msra.mxu0 %v3919
        %3998 = vmatpush.msra.mxu0 %v3915
        %3999 = vmatpush.msra.mxu0 %v3911
        %4000 = vmatpush.msra.mxu0 %v3907
        %4001 = vmatpush.msra.mxu0 %v3903
        %4002 = vmatmul.f32.gmra.mxu0 %v3896
        %v4003 = vpop.f32.mrf.mxu0
        %v4004 = vadd.f32 0.0, %v4003
        %4005 = vdwg.mxu0
        %4006 = vmatpush.msra.mxu0 %v3964
        %4007 = vmatpush.msra.mxu0 %v3960
        %4008 = vmatpush.msra.mxu0 %v3956
        %4009 = vmatpush.msra.mxu0 %v3952
        %4010 = vmatpush.msra.mxu0 %v3948
        %4011 = vmatpush.msra.mxu0 %v3944
        %4012 = vmatpush.msra.mxu0 %v3940
        %4013 = vmatpush.msra.mxu0 %v3936
        %4014 = vmatpush.msra.mxu0 %v3932
        %4015 = vmatpush.msra.mxu0 %v3928
        %4016 = vmatpush.msra.mxu0 %v3924
        %4017 = vmatpush.msra.mxu0 %v3920
        %4018 = vmatpush.msra.mxu0 %v3916
        %4019 = vmatpush.msra.mxu0 %v3912
        %4020 = vmatpush.msra.mxu0 %v3908
        %4021 = vmatpush.msra.mxu0 %v3904
        %4022 = vmatmul.f32.gmra.mxu0 %v3896
        %v4023 = vpop.f32.mrf.mxu0
        %v4024 = vadd.f32 0.0, %v4023
        %4025 = vdwg.mxu0
        %4026 = vmatpush.msra.mxu0 %v3965
        %4027 = vmatpush.msra.mxu0 %v3961
        %4028 = vmatpush.msra.mxu0 %v3957
        %4029 = vmatpush.msra.mxu0 %v3953
        %4030 = vmatpush.msra.mxu0 %v3949
        %4031 = vmatpush.msra.mxu0 %v3945
        %4032 = vmatpush.msra.mxu0 %v3941
        %4033 = vmatpush.msra.mxu0 %v3937
        %4034 = vmatpush.msra.mxu0 %v3933
        %4035 = vmatpush.msra.mxu0 %v3929
        %4036 = vmatpush.msra.mxu0 %v3925
        %4037 = vmatpush.msra.mxu0 %v3921
        %4038 = vmatpush.msra.mxu0 %v3917
        %4039 = vmatpush.msra.mxu0 %v3913
        %4040 = vmatpush.msra.mxu0 %v3909
        %4041 = vmatpush.msra.mxu0 %v3905
        %4042 = vmatmul.f32.gmra.mxu0 %v3896
        %v4043 = vpop.f32.mrf.mxu0
        %v4044 = vadd.f32 0.0, %v4043
        %4045 = vdwg.mxu0
        %v4050 = vrot.slane %v3984, 6
        %v4051 = vrot.slane %v4004, 6
        %v4052 = vrot.slane %v4024, 6
        %v4053 = vrot.slane %v4044, 6
        %v4058 = vadd.f32 %v3898, %v4050
        %v4059 = vadd.f32 %v3899, %v4051
        %v4060 = vadd.f32 %v3900, %v4052
        %v4061 = vadd.f32 %v3901, %v4053
        %v4062 = vxor.u32 %v4058, 2147483648
        %v4063 = vmul.f32 %v4062, 1.442695
        %v4064 = vpow.pop %v4063
        %v4065 = vadd.f32 %v4064, 1.0
        %v4066 = vrcp.pop %v4065
        %v4067 = vmul.f32 %v4065, %v4066
        %v4068 = vsub.f32 1.0, %v4067
        %v4069 = vmul.f32 %v4066, %v4068
        %v4070 = vadd.f32 %v4066, %v4069
        %vm4071 = vweird.f32 %v4065
        %vm4072 = vweird.f32 %v4066
        %vm4073 = vmor %vm4071, %vm4072
        %v4074 = vsel %vm4073, %v4066, %v4070
        %v4075 = vand.u32 2147483647, %v4065
        %vm4076 = vcmp.eq.f32.partialorder %v4075, 8.507059e+37
        %v4077 = vand.u32 %v4065, 2147483648
        %v4078 = vor.u32 1.1754944e-38, %v4077
        %v4079 = vsel %vm4076, %v4078, %v4074
        %v4080 = vmul.f32 1.0, %v4079
        %v4081 = vxor.u32 %v4059, 2147483648
        %v4082 = vmul.f32 %v4081, 1.442695
        %v4083 = vpow.pop %v4082
        %v4084 = vadd.f32 %v4083, 1.0
        %v4085 = vrcp.pop %v4084
        %v4086 = vmul.f32 %v4084, %v4085
        %v4087 = vsub.f32 1.0, %v4086
        %v4088 = vmul.f32 %v4085, %v4087
        %v4089 = vadd.f32 %v4085, %v4088
        %vm4090 = vweird.f32 %v4084
        %vm4091 = vweird.f32 %v4085
        %vm4092 = vmor %vm4090, %vm4091
        %v4093 = vsel %vm4092, %v4085, %v4089
        %v4094 = vand.u32 2147483647, %v4084
        %vm4095 = vcmp.eq.f32.partialorder %v4094, 8.507059e+37
        %v4096 = vand.u32 %v4084, 2147483648
        %v4097 = vor.u32 1.1754944e-38, %v4096
        %v4098 = vsel %vm4095, %v4097, %v4093
        %v4099 = vmul.f32 1.0, %v4098
        %v4100 = vtanh.pop %v4060
        %v4101 = vxor.u32 %v4061, 2147483648
        %v4102 = vmul.f32 %v4101, 1.442695
        %v4103 = vpow.pop %v4102
        %v4104 = vadd.f32 %v4103, 1.0
        %v4105 = vrcp.pop %v4104
        %v4106 = vmul.f32 %v4104, %v4105
        %v4107 = vsub.f32 1.0, %v4106
        %v4108 = vmul.f32 %v4105, %v4107
        %v4109 = vadd.f32 %v4105, %v4108
        %vm4110 = vweird.f32 %v4104
        %vm4111 = vweird.f32 %v4105
        %vm4112 = vmor %vm4110, %vm4111
        %v4113 = vsel %vm4112, %v4105, %v4109
        %v4114 = vand.u32 2147483647, %v4104
        %vm4115 = vcmp.eq.f32.partialorder %v4114, 8.507059e+37
        %v4116 = vand.u32 %v4104, 2147483648
        %v4117 = vor.u32 1.1754944e-38, %v4116
        %v4118 = vsel %vm4115, %v4117, %v4113
        %v4119 = vmul.f32 1.0, %v4118
        %v4121 = vrot.slane %v3894, 6
        %v4123 = vmul.f32 %v4099, %v4121
        %v4124 = vmul.f32 %v4080, %v4100
        %v4125 = vadd.f32 %v4123, %v4124
        %v4126 = vtanh.pop %v4125
        %v4127 = vmul.f32 %v4119, %v4126
        %4128 = vst [vmem:[%s414 + $0x8] sm:$0xc] %v4127
        %v4129 = vld [vmem:[#allocation2 + $0x20] sm:$0x30]
        %v4130 = vld [vmem:[#allocation2 + $0x28] sm:$0x30]
        %v4131 = vld [vmem:[#allocation2 + $0x30] sm:$0x30]
        %v4132 = vld [vmem:[#allocation2 + $0x38] sm:$0x30]
        %v4133 = vld [vmem:[%s322] sm:$0xff]
        %v4134 = vld [vmem:[%s322 + $0x8] sm:$0xff]
        %v4135 = vld [vmem:[%s322 + $0x10] sm:$0xff]
        %v4136 = vld [vmem:[%s322 + $0x18] sm:$0xff]
        %v4137 = vld [vmem:[%s322 + $0x20] sm:$0xff]
        %v4138 = vld [vmem:[%s322 + $0x28] sm:$0xff]
        %v4139 = vld [vmem:[%s322 + $0x30] sm:$0xff]
        %v4140 = vld [vmem:[%s322 + $0x38] sm:$0xff]
        %v4141 = vld [vmem:[%s322 + $0x40] sm:$0xff]
        %v4142 = vld [vmem:[%s322 + $0x48] sm:$0xff]
        %v4143 = vld [vmem:[%s322 + $0x50] sm:$0xff]
        %v4144 = vld [vmem:[%s322 + $0x58] sm:$0xff]
        %v4145 = vld [vmem:[%s322 + $0x60] sm:$0xff]
        %v4146 = vld [vmem:[%s322 + $0x68] sm:$0xff]
        %v4147 = vld [vmem:[%s322 + $0x70] sm:$0xff]
        %v4148 = vld [vmem:[%s322 + $0x78] sm:$0xff]
        %v4149 = vld [vmem:[%s322 + $0x80] sm:$0xff]
        %v4150 = vld [vmem:[%s322 + $0x88] sm:$0xff]
        %v4151 = vld [vmem:[%s322 + $0x90] sm:$0xff]
        %v4152 = vld [vmem:[%s322 + $0x98] sm:$0xff]
        %v4153 = vld [vmem:[%s322 + $0xa0] sm:$0xff]
        %v4154 = vld [vmem:[%s322 + $0xa8] sm:$0xff]
        %v4155 = vld [vmem:[%s322 + $0xb0] sm:$0xff]
        %v4156 = vld [vmem:[%s322 + $0xb8] sm:$0xff]
        %v4157 = vld [vmem:[%s322 + $0xc0] sm:$0xff]
        %v4158 = vld [vmem:[%s322 + $0xc8] sm:$0xff]
        %v4159 = vld [vmem:[%s322 + $0xd0] sm:$0xff]
        %v4160 = vld [vmem:[%s322 + $0xd8] sm:$0xff]
        %v4161 = vld [vmem:[%s322 + $0xe0] sm:$0xff]
        %v4162 = vld [vmem:[%s322 + $0xe8] sm:$0xff]
        %v4163 = vld [vmem:[%s322 + $0xf0] sm:$0xff]
        %v4164 = vld [vmem:[%s322 + $0xf8] sm:$0xff]
        %v4165 = vld [vmem:[%s322 + $0x100] sm:$0xff]
        %v4166 = vld [vmem:[%s322 + $0x108] sm:$0xff]
        %v4167 = vld [vmem:[%s322 + $0x110] sm:$0xff]
        %v4168 = vld [vmem:[%s322 + $0x118] sm:$0xff]
        %v4169 = vld [vmem:[%s322 + $0x120] sm:$0xff]
        %v4170 = vld [vmem:[%s322 + $0x128] sm:$0xff]
        %v4171 = vld [vmem:[%s322 + $0x130] sm:$0xff]
        %v4172 = vld [vmem:[%s322 + $0x138] sm:$0xff]
        %v4173 = vld [vmem:[%s322 + $0x140] sm:$0xff]
        %v4174 = vld [vmem:[%s322 + $0x148] sm:$0xff]
        %v4175 = vld [vmem:[%s322 + $0x150] sm:$0xff]
        %v4176 = vld [vmem:[%s322 + $0x158] sm:$0xff]
        %v4177 = vld [vmem:[%s322 + $0x160] sm:$0xff]
        %v4178 = vld [vmem:[%s322 + $0x168] sm:$0xff]
        %v4179 = vld [vmem:[%s322 + $0x170] sm:$0xff]
        %v4180 = vld [vmem:[%s322 + $0x178] sm:$0xff]
        %v4181 = vld [vmem:[%s322 + $0x180] sm:$0xff]
        %v4182 = vld [vmem:[%s322 + $0x188] sm:$0xff]
        %v4183 = vld [vmem:[%s322 + $0x190] sm:$0xff]
        %v4184 = vld [vmem:[%s322 + $0x198] sm:$0xff]
        %v4185 = vld [vmem:[%s322 + $0x1a0] sm:$0xff]
        %v4186 = vld [vmem:[%s322 + $0x1a8] sm:$0xff]
        %v4187 = vld [vmem:[%s322 + $0x1b0] sm:$0xff]
        %v4188 = vld [vmem:[%s322 + $0x1b8] sm:$0xff]
        %v4189 = vld [vmem:[%s322 + $0x1c0] sm:$0xff]
        %v4190 = vld [vmem:[%s322 + $0x1c8] sm:$0xff]
        %v4191 = vld [vmem:[%s322 + $0x1d0] sm:$0xff]
        %v4192 = vld [vmem:[%s322 + $0x1d8] sm:$0xff]
        %v4193 = vld [vmem:[%s322 + $0x1e0] sm:$0xff]
        %v4194 = vld [vmem:[%s322 + $0x1e8] sm:$0xff]
        %v4195 = vld [vmem:[%s322 + $0x1f0] sm:$0xff]
        %v4196 = vld [vmem:[%s322 + $0x1f8] sm:$0xff]
        %v4198 = vrot.slane %v4127, 2
        %4200 = vmatpush.msra.mxu0 %v4193
        %4201 = vmatpush.msra.mxu0 %v4189
        %4202 = vmatpush.msra.mxu0 %v4185
        %4203 = vmatpush.msra.mxu0 %v4181
        %4204 = vmatpush.msra.mxu0 %v4177
        %4205 = vmatpush.msra.mxu0 %v4173
        %4206 = vmatpush.msra.mxu0 %v4169
        %4207 = vmatpush.msra.mxu0 %v4165
        %4208 = vmatpush.msra.mxu0 %v4161
        %4209 = vmatpush.msra.mxu0 %v4157
        %4210 = vmatpush.msra.mxu0 %v4153
        %4211 = vmatpush.msra.mxu0 %v4149
        %4212 = vmatpush.msra.mxu0 %v4145
        %4213 = vmatpush.msra.mxu0 %v4141
        %4214 = vmatpush.msra.mxu0 %v4137
        %4215 = vmatpush.msra.mxu0 %v4133
        %4216 = vmatmul.f32.gmra.mxu0 %v4198
        %v4217 = vpop.f32.mrf.mxu0
        %v4218 = vadd.f32 0.0, %v4217
        %4219 = vdwg.mxu0
        %4220 = vmatpush.msra.mxu0 %v4194
        %4221 = vmatpush.msra.mxu0 %v4190
        %4222 = vmatpush.msra.mxu0 %v4186
        %4223 = vmatpush.msra.mxu0 %v4182
        %4224 = vmatpush.msra.mxu0 %v4178
        %4225 = vmatpush.msra.mxu0 %v4174
        %4226 = vmatpush.msra.mxu0 %v4170
        %4227 = vmatpush.msra.mxu0 %v4166
        %4228 = vmatpush.msra.mxu0 %v4162
        %4229 = vmatpush.msra.mxu0 %v4158
        %4230 = vmatpush.msra.mxu0 %v4154
        %4231 = vmatpush.msra.mxu0 %v4150
        %4232 = vmatpush.msra.mxu0 %v4146
        %4233 = vmatpush.msra.mxu0 %v4142
        %4234 = vmatpush.msra.mxu0 %v4138
        %4235 = vmatpush.msra.mxu0 %v4134
        %4236 = vmatmul.f32.gmra.mxu0 %v4198
        %v4237 = vpop.f32.mrf.mxu0
        %v4238 = vadd.f32 0.0, %v4237
        %4239 = vdwg.mxu0
        %4240 = vmatpush.msra.mxu0 %v4195
        %4241 = vmatpush.msra.mxu0 %v4191
        %4242 = vmatpush.msra.mxu0 %v4187
        %4243 = vmatpush.msra.mxu0 %v4183
        %4244 = vmatpush.msra.mxu0 %v4179
        %4245 = vmatpush.msra.mxu0 %v4175
        %4246 = vmatpush.msra.mxu0 %v4171
        %4247 = vmatpush.msra.mxu0 %v4167
        %4248 = vmatpush.msra.mxu0 %v4163
        %4249 = vmatpush.msra.mxu0 %v4159
        %4250 = vmatpush.msra.mxu0 %v4155
        %4251 = vmatpush.msra.mxu0 %v4151
        %4252 = vmatpush.msra.mxu0 %v4147
        %4253 = vmatpush.msra.mxu0 %v4143
        %4254 = vmatpush.msra.mxu0 %v4139
        %4255 = vmatpush.msra.mxu0 %v4135
        %4256 = vmatmul.f32.gmra.mxu0 %v4198
        %v4257 = vpop.f32.mrf.mxu0
        %v4258 = vadd.f32 0.0, %v4257
        %4259 = vdwg.mxu0
        %4260 = vmatpush.msra.mxu0 %v4196
        %4261 = vmatpush.msra.mxu0 %v4192
        %4262 = vmatpush.msra.mxu0 %v4188
        %4263 = vmatpush.msra.mxu0 %v4184
        %4264 = vmatpush.msra.mxu0 %v4180
        %4265 = vmatpush.msra.mxu0 %v4176
        %4266 = vmatpush.msra.mxu0 %v4172
        %4267 = vmatpush.msra.mxu0 %v4168
        %4268 = vmatpush.msra.mxu0 %v4164
        %4269 = vmatpush.msra.mxu0 %v4160
        %4270 = vmatpush.msra.mxu0 %v4156
        %4271 = vmatpush.msra.mxu0 %v4152
        %4272 = vmatpush.msra.mxu0 %v4148
        %4273 = vmatpush.msra.mxu0 %v4144
        %4274 = vmatpush.msra.mxu0 %v4140
        %4275 = vmatpush.msra.mxu0 %v4136
        %4276 = vmatmul.f32.gmra.mxu0 %v4198
        %v4277 = vpop.f32.mrf.mxu0
        %v4278 = vadd.f32 0.0, %v4277
        %4279 = vdwg.mxu0
        %v4284 = vrot.slane %v4218, 4
        %v4285 = vrot.slane %v4238, 4
        %v4286 = vrot.slane %v4258, 4
        %v4287 = vrot.slane %v4278, 4
        %v4292 = vadd.f32 %v4129, %v4284
        %v4293 = vadd.f32 %v4130, %v4285
        %v4294 = vadd.f32 %v4131, %v4286
        %v4295 = vadd.f32 %v4132, %v4287
        %v4296 = vxor.u32 %v4292, 2147483648
        %v4297 = vmul.f32 %v4296, 1.442695
        %v4298 = vpow.pop %v4297
        %v4299 = vadd.f32 %v4298, 1.0
        %v4300 = vrcp.pop %v4299
        %v4301 = vmul.f32 %v4299, %v4300
        %v4302 = vsub.f32 1.0, %v4301
        %v4303 = vmul.f32 %v4300, %v4302
        %v4304 = vadd.f32 %v4300, %v4303
        %vm4305 = vweird.f32 %v4299
        %vm4306 = vweird.f32 %v4300
        %vm4307 = vmor %vm4305, %vm4306
        %v4308 = vsel %vm4307, %v4300, %v4304
        %v4309 = vand.u32 2147483647, %v4299
        %vm4310 = vcmp.eq.f32.partialorder %v4309, 8.507059e+37
        %v4311 = vand.u32 %v4299, 2147483648
        %v4312 = vor.u32 1.1754944e-38, %v4311
        %v4313 = vsel %vm4310, %v4312, %v4308
        %v4314 = vmul.f32 1.0, %v4313
        %v4315 = vxor.u32 %v4293, 2147483648
        %v4316 = vmul.f32 %v4315, 1.442695
        %v4317 = vpow.pop %v4316
        %v4318 = vadd.f32 %v4317, 1.0
        %v4319 = vrcp.pop %v4318
        %v4320 = vmul.f32 %v4318, %v4319
        %v4321 = vsub.f32 1.0, %v4320
        %v4322 = vmul.f32 %v4319, %v4321
        %v4323 = vadd.f32 %v4319, %v4322
        %vm4324 = vweird.f32 %v4318
        %vm4325 = vweird.f32 %v4319
        %vm4326 = vmor %vm4324, %vm4325
        %v4327 = vsel %vm4326, %v4319, %v4323
        %v4328 = vand.u32 2147483647, %v4318
        %vm4329 = vcmp.eq.f32.partialorder %v4328, 8.507059e+37
        %v4330 = vand.u32 %v4318, 2147483648
        %v4331 = vor.u32 1.1754944e-38, %v4330
        %v4332 = vsel %vm4329, %v4331, %v4327
        %v4333 = vmul.f32 1.0, %v4332
        %v4334 = vtanh.pop %v4294
        %v4335 = vxor.u32 %v4295, 2147483648
        %v4336 = vmul.f32 %v4335, 1.442695
        %v4337 = vpow.pop %v4336
        %v4338 = vadd.f32 %v4337, 1.0
        %v4339 = vrcp.pop %v4338
        %v4340 = vmul.f32 %v4338, %v4339
        %v4341 = vsub.f32 1.0, %v4340
        %v4342 = vmul.f32 %v4339, %v4341
        %v4343 = vadd.f32 %v4339, %v4342
        %vm4344 = vweird.f32 %v4338
        %vm4345 = vweird.f32 %v4339
        %vm4346 = vmor %vm4344, %vm4345
        %v4347 = vsel %vm4346, %v4339, %v4343
        %v4348 = vand.u32 2147483647, %v4338
        %vm4349 = vcmp.eq.f32.partialorder %v4348, 8.507059e+37
        %v4350 = vand.u32 %v4338, 2147483648
        %v4351 = vor.u32 1.1754944e-38, %v4350
        %v4352 = vsel %vm4349, %v4351, %v4347
        %v4353 = vmul.f32 1.0, %v4352
        %v4355 = vrot.slane %v4125, 6
        %v4357 = vmul.f32 %v4333, %v4355
        %v4358 = vmul.f32 %v4314, %v4334
        %v4359 = vadd.f32 %v4357, %v4358
        %v4360 = vtanh.pop %v4359
        %v4361 = vmul.f32 %v4353, %v4360
        %4362 = vst [vmem:[%s414 + $0x8] sm:$0x30] %v4361
        %v4363 = vld [vmem:[#allocation2 + $0x20] sm:$0xc0]
        %v4364 = vld [vmem:[#allocation2 + $0x28] sm:$0xc0]
        %v4365 = vld [vmem:[#allocation2 + $0x30] sm:$0xc0]
        %v4366 = vld [vmem:[#allocation2 + $0x38] sm:$0xc0]
        %v4367 = vld [vmem:[%s322] sm:$0xff]
        %v4368 = vld [vmem:[%s322 + $0x8] sm:$0xff]
        %v4369 = vld [vmem:[%s322 + $0x10] sm:$0xff]
        %v4370 = vld [vmem:[%s322 + $0x18] sm:$0xff]
        %v4371 = vld [vmem:[%s322 + $0x20] sm:$0xff]
        %v4372 = vld [vmem:[%s322 + $0x28] sm:$0xff]
        %v4373 = vld [vmem:[%s322 + $0x30] sm:$0xff]
        %v4374 = vld [vmem:[%s322 + $0x38] sm:$0xff]
        %v4375 = vld [vmem:[%s322 + $0x40] sm:$0xff]
        %v4376 = vld [vmem:[%s322 + $0x48] sm:$0xff]
        %v4377 = vld [vmem:[%s322 + $0x50] sm:$0xff]
        %v4378 = vld [vmem:[%s322 + $0x58] sm:$0xff]
        %v4379 = vld [vmem:[%s322 + $0x60] sm:$0xff]
        %v4380 = vld [vmem:[%s322 + $0x68] sm:$0xff]
        %v4381 = vld [vmem:[%s322 + $0x70] sm:$0xff]
        %v4382 = vld [vmem:[%s322 + $0x78] sm:$0xff]
        %v4383 = vld [vmem:[%s322 + $0x80] sm:$0xff]
        %v4384 = vld [vmem:[%s322 + $0x88] sm:$0xff]
        %v4385 = vld [vmem:[%s322 + $0x90] sm:$0xff]
        %v4386 = vld [vmem:[%s322 + $0x98] sm:$0xff]
        %v4387 = vld [vmem:[%s322 + $0xa0] sm:$0xff]
        %v4388 = vld [vmem:[%s322 + $0xa8] sm:$0xff]
        %v4389 = vld [vmem:[%s322 + $0xb0] sm:$0xff]
        %v4390 = vld [vmem:[%s322 + $0xb8] sm:$0xff]
        %v4391 = vld [vmem:[%s322 + $0xc0] sm:$0xff]
        %v4392 = vld [vmem:[%s322 + $0xc8] sm:$0xff]
        %v4393 = vld [vmem:[%s322 + $0xd0] sm:$0xff]
        %v4394 = vld [vmem:[%s322 + $0xd8] sm:$0xff]
        %v4395 = vld [vmem:[%s322 + $0xe0] sm:$0xff]
        %v4396 = vld [vmem:[%s322 + $0xe8] sm:$0xff]
        %v4397 = vld [vmem:[%s322 + $0xf0] sm:$0xff]
        %v4398 = vld [vmem:[%s322 + $0xf8] sm:$0xff]
        %v4399 = vld [vmem:[%s322 + $0x100] sm:$0xff]
        %v4400 = vld [vmem:[%s322 + $0x108] sm:$0xff]
        %v4401 = vld [vmem:[%s322 + $0x110] sm:$0xff]
        %v4402 = vld [vmem:[%s322 + $0x118] sm:$0xff]
        %v4403 = vld [vmem:[%s322 + $0x120] sm:$0xff]
        %v4404 = vld [vmem:[%s322 + $0x128] sm:$0xff]
        %v4405 = vld [vmem:[%s322 + $0x130] sm:$0xff]
        %v4406 = vld [vmem:[%s322 + $0x138] sm:$0xff]
        %v4407 = vld [vmem:[%s322 + $0x140] sm:$0xff]
        %v4408 = vld [vmem:[%s322 + $0x148] sm:$0xff]
        %v4409 = vld [vmem:[%s322 + $0x150] sm:$0xff]
        %v4410 = vld [vmem:[%s322 + $0x158] sm:$0xff]
        %v4411 = vld [vmem:[%s322 + $0x160] sm:$0xff]
        %v4412 = vld [vmem:[%s322 + $0x168] sm:$0xff]
        %v4413 = vld [vmem:[%s322 + $0x170] sm:$0xff]
        %v4414 = vld [vmem:[%s322 + $0x178] sm:$0xff]
        %v4415 = vld [vmem:[%s322 + $0x180] sm:$0xff]
        %v4416 = vld [vmem:[%s322 + $0x188] sm:$0xff]
        %v4417 = vld [vmem:[%s322 + $0x190] sm:$0xff]
        %v4418 = vld [vmem:[%s322 + $0x198] sm:$0xff]
        %v4419 = vld [vmem:[%s322 + $0x1a0] sm:$0xff]
        %v4420 = vld [vmem:[%s322 + $0x1a8] sm:$0xff]
        %v4421 = vld [vmem:[%s322 + $0x1b0] sm:$0xff]
        %v4422 = vld [vmem:[%s322 + $0x1b8] sm:$0xff]
        %v4423 = vld [vmem:[%s322 + $0x1c0] sm:$0xff]
        %v4424 = vld [vmem:[%s322 + $0x1c8] sm:$0xff]
        %v4425 = vld [vmem:[%s322 + $0x1d0] sm:$0xff]
        %v4426 = vld [vmem:[%s322 + $0x1d8] sm:$0xff]
        %v4427 = vld [vmem:[%s322 + $0x1e0] sm:$0xff]
        %v4428 = vld [vmem:[%s322 + $0x1e8] sm:$0xff]
        %v4429 = vld [vmem:[%s322 + $0x1f0] sm:$0xff]
        %v4430 = vld [vmem:[%s322 + $0x1f8] sm:$0xff]
        %v4432 = vrot.slane %v4361, 4
        %4434 = vmatpush.msra.mxu0 %v4427
        %4435 = vmatpush.msra.mxu0 %v4423
        %4436 = vmatpush.msra.mxu0 %v4419
        %4437 = vmatpush.msra.mxu0 %v4415
        %4438 = vmatpush.msra.mxu0 %v4411
        %4439 = vmatpush.msra.mxu0 %v4407
        %4440 = vmatpush.msra.mxu0 %v4403
        %4441 = vmatpush.msra.mxu0 %v4399
        %4442 = vmatpush.msra.mxu0 %v4395
        %4443 = vmatpush.msra.mxu0 %v4391
        %4444 = vmatpush.msra.mxu0 %v4387
        %4445 = vmatpush.msra.mxu0 %v4383
        %4446 = vmatpush.msra.mxu0 %v4379
        %4447 = vmatpush.msra.mxu0 %v4375
        %4448 = vmatpush.msra.mxu0 %v4371
        %4449 = vmatpush.msra.mxu0 %v4367
        %4450 = vmatmul.f32.gmra.mxu0 %v4432
        %v4451 = vpop.f32.mrf.mxu0
        %v4452 = vadd.f32 0.0, %v4451
        %4453 = vdwg.mxu0
        %4454 = vmatpush.msra.mxu0 %v4428
        %4455 = vmatpush.msra.mxu0 %v4424
        %4456 = vmatpush.msra.mxu0 %v4420
        %4457 = vmatpush.msra.mxu0 %v4416
        %4458 = vmatpush.msra.mxu0 %v4412
        %4459 = vmatpush.msra.mxu0 %v4408
        %4460 = vmatpush.msra.mxu0 %v4404
        %4461 = vmatpush.msra.mxu0 %v4400
        %4462 = vmatpush.msra.mxu0 %v4396
        %4463 = vmatpush.msra.mxu0 %v4392
        %4464 = vmatpush.msra.mxu0 %v4388
        %4465 = vmatpush.msra.mxu0 %v4384
        %4466 = vmatpush.msra.mxu0 %v4380
        %4467 = vmatpush.msra.mxu0 %v4376
        %4468 = vmatpush.msra.mxu0 %v4372
        %4469 = vmatpush.msra.mxu0 %v4368
        %4470 = vmatmul.f32.gmra.mxu0 %v4432
        %v4471 = vpop.f32.mrf.mxu0
        %v4472 = vadd.f32 0.0, %v4471
        %4473 = vdwg.mxu0
        %4474 = vmatpush.msra.mxu0 %v4429
        %4475 = vmatpush.msra.mxu0 %v4425
        %4476 = vmatpush.msra.mxu0 %v4421
        %4477 = vmatpush.msra.mxu0 %v4417
        %4478 = vmatpush.msra.mxu0 %v4413
        %4479 = vmatpush.msra.mxu0 %v4409
        %4480 = vmatpush.msra.mxu0 %v4405
        %4481 = vmatpush.msra.mxu0 %v4401
        %4482 = vmatpush.msra.mxu0 %v4397
        %4483 = vmatpush.msra.mxu0 %v4393
        %4484 = vmatpush.msra.mxu0 %v4389
        %4485 = vmatpush.msra.mxu0 %v4385
        %4486 = vmatpush.msra.mxu0 %v4381
        %4487 = vmatpush.msra.mxu0 %v4377
        %4488 = vmatpush.msra.mxu0 %v4373
        %4489 = vmatpush.msra.mxu0 %v4369
        %4490 = vmatmul.f32.gmra.mxu0 %v4432
        %v4491 = vpop.f32.mrf.mxu0
        %v4492 = vadd.f32 0.0, %v4491
        %4493 = vdwg.mxu0
        %4494 = vmatpush.msra.mxu0 %v4430
        %4495 = vmatpush.msra.mxu0 %v4426
        %4496 = vmatpush.msra.mxu0 %v4422
        %4497 = vmatpush.msra.mxu0 %v4418
        %4498 = vmatpush.msra.mxu0 %v4414
        %4499 = vmatpush.msra.mxu0 %v4410
        %4500 = vmatpush.msra.mxu0 %v4406
        %4501 = vmatpush.msra.mxu0 %v4402
        %4502 = vmatpush.msra.mxu0 %v4398
        %4503 = vmatpush.msra.mxu0 %v4394
        %4504 = vmatpush.msra.mxu0 %v4390
        %4505 = vmatpush.msra.mxu0 %v4386
        %4506 = vmatpush.msra.mxu0 %v4382
        %4507 = vmatpush.msra.mxu0 %v4378
        %4508 = vmatpush.msra.mxu0 %v4374
        %4509 = vmatpush.msra.mxu0 %v4370
        %4510 = vmatmul.f32.gmra.mxu0 %v4432
        %v4511 = vpop.f32.mrf.mxu0
        %v4512 = vadd.f32 0.0, %v4511
        %4513 = vdwg.mxu0
        %v4518 = vrot.slane %v4452, 2
        %v4519 = vrot.slane %v4472, 2
        %v4520 = vrot.slane %v4492, 2
        %v4521 = vrot.slane %v4512, 2
        %v4526 = vadd.f32 %v4363, %v4518
        %v4527 = vadd.f32 %v4364, %v4519
        %v4528 = vadd.f32 %v4365, %v4520
        %v4529 = vadd.f32 %v4366, %v4521
        %v4530 = vxor.u32 %v4526, 2147483648
        %v4531 = vmul.f32 %v4530, 1.442695
        %v4532 = vpow.pop %v4531
        %v4533 = vadd.f32 %v4532, 1.0
        %v4534 = vrcp.pop %v4533
        %v4535 = vmul.f32 %v4533, %v4534
        %v4536 = vsub.f32 1.0, %v4535
        %v4537 = vmul.f32 %v4534, %v4536
        %v4538 = vadd.f32 %v4534, %v4537
        %vm4539 = vweird.f32 %v4533
        %vm4540 = vweird.f32 %v4534
        %vm4541 = vmor %vm4539, %vm4540
        %v4542 = vsel %vm4541, %v4534, %v4538
        %v4543 = vand.u32 2147483647, %v4533
        %vm4544 = vcmp.eq.f32.partialorder %v4543, 8.507059e+37
        %v4545 = vand.u32 %v4533, 2147483648
        %v4546 = vor.u32 1.1754944e-38, %v4545
        %v4547 = vsel %vm4544, %v4546, %v4542
        %v4548 = vmul.f32 1.0, %v4547
        %v4549 = vxor.u32 %v4527, 2147483648
        %v4550 = vmul.f32 %v4549, 1.442695
        %v4551 = vpow.pop %v4550
        %v4552 = vadd.f32 %v4551, 1.0
        %v4553 = vrcp.pop %v4552
        %v4554 = vmul.f32 %v4552, %v4553
        %v4555 = vsub.f32 1.0, %v4554
        %v4556 = vmul.f32 %v4553, %v4555
        %v4557 = vadd.f32 %v4553, %v4556
        %vm4558 = vweird.f32 %v4552
        %vm4559 = vweird.f32 %v4553
        %vm4560 = vmor %vm4558, %vm4559
        %v4561 = vsel %vm4560, %v4553, %v4557
        %v4562 = vand.u32 2147483647, %v4552
        %vm4563 = vcmp.eq.f32.partialorder %v4562, 8.507059e+37
        %v4564 = vand.u32 %v4552, 2147483648
        %v4565 = vor.u32 1.1754944e-38, %v4564
        %v4566 = vsel %vm4563, %v4565, %v4561
        %v4567 = vmul.f32 1.0, %v4566
        %v4568 = vtanh.pop %v4528
        %v4569 = vxor.u32 %v4529, 2147483648
        %v4570 = vmul.f32 %v4569, 1.442695
        %v4571 = vpow.pop %v4570
        %v4572 = vadd.f32 %v4571, 1.0
        %v4573 = vrcp.pop %v4572
        %v4574 = vmul.f32 %v4572, %v4573
        %v4575 = vsub.f32 1.0, %v4574
        %v4576 = vmul.f32 %v4573, %v4575
        %v4577 = vadd.f32 %v4573, %v4576
        %vm4578 = vweird.f32 %v4572
        %vm4579 = vweird.f32 %v4573
        %vm4580 = vmor %vm4578, %vm4579
        %v4581 = vsel %vm4580, %v4573, %v4577
        %v4582 = vand.u32 2147483647, %v4572
        %vm4583 = vcmp.eq.f32.partialorder %v4582, 8.507059e+37
        %v4584 = vand.u32 %v4572, 2147483648
        %v4585 = vor.u32 1.1754944e-38, %v4584
        %v4586 = vsel %vm4583, %v4585, %v4581
        %v4587 = vmul.f32 1.0, %v4586
        %v4589 = vrot.slane %v4359, 6
        %v4591 = vmul.f32 %v4567, %v4589
        %v4592 = vmul.f32 %v4548, %v4568
        %v4593 = vadd.f32 %v4591, %v4592
        %v4594 = vtanh.pop %v4593
        %v4595 = vmul.f32 %v4587, %v4594
        %4596 = vst [vmem:[%s414 + $0x8] sm:$0xc0] %v4595
        %p4597 = scmp.lt.s32.totalorder %s21, 1
        %s4598 = scalar_select %p4597, %s21, 1
        %s4599 = smul.addr %s4598, 2
        %s4600 = smul.addr %s4599, 8
        %s4601 = scalar_lea.vmem %s7, %s4600
        // Predicated region
        $region53: #{forward.4} parent=47 // pred_check
          %p4602 = pneg %p221
        $region54: #{forward.4} parent=47 // pred_check_branch
          %4604 = sbr.rel (%p4602) target = $region56
        $region55: #{forward.4} parent=47 // pred_region
          _
        $region56: #{forward.4} parent=47 // pred_fallthru
          _
      $region48: #{forward.4} parent=5 // pred_fallthru
        _
      %p4605 = scmp.le.s32.totalorder 2, %s16
      // Predicated region
      $region57: #{forward.4} parent=5 // pred_check
        %p4606 = pneg %p4605
      $region58: #{forward.4} parent=5 // pred_check_branch
        %4608 = sbr.rel (%p4606) target = $region60
      $region59: #{forward.4} parent=5 // pred_region
        %s4609 = ssub.s32 %s16, 2
        // Predicated region
        $region61: #{forward.4} parent=59 // pred_check
          %p4610 = pneg %p227
        $region62: #{forward.4} parent=59 // pred_check_branch
          %4612 = sbr.rel (%p4610) target = $region64
        $region63: #{forward.4} parent=59 // pred_region
          %p4613 = scmp.lt.s32.totalorder %s22, 1
          %s4614 = scalar_select %p4613, %s22, 1
          %s4615 = smul.addr %s4614, 2
          %s4616 = smul.addr %s4615, 8
          %s4617 = scalar_lea.vmem %s7, %s4616
        $region64: #{forward.4} parent=59 // pred_fallthru
          _
      $region60: #{forward.4} parent=5 // pred_fallthru
        _
    $region6: #{forward.4} parent=1 // loop_footer
      %s20 = sadd.s32 1, %s16
    $region7: #{forward.4} parent=1 // loop_footer_branch
      %15 = sbr.rel target = $region3
    $region8: #{forward.4} parent=1 // loop_exit
      _
    %4618 = vsyncpa [#allocation5], 1
    %s4619 = scalar_lea.sflag [#allocation5], 1
    %4620 = vsyncpa %s4619, 1

</llo_original>
